<compile_context>
chip_gen: v5e
topology: v5e:2x2
jax: 0.10.0
libtpu: 0.0.40
codegen_flags: <defaults>
</compile_context>

<pallas_src>
import jax
import jax.numpy as jnp
from jax.experimental import pallas as pl
from jax.experimental.pallas import tpu as pltpu
import numpy as np

# --- module hyper-parameters (from MV_LSTM.__init__) ---
NUM_HIDDEN = 10      # num_hidden
NUM_LAYERS = 5       # num_layers
HP = 128             # per-gate lane-aligned padded hidden width


def mv_lstm_kernel(x_ref,      # (T*B, Hp)       time-major flattened, lane-padded input
                   h0_ref,     # (L, B, Hp)      initial hidden (padded lanes = 0)
                   c0_ref,     # (L, B, Hp)      initial cell   (padded lanes = 0)
                   b_ref,      # (L, 1, 4*Hp)    fused gate bias (i/f/o pre-scaled by 0.5)
                   wlin_ref,   # (Hp, Hp)        Linear weight, only column 0 valid
                   blin_ref,   # (1, Hp)         Linear bias, only column 0 valid
                   wx_hbm,     # (L, Hp, 4*Hp)   input->gate weights, in HBM
                   wh_hbm,     # (L, Hp, 4*Hp)   hidden->gate weights, in HBM
                   out_ref,    # (B, Hp)         padded linear output
                   hN_ref,     # (L, B, Hp)
                   cN_ref,     # (L, B, Hp)
                   wx_buf,     # VMEM (2, Hp, 4*Hp)  double-buffered Wx
                   wh_buf,     # VMEM (2, Hp, 4*Hp)  double-buffered Wh
                   sem):       # DMA sems (2, 2): [0]=Wx, [1]=Wh  x  slot
    L, B, Hp = h0_ref.shape
    T = x_ref.shape[0] // B
    G = 4 * Hp

    def start_w(l, slot):
        pltpu.make_async_copy(wx_hbm.at[l], wx_buf.at[slot], sem.at[0, slot]).start()
        pltpu.make_async_copy(wh_hbm.at[l], wh_buf.at[slot], sem.at[1, slot]).start()

    def wait_wx(l, slot):
        pltpu.make_async_copy(wx_hbm.at[l], wx_buf.at[slot], sem.at[0, slot]).wait()

    def wait_wh(l, slot):
        pltpu.make_async_copy(wh_hbm.at[l], wh_buf.at[slot], sem.at[1, slot]).wait()

    # Prefetch layer 0's weights; layer l+1 streams while layer l computes.
    start_w(0, 0)

    # Layer-0 batched input slab (already flattened + padded wrapper-side).
    xcat = x_ref[...]                               # (T*B, Hp)

    h_last = None
    for l in range(L):                              # static layer loop (L = 5)
        slot = l % 2

        # Batched input projection for all T steps (off the per-step chain),
        # with the fused (pre-scaled) bias folded in once per layer.
        wait_wx(l, slot)
        xproj = (jnp.dot(xcat, wx_buf[slot], preferred_element_type=jnp.float32)
                 + b_ref[l])                        # (T*B, 4*Hp)

        wait_wh(l, slot)
        Wh = wh_buf[slot]                           # (Hp, 4*Hp)
        if l + 1 < L:
            start_w(l + 1, 1 - slot)                # stream next layer's weights

        h = h0_ref[l]                               # (B, Hp)
        c = c0_ref[l]                               # (B, Hp)
        hs = []
        for t in range(T):                          # fully unrolled time loop (T = 8)
            # Per-step recurrence: K=128 matmul, add adjacent to the dot (MRB on v7x).
            z = xproj[t * B:(t + 1) * B, :] + jnp.dot(
                h, Wh, preferred_element_type=jnp.float32)          # (B, 4*Hp)
            # One wide EUP push for all four gates.  i/f/o weights & bias were
            # pre-scaled by 0.5, so sigmoid(z) == 0.5*tanh(z_scaled) + 0.5 exactly.
            tg = jnp.tanh(z)
            i_g = 0.5 * tg[:, 0 * Hp:1 * Hp] + 0.5
            f_g = 0.5 * tg[:, 1 * Hp:2 * Hp] + 0.5
            g_g = tg[:, 2 * Hp:3 * Hp]
            o_g = 0.5 * tg[:, 3 * Hp:4 * Hp] + 0.5
            c = f_g * c + i_g * g_g
            h = o_g * jnp.tanh(c)
            hs.append(h)                            # stays in vregs

        hN_ref[l] = h
        cN_ref[l] = c
        h_last = h
        if l + 1 < L:
            # Next layer's batched input slab: this layer's outputs, carried in
            # vregs (no VMEM ping-pong round-trip between layers).
            xcat = jnp.concatenate(hs, axis=0)      # (T*B, Hp)

    # lstm_out[:, -1, :] of the last layer == its final hidden state.
    # Padded lanes of h_last are exactly zero, so the padded Linear is exact.
    out_ref[...] = (jnp.dot(h_last, wlin_ref[...],
                            preferred_element_type=jnp.float32)
                    + blin_ref[...])


def _pack_params(wih0, wih, whh, b, wlin, blin, F, H, Hp):
    """Pack per-gate weights into separate (L, Hp, 4*Hp) Wx / Wh stacks.

    Column layout: gate g occupies columns [g*Hp, g*Hp + H); rest zero.
    The i/f/o gate columns (and bias) are pre-scaled by 0.5 so the kernel can use
    sigmoid(z) = 0.5*tanh(0.5*z) + 0.5 with a single wide tanh and no pre-scale.
    Padded rows/columns stay exactly zero (keeps padded lanes of h exactly zero).
    """
    L = whh.shape[0]
    Wx = jnp.zeros((L, Hp, 4 * Hp), jnp.float32)
    Wh = jnp.zeros((L, Hp, 4 * Hp), jnp.float32)
    bias = jnp.zeros((L, 1, 4 * Hp), jnp.float32)
    gate_scale = (0.5, 0.5, 1.0, 0.5)               # i, f, g, o
    for l in range(L):
        w_in = wih0 if l == 0 else wih[l - 1]       # (4, in_dim, H)
        in_dim = w_in.shape[1]
        for g in range(4):
            s = gate_scale[g]
            Wx = Wx.at[l, 0:in_dim, g * Hp:g * Hp + H].set(s * w_in[g])
            Wh = Wh.at[l, 0:H, g * Hp:g * Hp + H].set(s * whh[l, g])
            bias = bias.at[l, 0, g * Hp:g * Hp + H].set(s * b[l, g, 0])
    wlin_p = jnp.zeros((Hp, Hp), jnp.float32).at[:H, 0].set(wlin[:, 0])
    blin_p = jnp.zeros((1, Hp), jnp.float32).at[0, 0].set(blin[0, 0])
    return Wx, Wh, bias, wlin_p, blin_p


@jax.jit
def mv_lstm_forward(x, h0, c0, wih0, wih, whh, b, wlin, blin):
    """x: (B, T, F) batch-first (PyTorch convention). Returns (out, hN, cN)."""
    B, T, F = x.shape
    L, _, H = h0.shape
    Hp = HP

    # --- all reshuffling / padding done wrapper-side (XLA), outside the kernel ---
    x_tbf = jnp.transpose(x, (1, 0, 2)).astype(jnp.float32)       # (T, B, F)
    x_flat = x_tbf.reshape(T * B, F)                              # row t*B+b = (t, b)
    x_pad = jnp.zeros((T * B, Hp), jnp.float32).at[:, :F].set(x_flat)
    h0_pad = jnp.zeros((L, B, Hp), jnp.float32).at[:, :, :H].set(h0)
    c0_pad = jnp.zeros((L, B, Hp), jnp.float32).at[:, :, :H].set(c0)
    Wx, Wh, bias, wlin_p, blin_p = _pack_params(wih0, wih, whh, b, wlin, blin, F, H, Hp)

    out_p, hN_p, cN_p = pl.pallas_call(
        mv_lstm_kernel,
        out_shape=(
            jax.ShapeDtypeStruct((B, Hp), jnp.float32),
            jax.ShapeDtypeStruct((L, B, Hp), jnp.float32),
            jax.ShapeDtypeStruct((L, B, Hp), jnp.float32),
        ),
        in_specs=[pl.BlockSpec(memory_space=pltpu.MemorySpace.VMEM)] * 6
                 + [pl.BlockSpec(memory_space=pl.ANY)] * 2,       # Wx, Wh stay in HBM
        out_specs=(pl.BlockSpec(memory_space=pltpu.MemorySpace.VMEM),) * 3,
        scratch_shapes=[
            pltpu.VMEM((2, Hp, 4 * Hp), jnp.float32),             # Wx double buffer
            pltpu.VMEM((2, Hp, 4 * Hp), jnp.float32),             # Wh double buffer
            pltpu.SemaphoreType.DMA((2, 2)),                      # [wx/wh, slot]
        ],
    )(x_pad, h0_pad, c0_pad, bias, wlin_p, blin_p, Wx, Wh)

    # slice the lane padding back off
    return out_p[:, :1], hN_p[:, :, :H], cN_p[:, :, :H]


def ref_forward(x, h0, c0, wih0, wih, whh, b, wlin, blin):
    """Pure-JAX reference of the same math (for correctness check)."""
    B, T, F = x.shape
    L, _, H = h0.shape
    inp = jnp.transpose(x, (1, 0, 2))     # (T, B, F)
    hs, cs = [], []
    for l in range(L):
        w_ih = wih0 if l == 0 else wih[l - 1]
        w_hh = whh[l]
        bl = b[l]
        h, c = h0[l], c0[l]
        outs = []
        for t in range(T):
            xt = inp[t]
            i_g = jax.nn.sigmoid(xt @ w_ih[0] + h @ w_hh[0] + bl[0])
            f_g = jax.nn.sigmoid(xt @ w_ih[1] + h @ w_hh[1] + bl[1])
            g_g = jnp.tanh(xt @ w_ih[2] + h @ w_hh[2] + bl[2])
            o_g = jax.nn.sigmoid(xt @ w_ih[3] + h @ w_hh[3] + bl[3])
            c = f_g * c + i_g * g_g
            h = o_g * jnp.tanh(c)
            outs.append(h)
        inp = jnp.stack(outs)
        hs.append(h)
        cs.append(c)
    out = inp[-1] @ wlin + blin
    return out, jnp.stack(hs), jnp.stack(cs)


if __name__ == "__main__":
    # small, deterministic problem consistent with the module
    B, T, F = 8, 8, 4                  # batch, seq_len (n_timesteps), n_features
    H, L = NUM_HIDDEN, NUM_LAYERS      # 10, 5

    key = jax.random.PRNGKey(0)
    ks = jax.random.split(key, 8)
    k_init = 1.0 / np.sqrt(H)          # PyTorch LSTM/Linear default uniform bound

    x = jax.random.normal(ks[0], (B, T, F), dtype=jnp.float32)
    # init_hidden(batch_size): zeros
    h0 = jnp.zeros((L, B, H), dtype=jnp.float32)
    c0 = jnp.zeros((L, B, H), dtype=jnp.float32)

    # LSTM parameters, pre-split per gate (i, f, g, o), transposed for x @ W
    wih0 = jax.random.uniform(ks[1], (4, F, H), jnp.float32, -k_init, k_init)
    wih = jax.random.uniform(ks[2], (L - 1, 4, H, H), jnp.float32, -k_init, k_init)
    whh = jax.random.uniform(ks[3], (L, 4, H, H), jnp.float32, -k_init, k_init)
    # combined bias (b_ih + b_hh); mathematically identical to PyTorch's two biases
    b = jax.random.uniform(ks[4], (L, 4, 1, H), jnp.float32, -2 * k_init, 2 * k_init)
    # Linear(hidden -> 1)
    wlin = jax.random.uniform(ks[5], (H, 1), jnp.float32, -k_init, k_init)
    blin = jax.random.uniform(ks[6], (1, 1), jnp.float32, -k_init, k_init)

    out, hN, cN = mv_lstm_forward(x, h0, c0, wih0, wih, whh, b, wlin, blin)
    jax.block_until_ready((out, hN, cN))

    # correctness check against pure-JAX reference of the same math
    out_r, hN_r, cN_r = ref_forward(x, h0, c0, wih0, wih, whh, b, wlin, blin)
    np.testing.assert_allclose(np.asarray(out), np.asarray(out_r), rtol=2e-4, atol=2e-5)
    np.testing.assert_allclose(np.asarray(hN), np.asarray(hN_r), rtol=2e-4, atol=2e-5)
    np.testing.assert_allclose(np.asarray(cN), np.asarray(cN_r), rtol=2e-4, atol=2e-5)

    print("KERNEL_OK")
</pallas_src>

<mosaic_0001>
module attributes {stable_mosaic.version = 11 : i64} {
  func.func @mv_lstm_kernel(%arg0: memref<64x128xf32, #tpu.memory_space<vmem>>, %arg1: memref<5x8x128xf32, #tpu.memory_space<vmem>>, %arg2: memref<5x8x128xf32, #tpu.memory_space<vmem>>, %arg3: memref<5x1x512xf32, #tpu.memory_space<vmem>>, %arg4: memref<128x128xf32, #tpu.memory_space<vmem>>, %arg5: memref<1x128xf32, #tpu.memory_space<vmem>>, %arg6: memref<5x128x512xf32, #tpu.memory_space<any>>, %arg7: memref<5x128x512xf32, #tpu.memory_space<any>>, %arg8: memref<8x128xf32, #tpu.memory_space<vmem>>, %arg9: memref<5x8x128xf32, #tpu.memory_space<vmem>>, %arg10: memref<5x8x128xf32, #tpu.memory_space<vmem>>, %arg11: memref<2x128x512xf32, #tpu.memory_space<vmem>>, %arg12: memref<2x128x512xf32, #tpu.memory_space<vmem>>, %arg13: memref<2x2x!tpu.dma_semaphore, #tpu.memory_space<semaphore_mem>>) attributes {dimension_semantics = [], scalar_prefetch = 0 : i64, scratch_operands = 3 : i64, tpu.core_type = #tpu.core_type<tc>} {
    %c0_i32 = arith.constant 0 : i32
    %c0_i32_0 = arith.constant 0 : i32
    %c0_i32_1 = arith.constant 0 : i32
    %c0_i32_2 = arith.constant 0 : i32
    %c0_i32_3 = arith.constant 0 : i32
    %c0_i32_4 = arith.constant 0 : i32
    %0 = tpu.memref_slice %arg6[%c0_i32, %c0_i32_3, %c0_i32_4] : memref<5x128x512xf32, #tpu.memory_space<any>> -> memref<1x128x512xf32, #tpu.memory_space<any>>
    %1 = tpu.memref_squeeze %0 : memref<1x128x512xf32, #tpu.memory_space<any>> -> memref<128x512xf32, #tpu.memory_space<any>>
    %c0_i32_5 = arith.constant 0 : i32
    %c0_i32_6 = arith.constant 0 : i32
    %2 = tpu.memref_slice %arg11[%c0_i32_0, %c0_i32_5, %c0_i32_6] : memref<2x128x512xf32, #tpu.memory_space<vmem>> -> memref<1x128x512xf32, #tpu.memory_space<vmem>>
    %3 = tpu.memref_squeeze %2 : memref<1x128x512xf32, #tpu.memory_space<vmem>> -> memref<128x512xf32, #tpu.memory_space<vmem>>
    %4 = tpu.memref_slice %arg13[%c0_i32_1, %c0_i32_2] : memref<2x2x!tpu.dma_semaphore, #tpu.memory_space<semaphore_mem>> -> memref<1x1x!tpu.dma_semaphore, #tpu.memory_space<semaphore_mem>>
    %5 = tpu.memref_squeeze %4 : memref<1x1x!tpu.dma_semaphore, #tpu.memory_space<semaphore_mem>> -> memref<!tpu.dma_semaphore, #tpu.memory_space<semaphore_mem>>
    tpu.enqueue_dma source(%1 : memref<128x512xf32, #tpu.memory_space<any>>) target(%3 : memref<128x512xf32, #tpu.memory_space<vmem>>) target_semaphore(%5 : memref<!tpu.dma_semaphore, #tpu.memory_space<semaphore_mem>>)
    %c0_i32_7 = arith.constant 0 : i32
    %c0_i32_8 = arith.constant 0 : i32
    %c1_i32 = arith.constant 1 : i32
    %c0_i32_9 = arith.constant 0 : i32
    %c0_i32_10 = arith.constant 0 : i32
    %c0_i32_11 = arith.constant 0 : i32
    %6 = tpu.memref_slice %arg7[%c0_i32_7, %c0_i32_10, %c0_i32_11] : memref<5x128x512xf32, #tpu.memory_space<any>> -> memref<1x128x512xf32, #tpu.memory_space<any>>
    %7 = tpu.memref_squeeze %6 : memref<1x128x512xf32, #tpu.memory_space<any>> -> memref<128x512xf32, #tpu.memory_space<any>>
    %c0_i32_12 = arith.constant 0 : i32
    %c0_i32_13 = arith.constant 0 : i32
    %8 = tpu.memref_slice %arg12[%c0_i32_8, %c0_i32_12, %c0_i32_13] : memref<2x128x512xf32, #tpu.memory_space<vmem>> -> memref<1x128x512xf32, #tpu.memory_space<vmem>>
    %9 = tpu.memref_squeeze %8 : memref<1x128x512xf32, #tpu.memory_space<vmem>> -> memref<128x512xf32, #tpu.memory_space<vmem>>
    %10 = tpu.memref_slice %arg13[%c1_i32, %c0_i32_9] : memref<2x2x!tpu.dma_semaphore, #tpu.memory_space<semaphore_mem>> -> memref<1x1x!tpu.dma_semaphore, #tpu.memory_space<semaphore_mem>>
    %11 = tpu.memref_squeeze %10 : memref<1x1x!tpu.dma_semaphore, #tpu.memory_space<semaphore_mem>> -> memref<!tpu.dma_semaphore, #tpu.memory_space<semaphore_mem>>
    tpu.enqueue_dma source(%7 : memref<128x512xf32, #tpu.memory_space<any>>) target(%9 : memref<128x512xf32, #tpu.memory_space<vmem>>) target_semaphore(%11 : memref<!tpu.dma_semaphore, #tpu.memory_space<semaphore_mem>>)
    %c0 = arith.constant 0 : index
    %c0_14 = arith.constant 0 : index
    %12 = vector.load %arg0[%c0, %c0_14] : memref<64x128xf32, #tpu.memory_space<vmem>>, vector<64x128xf32>
    %c0_i32_15 = arith.constant 0 : i32
    %c0_i32_16 = arith.constant 0 : i32
    %c0_i32_17 = arith.constant 0 : i32
    %c0_i32_18 = arith.constant 0 : i32
    %c0_i32_19 = arith.constant 0 : i32
    %c0_i32_20 = arith.constant 0 : i32
    %13 = tpu.memref_slice %arg6[%c0_i32_15, %c0_i32_19, %c0_i32_20] : memref<5x128x512xf32, #tpu.memory_space<any>> -> memref<1x128x512xf32, #tpu.memory_space<any>>
    %14 = tpu.memref_squeeze %13 : memref<1x128x512xf32, #tpu.memory_space<any>> -> memref<128x512xf32, #tpu.memory_space<any>>
    %c0_i32_21 = arith.constant 0 : i32
    %c0_i32_22 = arith.constant 0 : i32
    %15 = tpu.memref_slice %arg11[%c0_i32_16, %c0_i32_21, %c0_i32_22] : memref<2x128x512xf32, #tpu.memory_space<vmem>> -> memref<1x128x512xf32, #tpu.memory_space<vmem>>
    %16 = tpu.memref_squeeze %15 : memref<1x128x512xf32, #tpu.memory_space<vmem>> -> memref<128x512xf32, #tpu.memory_space<vmem>>
    %17 = tpu.memref_slice %arg13[%c0_i32_17, %c0_i32_18] : memref<2x2x!tpu.dma_semaphore, #tpu.memory_space<semaphore_mem>> -> memref<1x1x!tpu.dma_semaphore, #tpu.memory_space<semaphore_mem>>
    %18 = tpu.memref_squeeze %17 : memref<1x1x!tpu.dma_semaphore, #tpu.memory_space<semaphore_mem>> -> memref<!tpu.dma_semaphore, #tpu.memory_space<semaphore_mem>>
    tpu.wait_dma2 semaphore(%18 : memref<!tpu.dma_semaphore, #tpu.memory_space<semaphore_mem>>) src(%14 : memref<128x512xf32, #tpu.memory_space<any>>) dst(%16 : memref<128x512xf32, #tpu.memory_space<vmem>>)
    %c0_23 = arith.constant 0 : index
    %c0_24 = arith.constant 0 : index
    %c0_25 = arith.constant 0 : index
    %19 = vector.load %arg11[%c0_23, %c0_24, %c0_25] : memref<2x128x512xf32, #tpu.memory_space<vmem>>, vector<1x128x512xf32>
    %20 = vector.shape_cast %19 : vector<1x128x512xf32> to vector<128x512xf32>
    %cst = arith.constant dense<0.000000e+00> : vector<64x512xf32>
    %21 = tpu.matmul %12, %20, %cst {dimension_numbers = #tpu.dot_dimension_numbers<[1], [0], [0], [1], [0, 0, 1, 1], [], []>} : vector<64x128xf32>, vector<128x512xf32>, vector<64x512xf32> -> vector<64x512xf32>
    %c0_26 = arith.constant 0 : index
    %c0_27 = arith.constant 0 : index
    %c0_28 = arith.constant 0 : index
    %22 = vector.load %arg3[%c0_26, %c0_27, %c0_28] : memref<5x1x512xf32, #tpu.memory_space<vmem>>, vector<1x1x512xf32>
    %23 = vector.shape_cast %22 : vector<1x1x512xf32> to vector<1x512xf32>
    %24 = vector.broadcast %23 : vector<1x512xf32> to vector<64x512xf32>
    %25 = arith.addf %21, %24 : vector<64x512xf32>
    %c0_i32_29 = arith.constant 0 : i32
    %c0_i32_30 = arith.constant 0 : i32
    %c1_i32_31 = arith.constant 1 : i32
    %c0_i32_32 = arith.constant 0 : i32
    %c0_i32_33 = arith.constant 0 : i32
    %c0_i32_34 = arith.constant 0 : i32
    %26 = tpu.memref_slice %arg7[%c0_i32_29, %c0_i32_33, %c0_i32_34] : memref<5x128x512xf32, #tpu.memory_space<any>> -> memref<1x128x512xf32, #tpu.memory_space<any>>
    %27 = tpu.memref_squeeze %26 : memref<1x128x512xf32, #tpu.memory_space<any>> -> memref<128x512xf32, #tpu.memory_space<any>>
    %c0_i32_35 = arith.constant 0 : i32
    %c0_i32_36 = arith.constant 0 : i32
    %28 = tpu.memref_slice %arg12[%c0_i32_30, %c0_i32_35, %c0_i32_36] : memref<2x128x512xf32, #tpu.memory_space<vmem>> -> memref<1x128x512xf32, #tpu.memory_space<vmem>>
    %29 = tpu.memref_squeeze %28 : memref<1x128x512xf32, #tpu.memory_space<vmem>> -> memref<128x512xf32, #tpu.memory_space<vmem>>
    %30 = tpu.memref_slice %arg13[%c1_i32_31, %c0_i32_32] : memref<2x2x!tpu.dma_semaphore, #tpu.memory_space<semaphore_mem>> -> memref<1x1x!tpu.dma_semaphore, #tpu.memory_space<semaphore_mem>>
    %31 = tpu.memref_squeeze %30 : memref<1x1x!tpu.dma_semaphore, #tpu.memory_space<semaphore_mem>> -> memref<!tpu.dma_semaphore, #tpu.memory_space<semaphore_mem>>
    tpu.wait_dma2 semaphore(%31 : memref<!tpu.dma_semaphore, #tpu.memory_space<semaphore_mem>>) src(%27 : memref<128x512xf32, #tpu.memory_space<any>>) dst(%29 : memref<128x512xf32, #tpu.memory_space<vmem>>)
    %c0_37 = arith.constant 0 : index
    %c0_38 = arith.constant 0 : index
    %c0_39 = arith.constant 0 : index
    %32 = vector.load %arg12[%c0_37, %c0_38, %c0_39] : memref<2x128x512xf32, #tpu.memory_space<vmem>>, vector<1x128x512xf32>
    %33 = vector.shape_cast %32 : vector<1x128x512xf32> to vector<128x512xf32>
    %c1_i32_40 = arith.constant 1 : i32
    %c1_i32_41 = arith.constant 1 : i32
    %c0_i32_42 = arith.constant 0 : i32
    %c1_i32_43 = arith.constant 1 : i32
    %c0_i32_44 = arith.constant 0 : i32
    %c0_i32_45 = arith.constant 0 : i32
    %34 = tpu.memref_slice %arg6[%c1_i32_40, %c0_i32_44, %c0_i32_45] : memref<5x128x512xf32, #tpu.memory_space<any>> -> memref<1x128x512xf32, #tpu.memory_space<any>>
    %35 = tpu.memref_squeeze %34 : memref<1x128x512xf32, #tpu.memory_space<any>> -> memref<128x512xf32, #tpu.memory_space<any>>
    %c0_i32_46 = arith.constant 0 : i32
    %c0_i32_47 = arith.constant 0 : i32
    %36 = tpu.memref_slice %arg11[%c1_i32_41, %c0_i32_46, %c0_i32_47] : memref<2x128x512xf32, #tpu.memory_space<vmem>> -> memref<1x128x512xf32, #tpu.memory_space<vmem>>
    %37 = tpu.memref_squeeze %36 : memref<1x128x512xf32, #tpu.memory_space<vmem>> -> memref<128x512xf32, #tpu.memory_space<vmem>>
    %38 = tpu.memref_slice %arg13[%c0_i32_42, %c1_i32_43] : memref<2x2x!tpu.dma_semaphore, #tpu.memory_space<semaphore_mem>> -> memref<1x1x!tpu.dma_semaphore, #tpu.memory_space<semaphore_mem>>
    %39 = tpu.memref_squeeze %38 : memref<1x1x!tpu.dma_semaphore, #tpu.memory_space<semaphore_mem>> -> memref<!tpu.dma_semaphore, #tpu.memory_space<semaphore_mem>>
    tpu.enqueue_dma source(%35 : memref<128x512xf32, #tpu.memory_space<any>>) target(%37 : memref<128x512xf32, #tpu.memory_space<vmem>>) target_semaphore(%39 : memref<!tpu.dma_semaphore, #tpu.memory_space<semaphore_mem>>)
    %c1_i32_48 = arith.constant 1 : i32
    %c1_i32_49 = arith.constant 1 : i32
    %c1_i32_50 = arith.constant 1 : i32
    %c1_i32_51 = arith.constant 1 : i32
    %c0_i32_52 = arith.constant 0 : i32
    %c0_i32_53 = arith.constant 0 : i32
    %40 = tpu.memref_slice %arg7[%c1_i32_48, %c0_i32_52, %c0_i32_53] : memref<5x128x512xf32, #tpu.memory_space<any>> -> memref<1x128x512xf32, #tpu.memory_space<any>>
    %41 = tpu.memref_squeeze %40 : memref<1x128x512xf32, #tpu.memory_space<any>> -> memref<128x512xf32, #tpu.memory_space<any>>
    %c0_i32_54 = arith.constant 0 : i32
    %c0_i32_55 = arith.constant 0 : i32
    %42 = tpu.memref_slice %arg12[%c1_i32_49, %c0_i32_54, %c0_i32_55] : memref<2x128x512xf32, #tpu.memory_space<vmem>> -> memref<1x128x512xf32, #tpu.memory_space<vmem>>
    %43 = tpu.memref_squeeze %42 : memref<1x128x512xf32, #tpu.memory_space<vmem>> -> memref<128x512xf32, #tpu.memory_space<vmem>>
    %44 = tpu.memref_slice %arg13[%c1_i32_50, %c1_i32_51] : memref<2x2x!tpu.dma_semaphore, #tpu.memory_space<semaphore_mem>> -> memref<1x1x!tpu.dma_semaphore, #tpu.memory_space<semaphore_mem>>
    %45 = tpu.memref_squeeze %44 : memref<1x1x!tpu.dma_semaphore, #tpu.memory_space<semaphore_mem>> -> memref<!tpu.dma_semaphore, #tpu.memory_space<semaphore_mem>>
    tpu.enqueue_dma source(%41 : memref<128x512xf32, #tpu.memory_space<any>>) target(%43 : memref<128x512xf32, #tpu.memory_space<vmem>>) target_semaphore(%45 : memref<!tpu.dma_semaphore, #tpu.memory_space<semaphore_mem>>)
    %c0_56 = arith.constant 0 : index
    %c0_57 = arith.constant 0 : index
    %c0_58 = arith.constant 0 : index
    %46 = vector.load %arg1[%c0_56, %c0_57, %c0_58] : memref<5x8x128xf32, #tpu.memory_space<vmem>>, vector<1x8x128xf32>
    %47 = vector.shape_cast %46 : vector<1x8x128xf32> to vector<8x128xf32>
    %c0_59 = arith.constant 0 : index
    %c0_60 = arith.constant 0 : index
    %c0_61 = arith.constant 0 : index
    %48 = vector.load %arg2[%c0_59, %c0_60, %c0_61] : memref<5x8x128xf32, #tpu.memory_space<vmem>>, vector<1x8x128xf32>
    %49 = vector.shape_cast %48 : vector<1x8x128xf32> to vector<8x128xf32>
    %50 = vector.extract_strided_slice %25 {offsets = [0, 0], sizes = [8, 512], strides = [1, 1]} : vector<64x512xf32> to vector<8x512xf32>
    %cst_62 = arith.constant dense<0.000000e+00> : vector<8x512xf32>
    %51 = tpu.matmul %47, %33, %cst_62 {dimension_numbers = #tpu.dot_dimension_numbers<[1], [0], [0], [1], [0, 0, 1, 1], [], []>} : vector<8x128xf32>, vector<128x512xf32>, vector<8x512xf32> -> vector<8x512xf32>
    %52 = arith.addf %50, %51 : vector<8x512xf32>
    %53 = math.tanh %52 : vector<8x512xf32>
    %54 = vector.extract_strided_slice %53 {offsets = [0, 0], sizes = [8, 128], strides = [1, 1]} : vector<8x512xf32> to vector<8x128xf32>
    %cst_63 = arith.constant 5.000000e-01 : f32
    %55 = vector.broadcast %cst_63 : f32 to vector<8x128xf32>
    %56 = arith.mulf %55, %54 : vector<8x128xf32>
    %cst_64 = arith.constant 5.000000e-01 : f32
    %57 = vector.broadcast %cst_64 : f32 to vector<8x128xf32>
    %58 = arith.addf %56, %57 : vector<8x128xf32>
    %59 = vector.extract_strided_slice %53 {offsets = [0, 128], sizes = [8, 128], strides = [1, 1]} : vector<8x512xf32> to vector<8x128xf32>
    %cst_65 = arith.constant 5.000000e-01 : f32
    %60 = vector.broadcast %cst_65 : f32 to vector<8x128xf32>
    %61 = arith.mulf %60, %59 : vector<8x128xf32>
    %cst_66 = arith.constant 5.000000e-01 : f32
    %62 = vector.broadcast %cst_66 : f32 to vector<8x128xf32>
    %63 = arith.addf %61, %62 : vector<8x128xf32>
    %64 = vector.extract_strided_slice %53 {offsets = [0, 256], sizes = [8, 128], strides = [1, 1]} : vector<8x512xf32> to vector<8x128xf32>
    %65 = vector.extract_strided_slice %53 {offsets = [0, 384], sizes = [8, 128], strides = [1, 1]} : vector<8x512xf32> to vector<8x128xf32>
    %cst_67 = arith.constant 5.000000e-01 : f32
    %66 = vector.broadcast %cst_67 : f32 to vector<8x128xf32>
    %67 = arith.mulf %66, %65 : vector<8x128xf32>
    %cst_68 = arith.constant 5.000000e-01 : f32
    %68 = vector.broadcast %cst_68 : f32 to vector<8x128xf32>
    %69 = arith.addf %67, %68 : vector<8x128xf32>
    %70 = arith.mulf %63, %49 : vector<8x128xf32>
    %71 = arith.mulf %58, %64 : vector<8x128xf32>
    %72 = arith.addf %70, %71 : vector<8x128xf32>
    %73 = math.tanh %72 : vector<8x128xf32>
    %74 = arith.mulf %69, %73 : vector<8x128xf32>
    %75 = vector.extract_strided_slice %25 {offsets = [8, 0], sizes = [8, 512], strides = [1, 1]} : vector<64x512xf32> to vector<8x512xf32>
    %cst_69 = arith.constant dense<0.000000e+00> : vector<8x512xf32>
    %76 = tpu.matmul %74, %33, %cst_69 {dimension_numbers = #tpu.dot_dimension_numbers<[1], [0], [0], [1], [0, 0, 1, 1], [], []>} : vector<8x128xf32>, vector<128x512xf32>, vector<8x512xf32> -> vector<8x512xf32>
    %77 = arith.addf %75, %76 : vector<8x512xf32>
    %78 = math.tanh %77 : vector<8x512xf32>
    %79 = vector.extract_strided_slice %78 {offsets = [0, 0], sizes = [8, 128], strides = [1, 1]} : vector<8x512xf32> to vector<8x128xf32>
    %cst_70 = arith.constant 5.000000e-01 : f32
    %80 = vector.broadcast %cst_70 : f32 to vector<8x128xf32>
    %81 = arith.mulf %80, %79 : vector<8x128xf32>
    %cst_71 = arith.constant 5.000000e-01 : f32
    %82 = vector.broadcast %cst_71 : f32 to vector<8x128xf32>
    %83 = arith.addf %81, %82 : vector<8x128xf32>
    %84 = vector.extract_strided_slice %78 {offsets = [0, 128], sizes = [8, 128], strides = [1, 1]} : vector<8x512xf32> to vector<8x128xf32>
    %cst_72 = arith.constant 5.000000e-01 : f32
    %85 = vector.broadcast %cst_72 : f32 to vector<8x128xf32>
    %86 = arith.mulf %85, %84 : vector<8x128xf32>
    %cst_73 = arith.constant 5.000000e-01 : f32
    %87 = vector.broadcast %cst_73 : f32 to vector<8x128xf32>
    %88 = arith.addf %86, %87 : vector<8x128xf32>
    %89 = vector.extract_strided_slice %78 {offsets = [0, 256], sizes = [8, 128], strides = [1, 1]} : vector<8x512xf32> to vector<8x128xf32>
    %90 = vector.extract_strided_slice %78 {offsets = [0, 384], sizes = [8, 128], strides = [1, 1]} : vector<8x512xf32> to vector<8x128xf32>
    %cst_74 = arith.constant 5.000000e-01 : f32
    %91 = vector.broadcast %cst_74 : f32 to vector<8x128xf32>
    %92 = arith.mulf %91, %90 : vector<8x128xf32>
    %cst_75 = arith.constant 5.000000e-01 : f32
    %93 = vector.broadcast %cst_75 : f32 to vector<8x128xf32>
    %94 = arith.addf %92, %93 : vector<8x128xf32>
    %95 = arith.mulf %88, %72 : vector<8x128xf32>
    %96 = arith.mulf %83, %89 : vector<8x128xf32>
    %97 = arith.addf %95, %96 : vector<8x128xf32>
    %98 = math.tanh %97 : vector<8x128xf32>
    %99 = arith.mulf %94, %98 : vector<8x128xf32>
    %100 = vector.extract_strided_slice %25 {offsets = [16, 0], sizes = [8, 512], strides = [1, 1]} : vector<64x512xf32> to vector<8x512xf32>
    %cst_76 = arith.constant dense<0.000000e+00> : vector<8x512xf32>
    %101 = tpu.matmul %99, %33, %cst_76 {dimension_numbers = #tpu.dot_dimension_numbers<[1], [0], [0], [1], [0, 0, 1, 1], [], []>} : vector<8x128xf32>, vector<128x512xf32>, vector<8x512xf32> -> vector<8x512xf32>
    %102 = arith.addf %100, %101 : vector<8x512xf32>
    %103 = math.tanh %102 : vector<8x512xf32>
    %104 = vector.extract_strided_slice %103 {offsets = [0, 0], sizes = [8, 128], strides = [1, 1]} : vector<8x512xf32> to vector<8x128xf32>
    %cst_77 = arith.constant 5.000000e-01 : f32
    %105 = vector.broadcast %cst_77 : f32 to vector<8x128xf32>
    %106 = arith.mulf %105, %104 : vector<8x128xf32>
    %cst_78 = arith.constant 5.000000e-01 : f32
    %107 = vector.broadcast %cst_78 : f32 to vector<8x128xf32>
    %108 = arith.addf %106, %107 : vector<8x128xf32>
    %109 = vector.extract_strided_slice %103 {offsets = [0, 128], sizes = [8, 128], strides = [1, 1]} : vector<8x512xf32> to vector<8x128xf32>
    %cst_79 = arith.constant 5.000000e-01 : f32
    %110 = vector.broadcast %cst_79 : f32 to vector<8x128xf32>
    %111 = arith.mulf %110, %109 : vector<8x128xf32>
    %cst_80 = arith.constant 5.000000e-01 : f32
    %112 = vector.broadcast %cst_80 : f32 to vector<8x128xf32>
    %113 = arith.addf %111, %112 : vector<8x128xf32>
    %114 = vector.extract_strided_slice %103 {offsets = [0, 256], sizes = [8, 128], strides = [1, 1]} : vector<8x512xf32> to vector<8x128xf32>
    %115 = vector.extract_strided_slice %103 {offsets = [0, 384], sizes = [8, 128], strides = [1, 1]} : vector<8x512xf32> to vector<8x128xf32>
    %cst_81 = arith.constant 5.000000e-01 : f32
    %116 = vector.broadcast %cst_81 : f32 to vector<8x128xf32>
    %117 = arith.mulf %116, %115 : vector<8x128xf32>
    %cst_82 = arith.constant 5.000000e-01 : f32
    %118 = vector.broadcast %cst_82 : f32 to vector<8x128xf32>
    %119 = arith.addf %117, %118 : vector<8x128xf32>
    %120 = arith.mulf %113, %97 : vector<8x128xf32>
    %121 = arith.mulf %108, %114 : vector<8x128xf32>
    %122 = arith.addf %120, %121 : vector<8x128xf32>
    %123 = math.tanh %122 : vector<8x128xf32>
    %124 = arith.mulf %119, %123 : vector<8x128xf32>
    %125 = vector.extract_strided_slice %25 {offsets = [24, 0], sizes = [8, 512], strides = [1, 1]} : vector<64x512xf32> to vector<8x512xf32>
    %cst_83 = arith.constant dense<0.000000e+00> : vector<8x512xf32>
    %126 = tpu.matmul %124, %33, %cst_83 {dimension_numbers = #tpu.dot_dimension_numbers<[1], [0], [0], [1], [0, 0, 1, 1], [], []>} : vector<8x128xf32>, vector<128x512xf32>, vector<8x512xf32> -> vector<8x512xf32>
    %127 = arith.addf %125, %126 : vector<8x512xf32>
    %128 = math.tanh %127 : vector<8x512xf32>
    %129 = vector.extract_strided_slice %128 {offsets = [0, 0], sizes = [8, 128], strides = [1, 1]} : vector<8x512xf32> to vector<8x128xf32>
    %cst_84 = arith.constant 5.000000e-01 : f32
    %130 = vector.broadcast %cst_84 : f32 to vector<8x128xf32>
    %131 = arith.mulf %130, %129 : vector<8x128xf32>
    %cst_85 = arith.constant 5.000000e-01 : f32
    %132 = vector.broadcast %cst_85 : f32 to vector<8x128xf32>
    %133 = arith.addf %131, %132 : vector<8x128xf32>
    %134 = vector.extract_strided_slice %128 {offsets = [0, 128], sizes = [8, 128], strides = [1, 1]} : vector<8x512xf32> to vector<8x128xf32>
    %cst_86 = arith.constant 5.000000e-01 : f32
    %135 = vector.broadcast %cst_86 : f32 to vector<8x128xf32>
    %136 = arith.mulf %135, %134 : vector<8x128xf32>
    %cst_87 = arith.constant 5.000000e-01 : f32
    %137 = vector.broadcast %cst_87 : f32 to vector<8x128xf32>
    %138 = arith.addf %136, %137 : vector<8x128xf32>
    %139 = vector.extract_strided_slice %128 {offsets = [0, 256], sizes = [8, 128], strides = [1, 1]} : vector<8x512xf32> to vector<8x128xf32>
    %140 = vector.extract_strided_slice %128 {offsets = [0, 384], sizes = [8, 128], strides = [1, 1]} : vector<8x512xf32> to vector<8x128xf32>
    %cst_88 = arith.constant 5.000000e-01 : f32
    %141 = vector.broadcast %cst_88 : f32 to vector<8x128xf32>
    %142 = arith.mulf %141, %140 : vector<8x128xf32>
    %cst_89 = arith.constant 5.000000e-01 : f32
    %143 = vector.broadcast %cst_89 : f32 to vector<8x128xf32>
    %144 = arith.addf %142, %143 : vector<8x128xf32>
    %145 = arith.mulf %138, %122 : vector<8x128xf32>
    %146 = arith.mulf %133, %139 : vector<8x128xf32>
    %147 = arith.addf %145, %146 : vector<8x128xf32>
    %148 = math.tanh %147 : vector<8x128xf32>
    %149 = arith.mulf %144, %148 : vector<8x128xf32>
    %150 = vector.extract_strided_slice %25 {offsets = [32, 0], sizes = [8, 512], strides = [1, 1]} : vector<64x512xf32> to vector<8x512xf32>
    %cst_90 = arith.constant dense<0.000000e+00> : vector<8x512xf32>
    %151 = tpu.matmul %149, %33, %cst_90 {dimension_numbers = #tpu.dot_dimension_numbers<[1], [0], [0], [1], [0, 0, 1, 1], [], []>} : vector<8x128xf32>, vector<128x512xf32>, vector<8x512xf32> -> vector<8x512xf32>
    %152 = arith.addf %150, %151 : vector<8x512xf32>
    %153 = math.tanh %152 : vector<8x512xf32>
    %154 = vector.extract_strided_slice %153 {offsets = [0, 0], sizes = [8, 128], strides = [1, 1]} : vector<8x512xf32> to vector<8x128xf32>
    %cst_91 = arith.constant 5.000000e-01 : f32
    %155 = vector.broadcast %cst_91 : f32 to vector<8x128xf32>
    %156 = arith.mulf %155, %154 : vector<8x128xf32>
    %cst_92 = arith.constant 5.000000e-01 : f32
    %157 = vector.broadcast %cst_92 : f32 to vector<8x128xf32>
    %158 = arith.addf %156, %157 : vector<8x128xf32>
    %159 = vector.extract_strided_slice %153 {offsets = [0, 128], sizes = [8, 128], strides = [1, 1]} : vector<8x512xf32> to vector<8x128xf32>
    %cst_93 = arith.constant 5.000000e-01 : f32
    %160 = vector.broadcast %cst_93 : f32 to vector<8x128xf32>
    %161 = arith.mulf %160, %159 : vector<8x128xf32>
    %cst_94 = arith.constant 5.000000e-01 : f32
    %162 = vector.broadcast %cst_94 : f32 to vector<8x128xf32>
    %163 = arith.addf %161, %162 : vector<8x128xf32>
    %164 = vector.extract_strided_slice %153 {offsets = [0, 256], sizes = [8, 128], strides = [1, 1]} : vector<8x512xf32> to vector<8x128xf32>
    %165 = vector.extract_strided_slice %153 {offsets = [0, 384], sizes = [8, 128], strides = [1, 1]} : vector<8x512xf32> to vector<8x128xf32>
    %cst_95 = arith.constant 5.000000e-01 : f32
    %166 = vector.broadcast %cst_95 : f32 to vector<8x128xf32>
    %167 = arith.mulf %166, %165 : vector<8x128xf32>
    %cst_96 = arith.constant 5.000000e-01 : f32
    %168 = vector.broadcast %cst_96 : f32 to vector<8x128xf32>
    %169 = arith.addf %167, %168 : vector<8x128xf32>
    %170 = arith.mulf %163, %147 : vector<8x128xf32>
    %171 = arith.mulf %158, %164 : vector<8x128xf32>
    %172 = arith.addf %170, %171 : vector<8x128xf32>
    %173 = math.tanh %172 : vector<8x128xf32>
    %174 = arith.mulf %169, %173 : vector<8x128xf32>
    %175 = vector.extract_strided_slice %25 {offsets = [40, 0], sizes = [8, 512], strides = [1, 1]} : vector<64x512xf32> to vector<8x512xf32>
    %cst_97 = arith.constant dense<0.000000e+00> : vector<8x512xf32>
    %176 = tpu.matmul %174, %33, %cst_97 {dimension_numbers = #tpu.dot_dimension_numbers<[1], [0], [0], [1], [0, 0, 1, 1], [], []>} : vector<8x128xf32>, vector<128x512xf32>, vector<8x512xf32> -> vector<8x512xf32>
    %177 = arith.addf %175, %176 : vector<8x512xf32>
    %178 = math.tanh %177 : vector<8x512xf32>
    %179 = vector.extract_strided_slice %178 {offsets = [0, 0], sizes = [8, 128], strides = [1, 1]} : vector<8x512xf32> to vector<8x128xf32>
    %cst_98 = arith.constant 5.000000e-01 : f32
    %180 = vector.broadcast %cst_98 : f32 to vector<8x128xf32>
    %181 = arith.mulf %180, %179 : vector<8x128xf32>
    %cst_99 = arith.constant 5.000000e-01 : f32
    %182 = vector.broadcast %cst_99 : f32 to vector<8x128xf32>
    %183 = arith.addf %181, %182 : vector<8x128xf32>
    %184 = vector.extract_strided_slice %178 {offsets = [0, 128], sizes = [8, 128], strides = [1, 1]} : vector<8x512xf32> to vector<8x128xf32>
    %cst_100 = arith.constant 5.000000e-01 : f32
    %185 = vector.broadcast %cst_100 : f32 to vector<8x128xf32>
    %186 = arith.mulf %185, %184 : vector<8x128xf32>
    %cst_101 = arith.constant 5.000000e-01 : f32
    %187 = vector.broadcast %cst_101 : f32 to vector<8x128xf32>
    %188 = arith.addf %186, %187 : vector<8x128xf32>
    %189 = vector.extract_strided_slice %178 {offsets = [0, 256], sizes = [8, 128], strides = [1, 1]} : vector<8x512xf32> to vector<8x128xf32>
    %190 = vector.extract_strided_slice %178 {offsets = [0, 384], sizes = [8, 128], strides = [1, 1]} : vector<8x512xf32> to vector<8x128xf32>
    %cst_102 = arith.constant 5.000000e-01 : f32
    %191 = vector.broadcast %cst_102 : f32 to vector<8x128xf32>
    %192 = arith.mulf %191, %190 : vector<8x128xf32>
    %cst_103 = arith.constant 5.000000e-01 : f32
    %193 = vector.broadcast %cst_103 : f32 to vector<8x128xf32>
    %194 = arith.addf %192, %193 : vector<8x128xf32>
    %195 = arith.mulf %188, %172 : vector<8x128xf32>
    %196 = arith.mulf %183, %189 : vector<8x128xf32>
    %197 = arith.addf %195, %196 : vector<8x128xf32>
    %198 = math.tanh %197 : vector<8x128xf32>
    %199 = arith.mulf %194, %198 : vector<8x128xf32>
    %200 = vector.extract_strided_slice %25 {offsets = [48, 0], sizes = [8, 512], strides = [1, 1]} : vector<64x512xf32> to vector<8x512xf32>
    %cst_104 = arith.constant dense<0.000000e+00> : vector<8x512xf32>
    %201 = tpu.matmul %199, %33, %cst_104 {dimension_numbers = #tpu.dot_dimension_numbers<[1], [0], [0], [1], [0, 0, 1, 1], [], []>} : vector<8x128xf32>, vector<128x512xf32>, vector<8x512xf32> -> vector<8x512xf32>
    %202 = arith.addf %200, %201 : vector<8x512xf32>
    %203 = math.tanh %202 : vector<8x512xf32>
    %204 = vector.extract_strided_slice %203 {offsets = [0, 0], sizes = [8, 128], strides = [1, 1]} : vector<8x512xf32> to vector<8x128xf32>
    %cst_105 = arith.constant 5.000000e-01 : f32
    %205 = vector.broadcast %cst_105 : f32 to vector<8x128xf32>
    %206 = arith.mulf %205, %204 : vector<8x128xf32>
    %cst_106 = arith.constant 5.000000e-01 : f32
    %207 = vector.broadcast %cst_106 : f32 to vector<8x128xf32>
    %208 = arith.addf %206, %207 : vector<8x128xf32>
    %209 = vector.extract_strided_slice %203 {offsets = [0, 128], sizes = [8, 128], strides = [1, 1]} : vector<8x512xf32> to vector<8x128xf32>
    %cst_107 = arith.constant 5.000000e-01 : f32
    %210 = vector.broadcast %cst_107 : f32 to vector<8x128xf32>
    %211 = arith.mulf %210, %209 : vector<8x128xf32>
    %cst_108 = arith.constant 5.000000e-01 : f32
    %212 = vector.broadcast %cst_108 : f32 to vector<8x128xf32>
    %213 = arith.addf %211, %212 : vector<8x128xf32>
    %214 = vector.extract_strided_slice %203 {offsets = [0, 256], sizes = [8, 128], strides = [1, 1]} : vector<8x512xf32> to vector<8x128xf32>
    %215 = vector.extract_strided_slice %203 {offsets = [0, 384], sizes = [8, 128], strides = [1, 1]} : vector<8x512xf32> to vector<8x128xf32>
    %cst_109 = arith.constant 5.000000e-01 : f32
    %216 = vector.broadcast %cst_109 : f32 to vector<8x128xf32>
    %217 = arith.mulf %216, %215 : vector<8x128xf32>
    %cst_110 = arith.constant 5.000000e-01 : f32
    %218 = vector.broadcast %cst_110 : f32 to vector<8x128xf32>
    %219 = arith.addf %217, %218 : vector<8x128xf32>
    %220 = arith.mulf %213, %197 : vector<8x128xf32>
    %221 = arith.mulf %208, %214 : vector<8x128xf32>
    %222 = arith.addf %220, %221 : vector<8x128xf32>
    %223 = math.tanh %222 : vector<8x128xf32>
    %224 = arith.mulf %219, %223 : vector<8x128xf32>
    %225 = vector.extract_strided_slice %25 {offsets = [56, 0], sizes = [8, 512], strides = [1, 1]} : vector<64x512xf32> to vector<8x512xf32>
    %cst_111 = arith.constant dense<0.000000e+00> : vector<8x512xf32>
    %226 = tpu.matmul %224, %33, %cst_111 {dimension_numbers = #tpu.dot_dimension_numbers<[1], [0], [0], [1], [0, 0, 1, 1], [], []>} : vector<8x128xf32>, vector<128x512xf32>, vector<8x512xf32> -> vector<8x512xf32>
    %227 = arith.addf %225, %226 : vector<8x512xf32>
    %228 = math.tanh %227 : vector<8x512xf32>
    %229 = vector.extract_strided_slice %228 {offsets = [0, 0], sizes = [8, 128], strides = [1, 1]} : vector<8x512xf32> to vector<8x128xf32>
    %cst_112 = arith.constant 5.000000e-01 : f32
    %230 = vector.broadcast %cst_112 : f32 to vector<8x128xf32>
    %231 = arith.mulf %230, %229 : vector<8x128xf32>
    %cst_113 = arith.constant 5.000000e-01 : f32
    %232 = vector.broadcast %cst_113 : f32 to vector<8x128xf32>
    %233 = arith.addf %231, %232 : vector<8x128xf32>
    %234 = vector.extract_strided_slice %228 {offsets = [0, 128], sizes = [8, 128], strides = [1, 1]} : vector<8x512xf32> to vector<8x128xf32>
    %cst_114 = arith.constant 5.000000e-01 : f32
    %235 = vector.broadcast %cst_114 : f32 to vector<8x128xf32>
    %236 = arith.mulf %235, %234 : vector<8x128xf32>
    %cst_115 = arith.constant 5.000000e-01 : f32
    %237 = vector.broadcast %cst_115 : f32 to vector<8x128xf32>
    %238 = arith.addf %236, %237 : vector<8x128xf32>
    %239 = vector.extract_strided_slice %228 {offsets = [0, 256], sizes = [8, 128], strides = [1, 1]} : vector<8x512xf32> to vector<8x128xf32>
    %240 = vector.extract_strided_slice %228 {offsets = [0, 384], sizes = [8, 128], strides = [1, 1]} : vector<8x512xf32> to vector<8x128xf32>
    %cst_116 = arith.constant 5.000000e-01 : f32
    %241 = vector.broadcast %cst_116 : f32 to vector<8x128xf32>
    %242 = arith.mulf %241, %240 : vector<8x128xf32>
    %cst_117 = arith.constant 5.000000e-01 : f32
    %243 = vector.broadcast %cst_117 : f32 to vector<8x128xf32>
    %244 = arith.addf %242, %243 : vector<8x128xf32>
    %245 = arith.mulf %238, %222 : vector<8x128xf32>
    %246 = arith.mulf %233, %239 : vector<8x128xf32>
    %247 = arith.addf %245, %246 : vector<8x128xf32>
    %248 = math.tanh %247 : vector<8x128xf32>
    %249 = arith.mulf %244, %248 : vector<8x128xf32>
    %c0_118 = arith.constant 0 : index
    %c0_119 = arith.constant 0 : index
    %c0_120 = arith.constant 0 : index
    %250 = vector.load %arg9[%c0_118, %c0_119, %c0_120] : memref<5x8x128xf32, #tpu.memory_space<vmem>>, vector<1x8x128xf32>
    %251 = vector.shape_cast %250 : vector<1x8x128xf32> to vector<8x128xf32>
    %252 = vector.shape_cast %249 : vector<8x128xf32> to vector<1x8x128xf32>
    tpu.vector_store %arg9[%c0_118, %c0_119, %c0_120], %252 {strides = array<i32>} : memref<5x8x128xf32, #tpu.memory_space<vmem>>, vector<1x8x128xf32>,
    %c0_121 = arith.constant 0 : index
    %c0_122 = arith.constant 0 : index
    %c0_123 = arith.constant 0 : index
    %253 = vector.load %arg10[%c0_121, %c0_122, %c0_123] : memref<5x8x128xf32, #tpu.memory_space<vmem>>, vector<1x8x128xf32>
    %254 = vector.shape_cast %253 : vector<1x8x128xf32> to vector<8x128xf32>
    %255 = vector.shape_cast %247 : vector<8x128xf32> to vector<1x8x128xf32>
    tpu.vector_store %arg10[%c0_121, %c0_122, %c0_123], %255 {strides = array<i32>} : memref<5x8x128xf32, #tpu.memory_space<vmem>>, vector<1x8x128xf32>,
    %256 = tpu.concatenate %74, %99, %124, %149, %174, %199, %224, %249 in 0 : vector<8x128xf32>, vector<8x128xf32>, vector<8x128xf32>, vector<8x128xf32>, vector<8x128xf32>, vector<8x128xf32>, vector<8x128xf32>, vector<8x128xf32> -> vector<64x128xf32>
    %c1_i32_124 = arith.constant 1 : i32
    %c1_i32_125 = arith.constant 1 : i32
    %c0_i32_126 = arith.constant 0 : i32
    %c1_i32_127 = arith.constant 1 : i32
    %c0_i32_128 = arith.constant 0 : i32
    %c0_i32_129 = arith.constant 0 : i32
    %257 = tpu.memref_slice %arg6[%c1_i32_124, %c0_i32_128, %c0_i32_129] : memref<5x128x512xf32, #tpu.memory_space<any>> -> memref<1x128x512xf32, #tpu.memory_space<any>>
    %258 = tpu.memref_squeeze %257 : memref<1x128x512xf32, #tpu.memory_space<any>> -> memref<128x512xf32, #tpu.memory_space<any>>
    %c0_i32_130 = arith.constant 0 : i32
    %c0_i32_131 = arith.constant 0 : i32
    %259 = tpu.memref_slice %arg11[%c1_i32_125, %c0_i32_130, %c0_i32_131] : memref<2x128x512xf32, #tpu.memory_space<vmem>> -> memref<1x128x512xf32, #tpu.memory_space<vmem>>
    %260 = tpu.memref_squeeze %259 : memref<1x128x512xf32, #tpu.memory_space<vmem>> -> memref<128x512xf32, #tpu.memory_space<vmem>>
    %261 = tpu.memref_slice %arg13[%c0_i32_126, %c1_i32_127] : memref<2x2x!tpu.dma_semaphore, #tpu.memory_space<semaphore_mem>> -> memref<1x1x!tpu.dma_semaphore, #tpu.memory_space<semaphore_mem>>
    %262 = tpu.memref_squeeze %261 : memref<1x1x!tpu.dma_semaphore, #tpu.memory_space<semaphore_mem>> -> memref<!tpu.dma_semaphore, #tpu.memory_space<semaphore_mem>>
    tpu.wait_dma2 semaphore(%262 : memref<!tpu.dma_semaphore, #tpu.memory_space<semaphore_mem>>) src(%258 : memref<128x512xf32, #tpu.memory_space<any>>) dst(%260 : memref<128x512xf32, #tpu.memory_space<vmem>>)
    %c1 = arith.constant 1 : index
    %c0_132 = arith.constant 0 : index
    %c0_133 = arith.constant 0 : index
    %263 = vector.load %arg11[%c1, %c0_132, %c0_133] : memref<2x128x512xf32, #tpu.memory_space<vmem>>, vector<1x128x512xf32>
    %264 = vector.shape_cast %263 : vector<1x128x512xf32> to vector<128x512xf32>
    %cst_134 = arith.constant dense<0.000000e+00> : vector<64x512xf32>
    %265 = tpu.matmul %256, %264, %cst_134 {dimension_numbers = #tpu.dot_dimension_numbers<[1], [0], [0], [1], [0, 0, 1, 1], [], []>} : vector<64x128xf32>, vector<128x512xf32>, vector<64x512xf32> -> vector<64x512xf32>
    %c1_135 = arith.constant 1 : index
    %c0_136 = arith.constant 0 : index
    %c0_137 = arith.constant 0 : index
    %266 = vector.load %arg3[%c1_135, %c0_136, %c0_137] : memref<5x1x512xf32, #tpu.memory_space<vmem>>, vector<1x1x512xf32>
    %267 = vector.shape_cast %266 : vector<1x1x512xf32> to vector<1x512xf32>
    %268 = vector.broadcast %267 : vector<1x512xf32> to vector<64x512xf32>
    %269 = arith.addf %265, %268 : vector<64x512xf32>
    %c1_i32_138 = arith.constant 1 : i32
    %c1_i32_139 = arith.constant 1 : i32
    %c1_i32_140 = arith.constant 1 : i32
    %c1_i32_141 = arith.constant 1 : i32
    %c0_i32_142 = arith.constant 0 : i32
    %c0_i32_143 = arith.constant 0 : i32
    %270 = tpu.memref_slice %arg7[%c1_i32_138, %c0_i32_142, %c0_i32_143] : memref<5x128x512xf32, #tpu.memory_space<any>> -> memref<1x128x512xf32, #tpu.memory_space<any>>
    %271 = tpu.memref_squeeze %270 : memref<1x128x512xf32, #tpu.memory_space<any>> -> memref<128x512xf32, #tpu.memory_space<any>>
    %c0_i32_144 = arith.constant 0 : i32
    %c0_i32_145 = arith.constant 0 : i32
    %272 = tpu.memref_slice %arg12[%c1_i32_139, %c0_i32_144, %c0_i32_145] : memref<2x128x512xf32, #tpu.memory_space<vmem>> -> memref<1x128x512xf32, #tpu.memory_space<vmem>>
    %273 = tpu.memref_squeeze %272 : memref<1x128x512xf32, #tpu.memory_space<vmem>> -> memref<128x512xf32, #tpu.memory_space<vmem>>
    %274 = tpu.memref_slice %arg13[%c1_i32_140, %c1_i32_141] : memref<2x2x!tpu.dma_semaphore, #tpu.memory_space<semaphore_mem>> -> memref<1x1x!tpu.dma_semaphore, #tpu.memory_space<semaphore_mem>>
    %275 = tpu.memref_squeeze %274 : memref<1x1x!tpu.dma_semaphore, #tpu.memory_space<semaphore_mem>> -> memref<!tpu.dma_semaphore, #tpu.memory_space<semaphore_mem>>
    tpu.wait_dma2 semaphore(%275 : memref<!tpu.dma_semaphore, #tpu.memory_space<semaphore_mem>>) src(%271 : memref<128x512xf32, #tpu.memory_space<any>>) dst(%273 : memref<128x512xf32, #tpu.memory_space<vmem>>)
    %c1_146 = arith.constant 1 : index
    %c0_147 = arith.constant 0 : index
    %c0_148 = arith.constant 0 : index
    %276 = vector.load %arg12[%c1_146, %c0_147, %c0_148] : memref<2x128x512xf32, #tpu.memory_space<vmem>>, vector<1x128x512xf32>
    %277 = vector.shape_cast %276 : vector<1x128x512xf32> to vector<128x512xf32>
    %c2_i32 = arith.constant 2 : i32
    %c0_i32_149 = arith.constant 0 : i32
    %c0_i32_150 = arith.constant 0 : i32
    %c0_i32_151 = arith.constant 0 : i32
    %c0_i32_152 = arith.constant 0 : i32
    %c0_i32_153 = arith.constant 0 : i32
    %278 = tpu.memref_slice %arg6[%c2_i32, %c0_i32_152, %c0_i32_153] : memref<5x128x512xf32, #tpu.memory_space<any>> -> memref<1x128x512xf32, #tpu.memory_space<any>>
    %279 = tpu.memref_squeeze %278 : memref<1x128x512xf32, #tpu.memory_space<any>> -> memref<128x512xf32, #tpu.memory_space<any>>
    %c0_i32_154 = arith.constant 0 : i32
    %c0_i32_155 = arith.constant 0 : i32
    %280 = tpu.memref_slice %arg11[%c0_i32_149, %c0_i32_154, %c0_i32_155] : memref<2x128x512xf32, #tpu.memory_space<vmem>> -> memref<1x128x512xf32, #tpu.memory_space<vmem>>
    %281 = tpu.memref_squeeze %280 : memref<1x128x512xf32, #tpu.memory_space<vmem>> -> memref<128x512xf32, #tpu.memory_space<vmem>>
    %282 = tpu.memref_slice %arg13[%c0_i32_150, %c0_i32_151] : memref<2x2x!tpu.dma_semaphore, #tpu.memory_space<semaphore_mem>> -> memref<1x1x!tpu.dma_semaphore, #tpu.memory_space<semaphore_mem>>
    %283 = tpu.memref_squeeze %282 : memref<1x1x!tpu.dma_semaphore, #tpu.memory_space<semaphore_mem>> -> memref<!tpu.dma_semaphore, #tpu.memory_space<semaphore_mem>>
    tpu.enqueue_dma source(%279 : memref<128x512xf32, #tpu.memory_space<any>>) target(%281 : memref<128x512xf32, #tpu.memory_space<vmem>>) target_semaphore(%283 : memref<!tpu.dma_semaphore, #tpu.memory_space<semaphore_mem>>)
    %c2_i32_156 = arith.constant 2 : i32
    %c0_i32_157 = arith.constant 0 : i32
    %c1_i32_158 = arith.constant 1 : i32
    %c0_i32_159 = arith.constant 0 : i32
    %c0_i32_160 = arith.constant 0 : i32
    %c0_i32_161 = arith.constant 0 : i32
    %284 = tpu.memref_slice %arg7[%c2_i32_156, %c0_i32_160, %c0_i32_161] : memref<5x128x512xf32, #tpu.memory_space<any>> -> memref<1x128x512xf32, #tpu.memory_space<any>>
    %285 = tpu.memref_squeeze %284 : memref<1x128x512xf32, #tpu.memory_space<any>> -> memref<128x512xf32, #tpu.memory_space<any>>
    %c0_i32_162 = arith.constant 0 : i32
    %c0_i32_163 = arith.constant 0 : i32
    %286 = tpu.memref_slice %arg12[%c0_i32_157, %c0_i32_162, %c0_i32_163] : memref<2x128x512xf32, #tpu.memory_space<vmem>> -> memref<1x128x512xf32, #tpu.memory_space<vmem>>
    %287 = tpu.memref_squeeze %286 : memref<1x128x512xf32, #tpu.memory_space<vmem>> -> memref<128x512xf32, #tpu.memory_space<vmem>>
    %288 = tpu.memref_slice %arg13[%c1_i32_158, %c0_i32_159] : memref<2x2x!tpu.dma_semaphore, #tpu.memory_space<semaphore_mem>> -> memref<1x1x!tpu.dma_semaphore, #tpu.memory_space<semaphore_mem>>
    %289 = tpu.memref_squeeze %288 : memref<1x1x!tpu.dma_semaphore, #tpu.memory_space<semaphore_mem>> -> memref<!tpu.dma_semaphore, #tpu.memory_space<semaphore_mem>>
    tpu.enqueue_dma source(%285 : memref<128x512xf32, #tpu.memory_space<any>>) target(%287 : memref<128x512xf32, #tpu.memory_space<vmem>>) target_semaphore(%289 : memref<!tpu.dma_semaphore, #tpu.memory_space<semaphore_mem>>)
    %c1_164 = arith.constant 1 : index
    %c0_165 = arith.constant 0 : index
    %c0_166 = arith.constant 0 : index
    %290 = vector.load %arg1[%c1_164, %c0_165, %c0_166] : memref<5x8x128xf32, #tpu.memory_space<vmem>>, vector<1x8x128xf32>
    %291 = vector.shape_cast %290 : vector<1x8x128xf32> to vector<8x128xf32>
    %c1_167 = arith.constant 1 : index
    %c0_168 = arith.constant 0 : index
    %c0_169 = arith.constant 0 : index
    %292 = vector.load %arg2[%c1_167, %c0_168, %c0_169] : memref<5x8x128xf32, #tpu.memory_space<vmem>>, vector<1x8x128xf32>
    %293 = vector.shape_cast %292 : vector<1x8x128xf32> to vector<8x128xf32>
    %294 = vector.extract_strided_slice %269 {offsets = [0, 0], sizes = [8, 512], strides = [1, 1]} : vector<64x512xf32> to vector<8x512xf32>
    %cst_170 = arith.constant dense<0.000000e+00> : vector<8x512xf32>
    %295 = tpu.matmul %291, %277, %cst_170 {dimension_numbers = #tpu.dot_dimension_numbers<[1], [0], [0], [1], [0, 0, 1, 1], [], []>} : vector<8x128xf32>, vector<128x512xf32>, vector<8x512xf32> -> vector<8x512xf32>
    %296 = arith.addf %294, %295 : vector<8x512xf32>
    %297 = math.tanh %296 : vector<8x512xf32>
    %298 = vector.extract_strided_slice %297 {offsets = [0, 0], sizes = [8, 128], strides = [1, 1]} : vector<8x512xf32> to vector<8x128xf32>
    %cst_171 = arith.constant 5.000000e-01 : f32
    %299 = vector.broadcast %cst_171 : f32 to vector<8x128xf32>
    %300 = arith.mulf %299, %298 : vector<8x128xf32>
    %cst_172 = arith.constant 5.000000e-01 : f32
    %301 = vector.broadcast %cst_172 : f32 to vector<8x128xf32>
    %302 = arith.addf %300, %301 : vector<8x128xf32>
    %303 = vector.extract_strided_slice %297 {offsets = [0, 128], sizes = [8, 128], strides = [1, 1]} : vector<8x512xf32> to vector<8x128xf32>
    %cst_173 = arith.constant 5.000000e-01 : f32
    %304 = vector.broadcast %cst_173 : f32 to vector<8x128xf32>
    %305 = arith.mulf %304, %303 : vector<8x128xf32>
    %cst_174 = arith.constant 5.000000e-01 : f32
    %306 = vector.broadcast %cst_174 : f32 to vector<8x128xf32>
    %307 = arith.addf %305, %306 : vector<8x128xf32>
    %308 = vector.extract_strided_slice %297 {offsets = [0, 256], sizes = [8, 128], strides = [1, 1]} : vector<8x512xf32> to vector<8x128xf32>
    %309 = vector.extract_strided_slice %297 {offsets = [0, 384], sizes = [8, 128], strides = [1, 1]} : vector<8x512xf32> to vector<8x128xf32>
    %cst_175 = arith.constant 5.000000e-01 : f32
    %310 = vector.broadcast %cst_175 : f32 to vector<8x128xf32>
    %311 = arith.mulf %310, %309 : vector<8x128xf32>
    %cst_176 = arith.constant 5.000000e-01 : f32
    %312 = vector.broadcast %cst_176 : f32 to vector<8x128xf32>
    %313 = arith.addf %311, %312 : vector<8x128xf32>
    %314 = arith.mulf %307, %293 : vector<8x128xf32>
    %315 = arith.mulf %302, %308 : vector<8x128xf32>
    %316 = arith.addf %314, %315 : vector<8x128xf32>
    %317 = math.tanh %316 : vector<8x128xf32>
    %318 = arith.mulf %313, %317 : vector<8x128xf32>
    %319 = vector.extract_strided_slice %269 {offsets = [8, 0], sizes = [8, 512], strides = [1, 1]} : vector<64x512xf32> to vector<8x512xf32>
    %cst_177 = arith.constant dense<0.000000e+00> : vector<8x512xf32>
    %320 = tpu.matmul %318, %277, %cst_177 {dimension_numbers = #tpu.dot_dimension_numbers<[1], [0], [0], [1], [0, 0, 1, 1], [], []>} : vector<8x128xf32>, vector<128x512xf32>, vector<8x512xf32> -> vector<8x512xf32>
    %321 = arith.addf %319, %320 : vector<8x512xf32>
    %322 = math.tanh %321 : vector<8x512xf32>
    %323 = vector.extract_strided_slice %322 {offsets = [0, 0], sizes = [8, 128], strides = [1, 1]} : vector<8x512xf32> to vector<8x128xf32>
    %cst_178 = arith.constant 5.000000e-01 : f32
    %324 = vector.broadcast %cst_178 : f32 to vector<8x128xf32>
    %325 = arith.mulf %324, %323 : vector<8x128xf32>
    %cst_179 = arith.constant 5.000000e-01 : f32
    %326 = vector.broadcast %cst_179 : f32 to vector<8x128xf32>
    %327 = arith.addf %325, %326 : vector<8x128xf32>
    %328 = vector.extract_strided_slice %322 {offsets = [0, 128], sizes = [8, 128], strides = [1, 1]} : vector<8x512xf32> to vector<8x128xf32>
    %cst_180 = arith.constant 5.000000e-01 : f32
    %329 = vector.broadcast %cst_180 : f32 to vector<8x128xf32>
    %330 = arith.mulf %329, %328 : vector<8x128xf32>
    %cst_181 = arith.constant 5.000000e-01 : f32
    %331 = vector.broadcast %cst_181 : f32 to vector<8x128xf32>
    %332 = arith.addf %330, %331 : vector<8x128xf32>
    %333 = vector.extract_strided_slice %322 {offsets = [0, 256], sizes = [8, 128], strides = [1, 1]} : vector<8x512xf32> to vector<8x128xf32>
    %334 = vector.extract_strided_slice %322 {offsets = [0, 384], sizes = [8, 128], strides = [1, 1]} : vector<8x512xf32> to vector<8x128xf32>
    %cst_182 = arith.constant 5.000000e-01 : f32
    %335 = vector.broadcast %cst_182 : f32 to vector<8x128xf32>
    %336 = arith.mulf %335, %334 : vector<8x128xf32>
    %cst_183 = arith.constant 5.000000e-01 : f32
    %337 = vector.broadcast %cst_183 : f32 to vector<8x128xf32>
    %338 = arith.addf %336, %337 : vector<8x128xf32>
    %339 = arith.mulf %332, %316 : vector<8x128xf32>
    %340 = arith.mulf %327, %333 : vector<8x128xf32>
    %341 = arith.addf %339, %340 : vector<8x128xf32>
    %342 = math.tanh %341 : vector<8x128xf32>
    %343 = arith.mulf %338, %342 : vector<8x128xf32>
    %344 = vector.extract_strided_slice %269 {offsets = [16, 0], sizes = [8, 512], strides = [1, 1]} : vector<64x512xf32> to vector<8x512xf32>
    %cst_184 = arith.constant dense<0.000000e+00> : vector<8x512xf32>
    %345 = tpu.matmul %343, %277, %cst_184 {dimension_numbers = #tpu.dot_dimension_numbers<[1], [0], [0], [1], [0, 0, 1, 1], [], []>} : vector<8x128xf32>, vector<128x512xf32>, vector<8x512xf32> -> vector<8x512xf32>
    %346 = arith.addf %344, %345 : vector<8x512xf32>
    %347 = math.tanh %346 : vector<8x512xf32>
    %348 = vector.extract_strided_slice %347 {offsets = [0, 0], sizes = [8, 128], strides = [1, 1]} : vector<8x512xf32> to vector<8x128xf32>
    %cst_185 = arith.constant 5.000000e-01 : f32
    %349 = vector.broadcast %cst_185 : f32 to vector<8x128xf32>
    %350 = arith.mulf %349, %348 : vector<8x128xf32>
    %cst_186 = arith.constant 5.000000e-01 : f32
    %351 = vector.broadcast %cst_186 : f32 to vector<8x128xf32>
    %352 = arith.addf %350, %351 : vector<8x128xf32>
    %353 = vector.extract_strided_slice %347 {offsets = [0, 128], sizes = [8, 128], strides = [1, 1]} : vector<8x512xf32> to vector<8x128xf32>
    %cst_187 = arith.constant 5.000000e-01 : f32
    %354 = vector.broadcast %cst_187 : f32 to vector<8x128xf32>
    %355 = arith.mulf %354, %353 : vector<8x128xf32>
    %cst_188 = arith.constant 5.000000e-01 : f32
    %356 = vector.broadcast %cst_188 : f32 to vector<8x128xf32>
    %357 = arith.addf %355, %356 : vector<8x128xf32>
    %358 = vector.extract_strided_slice %347 {offsets = [0, 256], sizes = [8, 128], strides = [1, 1]} : vector<8x512xf32> to vector<8x128xf32>
    %359 = vector.extract_strided_slice %347 {offsets = [0, 384], sizes = [8, 128], strides = [1, 1]} : vector<8x512xf32> to vector<8x128xf32>
    %cst_189 = arith.constant 5.000000e-01 : f32
    %360 = vector.broadcast %cst_189 : f32 to vector<8x128xf32>
    %361 = arith.mulf %360, %359 : vector<8x128xf32>
    %cst_190 = arith.constant 5.000000e-01 : f32
    %362 = vector.broadcast %cst_190 : f32 to vector<8x128xf32>
    %363 = arith.addf %361, %362 : vector<8x128xf32>
    %364 = arith.mulf %357, %341 : vector<8x128xf32>
    %365 = arith.mulf %352, %358 : vector<8x128xf32>
    %366 = arith.addf %364, %365 : vector<8x128xf32>
    %367 = math.tanh %366 : vector<8x128xf32>
    %368 = arith.mulf %363, %367 : vector<8x128xf32>
    %369 = vector.extract_strided_slice %269 {offsets = [24, 0], sizes = [8, 512], strides = [1, 1]} : vector<64x512xf32> to vector<8x512xf32>
    %cst_191 = arith.constant dense<0.000000e+00> : vector<8x512xf32>
    %370 = tpu.matmul %368, %277, %cst_191 {dimension_numbers = #tpu.dot_dimension_numbers<[1], [0], [0], [1], [0, 0, 1, 1], [], []>} : vector<8x128xf32>, vector<128x512xf32>, vector<8x512xf32> -> vector<8x512xf32>
    %371 = arith.addf %369, %370 : vector<8x512xf32>
    %372 = math.tanh %371 : vector<8x512xf32>
    %373 = vector.extract_strided_slice %372 {offsets = [0, 0], sizes = [8, 128], strides = [1, 1]} : vector<8x512xf32> to vector<8x128xf32>
    %cst_192 = arith.constant 5.000000e-01 : f32
    %374 = vector.broadcast %cst_192 : f32 to vector<8x128xf32>
    %375 = arith.mulf %374, %373 : vector<8x128xf32>
    %cst_193 = arith.constant 5.000000e-01 : f32
    %376 = vector.broadcast %cst_193 : f32 to vector<8x128xf32>
    %377 = arith.addf %375, %376 : vector<8x128xf32>
    %378 = vector.extract_strided_slice %372 {offsets = [0, 128], sizes = [8, 128], strides = [1, 1]} : vector<8x512xf32> to vector<8x128xf32>
    %cst_194 = arith.constant 5.000000e-01 : f32
    %379 = vector.broadcast %cst_194 : f32 to vector<8x128xf32>
    %380 = arith.mulf %379, %378 : vector<8x128xf32>
    %cst_195 = arith.constant 5.000000e-01 : f32
    %381 = vector.broadcast %cst_195 : f32 to vector<8x128xf32>
    %382 = arith.addf %380, %381 : vector<8x128xf32>
    %383 = vector.extract_strided_slice %372 {offsets = [0, 256], sizes = [8, 128], strides = [1, 1]} : vector<8x512xf32> to vector<8x128xf32>
    %384 = vector.extract_strided_slice %372 {offsets = [0, 384], sizes = [8, 128], strides = [1, 1]} : vector<8x512xf32> to vector<8x128xf32>
    %cst_196 = arith.constant 5.000000e-01 : f32
    %385 = vector.broadcast %cst_196 : f32 to vector<8x128xf32>
    %386 = arith.mulf %385, %384 : vector<8x128xf32>
    %cst_197 = arith.constant 5.000000e-01 : f32
    %387 = vector.broadcast %cst_197 : f32 to vector<8x128xf32>
    %388 = arith.addf %386, %387 : vector<8x128xf32>
    %389 = arith.mulf %382, %366 : vector<8x128xf32>
    %390 = arith.mulf %377, %383 : vector<8x128xf32>
    %391 = arith.addf %389, %390 : vector<8x128xf32>
    %392 = math.tanh %391 : vector<8x128xf32>
    %393 = arith.mulf %388, %392 : vector<8x128xf32>
    %394 = vector.extract_strided_slice %269 {offsets = [32, 0], sizes = [8, 512], strides = [1, 1]} : vector<64x512xf32> to vector<8x512xf32>
    %cst_198 = arith.constant dense<0.000000e+00> : vector<8x512xf32>
    %395 = tpu.matmul %393, %277, %cst_198 {dimension_numbers = #tpu.dot_dimension_numbers<[1], [0], [0], [1], [0, 0, 1, 1], [], []>} : vector<8x128xf32>, vector<128x512xf32>, vector<8x512xf32> -> vector<8x512xf32>
    %396 = arith.addf %394, %395 : vector<8x512xf32>
    %397 = math.tanh %396 : vector<8x512xf32>
    %398 = vector.extract_strided_slice %397 {offsets = [0, 0], sizes = [8, 128], strides = [1, 1]} : vector<8x512xf32> to vector<8x128xf32>
    %cst_199 = arith.constant 5.000000e-01 : f32
    %399 = vector.broadcast %cst_199 : f32 to vector<8x128xf32>
    %400 = arith.mulf %399, %398 : vector<8x128xf32>
    %cst_200 = arith.constant 5.000000e-01 : f32
    %401 = vector.broadcast %cst_200 : f32 to vector<8x128xf32>
    %402 = arith.addf %400, %401 : vector<8x128xf32>
    %403 = vector.extract_strided_slice %397 {offsets = [0, 128], sizes = [8, 128], strides = [1, 1]} : vector<8x512xf32> to vector<8x128xf32>
    %cst_201 = arith.constant 5.000000e-01 : f32
    %404 = vector.broadcast %cst_201 : f32 to vector<8x128xf32>
    %405 = arith.mulf %404, %403 : vector<8x128xf32>
    %cst_202 = arith.constant 5.000000e-01 : f32
    %406 = vector.broadcast %cst_202 : f32 to vector<8x128xf32>
    %407 = arith.addf %405, %406 : vector<8x128xf32>
    %408 = vector.extract_strided_slice %397 {offsets = [0, 256], sizes = [8, 128], strides = [1, 1]} : vector<8x512xf32> to vector<8x128xf32>
    %409 = vector.extract_strided_slice %397 {offsets = [0, 384], sizes = [8, 128], strides = [1, 1]} : vector<8x512xf32> to vector<8x128xf32>
    %cst_203 = arith.constant 5.000000e-01 : f32
    %410 = vector.broadcast %cst_203 : f32 to vector<8x128xf32>
    %411 = arith.mulf %410, %409 : vector<8x128xf32>
    %cst_204 = arith.constant 5.000000e-01 : f32
    %412 = vector.broadcast %cst_204 : f32 to vector<8x128xf32>
    %413 = arith.addf %411, %412 : vector<8x128xf32>
    %414 = arith.mulf %407, %391 : vector<8x128xf32>
    %415 = arith.mulf %402, %408 : vector<8x128xf32>
    %416 = arith.addf %414, %415 : vector<8x128xf32>
    %417 = math.tanh %416 : vector<8x128xf32>
    %418 = arith.mulf %413, %417 : vector<8x128xf32>
    %419 = vector.extract_strided_slice %269 {offsets = [40, 0], sizes = [8, 512], strides = [1, 1]} : vector<64x512xf32> to vector<8x512xf32>
    %cst_205 = arith.constant dense<0.000000e+00> : vector<8x512xf32>
    %420 = tpu.matmul %418, %277, %cst_205 {dimension_numbers = #tpu.dot_dimension_numbers<[1], [0], [0], [1], [0, 0, 1, 1], [], []>} : vector<8x128xf32>, vector<128x512xf32>, vector<8x512xf32> -> vector<8x512xf32>
    %421 = arith.addf %419, %420 : vector<8x512xf32>
    %422 = math.tanh %421 : vector<8x512xf32>
    %423 = vector.extract_strided_slice %422 {offsets = [0, 0], sizes = [8, 128], strides = [1, 1]} : vector<8x512xf32> to vector<8x128xf32>
    %cst_206 = arith.constant 5.000000e-01 : f32
    %424 = vector.broadcast %cst_206 : f32 to vector<8x128xf32>
    %425 = arith.mulf %424, %423 : vector<8x128xf32>
    %cst_207 = arith.constant 5.000000e-01 : f32
    %426 = vector.broadcast %cst_207 : f32 to vector<8x128xf32>
    %427 = arith.addf %425, %426 : vector<8x128xf32>
    %428 = vector.extract_strided_slice %422 {offsets = [0, 128], sizes = [8, 128], strides = [1, 1]} : vector<8x512xf32> to vector<8x128xf32>
    %cst_208 = arith.constant 5.000000e-01 : f32
    %429 = vector.broadcast %cst_208 : f32 to vector<8x128xf32>
    %430 = arith.mulf %429, %428 : vector<8x128xf32>
    %cst_209 = arith.constant 5.000000e-01 : f32
    %431 = vector.broadcast %cst_209 : f32 to vector<8x128xf32>
    %432 = arith.addf %430, %431 : vector<8x128xf32>
    %433 = vector.extract_strided_slice %422 {offsets = [0, 256], sizes = [8, 128], strides = [1, 1]} : vector<8x512xf32> to vector<8x128xf32>
    %434 = vector.extract_strided_slice %422 {offsets = [0, 384], sizes = [8, 128], strides = [1, 1]} : vector<8x512xf32> to vector<8x128xf32>
    %cst_210 = arith.constant 5.000000e-01 : f32
    %435 = vector.broadcast %cst_210 : f32 to vector<8x128xf32>
    %436 = arith.mulf %435, %434 : vector<8x128xf32>
    %cst_211 = arith.constant 5.000000e-01 : f32
    %437 = vector.broadcast %cst_211 : f32 to vector<8x128xf32>
    %438 = arith.addf %436, %437 : vector<8x128xf32>
    %439 = arith.mulf %432, %416 : vector<8x128xf32>
    %440 = arith.mulf %427, %433 : vector<8x128xf32>
    %441 = arith.addf %439, %440 : vector<8x128xf32>
    %442 = math.tanh %441 : vector<8x128xf32>
    %443 = arith.mulf %438, %442 : vector<8x128xf32>
    %444 = vector.extract_strided_slice %269 {offsets = [48, 0], sizes = [8, 512], strides = [1, 1]} : vector<64x512xf32> to vector<8x512xf32>
    %cst_212 = arith.constant dense<0.000000e+00> : vector<8x512xf32>
    %445 = tpu.matmul %443, %277, %cst_212 {dimension_numbers = #tpu.dot_dimension_numbers<[1], [0], [0], [1], [0, 0, 1, 1], [], []>} : vector<8x128xf32>, vector<128x512xf32>, vector<8x512xf32> -> vector<8x512xf32>
    %446 = arith.addf %444, %445 : vector<8x512xf32>
    %447 = math.tanh %446 : vector<8x512xf32>
    %448 = vector.extract_strided_slice %447 {offsets = [0, 0], sizes = [8, 128], strides = [1, 1]} : vector<8x512xf32> to vector<8x128xf32>
    %cst_213 = arith.constant 5.000000e-01 : f32
    %449 = vector.broadcast %cst_213 : f32 to vector<8x128xf32>
    %450 = arith.mulf %449, %448 : vector<8x128xf32>
    %cst_214 = arith.constant 5.000000e-01 : f32
    %451 = vector.broadcast %cst_214 : f32 to vector<8x128xf32>
    %452 = arith.addf %450, %451 : vector<8x128xf32>
    %453 = vector.extract_strided_slice %447 {offsets = [0, 128], sizes = [8, 128], strides = [1, 1]} : vector<8x512xf32> to vector<8x128xf32>
    %cst_215 = arith.constant 5.000000e-01 : f32
    %454 = vector.broadcast %cst_215 : f32 to vector<8x128xf32>
    %455 = arith.mulf %454, %453 : vector<8x128xf32>
    %cst_216 = arith.constant 5.000000e-01 : f32
    %456 = vector.broadcast %cst_216 : f32 to vector<8x128xf32>
    %457 = arith.addf %455, %456 : vector<8x128xf32>
    %458 = vector.extract_strided_slice %447 {offsets = [0, 256], sizes = [8, 128], strides = [1, 1]} : vector<8x512xf32> to vector<8x128xf32>
    %459 = vector.extract_strided_slice %447 {offsets = [0, 384], sizes = [8, 128], strides = [1, 1]} : vector<8x512xf32> to vector<8x128xf32>
    %cst_217 = arith.constant 5.000000e-01 : f32
    %460 = vector.broadcast %cst_217 : f32 to vector<8x128xf32>
    %461 = arith.mulf %460, %459 : vector<8x128xf32>
    %cst_218 = arith.constant 5.000000e-01 : f32
    %462 = vector.broadcast %cst_218 : f32 to vector<8x128xf32>
    %463 = arith.addf %461, %462 : vector<8x128xf32>
    %464 = arith.mulf %457, %441 : vector<8x128xf32>
    %465 = arith.mulf %452, %458 : vector<8x128xf32>
    %466 = arith.addf %464, %465 : vector<8x128xf32>
    %467 = math.tanh %466 : vector<8x128xf32>
    %468 = arith.mulf %463, %467 : vector<8x128xf32>
    %469 = vector.extract_strided_slice %269 {offsets = [56, 0], sizes = [8, 512], strides = [1, 1]} : vector<64x512xf32> to vector<8x512xf32>
    %cst_219 = arith.constant dense<0.000000e+00> : vector<8x512xf32>
    %470 = tpu.matmul %468, %277, %cst_219 {dimension_numbers = #tpu.dot_dimension_numbers<[1], [0], [0], [1], [0, 0, 1, 1], [], []>} : vector<8x128xf32>, vector<128x512xf32>, vector<8x512xf32> -> vector<8x512xf32>
    %471 = arith.addf %469, %470 : vector<8x512xf32>
    %472 = math.tanh %471 : vector<8x512xf32>
    %473 = vector.extract_strided_slice %472 {offsets = [0, 0], sizes = [8, 128], strides = [1, 1]} : vector<8x512xf32> to vector<8x128xf32>
    %cst_220 = arith.constant 5.000000e-01 : f32
    %474 = vector.broadcast %cst_220 : f32 to vector<8x128xf32>
    %475 = arith.mulf %474, %473 : vector<8x128xf32>
    %cst_221 = arith.constant 5.000000e-01 : f32
    %476 = vector.broadcast %cst_221 : f32 to vector<8x128xf32>
    %477 = arith.addf %475, %476 : vector<8x128xf32>
    %478 = vector.extract_strided_slice %472 {offsets = [0, 128], sizes = [8, 128], strides = [1, 1]} : vector<8x512xf32> to vector<8x128xf32>
    %cst_222 = arith.constant 5.000000e-01 : f32
    %479 = vector.broadcast %cst_222 : f32 to vector<8x128xf32>
    %480 = arith.mulf %479, %478 : vector<8x128xf32>
    %cst_223 = arith.constant 5.000000e-01 : f32
    %481 = vector.broadcast %cst_223 : f32 to vector<8x128xf32>
    %482 = arith.addf %480, %481 : vector<8x128xf32>
    %483 = vector.extract_strided_slice %472 {offsets = [0, 256], sizes = [8, 128], strides = [1, 1]} : vector<8x512xf32> to vector<8x128xf32>
    %484 = vector.extract_strided_slice %472 {offsets = [0, 384], sizes = [8, 128], strides = [1, 1]} : vector<8x512xf32> to vector<8x128xf32>
    %cst_224 = arith.constant 5.000000e-01 : f32
    %485 = vector.broadcast %cst_224 : f32 to vector<8x128xf32>
    %486 = arith.mulf %485, %484 : vector<8x128xf32>
    %cst_225 = arith.constant 5.000000e-01 : f32
    %487 = vector.broadcast %cst_225 : f32 to vector<8x128xf32>
    %488 = arith.addf %486, %487 : vector<8x128xf32>
    %489 = arith.mulf %482, %466 : vector<8x128xf32>
    %490 = arith.mulf %477, %483 : vector<8x128xf32>
    %491 = arith.addf %489, %490 : vector<8x128xf32>
    %492 = math.tanh %491 : vector<8x128xf32>
    %493 = arith.mulf %488, %492 : vector<8x128xf32>
    %c1_226 = arith.constant 1 : index
    %c0_227 = arith.constant 0 : index
    %c0_228 = arith.constant 0 : index
    %494 = vector.load %arg9[%c1_226, %c0_227, %c0_228] : memref<5x8x128xf32, #tpu.memory_space<vmem>>, vector<1x8x128xf32>
    %495 = vector.shape_cast %494 : vector<1x8x128xf32> to vector<8x128xf32>
    %496 = vector.shape_cast %493 : vector<8x128xf32> to vector<1x8x128xf32>
    tpu.vector_store %arg9[%c1_226, %c0_227, %c0_228], %496 {strides = array<i32>} : memref<5x8x128xf32, #tpu.memory_space<vmem>>, vector<1x8x128xf32>,
    %c1_229 = arith.constant 1 : index
    %c0_230 = arith.constant 0 : index
    %c0_231 = arith.constant 0 : index
    %497 = vector.load %arg10[%c1_229, %c0_230, %c0_231] : memref<5x8x128xf32, #tpu.memory_space<vmem>>, vector<1x8x128xf32>
    %498 = vector.shape_cast %497 : vector<1x8x128xf32> to vector<8x128xf32>
    %499 = vector.shape_cast %491 : vector<8x128xf32> to vector<1x8x128xf32>
    tpu.vector_store %arg10[%c1_229, %c0_230, %c0_231], %499 {strides = array<i32>} : memref<5x8x128xf32, #tpu.memory_space<vmem>>, vector<1x8x128xf32>,
    %500 = tpu.concatenate %318, %343, %368, %393, %418, %443, %468, %493 in 0 : vector<8x128xf32>, vector<8x128xf32>, vector<8x128xf32>, vector<8x128xf32>, vector<8x128xf32>, vector<8x128xf32>, vector<8x128xf32>, vector<8x128xf32> -> vector<64x128xf32>
    %c2_i32_232 = arith.constant 2 : i32
    %c0_i32_233 = arith.constant 0 : i32
    %c0_i32_234 = arith.constant 0 : i32
    %c0_i32_235 = arith.constant 0 : i32
    %c0_i32_236 = arith.constant 0 : i32
    %c0_i32_237 = arith.constant 0 : i32
    %501 = tpu.memref_slice %arg6[%c2_i32_232, %c0_i32_236, %c0_i32_237] : memref<5x128x512xf32, #tpu.memory_space<any>> -> memref<1x128x512xf32, #tpu.memory_space<any>>
    %502 = tpu.memref_squeeze %501 : memref<1x128x512xf32, #tpu.memory_space<any>> -> memref<128x512xf32, #tpu.memory_space<any>>
    %c0_i32_238 = arith.constant 0 : i32
    %c0_i32_239 = arith.constant 0 : i32
    %503 = tpu.memref_slice %arg11[%c0_i32_233, %c0_i32_238, %c0_i32_239] : memref<2x128x512xf32, #tpu.memory_space<vmem>> -> memref<1x128x512xf32, #tpu.memory_space<vmem>>
    %504 = tpu.memref_squeeze %503 : memref<1x128x512xf32, #tpu.memory_space<vmem>> -> memref<128x512xf32, #tpu.memory_space<vmem>>
    %505 = tpu.memref_slice %arg13[%c0_i32_234, %c0_i32_235] : memref<2x2x!tpu.dma_semaphore, #tpu.memory_space<semaphore_mem>> -> memref<1x1x!tpu.dma_semaphore, #tpu.memory_space<semaphore_mem>>
    %506 = tpu.memref_squeeze %505 : memref<1x1x!tpu.dma_semaphore, #tpu.memory_space<semaphore_mem>> -> memref<!tpu.dma_semaphore, #tpu.memory_space<semaphore_mem>>
    tpu.wait_dma2 semaphore(%506 : memref<!tpu.dma_semaphore, #tpu.memory_space<semaphore_mem>>) src(%502 : memref<128x512xf32, #tpu.memory_space<any>>) dst(%504 : memref<128x512xf32, #tpu.memory_space<vmem>>)
    %c0_240 = arith.constant 0 : index
    %c0_241 = arith.constant 0 : index
    %c0_242 = arith.constant 0 : index
    %507 = vector.load %arg11[%c0_240, %c0_241, %c0_242] : memref<2x128x512xf32, #tpu.memory_space<vmem>>, vector<1x128x512xf32>
    %508 = vector.shape_cast %507 : vector<1x128x512xf32> to vector<128x512xf32>
    %cst_243 = arith.constant dense<0.000000e+00> : vector<64x512xf32>
    %509 = tpu.matmul %500, %508, %cst_243 {dimension_numbers = #tpu.dot_dimension_numbers<[1], [0], [0], [1], [0, 0, 1, 1], [], []>} : vector<64x128xf32>, vector<128x512xf32>, vector<64x512xf32> -> vector<64x512xf32>
    %c2 = arith.constant 2 : index
    %c0_244 = arith.constant 0 : index
    %c0_245 = arith.constant 0 : index
    %510 = vector.load %arg3[%c2, %c0_244, %c0_245] : memref<5x1x512xf32, #tpu.memory_space<vmem>>, vector<1x1x512xf32>
    %511 = vector.shape_cast %510 : vector<1x1x512xf32> to vector<1x512xf32>
    %512 = vector.broadcast %511 : vector<1x512xf32> to vector<64x512xf32>
    %513 = arith.addf %509, %512 : vector<64x512xf32>
    %c2_i32_246 = arith.constant 2 : i32
    %c0_i32_247 = arith.constant 0 : i32
    %c1_i32_248 = arith.constant 1 : i32
    %c0_i32_249 = arith.constant 0 : i32
    %c0_i32_250 = arith.constant 0 : i32
    %c0_i32_251 = arith.constant 0 : i32
    %514 = tpu.memref_slice %arg7[%c2_i32_246, %c0_i32_250, %c0_i32_251] : memref<5x128x512xf32, #tpu.memory_space<any>> -> memref<1x128x512xf32, #tpu.memory_space<any>>
    %515 = tpu.memref_squeeze %514 : memref<1x128x512xf32, #tpu.memory_space<any>> -> memref<128x512xf32, #tpu.memory_space<any>>
    %c0_i32_252 = arith.constant 0 : i32
    %c0_i32_253 = arith.constant 0 : i32
    %516 = tpu.memref_slice %arg12[%c0_i32_247, %c0_i32_252, %c0_i32_253] : memref<2x128x512xf32, #tpu.memory_space<vmem>> -> memref<1x128x512xf32, #tpu.memory_space<vmem>>
    %517 = tpu.memref_squeeze %516 : memref<1x128x512xf32, #tpu.memory_space<vmem>> -> memref<128x512xf32, #tpu.memory_space<vmem>>
    %518 = tpu.memref_slice %arg13[%c1_i32_248, %c0_i32_249] : memref<2x2x!tpu.dma_semaphore, #tpu.memory_space<semaphore_mem>> -> memref<1x1x!tpu.dma_semaphore, #tpu.memory_space<semaphore_mem>>
    %519 = tpu.memref_squeeze %518 : memref<1x1x!tpu.dma_semaphore, #tpu.memory_space<semaphore_mem>> -> memref<!tpu.dma_semaphore, #tpu.memory_space<semaphore_mem>>
    tpu.wait_dma2 semaphore(%519 : memref<!tpu.dma_semaphore, #tpu.memory_space<semaphore_mem>>) src(%515 : memref<128x512xf32, #tpu.memory_space<any>>) dst(%517 : memref<128x512xf32, #tpu.memory_space<vmem>>)
    %c0_254 = arith.constant 0 : index
    %c0_255 = arith.constant 0 : index
    %c0_256 = arith.constant 0 : index
    %520 = vector.load %arg12[%c0_254, %c0_255, %c0_256] : memref<2x128x512xf32, #tpu.memory_space<vmem>>, vector<1x128x512xf32>
    %521 = vector.shape_cast %520 : vector<1x128x512xf32> to vector<128x512xf32>
    %c3_i32 = arith.constant 3 : i32
    %c1_i32_257 = arith.constant 1 : i32
    %c0_i32_258 = arith.constant 0 : i32
    %c1_i32_259 = arith.constant 1 : i32
    %c0_i32_260 = arith.constant 0 : i32
    %c0_i32_261 = arith.constant 0 : i32
    %522 = tpu.memref_slice %arg6[%c3_i32, %c0_i32_260, %c0_i32_261] : memref<5x128x512xf32, #tpu.memory_space<any>> -> memref<1x128x512xf32, #tpu.memory_space<any>>
    %523 = tpu.memref_squeeze %522 : memref<1x128x512xf32, #tpu.memory_space<any>> -> memref<128x512xf32, #tpu.memory_space<any>>
    %c0_i32_262 = arith.constant 0 : i32
    %c0_i32_263 = arith.constant 0 : i32
    %524 = tpu.memref_slice %arg11[%c1_i32_257, %c0_i32_262, %c0_i32_263] : memref<2x128x512xf32, #tpu.memory_space<vmem>> -> memref<1x128x512xf32, #tpu.memory_space<vmem>>
    %525 = tpu.memref_squeeze %524 : memref<1x128x512xf32, #tpu.memory_space<vmem>> -> memref<128x512xf32, #tpu.memory_space<vmem>>
    %526 = tpu.memref_slice %arg13[%c0_i32_258, %c1_i32_259] : memref<2x2x!tpu.dma_semaphore, #tpu.memory_space<semaphore_mem>> -> memref<1x1x!tpu.dma_semaphore, #tpu.memory_space<semaphore_mem>>
    %527 = tpu.memref_squeeze %526 : memref<1x1x!tpu.dma_semaphore, #tpu.memory_space<semaphore_mem>> -> memref<!tpu.dma_semaphore, #tpu.memory_space<semaphore_mem>>
    tpu.enqueue_dma source(%523 : memref<128x512xf32, #tpu.memory_space<any>>) target(%525 : memref<128x512xf32, #tpu.memory_space<vmem>>) target_semaphore(%527 : memref<!tpu.dma_semaphore, #tpu.memory_space<semaphore_mem>>)
    %c3_i32_264 = arith.constant 3 : i32
    %c1_i32_265 = arith.constant 1 : i32
    %c1_i32_266 = arith.constant 1 : i32
    %c1_i32_267 = arith.constant 1 : i32
    %c0_i32_268 = arith.constant 0 : i32
    %c0_i32_269 = arith.constant 0 : i32
    %528 = tpu.memref_slice %arg7[%c3_i32_264, %c0_i32_268, %c0_i32_269] : memref<5x128x512xf32, #tpu.memory_space<any>> -> memref<1x128x512xf32, #tpu.memory_space<any>>
    %529 = tpu.memref_squeeze %528 : memref<1x128x512xf32, #tpu.memory_space<any>> -> memref<128x512xf32, #tpu.memory_space<any>>
    %c0_i32_270 = arith.constant 0 : i32
    %c0_i32_271 = arith.constant 0 : i32
    %530 = tpu.memref_slice %arg12[%c1_i32_265, %c0_i32_270, %c0_i32_271] : memref<2x128x512xf32, #tpu.memory_space<vmem>> -> memref<1x128x512xf32, #tpu.memory_space<vmem>>
    %531 = tpu.memref_squeeze %530 : memref<1x128x512xf32, #tpu.memory_space<vmem>> -> memref<128x512xf32, #tpu.memory_space<vmem>>
    %532 = tpu.memref_slice %arg13[%c1_i32_266, %c1_i32_267] : memref<2x2x!tpu.dma_semaphore, #tpu.memory_space<semaphore_mem>> -> memref<1x1x!tpu.dma_semaphore, #tpu.memory_space<semaphore_mem>>
    %533 = tpu.memref_squeeze %532 : memref<1x1x!tpu.dma_semaphore, #tpu.memory_space<semaphore_mem>> -> memref<!tpu.dma_semaphore, #tpu.memory_space<semaphore_mem>>
    tpu.enqueue_dma source(%529 : memref<128x512xf32, #tpu.memory_space<any>>) target(%531 : memref<128x512xf32, #tpu.memory_space<vmem>>) target_semaphore(%533 : memref<!tpu.dma_semaphore, #tpu.memory_space<semaphore_mem>>)
    %c2_272 = arith.constant 2 : index
    %c0_273 = arith.constant 0 : index
    %c0_274 = arith.constant 0 : index
    %534 = vector.load %arg1[%c2_272, %c0_273, %c0_274] : memref<5x8x128xf32, #tpu.memory_space<vmem>>, vector<1x8x128xf32>
    %535 = vector.shape_cast %534 : vector<1x8x128xf32> to vector<8x128xf32>
    %c2_275 = arith.constant 2 : index
    %c0_276 = arith.constant 0 : index
    %c0_277 = arith.constant 0 : index
    %536 = vector.load %arg2[%c2_275, %c0_276, %c0_277] : memref<5x8x128xf32, #tpu.memory_space<vmem>>, vector<1x8x128xf32>
    %537 = vector.shape_cast %536 : vector<1x8x128xf32> to vector<8x128xf32>
    %538 = vector.extract_strided_slice %513 {offsets = [0, 0], sizes = [8, 512], strides = [1, 1]} : vector<64x512xf32> to vector<8x512xf32>
    %cst_278 = arith.constant dense<0.000000e+00> : vector<8x512xf32>
    %539 = tpu.matmul %535, %521, %cst_278 {dimension_numbers = #tpu.dot_dimension_numbers<[1], [0], [0], [1], [0, 0, 1, 1], [], []>} : vector<8x128xf32>, vector<128x512xf32>, vector<8x512xf32> -> vector<8x512xf32>
    %540 = arith.addf %538, %539 : vector<8x512xf32>
    %541 = math.tanh %540 : vector<8x512xf32>
    %542 = vector.extract_strided_slice %541 {offsets = [0, 0], sizes = [8, 128], strides = [1, 1]} : vector<8x512xf32> to vector<8x128xf32>
    %cst_279 = arith.constant 5.000000e-01 : f32
    %543 = vector.broadcast %cst_279 : f32 to vector<8x128xf32>
    %544 = arith.mulf %543, %542 : vector<8x128xf32>
    %cst_280 = arith.constant 5.000000e-01 : f32
    %545 = vector.broadcast %cst_280 : f32 to vector<8x128xf32>
    %546 = arith.addf %544, %545 : vector<8x128xf32>
    %547 = vector.extract_strided_slice %541 {offsets = [0, 128], sizes = [8, 128], strides = [1, 1]} : vector<8x512xf32> to vector<8x128xf32>
    %cst_281 = arith.constant 5.000000e-01 : f32
    %548 = vector.broadcast %cst_281 : f32 to vector<8x128xf32>
    %549 = arith.mulf %548, %547 : vector<8x128xf32>
    %cst_282 = arith.constant 5.000000e-01 : f32
    %550 = vector.broadcast %cst_282 : f32 to vector<8x128xf32>
    %551 = arith.addf %549, %550 : vector<8x128xf32>
    %552 = vector.extract_strided_slice %541 {offsets = [0, 256], sizes = [8, 128], strides = [1, 1]} : vector<8x512xf32> to vector<8x128xf32>
    %553 = vector.extract_strided_slice %541 {offsets = [0, 384], sizes = [8, 128], strides = [1, 1]} : vector<8x512xf32> to vector<8x128xf32>
    %cst_283 = arith.constant 5.000000e-01 : f32
    %554 = vector.broadcast %cst_283 : f32 to vector<8x128xf32>
    %555 = arith.mulf %554, %553 : vector<8x128xf32>
    %cst_284 = arith.constant 5.000000e-01 : f32
    %556 = vector.broadcast %cst_284 : f32 to vector<8x128xf32>
    %557 = arith.addf %555, %556 : vector<8x128xf32>
    %558 = arith.mulf %551, %537 : vector<8x128xf32>
    %559 = arith.mulf %546, %552 : vector<8x128xf32>
    %560 = arith.addf %558, %559 : vector<8x128xf32>
    %561 = math.tanh %560 : vector<8x128xf32>
    %562 = arith.mulf %557, %561 : vector<8x128xf32>
    %563 = vector.extract_strided_slice %513 {offsets = [8, 0], sizes = [8, 512], strides = [1, 1]} : vector<64x512xf32> to vector<8x512xf32>
    %cst_285 = arith.constant dense<0.000000e+00> : vector<8x512xf32>
    %564 = tpu.matmul %562, %521, %cst_285 {dimension_numbers = #tpu.dot_dimension_numbers<[1], [0], [0], [1], [0, 0, 1, 1], [], []>} : vector<8x128xf32>, vector<128x512xf32>, vector<8x512xf32> -> vector<8x512xf32>
    %565 = arith.addf %563, %564 : vector<8x512xf32>
    %566 = math.tanh %565 : vector<8x512xf32>
    %567 = vector.extract_strided_slice %566 {offsets = [0, 0], sizes = [8, 128], strides = [1, 1]} : vector<8x512xf32> to vector<8x128xf32>
    %cst_286 = arith.constant 5.000000e-01 : f32
    %568 = vector.broadcast %cst_286 : f32 to vector<8x128xf32>
    %569 = arith.mulf %568, %567 : vector<8x128xf32>
    %cst_287 = arith.constant 5.000000e-01 : f32
    %570 = vector.broadcast %cst_287 : f32 to vector<8x128xf32>
    %571 = arith.addf %569, %570 : vector<8x128xf32>
    %572 = vector.extract_strided_slice %566 {offsets = [0, 128], sizes = [8, 128], strides = [1, 1]} : vector<8x512xf32> to vector<8x128xf32>
    %cst_288 = arith.constant 5.000000e-01 : f32
    %573 = vector.broadcast %cst_288 : f32 to vector<8x128xf32>
    %574 = arith.mulf %573, %572 : vector<8x128xf32>
    %cst_289 = arith.constant 5.000000e-01 : f32
    %575 = vector.broadcast %cst_289 : f32 to vector<8x128xf32>
    %576 = arith.addf %574, %575 : vector<8x128xf32>
    %577 = vector.extract_strided_slice %566 {offsets = [0, 256], sizes = [8, 128], strides = [1, 1]} : vector<8x512xf32> to vector<8x128xf32>
    %578 = vector.extract_strided_slice %566 {offsets = [0, 384], sizes = [8, 128], strides = [1, 1]} : vector<8x512xf32> to vector<8x128xf32>
    %cst_290 = arith.constant 5.000000e-01 : f32
    %579 = vector.broadcast %cst_290 : f32 to vector<8x128xf32>
    %580 = arith.mulf %579, %578 : vector<8x128xf32>
    %cst_291 = arith.constant 5.000000e-01 : f32
    %581 = vector.broadcast %cst_291 : f32 to vector<8x128xf32>
    %582 = arith.addf %580, %581 : vector<8x128xf32>
    %583 = arith.mulf %576, %560 : vector<8x128xf32>
    %584 = arith.mulf %571, %577 : vector<8x128xf32>
    %585 = arith.addf %583, %584 : vector<8x128xf32>
    %586 = math.tanh %585 : vector<8x128xf32>
    %587 = arith.mulf %582, %586 : vector<8x128xf32>
    %588 = vector.extract_strided_slice %513 {offsets = [16, 0], sizes = [8, 512], strides = [1, 1]} : vector<64x512xf32> to vector<8x512xf32>
    %cst_292 = arith.constant dense<0.000000e+00> : vector<8x512xf32>
    %589 = tpu.matmul %587, %521, %cst_292 {dimension_numbers = #tpu.dot_dimension_numbers<[1], [0], [0], [1], [0, 0, 1, 1], [], []>} : vector<8x128xf32>, vector<128x512xf32>, vector<8x512xf32> -> vector<8x512xf32>
    %590 = arith.addf %588, %589 : vector<8x512xf32>
    %591 = math.tanh %590 : vector<8x512xf32>
    %592 = vector.extract_strided_slice %591 {offsets = [0, 0], sizes = [8, 128], strides = [1, 1]} : vector<8x512xf32> to vector<8x128xf32>
    %cst_293 = arith.constant 5.000000e-01 : f32
    %593 = vector.broadcast %cst_293 : f32 to vector<8x128xf32>
    %594 = arith.mulf %593, %592 : vector<8x128xf32>
    %cst_294 = arith.constant 5.000000e-01 : f32
    %595 = vector.broadcast %cst_294 : f32 to vector<8x128xf32>
    %596 = arith.addf %594, %595 : vector<8x128xf32>
    %597 = vector.extract_strided_slice %591 {offsets = [0, 128], sizes = [8, 128], strides = [1, 1]} : vector<8x512xf32> to vector<8x128xf32>
    %cst_295 = arith.constant 5.000000e-01 : f32
    %598 = vector.broadcast %cst_295 : f32 to vector<8x128xf32>
    %599 = arith.mulf %598, %597 : vector<8x128xf32>
    %cst_296 = arith.constant 5.000000e-01 : f32
    %600 = vector.broadcast %cst_296 : f32 to vector<8x128xf32>
    %601 = arith.addf %599, %600 : vector<8x128xf32>
    %602 = vector.extract_strided_slice %591 {offsets = [0, 256], sizes = [8, 128], strides = [1, 1]} : vector<8x512xf32> to vector<8x128xf32>
    %603 = vector.extract_strided_slice %591 {offsets = [0, 384], sizes = [8, 128], strides = [1, 1]} : vector<8x512xf32> to vector<8x128xf32>
    %cst_297 = arith.constant 5.000000e-01 : f32
    %604 = vector.broadcast %cst_297 : f32 to vector<8x128xf32>
    %605 = arith.mulf %604, %603 : vector<8x128xf32>
    %cst_298 = arith.constant 5.000000e-01 : f32
    %606 = vector.broadcast %cst_298 : f32 to vector<8x128xf32>
    %607 = arith.addf %605, %606 : vector<8x128xf32>
    %608 = arith.mulf %601, %585 : vector<8x128xf32>
    %609 = arith.mulf %596, %602 : vector<8x128xf32>
    %610 = arith.addf %608, %609 : vector<8x128xf32>
    %611 = math.tanh %610 : vector<8x128xf32>
    %612 = arith.mulf %607, %611 : vector<8x128xf32>
    %613 = vector.extract_strided_slice %513 {offsets = [24, 0], sizes = [8, 512], strides = [1, 1]} : vector<64x512xf32> to vector<8x512xf32>
    %cst_299 = arith.constant dense<0.000000e+00> : vector<8x512xf32>
    %614 = tpu.matmul %612, %521, %cst_299 {dimension_numbers = #tpu.dot_dimension_numbers<[1], [0], [0], [1], [0, 0, 1, 1], [], []>} : vector<8x128xf32>, vector<128x512xf32>, vector<8x512xf32> -> vector<8x512xf32>
    %615 = arith.addf %613, %614 : vector<8x512xf32>
    %616 = math.tanh %615 : vector<8x512xf32>
    %617 = vector.extract_strided_slice %616 {offsets = [0, 0], sizes = [8, 128], strides = [1, 1]} : vector<8x512xf32> to vector<8x128xf32>
    %cst_300 = arith.constant 5.000000e-01 : f32
    %618 = vector.broadcast %cst_300 : f32 to vector<8x128xf32>
    %619 = arith.mulf %618, %617 : vector<8x128xf32>
    %cst_301 = arith.constant 5.000000e-01 : f32
    %620 = vector.broadcast %cst_301 : f32 to vector<8x128xf32>
    %621 = arith.addf %619, %620 : vector<8x128xf32>
    %622 = vector.extract_strided_slice %616 {offsets = [0, 128], sizes = [8, 128], strides = [1, 1]} : vector<8x512xf32> to vector<8x128xf32>
    %cst_302 = arith.constant 5.000000e-01 : f32
    %623 = vector.broadcast %cst_302 : f32 to vector<8x128xf32>
    %624 = arith.mulf %623, %622 : vector<8x128xf32>
    %cst_303 = arith.constant 5.000000e-01 : f32
    %625 = vector.broadcast %cst_303 : f32 to vector<8x128xf32>
    %626 = arith.addf %624, %625 : vector<8x128xf32>
    %627 = vector.extract_strided_slice %616 {offsets = [0, 256], sizes = [8, 128], strides = [1, 1]} : vector<8x512xf32> to vector<8x128xf32>
    %628 = vector.extract_strided_slice %616 {offsets = [0, 384], sizes = [8, 128], strides = [1, 1]} : vector<8x512xf32> to vector<8x128xf32>
    %cst_304 = arith.constant 5.000000e-01 : f32
    %629 = vector.broadcast %cst_304 : f32 to vector<8x128xf32>
    %630 = arith.mulf %629, %628 : vector<8x128xf32>
    %cst_305 = arith.constant 5.000000e-01 : f32
    %631 = vector.broadcast %cst_305 : f32 to vector<8x128xf32>
    %632 = arith.addf %630, %631 : vector<8x128xf32>
    %633 = arith.mulf %626, %610 : vector<8x128xf32>
    %634 = arith.mulf %621, %627 : vector<8x128xf32>
    %635 = arith.addf %633, %634 : vector<8x128xf32>
    %636 = math.tanh %635 : vector<8x128xf32>
    %637 = arith.mulf %632, %636 : vector<8x128xf32>
    %638 = vector.extract_strided_slice %513 {offsets = [32, 0], sizes = [8, 512], strides = [1, 1]} : vector<64x512xf32> to vector<8x512xf32>
    %cst_306 = arith.constant dense<0.000000e+00> : vector<8x512xf32>
    %639 = tpu.matmul %637, %521, %cst_306 {dimension_numbers = #tpu.dot_dimension_numbers<[1], [0], [0], [1], [0, 0, 1, 1], [], []>} : vector<8x128xf32>, vector<128x512xf32>, vector<8x512xf32> -> vector<8x512xf32>
    %640 = arith.addf %638, %639 : vector<8x512xf32>
    %641 = math.tanh %640 : vector<8x512xf32>
    %642 = vector.extract_strided_slice %641 {offsets = [0, 0], sizes = [8, 128], strides = [1, 1]} : vector<8x512xf32> to vector<8x128xf32>
    %cst_307 = arith.constant 5.000000e-01 : f32
    %643 = vector.broadcast %cst_307 : f32 to vector<8x128xf32>
    %644 = arith.mulf %643, %642 : vector<8x128xf32>
    %cst_308 = arith.constant 5.000000e-01 : f32
    %645 = vector.broadcast %cst_308 : f32 to vector<8x128xf32>
    %646 = arith.addf %644, %645 : vector<8x128xf32>
    %647 = vector.extract_strided_slice %641 {offsets = [0, 128], sizes = [8, 128], strides = [1, 1]} : vector<8x512xf32> to vector<8x128xf32>
    %cst_309 = arith.constant 5.000000e-01 : f32
    %648 = vector.broadcast %cst_309 : f32 to vector<8x128xf32>
    %649 = arith.mulf %648, %647 : vector<8x128xf32>
    %cst_310 = arith.constant 5.000000e-01 : f32
    %650 = vector.broadcast %cst_310 : f32 to vector<8x128xf32>
    %651 = arith.addf %649, %650 : vector<8x128xf32>
    %652 = vector.extract_strided_slice %641 {offsets = [0, 256], sizes = [8, 128], strides = [1, 1]} : vector<8x512xf32> to vector<8x128xf32>
    %653 = vector.extract_strided_slice %641 {offsets = [0, 384], sizes = [8, 128], strides = [1, 1]} : vector<8x512xf32> to vector<8x128xf32>
    %cst_311 = arith.constant 5.000000e-01 : f32
    %654 = vector.broadcast %cst_311 : f32 to vector<8x128xf32>
    %655 = arith.mulf %654, %653 : vector<8x128xf32>
    %cst_312 = arith.constant 5.000000e-01 : f32
    %656 = vector.broadcast %cst_312 : f32 to vector<8x128xf32>
    %657 = arith.addf %655, %656 : vector<8x128xf32>
    %658 = arith.mulf %651, %635 : vector<8x128xf32>
    %659 = arith.mulf %646, %652 : vector<8x128xf32>
    %660 = arith.addf %658, %659 : vector<8x128xf32>
    %661 = math.tanh %660 : vector<8x128xf32>
    %662 = arith.mulf %657, %661 : vector<8x128xf32>
    %663 = vector.extract_strided_slice %513 {offsets = [40, 0], sizes = [8, 512], strides = [1, 1]} : vector<64x512xf32> to vector<8x512xf32>
    %cst_313 = arith.constant dense<0.000000e+00> : vector<8x512xf32>
    %664 = tpu.matmul %662, %521, %cst_313 {dimension_numbers = #tpu.dot_dimension_numbers<[1], [0], [0], [1], [0, 0, 1, 1], [], []>} : vector<8x128xf32>, vector<128x512xf32>, vector<8x512xf32> -> vector<8x512xf32>
    %665 = arith.addf %663, %664 : vector<8x512xf32>
    %666 = math.tanh %665 : vector<8x512xf32>
    %667 = vector.extract_strided_slice %666 {offsets = [0, 0], sizes = [8, 128], strides = [1, 1]} : vector<8x512xf32> to vector<8x128xf32>
    %cst_314 = arith.constant 5.000000e-01 : f32
    %668 = vector.broadcast %cst_314 : f32 to vector<8x128xf32>
    %669 = arith.mulf %668, %667 : vector<8x128xf32>
    %cst_315 = arith.constant 5.000000e-01 : f32
    %670 = vector.broadcast %cst_315 : f32 to vector<8x128xf32>
    %671 = arith.addf %669, %670 : vector<8x128xf32>
    %672 = vector.extract_strided_slice %666 {offsets = [0, 128], sizes = [8, 128], strides = [1, 1]} : vector<8x512xf32> to vector<8x128xf32>
    %cst_316 = arith.constant 5.000000e-01 : f32
    %673 = vector.broadcast %cst_316 : f32 to vector<8x128xf32>
    %674 = arith.mulf %673, %672 : vector<8x128xf32>
    %cst_317 = arith.constant 5.000000e-01 : f32
    %675 = vector.broadcast %cst_317 : f32 to vector<8x128xf32>
    %676 = arith.addf %674, %675 : vector<8x128xf32>
    %677 = vector.extract_strided_slice %666 {offsets = [0, 256], sizes = [8, 128], strides = [1, 1]} : vector<8x512xf32> to vector<8x128xf32>
    %678 = vector.extract_strided_slice %666 {offsets = [0, 384], sizes = [8, 128], strides = [1, 1]} : vector<8x512xf32> to vector<8x128xf32>
    %cst_318 = arith.constant 5.000000e-01 : f32
    %679 = vector.broadcast %cst_318 : f32 to vector<8x128xf32>
    %680 = arith.mulf %679, %678 : vector<8x128xf32>
    %cst_319 = arith.constant 5.000000e-01 : f32
    %681 = vector.broadcast %cst_319 : f32 to vector<8x128xf32>
    %682 = arith.addf %680, %681 : vector<8x128xf32>
    %683 = arith.mulf %676, %660 : vector<8x128xf32>
    %684 = arith.mulf %671, %677 : vector<8x128xf32>
    %685 = arith.addf %683, %684 : vector<8x128xf32>
    %686 = math.tanh %685 : vector<8x128xf32>
    %687 = arith.mulf %682, %686 : vector<8x128xf32>
    %688 = vector.extract_strided_slice %513 {offsets = [48, 0], sizes = [8, 512], strides = [1, 1]} : vector<64x512xf32> to vector<8x512xf32>
    %cst_320 = arith.constant dense<0.000000e+00> : vector<8x512xf32>
    %689 = tpu.matmul %687, %521, %cst_320 {dimension_numbers = #tpu.dot_dimension_numbers<[1], [0], [0], [1], [0, 0, 1, 1], [], []>} : vector<8x128xf32>, vector<128x512xf32>, vector<8x512xf32> -> vector<8x512xf32>
    %690 = arith.addf %688, %689 : vector<8x512xf32>
    %691 = math.tanh %690 : vector<8x512xf32>
    %692 = vector.extract_strided_slice %691 {offsets = [0, 0], sizes = [8, 128], strides = [1, 1]} : vector<8x512xf32> to vector<8x128xf32>
    %cst_321 = arith.constant 5.000000e-01 : f32
    %693 = vector.broadcast %cst_321 : f32 to vector<8x128xf32>
    %694 = arith.mulf %693, %692 : vector<8x128xf32>
    %cst_322 = arith.constant 5.000000e-01 : f32
    %695 = vector.broadcast %cst_322 : f32 to vector<8x128xf32>
    %696 = arith.addf %694, %695 : vector<8x128xf32>
    %697 = vector.extract_strided_slice %691 {offsets = [0, 128], sizes = [8, 128], strides = [1, 1]} : vector<8x512xf32> to vector<8x128xf32>
    %cst_323 = arith.constant 5.000000e-01 : f32
    %698 = vector.broadcast %cst_323 : f32 to vector<8x128xf32>
    %699 = arith.mulf %698, %697 : vector<8x128xf32>
    %cst_324 = arith.constant 5.000000e-01 : f32
    %700 = vector.broadcast %cst_324 : f32 to vector<8x128xf32>
    %701 = arith.addf %699, %700 : vector<8x128xf32>
    %702 = vector.extract_strided_slice %691 {offsets = [0, 256], sizes = [8, 128], strides = [1, 1]} : vector<8x512xf32> to vector<8x128xf32>
    %703 = vector.extract_strided_slice %691 {offsets = [0, 384], sizes = [8, 128], strides = [1, 1]} : vector<8x512xf32> to vector<8x128xf32>
    %cst_325 = arith.constant 5.000000e-01 : f32
    %704 = vector.broadcast %cst_325 : f32 to vector<8x128xf32>
    %705 = arith.mulf %704, %703 : vector<8x128xf32>
    %cst_326 = arith.constant 5.000000e-01 : f32
    %706 = vector.broadcast %cst_326 : f32 to vector<8x128xf32>
    %707 = arith.addf %705, %706 : vector<8x128xf32>
    %708 = arith.mulf %701, %685 : vector<8x128xf32>
    %709 = arith.mulf %696, %702 : vector<8x128xf32>
    %710 = arith.addf %708, %709 : vector<8x128xf32>
    %711 = math.tanh %710 : vector<8x128xf32>
    %712 = arith.mulf %707, %711 : vector<8x128xf32>
    %713 = vector.extract_strided_slice %513 {offsets = [56, 0], sizes = [8, 512], strides = [1, 1]} : vector<64x512xf32> to vector<8x512xf32>
    %cst_327 = arith.constant dense<0.000000e+00> : vector<8x512xf32>
    %714 = tpu.matmul %712, %521, %cst_327 {dimension_numbers = #tpu.dot_dimension_numbers<[1], [0], [0], [1], [0, 0, 1, 1], [], []>} : vector<8x128xf32>, vector<128x512xf32>, vector<8x512xf32> -> vector<8x512xf32>
    %715 = arith.addf %713, %714 : vector<8x512xf32>
    %716 = math.tanh %715 : vector<8x512xf32>
    %717 = vector.extract_strided_slice %716 {offsets = [0, 0], sizes = [8, 128], strides = [1, 1]} : vector<8x512xf32> to vector<8x128xf32>
    %cst_328 = arith.constant 5.000000e-01 : f32
    %718 = vector.broadcast %cst_328 : f32 to vector<8x128xf32>
    %719 = arith.mulf %718, %717 : vector<8x128xf32>
    %cst_329 = arith.constant 5.000000e-01 : f32
    %720 = vector.broadcast %cst_329 : f32 to vector<8x128xf32>
    %721 = arith.addf %719, %720 : vector<8x128xf32>
    %722 = vector.extract_strided_slice %716 {offsets = [0, 128], sizes = [8, 128], strides = [1, 1]} : vector<8x512xf32> to vector<8x128xf32>
    %cst_330 = arith.constant 5.000000e-01 : f32
    %723 = vector.broadcast %cst_330 : f32 to vector<8x128xf32>
    %724 = arith.mulf %723, %722 : vector<8x128xf32>
    %cst_331 = arith.constant 5.000000e-01 : f32
    %725 = vector.broadcast %cst_331 : f32 to vector<8x128xf32>
    %726 = arith.addf %724, %725 : vector<8x128xf32>
    %727 = vector.extract_strided_slice %716 {offsets = [0, 256], sizes = [8, 128], strides = [1, 1]} : vector<8x512xf32> to vector<8x128xf32>
    %728 = vector.extract_strided_slice %716 {offsets = [0, 384], sizes = [8, 128], strides = [1, 1]} : vector<8x512xf32> to vector<8x128xf32>
    %cst_332 = arith.constant 5.000000e-01 : f32
    %729 = vector.broadcast %cst_332 : f32 to vector<8x128xf32>
    %730 = arith.mulf %729, %728 : vector<8x128xf32>
    %cst_333 = arith.constant 5.000000e-01 : f32
    %731 = vector.broadcast %cst_333 : f32 to vector<8x128xf32>
    %732 = arith.addf %730, %731 : vector<8x128xf32>
    %733 = arith.mulf %726, %710 : vector<8x128xf32>
    %734 = arith.mulf %721, %727 : vector<8x128xf32>
    %735 = arith.addf %733, %734 : vector<8x128xf32>
    %736 = math.tanh %735 : vector<8x128xf32>
    %737 = arith.mulf %732, %736 : vector<8x128xf32>
    %c2_334 = arith.constant 2 : index
    %c0_335 = arith.constant 0 : index
    %c0_336 = arith.constant 0 : index
    %738 = vector.load %arg9[%c2_334, %c0_335, %c0_336] : memref<5x8x128xf32, #tpu.memory_space<vmem>>, vector<1x8x128xf32>
    %739 = vector.shape_cast %738 : vector<1x8x128xf32> to vector<8x128xf32>
    %740 = vector.shape_cast %737 : vector<8x128xf32> to vector<1x8x128xf32>
    tpu.vector_store %arg9[%c2_334, %c0_335, %c0_336], %740 {strides = array<i32>} : memref<5x8x128xf32, #tpu.memory_space<vmem>>, vector<1x8x128xf32>,
    %c2_337 = arith.constant 2 : index
    %c0_338 = arith.constant 0 : index
    %c0_339 = arith.constant 0 : index
    %741 = vector.load %arg10[%c2_337, %c0_338, %c0_339] : memref<5x8x128xf32, #tpu.memory_space<vmem>>, vector<1x8x128xf32>
    %742 = vector.shape_cast %741 : vector<1x8x128xf32> to vector<8x128xf32>
    %743 = vector.shape_cast %735 : vector<8x128xf32> to vector<1x8x128xf32>
    tpu.vector_store %arg10[%c2_337, %c0_338, %c0_339], %743 {strides = array<i32>} : memref<5x8x128xf32, #tpu.memory_space<vmem>>, vector<1x8x128xf32>,
    %744 = tpu.concatenate %562, %587, %612, %637, %662, %687, %712, %737 in 0 : vector<8x128xf32>, vector<8x128xf32>, vector<8x128xf32>, vector<8x128xf32>, vector<8x128xf32>, vector<8x128xf32>, vector<8x128xf32>, vector<8x128xf32> -> vector<64x128xf32>
    %c3_i32_340 = arith.constant 3 : i32
    %c1_i32_341 = arith.constant 1 : i32
    %c0_i32_342 = arith.constant 0 : i32
    %c1_i32_343 = arith.constant 1 : i32
    %c0_i32_344 = arith.constant 0 : i32
    %c0_i32_345 = arith.constant 0 : i32
    %745 = tpu.memref_slice %arg6[%c3_i32_340, %c0_i32_344, %c0_i32_345] : memref<5x128x512xf32, #tpu.memory_space<any>> -> memref<1x128x512xf32, #tpu.memory_space<any>>
    %746 = tpu.memref_squeeze %745 : memref<1x128x512xf32, #tpu.memory_space<any>> -> memref<128x512xf32, #tpu.memory_space<any>>
    %c0_i32_346 = arith.constant 0 : i32
    %c0_i32_347 = arith.constant 0 : i32
    %747 = tpu.memref_slice %arg11[%c1_i32_341, %c0_i32_346, %c0_i32_347] : memref<2x128x512xf32, #tpu.memory_space<vmem>> -> memref<1x128x512xf32, #tpu.memory_space<vmem>>
    %748 = tpu.memref_squeeze %747 : memref<1x128x512xf32, #tpu.memory_space<vmem>> -> memref<128x512xf32, #tpu.memory_space<vmem>>
    %749 = tpu.memref_slice %arg13[%c0_i32_342, %c1_i32_343] : memref<2x2x!tpu.dma_semaphore, #tpu.memory_space<semaphore_mem>> -> memref<1x1x!tpu.dma_semaphore, #tpu.memory_space<semaphore_mem>>
    %750 = tpu.memref_squeeze %749 : memref<1x1x!tpu.dma_semaphore, #tpu.memory_space<semaphore_mem>> -> memref<!tpu.dma_semaphore, #tpu.memory_space<semaphore_mem>>
    tpu.wait_dma2 semaphore(%750 : memref<!tpu.dma_semaphore, #tpu.memory_space<semaphore_mem>>) src(%746 : memref<128x512xf32, #tpu.memory_space<any>>) dst(%748 : memref<128x512xf32, #tpu.memory_space<vmem>>)
    %c1_348 = arith.constant 1 : index
    %c0_349 = arith.constant 0 : index
    %c0_350 = arith.constant 0 : index
    %751 = vector.load %arg11[%c1_348, %c0_349, %c0_350] : memref<2x128x512xf32, #tpu.memory_space<vmem>>, vector<1x128x512xf32>
    %752 = vector.shape_cast %751 : vector<1x128x512xf32> to vector<128x512xf32>
    %cst_351 = arith.constant dense<0.000000e+00> : vector<64x512xf32>
    %753 = tpu.matmul %744, %752, %cst_351 {dimension_numbers = #tpu.dot_dimension_numbers<[1], [0], [0], [1], [0, 0, 1, 1], [], []>} : vector<64x128xf32>, vector<128x512xf32>, vector<64x512xf32> -> vector<64x512xf32>
    %c3 = arith.constant 3 : index
    %c0_352 = arith.constant 0 : index
    %c0_353 = arith.constant 0 : index
    %754 = vector.load %arg3[%c3, %c0_352, %c0_353] : memref<5x1x512xf32, #tpu.memory_space<vmem>>, vector<1x1x512xf32>
    %755 = vector.shape_cast %754 : vector<1x1x512xf32> to vector<1x512xf32>
    %756 = vector.broadcast %755 : vector<1x512xf32> to vector<64x512xf32>
    %757 = arith.addf %753, %756 : vector<64x512xf32>
    %c3_i32_354 = arith.constant 3 : i32
    %c1_i32_355 = arith.constant 1 : i32
    %c1_i32_356 = arith.constant 1 : i32
    %c1_i32_357 = arith.constant 1 : i32
    %c0_i32_358 = arith.constant 0 : i32
    %c0_i32_359 = arith.constant 0 : i32
    %758 = tpu.memref_slice %arg7[%c3_i32_354, %c0_i32_358, %c0_i32_359] : memref<5x128x512xf32, #tpu.memory_space<any>> -> memref<1x128x512xf32, #tpu.memory_space<any>>
    %759 = tpu.memref_squeeze %758 : memref<1x128x512xf32, #tpu.memory_space<any>> -> memref<128x512xf32, #tpu.memory_space<any>>
    %c0_i32_360 = arith.constant 0 : i32
    %c0_i32_361 = arith.constant 0 : i32
    %760 = tpu.memref_slice %arg12[%c1_i32_355, %c0_i32_360, %c0_i32_361] : memref<2x128x512xf32, #tpu.memory_space<vmem>> -> memref<1x128x512xf32, #tpu.memory_space<vmem>>
    %761 = tpu.memref_squeeze %760 : memref<1x128x512xf32, #tpu.memory_space<vmem>> -> memref<128x512xf32, #tpu.memory_space<vmem>>
    %762 = tpu.memref_slice %arg13[%c1_i32_356, %c1_i32_357] : memref<2x2x!tpu.dma_semaphore, #tpu.memory_space<semaphore_mem>> -> memref<1x1x!tpu.dma_semaphore, #tpu.memory_space<semaphore_mem>>
    %763 = tpu.memref_squeeze %762 : memref<1x1x!tpu.dma_semaphore, #tpu.memory_space<semaphore_mem>> -> memref<!tpu.dma_semaphore, #tpu.memory_space<semaphore_mem>>
    tpu.wait_dma2 semaphore(%763 : memref<!tpu.dma_semaphore, #tpu.memory_space<semaphore_mem>>) src(%759 : memref<128x512xf32, #tpu.memory_space<any>>) dst(%761 : memref<128x512xf32, #tpu.memory_space<vmem>>)
    %c1_362 = arith.constant 1 : index
    %c0_363 = arith.constant 0 : index
    %c0_364 = arith.constant 0 : index
    %764 = vector.load %arg12[%c1_362, %c0_363, %c0_364] : memref<2x128x512xf32, #tpu.memory_space<vmem>>, vector<1x128x512xf32>
    %765 = vector.shape_cast %764 : vector<1x128x512xf32> to vector<128x512xf32>
    %c4_i32 = arith.constant 4 : i32
    %c0_i32_365 = arith.constant 0 : i32
    %c0_i32_366 = arith.constant 0 : i32
    %c0_i32_367 = arith.constant 0 : i32
    %c0_i32_368 = arith.constant 0 : i32
    %c0_i32_369 = arith.constant 0 : i32
    %766 = tpu.memref_slice %arg6[%c4_i32, %c0_i32_368, %c0_i32_369] : memref<5x128x512xf32, #tpu.memory_space<any>> -> memref<1x128x512xf32, #tpu.memory_space<any>>
    %767 = tpu.memref_squeeze %766 : memref<1x128x512xf32, #tpu.memory_space<any>> -> memref<128x512xf32, #tpu.memory_space<any>>
    %c0_i32_370 = arith.constant 0 : i32
    %c0_i32_371 = arith.constant 0 : i32
    %768 = tpu.memref_slice %arg11[%c0_i32_365, %c0_i32_370, %c0_i32_371] : memref<2x128x512xf32, #tpu.memory_space<vmem>> -> memref<1x128x512xf32, #tpu.memory_space<vmem>>
    %769 = tpu.memref_squeeze %768 : memref<1x128x512xf32, #tpu.memory_space<vmem>> -> memref<128x512xf32, #tpu.memory_space<vmem>>
    %770 = tpu.memref_slice %arg13[%c0_i32_366, %c0_i32_367] : memref<2x2x!tpu.dma_semaphore, #tpu.memory_space<semaphore_mem>> -> memref<1x1x!tpu.dma_semaphore, #tpu.memory_space<semaphore_mem>>
    %771 = tpu.memref_squeeze %770 : memref<1x1x!tpu.dma_semaphore, #tpu.memory_space<semaphore_mem>> -> memref<!tpu.dma_semaphore, #tpu.memory_space<semaphore_mem>>
    tpu.enqueue_dma source(%767 : memref<128x512xf32, #tpu.memory_space<any>>) target(%769 : memref<128x512xf32, #tpu.memory_space<vmem>>) target_semaphore(%771 : memref<!tpu.dma_semaphore, #tpu.memory_space<semaphore_mem>>)
    %c4_i32_372 = arith.constant 4 : i32
    %c0_i32_373 = arith.constant 0 : i32
    %c1_i32_374 = arith.constant 1 : i32
    %c0_i32_375 = arith.constant 0 : i32
    %c0_i32_376 = arith.constant 0 : i32
    %c0_i32_377 = arith.constant 0 : i32
    %772 = tpu.memref_slice %arg7[%c4_i32_372, %c0_i32_376, %c0_i32_377] : memref<5x128x512xf32, #tpu.memory_space<any>> -> memref<1x128x512xf32, #tpu.memory_space<any>>
    %773 = tpu.memref_squeeze %772 : memref<1x128x512xf32, #tpu.memory_space<any>> -> memref<128x512xf32, #tpu.memory_space<any>>
    %c0_i32_378 = arith.constant 0 : i32
    %c0_i32_379 = arith.constant 0 : i32
    %774 = tpu.memref_slice %arg12[%c0_i32_373, %c0_i32_378, %c0_i32_379] : memref<2x128x512xf32, #tpu.memory_space<vmem>> -> memref<1x128x512xf32, #tpu.memory_space<vmem>>
    %775 = tpu.memref_squeeze %774 : memref<1x128x512xf32, #tpu.memory_space<vmem>> -> memref<128x512xf32, #tpu.memory_space<vmem>>
    %776 = tpu.memref_slice %arg13[%c1_i32_374, %c0_i32_375] : memref<2x2x!tpu.dma_semaphore, #tpu.memory_space<semaphore_mem>> -> memref<1x1x!tpu.dma_semaphore, #tpu.memory_space<semaphore_mem>>
    %777 = tpu.memref_squeeze %776 : memref<1x1x!tpu.dma_semaphore, #tpu.memory_space<semaphore_mem>> -> memref<!tpu.dma_semaphore, #tpu.memory_space<semaphore_mem>>
    tpu.enqueue_dma source(%773 : memref<128x512xf32, #tpu.memory_space<any>>) target(%775 : memref<128x512xf32, #tpu.memory_space<vmem>>) target_semaphore(%777 : memref<!tpu.dma_semaphore, #tpu.memory_space<semaphore_mem>>)
    %c3_380 = arith.constant 3 : index
    %c0_381 = arith.constant 0 : index
    %c0_382 = arith.constant 0 : index
    %778 = vector.load %arg1[%c3_380, %c0_381, %c0_382] : memref<5x8x128xf32, #tpu.memory_space<vmem>>, vector<1x8x128xf32>
    %779 = vector.shape_cast %778 : vector<1x8x128xf32> to vector<8x128xf32>
    %c3_383 = arith.constant 3 : index
    %c0_384 = arith.constant 0 : index
    %c0_385 = arith.constant 0 : index
    %780 = vector.load %arg2[%c3_383, %c0_384, %c0_385] : memref<5x8x128xf32, #tpu.memory_space<vmem>>, vector<1x8x128xf32>
    %781 = vector.shape_cast %780 : vector<1x8x128xf32> to vector<8x128xf32>
    %782 = vector.extract_strided_slice %757 {offsets = [0, 0], sizes = [8, 512], strides = [1, 1]} : vector<64x512xf32> to vector<8x512xf32>
    %cst_386 = arith.constant dense<0.000000e+00> : vector<8x512xf32>
    %783 = tpu.matmul %779, %765, %cst_386 {dimension_numbers = #tpu.dot_dimension_numbers<[1], [0], [0], [1], [0, 0, 1, 1], [], []>} : vector<8x128xf32>, vector<128x512xf32>, vector<8x512xf32> -> vector<8x512xf32>
    %784 = arith.addf %782, %783 : vector<8x512xf32>
    %785 = math.tanh %784 : vector<8x512xf32>
    %786 = vector.extract_strided_slice %785 {offsets = [0, 0], sizes = [8, 128], strides = [1, 1]} : vector<8x512xf32> to vector<8x128xf32>
    %cst_387 = arith.constant 5.000000e-01 : f32
    %787 = vector.broadcast %cst_387 : f32 to vector<8x128xf32>
    %788 = arith.mulf %787, %786 : vector<8x128xf32>
    %cst_388 = arith.constant 5.000000e-01 : f32
    %789 = vector.broadcast %cst_388 : f32 to vector<8x128xf32>
    %790 = arith.addf %788, %789 : vector<8x128xf32>
    %791 = vector.extract_strided_slice %785 {offsets = [0, 128], sizes = [8, 128], strides = [1, 1]} : vector<8x512xf32> to vector<8x128xf32>
    %cst_389 = arith.constant 5.000000e-01 : f32
    %792 = vector.broadcast %cst_389 : f32 to vector<8x128xf32>
    %793 = arith.mulf %792, %791 : vector<8x128xf32>
    %cst_390 = arith.constant 5.000000e-01 : f32
    %794 = vector.broadcast %cst_390 : f32 to vector<8x128xf32>
    %795 = arith.addf %793, %794 : vector<8x128xf32>
    %796 = vector.extract_strided_slice %785 {offsets = [0, 256], sizes = [8, 128], strides = [1, 1]} : vector<8x512xf32> to vector<8x128xf32>
    %797 = vector.extract_strided_slice %785 {offsets = [0, 384], sizes = [8, 128], strides = [1, 1]} : vector<8x512xf32> to vector<8x128xf32>
    %cst_391 = arith.constant 5.000000e-01 : f32
    %798 = vector.broadcast %cst_391 : f32 to vector<8x128xf32>
    %799 = arith.mulf %798, %797 : vector<8x128xf32>
    %cst_392 = arith.constant 5.000000e-01 : f32
    %800 = vector.broadcast %cst_392 : f32 to vector<8x128xf32>
    %801 = arith.addf %799, %800 : vector<8x128xf32>
    %802 = arith.mulf %795, %781 : vector<8x128xf32>
    %803 = arith.mulf %790, %796 : vector<8x128xf32>
    %804 = arith.addf %802, %803 : vector<8x128xf32>
    %805 = math.tanh %804 : vector<8x128xf32>
    %806 = arith.mulf %801, %805 : vector<8x128xf32>
    %807 = vector.extract_strided_slice %757 {offsets = [8, 0], sizes = [8, 512], strides = [1, 1]} : vector<64x512xf32> to vector<8x512xf32>
    %cst_393 = arith.constant dense<0.000000e+00> : vector<8x512xf32>
    %808 = tpu.matmul %806, %765, %cst_393 {dimension_numbers = #tpu.dot_dimension_numbers<[1], [0], [0], [1], [0, 0, 1, 1], [], []>} : vector<8x128xf32>, vector<128x512xf32>, vector<8x512xf32> -> vector<8x512xf32>
    %809 = arith.addf %807, %808 : vector<8x512xf32>
    %810 = math.tanh %809 : vector<8x512xf32>
    %811 = vector.extract_strided_slice %810 {offsets = [0, 0], sizes = [8, 128], strides = [1, 1]} : vector<8x512xf32> to vector<8x128xf32>
    %cst_394 = arith.constant 5.000000e-01 : f32
    %812 = vector.broadcast %cst_394 : f32 to vector<8x128xf32>
    %813 = arith.mulf %812, %811 : vector<8x128xf32>
    %cst_395 = arith.constant 5.000000e-01 : f32
    %814 = vector.broadcast %cst_395 : f32 to vector<8x128xf32>
    %815 = arith.addf %813, %814 : vector<8x128xf32>
    %816 = vector.extract_strided_slice %810 {offsets = [0, 128], sizes = [8, 128], strides = [1, 1]} : vector<8x512xf32> to vector<8x128xf32>
    %cst_396 = arith.constant 5.000000e-01 : f32
    %817 = vector.broadcast %cst_396 : f32 to vector<8x128xf32>
    %818 = arith.mulf %817, %816 : vector<8x128xf32>
    %cst_397 = arith.constant 5.000000e-01 : f32
    %819 = vector.broadcast %cst_397 : f32 to vector<8x128xf32>
    %820 = arith.addf %818, %819 : vector<8x128xf32>
    %821 = vector.extract_strided_slice %810 {offsets = [0, 256], sizes = [8, 128], strides = [1, 1]} : vector<8x512xf32> to vector<8x128xf32>
    %822 = vector.extract_strided_slice %810 {offsets = [0, 384], sizes = [8, 128], strides = [1, 1]} : vector<8x512xf32> to vector<8x128xf32>
    %cst_398 = arith.constant 5.000000e-01 : f32
    %823 = vector.broadcast %cst_398 : f32 to vector<8x128xf32>
    %824 = arith.mulf %823, %822 : vector<8x128xf32>
    %cst_399 = arith.constant 5.000000e-01 : f32
    %825 = vector.broadcast %cst_399 : f32 to vector<8x128xf32>
    %826 = arith.addf %824, %825 : vector<8x128xf32>
    %827 = arith.mulf %820, %804 : vector<8x128xf32>
    %828 = arith.mulf %815, %821 : vector<8x128xf32>
    %829 = arith.addf %827, %828 : vector<8x128xf32>
    %830 = math.tanh %829 : vector<8x128xf32>
    %831 = arith.mulf %826, %830 : vector<8x128xf32>
    %832 = vector.extract_strided_slice %757 {offsets = [16, 0], sizes = [8, 512], strides = [1, 1]} : vector<64x512xf32> to vector<8x512xf32>
    %cst_400 = arith.constant dense<0.000000e+00> : vector<8x512xf32>
    %833 = tpu.matmul %831, %765, %cst_400 {dimension_numbers = #tpu.dot_dimension_numbers<[1], [0], [0], [1], [0, 0, 1, 1], [], []>} : vector<8x128xf32>, vector<128x512xf32>, vector<8x512xf32> -> vector<8x512xf32>
    %834 = arith.addf %832, %833 : vector<8x512xf32>
    %835 = math.tanh %834 : vector<8x512xf32>
    %836 = vector.extract_strided_slice %835 {offsets = [0, 0], sizes = [8, 128], strides = [1, 1]} : vector<8x512xf32> to vector<8x128xf32>
    %cst_401 = arith.constant 5.000000e-01 : f32
    %837 = vector.broadcast %cst_401 : f32 to vector<8x128xf32>
    %838 = arith.mulf %837, %836 : vector<8x128xf32>
    %cst_402 = arith.constant 5.000000e-01 : f32
    %839 = vector.broadcast %cst_402 : f32 to vector<8x128xf32>
    %840 = arith.addf %838, %839 : vector<8x128xf32>
    %841 = vector.extract_strided_slice %835 {offsets = [0, 128], sizes = [8, 128], strides = [1, 1]} : vector<8x512xf32> to vector<8x128xf32>
    %cst_403 = arith.constant 5.000000e-01 : f32
    %842 = vector.broadcast %cst_403 : f32 to vector<8x128xf32>
    %843 = arith.mulf %842, %841 : vector<8x128xf32>
    %cst_404 = arith.constant 5.000000e-01 : f32
    %844 = vector.broadcast %cst_404 : f32 to vector<8x128xf32>
    %845 = arith.addf %843, %844 : vector<8x128xf32>
    %846 = vector.extract_strided_slice %835 {offsets = [0, 256], sizes = [8, 128], strides = [1, 1]} : vector<8x512xf32> to vector<8x128xf32>
    %847 = vector.extract_strided_slice %835 {offsets = [0, 384], sizes = [8, 128], strides = [1, 1]} : vector<8x512xf32> to vector<8x128xf32>
    %cst_405 = arith.constant 5.000000e-01 : f32
    %848 = vector.broadcast %cst_405 : f32 to vector<8x128xf32>
    %849 = arith.mulf %848, %847 : vector<8x128xf32>
    %cst_406 = arith.constant 5.000000e-01 : f32
    %850 = vector.broadcast %cst_406 : f32 to vector<8x128xf32>
    %851 = arith.addf %849, %850 : vector<8x128xf32>
    %852 = arith.mulf %845, %829 : vector<8x128xf32>
    %853 = arith.mulf %840, %846 : vector<8x128xf32>
    %854 = arith.addf %852, %853 : vector<8x128xf32>
    %855 = math.tanh %854 : vector<8x128xf32>
    %856 = arith.mulf %851, %855 : vector<8x128xf32>
    %857 = vector.extract_strided_slice %757 {offsets = [24, 0], sizes = [8, 512], strides = [1, 1]} : vector<64x512xf32> to vector<8x512xf32>
    %cst_407 = arith.constant dense<0.000000e+00> : vector<8x512xf32>
    %858 = tpu.matmul %856, %765, %cst_407 {dimension_numbers = #tpu.dot_dimension_numbers<[1], [0], [0], [1], [0, 0, 1, 1], [], []>} : vector<8x128xf32>, vector<128x512xf32>, vector<8x512xf32> -> vector<8x512xf32>
    %859 = arith.addf %857, %858 : vector<8x512xf32>
    %860 = math.tanh %859 : vector<8x512xf32>
    %861 = vector.extract_strided_slice %860 {offsets = [0, 0], sizes = [8, 128], strides = [1, 1]} : vector<8x512xf32> to vector<8x128xf32>
    %cst_408 = arith.constant 5.000000e-01 : f32
    %862 = vector.broadcast %cst_408 : f32 to vector<8x128xf32>
    %863 = arith.mulf %862, %861 : vector<8x128xf32>
    %cst_409 = arith.constant 5.000000e-01 : f32
    %864 = vector.broadcast %cst_409 : f32 to vector<8x128xf32>
    %865 = arith.addf %863, %864 : vector<8x128xf32>
    %866 = vector.extract_strided_slice %860 {offsets = [0, 128], sizes = [8, 128], strides = [1, 1]} : vector<8x512xf32> to vector<8x128xf32>
    %cst_410 = arith.constant 5.000000e-01 : f32
    %867 = vector.broadcast %cst_410 : f32 to vector<8x128xf32>
    %868 = arith.mulf %867, %866 : vector<8x128xf32>
    %cst_411 = arith.constant 5.000000e-01 : f32
    %869 = vector.broadcast %cst_411 : f32 to vector<8x128xf32>
    %870 = arith.addf %868, %869 : vector<8x128xf32>
    %871 = vector.extract_strided_slice %860 {offsets = [0, 256], sizes = [8, 128], strides = [1, 1]} : vector<8x512xf32> to vector<8x128xf32>
    %872 = vector.extract_strided_slice %860 {offsets = [0, 384], sizes = [8, 128], strides = [1, 1]} : vector<8x512xf32> to vector<8x128xf32>
    %cst_412 = arith.constant 5.000000e-01 : f32
    %873 = vector.broadcast %cst_412 : f32 to vector<8x128xf32>
    %874 = arith.mulf %873, %872 : vector<8x128xf32>
    %cst_413 = arith.constant 5.000000e-01 : f32
    %875 = vector.broadcast %cst_413 : f32 to vector<8x128xf32>
    %876 = arith.addf %874, %875 : vector<8x128xf32>
    %877 = arith.mulf %870, %854 : vector<8x128xf32>
    %878 = arith.mulf %865, %871 : vector<8x128xf32>
    %879 = arith.addf %877, %878 : vector<8x128xf32>
    %880 = math.tanh %879 : vector<8x128xf32>
    %881 = arith.mulf %876, %880 : vector<8x128xf32>
    %882 = vector.extract_strided_slice %757 {offsets = [32, 0], sizes = [8, 512], strides = [1, 1]} : vector<64x512xf32> to vector<8x512xf32>
    %cst_414 = arith.constant dense<0.000000e+00> : vector<8x512xf32>
    %883 = tpu.matmul %881, %765, %cst_414 {dimension_numbers = #tpu.dot_dimension_numbers<[1], [0], [0], [1], [0, 0, 1, 1], [], []>} : vector<8x128xf32>, vector<128x512xf32>, vector<8x512xf32> -> vector<8x512xf32>
    %884 = arith.addf %882, %883 : vector<8x512xf32>
    %885 = math.tanh %884 : vector<8x512xf32>
    %886 = vector.extract_strided_slice %885 {offsets = [0, 0], sizes = [8, 128], strides = [1, 1]} : vector<8x512xf32> to vector<8x128xf32>
    %cst_415 = arith.constant 5.000000e-01 : f32
    %887 = vector.broadcast %cst_415 : f32 to vector<8x128xf32>
    %888 = arith.mulf %887, %886 : vector<8x128xf32>
    %cst_416 = arith.constant 5.000000e-01 : f32
    %889 = vector.broadcast %cst_416 : f32 to vector<8x128xf32>
    %890 = arith.addf %888, %889 : vector<8x128xf32>
    %891 = vector.extract_strided_slice %885 {offsets = [0, 128], sizes = [8, 128], strides = [1, 1]} : vector<8x512xf32> to vector<8x128xf32>
    %cst_417 = arith.constant 5.000000e-01 : f32
    %892 = vector.broadcast %cst_417 : f32 to vector<8x128xf32>
    %893 = arith.mulf %892, %891 : vector<8x128xf32>
    %cst_418 = arith.constant 5.000000e-01 : f32
    %894 = vector.broadcast %cst_418 : f32 to vector<8x128xf32>
    %895 = arith.addf %893, %894 : vector<8x128xf32>
    %896 = vector.extract_strided_slice %885 {offsets = [0, 256], sizes = [8, 128], strides = [1, 1]} : vector<8x512xf32> to vector<8x128xf32>
    %897 = vector.extract_strided_slice %885 {offsets = [0, 384], sizes = [8, 128], strides = [1, 1]} : vector<8x512xf32> to vector<8x128xf32>
    %cst_419 = arith.constant 5.000000e-01 : f32
    %898 = vector.broadcast %cst_419 : f32 to vector<8x128xf32>
    %899 = arith.mulf %898, %897 : vector<8x128xf32>
    %cst_420 = arith.constant 5.000000e-01 : f32
    %900 = vector.broadcast %cst_420 : f32 to vector<8x128xf32>
    %901 = arith.addf %899, %900 : vector<8x128xf32>
    %902 = arith.mulf %895, %879 : vector<8x128xf32>
    %903 = arith.mulf %890, %896 : vector<8x128xf32>
    %904 = arith.addf %902, %903 : vector<8x128xf32>
    %905 = math.tanh %904 : vector<8x128xf32>
    %906 = arith.mulf %901, %905 : vector<8x128xf32>
    %907 = vector.extract_strided_slice %757 {offsets = [40, 0], sizes = [8, 512], strides = [1, 1]} : vector<64x512xf32> to vector<8x512xf32>
    %cst_421 = arith.constant dense<0.000000e+00> : vector<8x512xf32>
    %908 = tpu.matmul %906, %765, %cst_421 {dimension_numbers = #tpu.dot_dimension_numbers<[1], [0], [0], [1], [0, 0, 1, 1], [], []>} : vector<8x128xf32>, vector<128x512xf32>, vector<8x512xf32> -> vector<8x512xf32>
    %909 = arith.addf %907, %908 : vector<8x512xf32>
    %910 = math.tanh %909 : vector<8x512xf32>
    %911 = vector.extract_strided_slice %910 {offsets = [0, 0], sizes = [8, 128], strides = [1, 1]} : vector<8x512xf32> to vector<8x128xf32>
    %cst_422 = arith.constant 5.000000e-01 : f32
    %912 = vector.broadcast %cst_422 : f32 to vector<8x128xf32>
    %913 = arith.mulf %912, %911 : vector<8x128xf32>
    %cst_423 = arith.constant 5.000000e-01 : f32
    %914 = vector.broadcast %cst_423 : f32 to vector<8x128xf32>
    %915 = arith.addf %913, %914 : vector<8x128xf32>
    %916 = vector.extract_strided_slice %910 {offsets = [0, 128], sizes = [8, 128], strides = [1, 1]} : vector<8x512xf32> to vector<8x128xf32>
    %cst_424 = arith.constant 5.000000e-01 : f32
    %917 = vector.broadcast %cst_424 : f32 to vector<8x128xf32>
    %918 = arith.mulf %917, %916 : vector<8x128xf32>
    %cst_425 = arith.constant 5.000000e-01 : f32
    %919 = vector.broadcast %cst_425 : f32 to vector<8x128xf32>
    %920 = arith.addf %918, %919 : vector<8x128xf32>
    %921 = vector.extract_strided_slice %910 {offsets = [0, 256], sizes = [8, 128], strides = [1, 1]} : vector<8x512xf32> to vector<8x128xf32>
    %922 = vector.extract_strided_slice %910 {offsets = [0, 384], sizes = [8, 128], strides = [1, 1]} : vector<8x512xf32> to vector<8x128xf32>
    %cst_426 = arith.constant 5.000000e-01 : f32
    %923 = vector.broadcast %cst_426 : f32 to vector<8x128xf32>
    %924 = arith.mulf %923, %922 : vector<8x128xf32>
    %cst_427 = arith.constant 5.000000e-01 : f32
    %925 = vector.broadcast %cst_427 : f32 to vector<8x128xf32>
    %926 = arith.addf %924, %925 : vector<8x128xf32>
    %927 = arith.mulf %920, %904 : vector<8x128xf32>
    %928 = arith.mulf %915, %921 : vector<8x128xf32>
    %929 = arith.addf %927, %928 : vector<8x128xf32>
    %930 = math.tanh %929 : vector<8x128xf32>
    %931 = arith.mulf %926, %930 : vector<8x128xf32>
    %932 = vector.extract_strided_slice %757 {offsets = [48, 0], sizes = [8, 512], strides = [1, 1]} : vector<64x512xf32> to vector<8x512xf32>
    %cst_428 = arith.constant dense<0.000000e+00> : vector<8x512xf32>
    %933 = tpu.matmul %931, %765, %cst_428 {dimension_numbers = #tpu.dot_dimension_numbers<[1], [0], [0], [1], [0, 0, 1, 1], [], []>} : vector<8x128xf32>, vector<128x512xf32>, vector<8x512xf32> -> vector<8x512xf32>
    %934 = arith.addf %932, %933 : vector<8x512xf32>
    %935 = math.tanh %934 : vector<8x512xf32>
    %936 = vector.extract_strided_slice %935 {offsets = [0, 0], sizes = [8, 128], strides = [1, 1]} : vector<8x512xf32> to vector<8x128xf32>
    %cst_429 = arith.constant 5.000000e-01 : f32
    %937 = vector.broadcast %cst_429 : f32 to vector<8x128xf32>
    %938 = arith.mulf %937, %936 : vector<8x128xf32>
    %cst_430 = arith.constant 5.000000e-01 : f32
    %939 = vector.broadcast %cst_430 : f32 to vector<8x128xf32>
    %940 = arith.addf %938, %939 : vector<8x128xf32>
    %941 = vector.extract_strided_slice %935 {offsets = [0, 128], sizes = [8, 128], strides = [1, 1]} : vector<8x512xf32> to vector<8x128xf32>
    %cst_431 = arith.constant 5.000000e-01 : f32
    %942 = vector.broadcast %cst_431 : f32 to vector<8x128xf32>
    %943 = arith.mulf %942, %941 : vector<8x128xf32>
    %cst_432 = arith.constant 5.000000e-01 : f32
    %944 = vector.broadcast %cst_432 : f32 to vector<8x128xf32>
    %945 = arith.addf %943, %944 : vector<8x128xf32>
    %946 = vector.extract_strided_slice %935 {offsets = [0, 256], sizes = [8, 128], strides = [1, 1]} : vector<8x512xf32> to vector<8x128xf32>
    %947 = vector.extract_strided_slice %935 {offsets = [0, 384], sizes = [8, 128], strides = [1, 1]} : vector<8x512xf32> to vector<8x128xf32>
    %cst_433 = arith.constant 5.000000e-01 : f32
    %948 = vector.broadcast %cst_433 : f32 to vector<8x128xf32>
    %949 = arith.mulf %948, %947 : vector<8x128xf32>
    %cst_434 = arith.constant 5.000000e-01 : f32
    %950 = vector.broadcast %cst_434 : f32 to vector<8x128xf32>
    %951 = arith.addf %949, %950 : vector<8x128xf32>
    %952 = arith.mulf %945, %929 : vector<8x128xf32>
    %953 = arith.mulf %940, %946 : vector<8x128xf32>
    %954 = arith.addf %952, %953 : vector<8x128xf32>
    %955 = math.tanh %954 : vector<8x128xf32>
    %956 = arith.mulf %951, %955 : vector<8x128xf32>
    %957 = vector.extract_strided_slice %757 {offsets = [56, 0], sizes = [8, 512], strides = [1, 1]} : vector<64x512xf32> to vector<8x512xf32>
    %cst_435 = arith.constant dense<0.000000e+00> : vector<8x512xf32>
    %958 = tpu.matmul %956, %765, %cst_435 {dimension_numbers = #tpu.dot_dimension_numbers<[1], [0], [0], [1], [0, 0, 1, 1], [], []>} : vector<8x128xf32>, vector<128x512xf32>, vector<8x512xf32> -> vector<8x512xf32>
    %959 = arith.addf %957, %958 : vector<8x512xf32>
    %960 = math.tanh %959 : vector<8x512xf32>
    %961 = vector.extract_strided_slice %960 {offsets = [0, 0], sizes = [8, 128], strides = [1, 1]} : vector<8x512xf32> to vector<8x128xf32>
    %cst_436 = arith.constant 5.000000e-01 : f32
    %962 = vector.broadcast %cst_436 : f32 to vector<8x128xf32>
    %963 = arith.mulf %962, %961 : vector<8x128xf32>
    %cst_437 = arith.constant 5.000000e-01 : f32
    %964 = vector.broadcast %cst_437 : f32 to vector<8x128xf32>
    %965 = arith.addf %963, %964 : vector<8x128xf32>
    %966 = vector.extract_strided_slice %960 {offsets = [0, 128], sizes = [8, 128], strides = [1, 1]} : vector<8x512xf32> to vector<8x128xf32>
    %cst_438 = arith.constant 5.000000e-01 : f32
    %967 = vector.broadcast %cst_438 : f32 to vector<8x128xf32>
    %968 = arith.mulf %967, %966 : vector<8x128xf32>
    %cst_439 = arith.constant 5.000000e-01 : f32
    %969 = vector.broadcast %cst_439 : f32 to vector<8x128xf32>
    %970 = arith.addf %968, %969 : vector<8x128xf32>
    %971 = vector.extract_strided_slice %960 {offsets = [0, 256], sizes = [8, 128], strides = [1, 1]} : vector<8x512xf32> to vector<8x128xf32>
    %972 = vector.extract_strided_slice %960 {offsets = [0, 384], sizes = [8, 128], strides = [1, 1]} : vector<8x512xf32> to vector<8x128xf32>
    %cst_440 = arith.constant 5.000000e-01 : f32
    %973 = vector.broadcast %cst_440 : f32 to vector<8x128xf32>
    %974 = arith.mulf %973, %972 : vector<8x128xf32>
    %cst_441 = arith.constant 5.000000e-01 : f32
    %975 = vector.broadcast %cst_441 : f32 to vector<8x128xf32>
    %976 = arith.addf %974, %975 : vector<8x128xf32>
    %977 = arith.mulf %970, %954 : vector<8x128xf32>
    %978 = arith.mulf %965, %971 : vector<8x128xf32>
    %979 = arith.addf %977, %978 : vector<8x128xf32>
    %980 = math.tanh %979 : vector<8x128xf32>
    %981 = arith.mulf %976, %980 : vector<8x128xf32>
    %c3_442 = arith.constant 3 : index
    %c0_443 = arith.constant 0 : index
    %c0_444 = arith.constant 0 : index
    %982 = vector.load %arg9[%c3_442, %c0_443, %c0_444] : memref<5x8x128xf32, #tpu.memory_space<vmem>>, vector<1x8x128xf32>
    %983 = vector.shape_cast %982 : vector<1x8x128xf32> to vector<8x128xf32>
    %984 = vector.shape_cast %981 : vector<8x128xf32> to vector<1x8x128xf32>
    tpu.vector_store %arg9[%c3_442, %c0_443, %c0_444], %984 {strides = array<i32>} : memref<5x8x128xf32, #tpu.memory_space<vmem>>, vector<1x8x128xf32>,
    %c3_445 = arith.constant 3 : index
    %c0_446 = arith.constant 0 : index
    %c0_447 = arith.constant 0 : index
    %985 = vector.load %arg10[%c3_445, %c0_446, %c0_447] : memref<5x8x128xf32, #tpu.memory_space<vmem>>, vector<1x8x128xf32>
    %986 = vector.shape_cast %985 : vector<1x8x128xf32> to vector<8x128xf32>
    %987 = vector.shape_cast %979 : vector<8x128xf32> to vector<1x8x128xf32>
    tpu.vector_store %arg10[%c3_445, %c0_446, %c0_447], %987 {strides = array<i32>} : memref<5x8x128xf32, #tpu.memory_space<vmem>>, vector<1x8x128xf32>,
    %988 = tpu.concatenate %806, %831, %856, %881, %906, %931, %956, %981 in 0 : vector<8x128xf32>, vector<8x128xf32>, vector<8x128xf32>, vector<8x128xf32>, vector<8x128xf32>, vector<8x128xf32>, vector<8x128xf32>, vector<8x128xf32> -> vector<64x128xf32>
    %c4_i32_448 = arith.constant 4 : i32
    %c0_i32_449 = arith.constant 0 : i32
    %c0_i32_450 = arith.constant 0 : i32
    %c0_i32_451 = arith.constant 0 : i32
    %c0_i32_452 = arith.constant 0 : i32
    %c0_i32_453 = arith.constant 0 : i32
    %989 = tpu.memref_slice %arg6[%c4_i32_448, %c0_i32_452, %c0_i32_453] : memref<5x128x512xf32, #tpu.memory_space<any>> -> memref<1x128x512xf32, #tpu.memory_space<any>>
    %990 = tpu.memref_squeeze %989 : memref<1x128x512xf32, #tpu.memory_space<any>> -> memref<128x512xf32, #tpu.memory_space<any>>
    %c0_i32_454 = arith.constant 0 : i32
    %c0_i32_455 = arith.constant 0 : i32
    %991 = tpu.memref_slice %arg11[%c0_i32_449, %c0_i32_454, %c0_i32_455] : memref<2x128x512xf32, #tpu.memory_space<vmem>> -> memref<1x128x512xf32, #tpu.memory_space<vmem>>
    %992 = tpu.memref_squeeze %991 : memref<1x128x512xf32, #tpu.memory_space<vmem>> -> memref<128x512xf32, #tpu.memory_space<vmem>>
    %993 = tpu.memref_slice %arg13[%c0_i32_450, %c0_i32_451] : memref<2x2x!tpu.dma_semaphore, #tpu.memory_space<semaphore_mem>> -> memref<1x1x!tpu.dma_semaphore, #tpu.memory_space<semaphore_mem>>
    %994 = tpu.memref_squeeze %993 : memref<1x1x!tpu.dma_semaphore, #tpu.memory_space<semaphore_mem>> -> memref<!tpu.dma_semaphore, #tpu.memory_space<semaphore_mem>>
    tpu.wait_dma2 semaphore(%994 : memref<!tpu.dma_semaphore, #tpu.memory_space<semaphore_mem>>) src(%990 : memref<128x512xf32, #tpu.memory_space<any>>) dst(%992 : memref<128x512xf32, #tpu.memory_space<vmem>>)
    %c0_456 = arith.constant 0 : index
    %c0_457 = arith.constant 0 : index
    %c0_458 = arith.constant 0 : index
    %995 = vector.load %arg11[%c0_456, %c0_457, %c0_458] : memref<2x128x512xf32, #tpu.memory_space<vmem>>, vector<1x128x512xf32>
    %996 = vector.shape_cast %995 : vector<1x128x512xf32> to vector<128x512xf32>
    %cst_459 = arith.constant dense<0.000000e+00> : vector<64x512xf32>
    %997 = tpu.matmul %988, %996, %cst_459 {dimension_numbers = #tpu.dot_dimension_numbers<[1], [0], [0], [1], [0, 0, 1, 1], [], []>} : vector<64x128xf32>, vector<128x512xf32>, vector<64x512xf32> -> vector<64x512xf32>
    %c4 = arith.constant 4 : index
    %c0_460 = arith.constant 0 : index
    %c0_461 = arith.constant 0 : index
    %998 = vector.load %arg3[%c4, %c0_460, %c0_461] : memref<5x1x512xf32, #tpu.memory_space<vmem>>, vector<1x1x512xf32>
    %999 = vector.shape_cast %998 : vector<1x1x512xf32> to vector<1x512xf32>
    %1000 = vector.broadcast %999 : vector<1x512xf32> to vector<64x512xf32>
    %1001 = arith.addf %997, %1000 : vector<64x512xf32>
    %c4_i32_462 = arith.constant 4 : i32
    %c0_i32_463 = arith.constant 0 : i32
    %c1_i32_464 = arith.constant 1 : i32
    %c0_i32_465 = arith.constant 0 : i32
    %c0_i32_466 = arith.constant 0 : i32
    %c0_i32_467 = arith.constant 0 : i32
    %1002 = tpu.memref_slice %arg7[%c4_i32_462, %c0_i32_466, %c0_i32_467] : memref<5x128x512xf32, #tpu.memory_space<any>> -> memref<1x128x512xf32, #tpu.memory_space<any>>
    %1003 = tpu.memref_squeeze %1002 : memref<1x128x512xf32, #tpu.memory_space<any>> -> memref<128x512xf32, #tpu.memory_space<any>>
    %c0_i32_468 = arith.constant 0 : i32
    %c0_i32_469 = arith.constant 0 : i32
    %1004 = tpu.memref_slice %arg12[%c0_i32_463, %c0_i32_468, %c0_i32_469] : memref<2x128x512xf32, #tpu.memory_space<vmem>> -> memref<1x128x512xf32, #tpu.memory_space<vmem>>
    %1005 = tpu.memref_squeeze %1004 : memref<1x128x512xf32, #tpu.memory_space<vmem>> -> memref<128x512xf32, #tpu.memory_space<vmem>>
    %1006 = tpu.memref_slice %arg13[%c1_i32_464, %c0_i32_465] : memref<2x2x!tpu.dma_semaphore, #tpu.memory_space<semaphore_mem>> -> memref<1x1x!tpu.dma_semaphore, #tpu.memory_space<semaphore_mem>>
    %1007 = tpu.memref_squeeze %1006 : memref<1x1x!tpu.dma_semaphore, #tpu.memory_space<semaphore_mem>> -> memref<!tpu.dma_semaphore, #tpu.memory_space<semaphore_mem>>
    tpu.wait_dma2 semaphore(%1007 : memref<!tpu.dma_semaphore, #tpu.memory_space<semaphore_mem>>) src(%1003 : memref<128x512xf32, #tpu.memory_space<any>>) dst(%1005 : memref<128x512xf32, #tpu.memory_space<vmem>>)
    %c0_470 = arith.constant 0 : index
    %c0_471 = arith.constant 0 : index
    %c0_472 = arith.constant 0 : index
    %1008 = vector.load %arg12[%c0_470, %c0_471, %c0_472] : memref<2x128x512xf32, #tpu.memory_space<vmem>>, vector<1x128x512xf32>
    %1009 = vector.shape_cast %1008 : vector<1x128x512xf32> to vector<128x512xf32>
    %c4_473 = arith.constant 4 : index
    %c0_474 = arith.constant 0 : index
    %c0_475 = arith.constant 0 : index
    %1010 = vector.load %arg1[%c4_473, %c0_474, %c0_475] : memref<5x8x128xf32, #tpu.memory_space<vmem>>, vector<1x8x128xf32>
    %1011 = vector.shape_cast %1010 : vector<1x8x128xf32> to vector<8x128xf32>
    %c4_476 = arith.constant 4 : index
    %c0_477 = arith.constant 0 : index
    %c0_478 = arith.constant 0 : index
    %1012 = vector.load %arg2[%c4_476, %c0_477, %c0_478] : memref<5x8x128xf32, #tpu.memory_space<vmem>>, vector<1x8x128xf32>
    %1013 = vector.shape_cast %1012 : vector<1x8x128xf32> to vector<8x128xf32>
    %1014 = vector.extract_strided_slice %1001 {offsets = [0, 0], sizes = [8, 512], strides = [1, 1]} : vector<64x512xf32> to vector<8x512xf32>
    %cst_479 = arith.constant dense<0.000000e+00> : vector<8x512xf32>
    %1015 = tpu.matmul %1011, %1009, %cst_479 {dimension_numbers = #tpu.dot_dimension_numbers<[1], [0], [0], [1], [0, 0, 1, 1], [], []>} : vector<8x128xf32>, vector<128x512xf32>, vector<8x512xf32> -> vector<8x512xf32>
    %1016 = arith.addf %1014, %1015 : vector<8x512xf32>
    %1017 = math.tanh %1016 : vector<8x512xf32>
    %1018 = vector.extract_strided_slice %1017 {offsets = [0, 0], sizes = [8, 128], strides = [1, 1]} : vector<8x512xf32> to vector<8x128xf32>
    %cst_480 = arith.constant 5.000000e-01 : f32
    %1019 = vector.broadcast %cst_480 : f32 to vector<8x128xf32>
    %1020 = arith.mulf %1019, %1018 : vector<8x128xf32>
    %cst_481 = arith.constant 5.000000e-01 : f32
    %1021 = vector.broadcast %cst_481 : f32 to vector<8x128xf32>
    %1022 = arith.addf %1020, %1021 : vector<8x128xf32>
    %1023 = vector.extract_strided_slice %1017 {offsets = [0, 128], sizes = [8, 128], strides = [1, 1]} : vector<8x512xf32> to vector<8x128xf32>
    %cst_482 = arith.constant 5.000000e-01 : f32
    %1024 = vector.broadcast %cst_482 : f32 to vector<8x128xf32>
    %1025 = arith.mulf %1024, %1023 : vector<8x128xf32>
    %cst_483 = arith.constant 5.000000e-01 : f32
    %1026 = vector.broadcast %cst_483 : f32 to vector<8x128xf32>
    %1027 = arith.addf %1025, %1026 : vector<8x128xf32>
    %1028 = vector.extract_strided_slice %1017 {offsets = [0, 256], sizes = [8, 128], strides = [1, 1]} : vector<8x512xf32> to vector<8x128xf32>
    %1029 = vector.extract_strided_slice %1017 {offsets = [0, 384], sizes = [8, 128], strides = [1, 1]} : vector<8x512xf32> to vector<8x128xf32>
    %cst_484 = arith.constant 5.000000e-01 : f32
    %1030 = vector.broadcast %cst_484 : f32 to vector<8x128xf32>
    %1031 = arith.mulf %1030, %1029 : vector<8x128xf32>
    %cst_485 = arith.constant 5.000000e-01 : f32
    %1032 = vector.broadcast %cst_485 : f32 to vector<8x128xf32>
    %1033 = arith.addf %1031, %1032 : vector<8x128xf32>
    %1034 = arith.mulf %1027, %1013 : vector<8x128xf32>
    %1035 = arith.mulf %1022, %1028 : vector<8x128xf32>
    %1036 = arith.addf %1034, %1035 : vector<8x128xf32>
    %1037 = math.tanh %1036 : vector<8x128xf32>
    %1038 = arith.mulf %1033, %1037 : vector<8x128xf32>
    %1039 = vector.extract_strided_slice %1001 {offsets = [8, 0], sizes = [8, 512], strides = [1, 1]} : vector<64x512xf32> to vector<8x512xf32>
    %cst_486 = arith.constant dense<0.000000e+00> : vector<8x512xf32>
    %1040 = tpu.matmul %1038, %1009, %cst_486 {dimension_numbers = #tpu.dot_dimension_numbers<[1], [0], [0], [1], [0, 0, 1, 1], [], []>} : vector<8x128xf32>, vector<128x512xf32>, vector<8x512xf32> -> vector<8x512xf32>
    %1041 = arith.addf %1039, %1040 : vector<8x512xf32>
    %1042 = math.tanh %1041 : vector<8x512xf32>
    %1043 = vector.extract_strided_slice %1042 {offsets = [0, 0], sizes = [8, 128], strides = [1, 1]} : vector<8x512xf32> to vector<8x128xf32>
    %cst_487 = arith.constant 5.000000e-01 : f32
    %1044 = vector.broadcast %cst_487 : f32 to vector<8x128xf32>
    %1045 = arith.mulf %1044, %1043 : vector<8x128xf32>
    %cst_488 = arith.constant 5.000000e-01 : f32
    %1046 = vector.broadcast %cst_488 : f32 to vector<8x128xf32>
    %1047 = arith.addf %1045, %1046 : vector<8x128xf32>
    %1048 = vector.extract_strided_slice %1042 {offsets = [0, 128], sizes = [8, 128], strides = [1, 1]} : vector<8x512xf32> to vector<8x128xf32>
    %cst_489 = arith.constant 5.000000e-01 : f32
    %1049 = vector.broadcast %cst_489 : f32 to vector<8x128xf32>
    %1050 = arith.mulf %1049, %1048 : vector<8x128xf32>
    %cst_490 = arith.constant 5.000000e-01 : f32
    %1051 = vector.broadcast %cst_490 : f32 to vector<8x128xf32>
    %1052 = arith.addf %1050, %1051 : vector<8x128xf32>
    %1053 = vector.extract_strided_slice %1042 {offsets = [0, 256], sizes = [8, 128], strides = [1, 1]} : vector<8x512xf32> to vector<8x128xf32>
    %1054 = vector.extract_strided_slice %1042 {offsets = [0, 384], sizes = [8, 128], strides = [1, 1]} : vector<8x512xf32> to vector<8x128xf32>
    %cst_491 = arith.constant 5.000000e-01 : f32
    %1055 = vector.broadcast %cst_491 : f32 to vector<8x128xf32>
    %1056 = arith.mulf %1055, %1054 : vector<8x128xf32>
    %cst_492 = arith.constant 5.000000e-01 : f32
    %1057 = vector.broadcast %cst_492 : f32 to vector<8x128xf32>
    %1058 = arith.addf %1056, %1057 : vector<8x128xf32>
    %1059 = arith.mulf %1052, %1036 : vector<8x128xf32>
    %1060 = arith.mulf %1047, %1053 : vector<8x128xf32>
    %1061 = arith.addf %1059, %1060 : vector<8x128xf32>
    %1062 = math.tanh %1061 : vector<8x128xf32>
    %1063 = arith.mulf %1058, %1062 : vector<8x128xf32>
    %1064 = vector.extract_strided_slice %1001 {offsets = [16, 0], sizes = [8, 512], strides = [1, 1]} : vector<64x512xf32> to vector<8x512xf32>
    %cst_493 = arith.constant dense<0.000000e+00> : vector<8x512xf32>
    %1065 = tpu.matmul %1063, %1009, %cst_493 {dimension_numbers = #tpu.dot_dimension_numbers<[1], [0], [0], [1], [0, 0, 1, 1], [], []>} : vector<8x128xf32>, vector<128x512xf32>, vector<8x512xf32> -> vector<8x512xf32>
    %1066 = arith.addf %1064, %1065 : vector<8x512xf32>
    %1067 = math.tanh %1066 : vector<8x512xf32>
    %1068 = vector.extract_strided_slice %1067 {offsets = [0, 0], sizes = [8, 128], strides = [1, 1]} : vector<8x512xf32> to vector<8x128xf32>
    %cst_494 = arith.constant 5.000000e-01 : f32
    %1069 = vector.broadcast %cst_494 : f32 to vector<8x128xf32>
    %1070 = arith.mulf %1069, %1068 : vector<8x128xf32>
    %cst_495 = arith.constant 5.000000e-01 : f32
    %1071 = vector.broadcast %cst_495 : f32 to vector<8x128xf32>
    %1072 = arith.addf %1070, %1071 : vector<8x128xf32>
    %1073 = vector.extract_strided_slice %1067 {offsets = [0, 128], sizes = [8, 128], strides = [1, 1]} : vector<8x512xf32> to vector<8x128xf32>
    %cst_496 = arith.constant 5.000000e-01 : f32
    %1074 = vector.broadcast %cst_496 : f32 to vector<8x128xf32>
    %1075 = arith.mulf %1074, %1073 : vector<8x128xf32>
    %cst_497 = arith.constant 5.000000e-01 : f32
    %1076 = vector.broadcast %cst_497 : f32 to vector<8x128xf32>
    %1077 = arith.addf %1075, %1076 : vector<8x128xf32>
    %1078 = vector.extract_strided_slice %1067 {offsets = [0, 256], sizes = [8, 128], strides = [1, 1]} : vector<8x512xf32> to vector<8x128xf32>
    %1079 = vector.extract_strided_slice %1067 {offsets = [0, 384], sizes = [8, 128], strides = [1, 1]} : vector<8x512xf32> to vector<8x128xf32>
    %cst_498 = arith.constant 5.000000e-01 : f32
    %1080 = vector.broadcast %cst_498 : f32 to vector<8x128xf32>
    %1081 = arith.mulf %1080, %1079 : vector<8x128xf32>
    %cst_499 = arith.constant 5.000000e-01 : f32
    %1082 = vector.broadcast %cst_499 : f32 to vector<8x128xf32>
    %1083 = arith.addf %1081, %1082 : vector<8x128xf32>
    %1084 = arith.mulf %1077, %1061 : vector<8x128xf32>
    %1085 = arith.mulf %1072, %1078 : vector<8x128xf32>
    %1086 = arith.addf %1084, %1085 : vector<8x128xf32>
    %1087 = math.tanh %1086 : vector<8x128xf32>
    %1088 = arith.mulf %1083, %1087 : vector<8x128xf32>
    %1089 = vector.extract_strided_slice %1001 {offsets = [24, 0], sizes = [8, 512], strides = [1, 1]} : vector<64x512xf32> to vector<8x512xf32>
    %cst_500 = arith.constant dense<0.000000e+00> : vector<8x512xf32>
    %1090 = tpu.matmul %1088, %1009, %cst_500 {dimension_numbers = #tpu.dot_dimension_numbers<[1], [0], [0], [1], [0, 0, 1, 1], [], []>} : vector<8x128xf32>, vector<128x512xf32>, vector<8x512xf32> -> vector<8x512xf32>
    %1091 = arith.addf %1089, %1090 : vector<8x512xf32>
    %1092 = math.tanh %1091 : vector<8x512xf32>
    %1093 = vector.extract_strided_slice %1092 {offsets = [0, 0], sizes = [8, 128], strides = [1, 1]} : vector<8x512xf32> to vector<8x128xf32>
    %cst_501 = arith.constant 5.000000e-01 : f32
    %1094 = vector.broadcast %cst_501 : f32 to vector<8x128xf32>
    %1095 = arith.mulf %1094, %1093 : vector<8x128xf32>
    %cst_502 = arith.constant 5.000000e-01 : f32
    %1096 = vector.broadcast %cst_502 : f32 to vector<8x128xf32>
    %1097 = arith.addf %1095, %1096 : vector<8x128xf32>
    %1098 = vector.extract_strided_slice %1092 {offsets = [0, 128], sizes = [8, 128], strides = [1, 1]} : vector<8x512xf32> to vector<8x128xf32>
    %cst_503 = arith.constant 5.000000e-01 : f32
    %1099 = vector.broadcast %cst_503 : f32 to vector<8x128xf32>
    %1100 = arith.mulf %1099, %1098 : vector<8x128xf32>
    %cst_504 = arith.constant 5.000000e-01 : f32
    %1101 = vector.broadcast %cst_504 : f32 to vector<8x128xf32>
    %1102 = arith.addf %1100, %1101 : vector<8x128xf32>
    %1103 = vector.extract_strided_slice %1092 {offsets = [0, 256], sizes = [8, 128], strides = [1, 1]} : vector<8x512xf32> to vector<8x128xf32>
    %1104 = vector.extract_strided_slice %1092 {offsets = [0, 384], sizes = [8, 128], strides = [1, 1]} : vector<8x512xf32> to vector<8x128xf32>
    %cst_505 = arith.constant 5.000000e-01 : f32
    %1105 = vector.broadcast %cst_505 : f32 to vector<8x128xf32>
    %1106 = arith.mulf %1105, %1104 : vector<8x128xf32>
    %cst_506 = arith.constant 5.000000e-01 : f32
    %1107 = vector.broadcast %cst_506 : f32 to vector<8x128xf32>
    %1108 = arith.addf %1106, %1107 : vector<8x128xf32>
    %1109 = arith.mulf %1102, %1086 : vector<8x128xf32>
    %1110 = arith.mulf %1097, %1103 : vector<8x128xf32>
    %1111 = arith.addf %1109, %1110 : vector<8x128xf32>
    %1112 = math.tanh %1111 : vector<8x128xf32>
    %1113 = arith.mulf %1108, %1112 : vector<8x128xf32>
    %1114 = vector.extract_strided_slice %1001 {offsets = [32, 0], sizes = [8, 512], strides = [1, 1]} : vector<64x512xf32> to vector<8x512xf32>
    %cst_507 = arith.constant dense<0.000000e+00> : vector<8x512xf32>
    %1115 = tpu.matmul %1113, %1009, %cst_507 {dimension_numbers = #tpu.dot_dimension_numbers<[1], [0], [0], [1], [0, 0, 1, 1], [], []>} : vector<8x128xf32>, vector<128x512xf32>, vector<8x512xf32> -> vector<8x512xf32>
    %1116 = arith.addf %1114, %1115 : vector<8x512xf32>
    %1117 = math.tanh %1116 : vector<8x512xf32>
    %1118 = vector.extract_strided_slice %1117 {offsets = [0, 0], sizes = [8, 128], strides = [1, 1]} : vector<8x512xf32> to vector<8x128xf32>
    %cst_508 = arith.constant 5.000000e-01 : f32
    %1119 = vector.broadcast %cst_508 : f32 to vector<8x128xf32>
    %1120 = arith.mulf %1119, %1118 : vector<8x128xf32>
    %cst_509 = arith.constant 5.000000e-01 : f32
    %1121 = vector.broadcast %cst_509 : f32 to vector<8x128xf32>
    %1122 = arith.addf %1120, %1121 : vector<8x128xf32>
    %1123 = vector.extract_strided_slice %1117 {offsets = [0, 128], sizes = [8, 128], strides = [1, 1]} : vector<8x512xf32> to vector<8x128xf32>
    %cst_510 = arith.constant 5.000000e-01 : f32
    %1124 = vector.broadcast %cst_510 : f32 to vector<8x128xf32>
    %1125 = arith.mulf %1124, %1123 : vector<8x128xf32>
    %cst_511 = arith.constant 5.000000e-01 : f32
    %1126 = vector.broadcast %cst_511 : f32 to vector<8x128xf32>
    %1127 = arith.addf %1125, %1126 : vector<8x128xf32>
    %1128 = vector.extract_strided_slice %1117 {offsets = [0, 256], sizes = [8, 128], strides = [1, 1]} : vector<8x512xf32> to vector<8x128xf32>
    %1129 = vector.extract_strided_slice %1117 {offsets = [0, 384], sizes = [8, 128], strides = [1, 1]} : vector<8x512xf32> to vector<8x128xf32>
    %cst_512 = arith.constant 5.000000e-01 : f32
    %1130 = vector.broadcast %cst_512 : f32 to vector<8x128xf32>
    %1131 = arith.mulf %1130, %1129 : vector<8x128xf32>
    %cst_513 = arith.constant 5.000000e-01 : f32
    %1132 = vector.broadcast %cst_513 : f32 to vector<8x128xf32>
    %1133 = arith.addf %1131, %1132 : vector<8x128xf32>
    %1134 = arith.mulf %1127, %1111 : vector<8x128xf32>
    %1135 = arith.mulf %1122, %1128 : vector<8x128xf32>
    %1136 = arith.addf %1134, %1135 : vector<8x128xf32>
    %1137 = math.tanh %1136 : vector<8x128xf32>
    %1138 = arith.mulf %1133, %1137 : vector<8x128xf32>
    %1139 = vector.extract_strided_slice %1001 {offsets = [40, 0], sizes = [8, 512], strides = [1, 1]} : vector<64x512xf32> to vector<8x512xf32>
    %cst_514 = arith.constant dense<0.000000e+00> : vector<8x512xf32>
    %1140 = tpu.matmul %1138, %1009, %cst_514 {dimension_numbers = #tpu.dot_dimension_numbers<[1], [0], [0], [1], [0, 0, 1, 1], [], []>} : vector<8x128xf32>, vector<128x512xf32>, vector<8x512xf32> -> vector<8x512xf32>
    %1141 = arith.addf %1139, %1140 : vector<8x512xf32>
    %1142 = math.tanh %1141 : vector<8x512xf32>
    %1143 = vector.extract_strided_slice %1142 {offsets = [0, 0], sizes = [8, 128], strides = [1, 1]} : vector<8x512xf32> to vector<8x128xf32>
    %cst_515 = arith.constant 5.000000e-01 : f32
    %1144 = vector.broadcast %cst_515 : f32 to vector<8x128xf32>
    %1145 = arith.mulf %1144, %1143 : vector<8x128xf32>
    %cst_516 = arith.constant 5.000000e-01 : f32
    %1146 = vector.broadcast %cst_516 : f32 to vector<8x128xf32>
    %1147 = arith.addf %1145, %1146 : vector<8x128xf32>
    %1148 = vector.extract_strided_slice %1142 {offsets = [0, 128], sizes = [8, 128], strides = [1, 1]} : vector<8x512xf32> to vector<8x128xf32>
    %cst_517 = arith.constant 5.000000e-01 : f32
    %1149 = vector.broadcast %cst_517 : f32 to vector<8x128xf32>
    %1150 = arith.mulf %1149, %1148 : vector<8x128xf32>
    %cst_518 = arith.constant 5.000000e-01 : f32
    %1151 = vector.broadcast %cst_518 : f32 to vector<8x128xf32>
    %1152 = arith.addf %1150, %1151 : vector<8x128xf32>
    %1153 = vector.extract_strided_slice %1142 {offsets = [0, 256], sizes = [8, 128], strides = [1, 1]} : vector<8x512xf32> to vector<8x128xf32>
    %1154 = vector.extract_strided_slice %1142 {offsets = [0, 384], sizes = [8, 128], strides = [1, 1]} : vector<8x512xf32> to vector<8x128xf32>
    %cst_519 = arith.constant 5.000000e-01 : f32
    %1155 = vector.broadcast %cst_519 : f32 to vector<8x128xf32>
    %1156 = arith.mulf %1155, %1154 : vector<8x128xf32>
    %cst_520 = arith.constant 5.000000e-01 : f32
    %1157 = vector.broadcast %cst_520 : f32 to vector<8x128xf32>
    %1158 = arith.addf %1156, %1157 : vector<8x128xf32>
    %1159 = arith.mulf %1152, %1136 : vector<8x128xf32>
    %1160 = arith.mulf %1147, %1153 : vector<8x128xf32>
    %1161 = arith.addf %1159, %1160 : vector<8x128xf32>
    %1162 = math.tanh %1161 : vector<8x128xf32>
    %1163 = arith.mulf %1158, %1162 : vector<8x128xf32>
    %1164 = vector.extract_strided_slice %1001 {offsets = [48, 0], sizes = [8, 512], strides = [1, 1]} : vector<64x512xf32> to vector<8x512xf32>
    %cst_521 = arith.constant dense<0.000000e+00> : vector<8x512xf32>
    %1165 = tpu.matmul %1163, %1009, %cst_521 {dimension_numbers = #tpu.dot_dimension_numbers<[1], [0], [0], [1], [0, 0, 1, 1], [], []>} : vector<8x128xf32>, vector<128x512xf32>, vector<8x512xf32> -> vector<8x512xf32>
    %1166 = arith.addf %1164, %1165 : vector<8x512xf32>
    %1167 = math.tanh %1166 : vector<8x512xf32>
    %1168 = vector.extract_strided_slice %1167 {offsets = [0, 0], sizes = [8, 128], strides = [1, 1]} : vector<8x512xf32> to vector<8x128xf32>
    %cst_522 = arith.constant 5.000000e-01 : f32
    %1169 = vector.broadcast %cst_522 : f32 to vector<8x128xf32>
    %1170 = arith.mulf %1169, %1168 : vector<8x128xf32>
    %cst_523 = arith.constant 5.000000e-01 : f32
    %1171 = vector.broadcast %cst_523 : f32 to vector<8x128xf32>
    %1172 = arith.addf %1170, %1171 : vector<8x128xf32>
    %1173 = vector.extract_strided_slice %1167 {offsets = [0, 128], sizes = [8, 128], strides = [1, 1]} : vector<8x512xf32> to vector<8x128xf32>
    %cst_524 = arith.constant 5.000000e-01 : f32
    %1174 = vector.broadcast %cst_524 : f32 to vector<8x128xf32>
    %1175 = arith.mulf %1174, %1173 : vector<8x128xf32>
    %cst_525 = arith.constant 5.000000e-01 : f32
    %1176 = vector.broadcast %cst_525 : f32 to vector<8x128xf32>
    %1177 = arith.addf %1175, %1176 : vector<8x128xf32>
    %1178 = vector.extract_strided_slice %1167 {offsets = [0, 256], sizes = [8, 128], strides = [1, 1]} : vector<8x512xf32> to vector<8x128xf32>
    %1179 = vector.extract_strided_slice %1167 {offsets = [0, 384], sizes = [8, 128], strides = [1, 1]} : vector<8x512xf32> to vector<8x128xf32>
    %cst_526 = arith.constant 5.000000e-01 : f32
    %1180 = vector.broadcast %cst_526 : f32 to vector<8x128xf32>
    %1181 = arith.mulf %1180, %1179 : vector<8x128xf32>
    %cst_527 = arith.constant 5.000000e-01 : f32
    %1182 = vector.broadcast %cst_527 : f32 to vector<8x128xf32>
    %1183 = arith.addf %1181, %1182 : vector<8x128xf32>
    %1184 = arith.mulf %1177, %1161 : vector<8x128xf32>
    %1185 = arith.mulf %1172, %1178 : vector<8x128xf32>
    %1186 = arith.addf %1184, %1185 : vector<8x128xf32>
    %1187 = math.tanh %1186 : vector<8x128xf32>
    %1188 = arith.mulf %1183, %1187 : vector<8x128xf32>
    %1189 = vector.extract_strided_slice %1001 {offsets = [56, 0], sizes = [8, 512], strides = [1, 1]} : vector<64x512xf32> to vector<8x512xf32>
    %cst_528 = arith.constant dense<0.000000e+00> : vector<8x512xf32>
    %1190 = tpu.matmul %1188, %1009, %cst_528 {dimension_numbers = #tpu.dot_dimension_numbers<[1], [0], [0], [1], [0, 0, 1, 1], [], []>} : vector<8x128xf32>, vector<128x512xf32>, vector<8x512xf32> -> vector<8x512xf32>
    %1191 = arith.addf %1189, %1190 : vector<8x512xf32>
    %1192 = math.tanh %1191 : vector<8x512xf32>
    %1193 = vector.extract_strided_slice %1192 {offsets = [0, 0], sizes = [8, 128], strides = [1, 1]} : vector<8x512xf32> to vector<8x128xf32>
    %cst_529 = arith.constant 5.000000e-01 : f32
    %1194 = vector.broadcast %cst_529 : f32 to vector<8x128xf32>
    %1195 = arith.mulf %1194, %1193 : vector<8x128xf32>
    %cst_530 = arith.constant 5.000000e-01 : f32
    %1196 = vector.broadcast %cst_530 : f32 to vector<8x128xf32>
    %1197 = arith.addf %1195, %1196 : vector<8x128xf32>
    %1198 = vector.extract_strided_slice %1192 {offsets = [0, 128], sizes = [8, 128], strides = [1, 1]} : vector<8x512xf32> to vector<8x128xf32>
    %cst_531 = arith.constant 5.000000e-01 : f32
    %1199 = vector.broadcast %cst_531 : f32 to vector<8x128xf32>
    %1200 = arith.mulf %1199, %1198 : vector<8x128xf32>
    %cst_532 = arith.constant 5.000000e-01 : f32
    %1201 = vector.broadcast %cst_532 : f32 to vector<8x128xf32>
    %1202 = arith.addf %1200, %1201 : vector<8x128xf32>
    %1203 = vector.extract_strided_slice %1192 {offsets = [0, 256], sizes = [8, 128], strides = [1, 1]} : vector<8x512xf32> to vector<8x128xf32>
    %1204 = vector.extract_strided_slice %1192 {offsets = [0, 384], sizes = [8, 128], strides = [1, 1]} : vector<8x512xf32> to vector<8x128xf32>
    %cst_533 = arith.constant 5.000000e-01 : f32
    %1205 = vector.broadcast %cst_533 : f32 to vector<8x128xf32>
    %1206 = arith.mulf %1205, %1204 : vector<8x128xf32>
    %cst_534 = arith.constant 5.000000e-01 : f32
    %1207 = vector.broadcast %cst_534 : f32 to vector<8x128xf32>
    %1208 = arith.addf %1206, %1207 : vector<8x128xf32>
    %1209 = arith.mulf %1202, %1186 : vector<8x128xf32>
    %1210 = arith.mulf %1197, %1203 : vector<8x128xf32>
    %1211 = arith.addf %1209, %1210 : vector<8x128xf32>
    %1212 = math.tanh %1211 : vector<8x128xf32>
    %1213 = arith.mulf %1208, %1212 : vector<8x128xf32>
    %c4_535 = arith.constant 4 : index
    %c0_536 = arith.constant 0 : index
    %c0_537 = arith.constant 0 : index
    %1214 = vector.load %arg9[%c4_535, %c0_536, %c0_537] : memref<5x8x128xf32, #tpu.memory_space<vmem>>, vector<1x8x128xf32>
    %1215 = vector.shape_cast %1214 : vector<1x8x128xf32> to vector<8x128xf32>
    %1216 = vector.shape_cast %1213 : vector<8x128xf32> to vector<1x8x128xf32>
    tpu.vector_store %arg9[%c4_535, %c0_536, %c0_537], %1216 {strides = array<i32>} : memref<5x8x128xf32, #tpu.memory_space<vmem>>, vector<1x8x128xf32>,
    %c4_538 = arith.constant 4 : index
    %c0_539 = arith.constant 0 : index
    %c0_540 = arith.constant 0 : index
    %1217 = vector.load %arg10[%c4_538, %c0_539, %c0_540] : memref<5x8x128xf32, #tpu.memory_space<vmem>>, vector<1x8x128xf32>
    %1218 = vector.shape_cast %1217 : vector<1x8x128xf32> to vector<8x128xf32>
    %1219 = vector.shape_cast %1211 : vector<8x128xf32> to vector<1x8x128xf32>
    tpu.vector_store %arg10[%c4_538, %c0_539, %c0_540], %1219 {strides = array<i32>} : memref<5x8x128xf32, #tpu.memory_space<vmem>>, vector<1x8x128xf32>,
    %c0_541 = arith.constant 0 : index
    %c0_542 = arith.constant 0 : index
    %1220 = vector.load %arg4[%c0_541, %c0_542] : memref<128x128xf32, #tpu.memory_space<vmem>>, vector<128x128xf32>
    %cst_543 = arith.constant dense<0.000000e+00> : vector<8x128xf32>
    %1221 = tpu.matmul %1213, %1220, %cst_543 {dimension_numbers = #tpu.dot_dimension_numbers<[1], [0], [0], [1], [0, 0, 1, 1], [], []>} : vector<8x128xf32>, vector<128x128xf32>, vector<8x128xf32> -> vector<8x128xf32>
    %c0_544 = arith.constant 0 : index
    %c0_545 = arith.constant 0 : index
    %1222 = vector.load %arg5[%c0_544, %c0_545] : memref<1x128xf32, #tpu.memory_space<vmem>>, vector<1x128xf32>
    %1223 = vector.broadcast %1222 : vector<1x128xf32> to vector<8x128xf32>
    %1224 = arith.addf %1221, %1223 : vector<8x128xf32>
    %c0_546 = arith.constant 0 : index
    %c0_547 = arith.constant 0 : index
    %1225 = vector.load %arg8[%c0_546, %c0_547] : memref<8x128xf32, #tpu.memory_space<vmem>>, vector<8x128xf32>
    tpu.vector_store %arg8[%c0_546, %c0_547], %1224 {strides = array<i32>} : memref<8x128xf32, #tpu.memory_space<vmem>>, vector<8x128xf32>,
    return
  }
}

</mosaic_0001>

<llo_original>
// kernel: mv_lstm_forward.1
$region0: #{mv_lstm_forward.1}
  #allocation0 [shape = 'u32[]', space=smem, size = 0x4, offset = 0x4, fixed_abs, tag = 'smem constant byte address 0x4 - core index']
  #allocation1 [shape = 'u32[72,128]{1,0:T(1,128)}', space=vmem, size = 0x9000, scoped, tag = 'internal scratch']
  #allocation2 [shape = 'f32[2,128,512]{2,1,0:T(8,128)}', space=vmem, size = 0x80000, scoped, tag = 'scratch operand']
  #allocation3 [shape = 'f32[2,128,512]{2,1,0:T(8,128)}', space=vmem, size = 0x80000, scoped, tag = 'scratch operand']
  #allocation4 [shape = 's32[4]{0}', space=sflag, size = 0x10, scoped, tag = 'scratch operand']
  #allocation9 [shape = 's32[]', space=sflag, size = 0x4, offset = 0, fixed_abs, tag = 'sflag constant byte address 0x0 - dummy sync flag']
  #allocation10 [shape = 's32[]', space=sflag, size = 0x4, offset = 0, fixed_abs, tag = 'sflag constant byte address 0x0 - dummy sync flag']
  #allocation11 [shape = 's32[]', space=sflag, size = 0x4, offset = 0, fixed_abs, tag = 'sflag constant byte address 0x0 - dummy sync flag']
  #allocation12 [shape = 's32[]', space=sflag, size = 0x4, offset = 0, fixed_abs, tag = 'sflag constant byte address 0x0 - dummy sync flag']
  #allocation13 [shape = 's32[]', space=sflag, size = 0x4, offset = 0, fixed_abs, tag = 'sflag constant byte address 0x0 - dummy sync flag']
  #allocation14 [shape = 's32[]', space=sflag, size = 0x4, offset = 0, fixed_abs, tag = 'sflag constant byte address 0x0 - dummy sync flag']
  #allocation15 [shape = 's32[]', space=sflag, size = 0x4, offset = 0, fixed_abs, tag = 'sflag constant byte address 0x0 - dummy sync flag']
  #allocation16 [shape = 's32[]', space=sflag, size = 0x4, offset = 0, fixed_abs, tag = 'sflag constant byte address 0x0 - dummy sync flag']
  #allocation17 [shape = 's32[]', space=sflag, size = 0x4, offset = 0, fixed_abs, tag = 'sflag constant byte address 0x0 - dummy sync flag']
  #allocation18 [shape = 's32[]', space=sflag, size = 0x4, offset = 0, fixed_abs, tag = 'sflag constant byte address 0x0 - dummy sync flag']
  %s0 = inlined_call_operand.vmem [shape: f32[64,128], index: 0, kind: input, shape index: {}]
  %s1 = inlined_call_operand.vmem [shape: f32[5,8,128], index: 1, kind: input, shape index: {}]
  %s2 = inlined_call_operand.vmem [shape: f32[5,8,128], index: 2, kind: input, shape index: {}]
  %s3 = inlined_call_operand.vmem [shape: f32[5,1,512], index: 3, kind: input, shape index: {}]
  %s4 = inlined_call_operand.vmem [shape: f32[128,128], index: 4, kind: input, shape index: {}]
  %s5 = inlined_call_operand.vmem [shape: f32[1,128], index: 5, kind: input, shape index: {}]
  %s6 = inlined_call_operand.vmem [shape: f32[5,128,512], index: 6, kind: input, shape index: {}]
  %s7 = inlined_call_operand.vmem [shape: f32[5,128,512], index: 7, kind: input, shape index: {}]
  %s8 = inlined_call_operand.vmem [shape: f32[8,128], index: 8, kind: output, shape index: {0}]
  %s9 = inlined_call_operand.hbm [shape: f32[5,8,128], index: 9, kind: output, shape index: {1}]
  %s10 = inlined_call_operand.hbm [shape: f32[5,8,128], index: 10, kind: output, shape index: {2}]
  %11 = xla_tuple %s8, %s9, %s10
  %s12 = sld [smem:[#allocation0]]
  $region240: #{mv_lstm_forward.1} parent=0
    _
  %s14 = ssub.s32 1, %s12
  %s15 = scalar_select 0, %s14, %s12
  $region1: #{mv_lstm_forward.1} parent=0
    #allocation5 [shape = 'u8[20480]{0}', space=vmem, size = 0x5000, scoped, tag = 'output window, operand 1, single buffered']
    #allocation6 [shape = 's32[1]{0}', space=sflag, size = 0x4, scoped, tag = 'scoped memory for mv_lstm_forward.1']
    #allocation7 [shape = 'u8[20480]{0}', space=vmem, size = 0x5000, scoped, tag = 'output window, operand 2, single buffered']
    #allocation8 [shape = 's32[1]{0}', space=sflag, size = 0x4, scoped, tag = 'scoped memory for mv_lstm_forward.1']
    %16 = vsyncpa [#allocation6], 0
    %17 = vsyncpa [#allocation8], 0
    // Predicated region
    $region2: #{mv_lstm_forward.1} parent=1 // pred_check
      _
    $region3: #{mv_lstm_forward.1} parent=1 // pred_check_branch
      %19 = sbr.rel (0) target = $region5
    $region4: #{mv_lstm_forward.1} parent=1 // pred_region
      _
    $region5: #{mv_lstm_forward.1} parent=1 // pred_fallthru
      _
    // Predicated region
    $region6: #{mv_lstm_forward.1} parent=1 // pred_check
      _
    $region7: #{mv_lstm_forward.1} parent=1 // pred_check_branch
      %21 = sbr.rel (0) target = $region9
    $region8: #{mv_lstm_forward.1} parent=1 // pred_region
      _
    $region9: #{mv_lstm_forward.1} parent=1 // pred_fallthru
      _
    // Predicated region
    $region10: #{mv_lstm_forward.1} parent=1 // pred_check
      _
    $region11: #{mv_lstm_forward.1} parent=1 // pred_check_branch
      %23 = sbr.rel (0) target = $region13
    $region12: #{mv_lstm_forward.1} parent=1 // pred_region
      _
    $region13: #{mv_lstm_forward.1} parent=1 // pred_fallthru
      _
    // Predicated region
    $region14: #{mv_lstm_forward.1} parent=1 // pred_check
      _
    $region15: #{mv_lstm_forward.1} parent=1 // pred_check_branch
      %25 = sbr.rel (0) target = $region17
    $region16: #{mv_lstm_forward.1} parent=1 // pred_region
      _
    $region17: #{mv_lstm_forward.1} parent=1 // pred_fallthru
      _
    // Predicated region
    $region18: #{mv_lstm_forward.1} parent=1 // pred_check
      _
    $region19: #{mv_lstm_forward.1} parent=1 // pred_check_branch
      %27 = sbr.rel (0) target = $region21
    $region20: #{mv_lstm_forward.1} parent=1 // pred_region
      _
    $region21: #{mv_lstm_forward.1} parent=1 // pred_fallthru
      _
    // Predicated region
    $region22: #{mv_lstm_forward.1} parent=1 // pred_check
      _
    $region23: #{mv_lstm_forward.1} parent=1 // pred_check_branch
      %29 = sbr.rel (0) target = $region25
    $region24: #{mv_lstm_forward.1} parent=1 // pred_region
      _
    $region25: #{mv_lstm_forward.1} parent=1 // pred_fallthru
      _
    // Predicated region
    $region26: #{mv_lstm_forward.1} parent=1 // pred_check
      _
    $region27: #{mv_lstm_forward.1} parent=1 // pred_check_branch
      %31 = sbr.rel (0) target = $region29
    $region28: #{mv_lstm_forward.1} parent=1 // pred_region
      loop: start=0, step=1, limit=1
      $region30: #{mv_lstm_forward.1} parent=28 // loop_pre_header
        _
      $region31: #{mv_lstm_forward.1} parent=28 // loop_header
        %s33 = sphi 0, %s37
        %p34 = scmp.ge.s32.totalorder %s33, 1
        %s38 = sphi %s6, %s6
        %s39 = sphi [#allocation2], [#allocation2]
      $region32: #{mv_lstm_forward.1} parent=28 // loop_header_branch
        %36 = sbr.rel (%p34) target = $region36
      $region33: #{mv_lstm_forward.1} parent=28 // loop_body
        %v40 = vld [vmem:[%s38] sm:$0xff]
        %41 = vst [vmem:[%s39] sm:$0xff] %v40
        %v42 = vld [vmem:[%s38 + $0x8] sm:$0xff]
        %43 = vst [vmem:[%s39 + $0x8] sm:$0xff] %v42
        %v44 = vld [vmem:[%s38 + $0x10] sm:$0xff]
        %45 = vst [vmem:[%s39 + $0x10] sm:$0xff] %v44
        %v46 = vld [vmem:[%s38 + $0x18] sm:$0xff]
        %47 = vst [vmem:[%s39 + $0x18] sm:$0xff] %v46
        %v48 = vld [vmem:[%s38 + $0x20] sm:$0xff]
        %49 = vst [vmem:[%s39 + $0x20] sm:$0xff] %v48
        %v50 = vld [vmem:[%s38 + $0x28] sm:$0xff]
        %51 = vst [vmem:[%s39 + $0x28] sm:$0xff] %v50
        %v52 = vld [vmem:[%s38 + $0x30] sm:$0xff]
        %53 = vst [vmem:[%s39 + $0x30] sm:$0xff] %v52
        %v54 = vld [vmem:[%s38 + $0x38] sm:$0xff]
        %55 = vst [vmem:[%s39 + $0x38] sm:$0xff] %v54
        %v56 = vld [vmem:[%s38 + $0x40] sm:$0xff]
        %57 = vst [vmem:[%s39 + $0x40] sm:$0xff] %v56
        %v58 = vld [vmem:[%s38 + $0x48] sm:$0xff]
        %59 = vst [vmem:[%s39 + $0x48] sm:$0xff] %v58
        %v60 = vld [vmem:[%s38 + $0x50] sm:$0xff]
        %61 = vst [vmem:[%s39 + $0x50] sm:$0xff] %v60
        %v62 = vld [vmem:[%s38 + $0x58] sm:$0xff]
        %63 = vst [vmem:[%s39 + $0x58] sm:$0xff] %v62
        %v64 = vld [vmem:[%s38 + $0x60] sm:$0xff]
        %65 = vst [vmem:[%s39 + $0x60] sm:$0xff] %v64
        %v66 = vld [vmem:[%s38 + $0x68] sm:$0xff]
        %67 = vst [vmem:[%s39 + $0x68] sm:$0xff] %v66
        %v68 = vld [vmem:[%s38 + $0x70] sm:$0xff]
        %69 = vst [vmem:[%s39 + $0x70] sm:$0xff] %v68
        %v70 = vld [vmem:[%s38 + $0x78] sm:$0xff]
        %71 = vst [vmem:[%s39 + $0x78] sm:$0xff] %v70
        %v72 = vld [vmem:[%s38 + $0x80] sm:$0xff]
        %73 = vst [vmem:[%s39 + $0x80] sm:$0xff] %v72
        %v74 = vld [vmem:[%s38 + $0x88] sm:$0xff]
        %75 = vst [vmem:[%s39 + $0x88] sm:$0xff] %v74
        %v76 = vld [vmem:[%s38 + $0x90] sm:$0xff]
        %77 = vst [vmem:[%s39 + $0x90] sm:$0xff] %v76
        %v78 = vld [vmem:[%s38 + $0x98] sm:$0xff]
        %79 = vst [vmem:[%s39 + $0x98] sm:$0xff] %v78
        %v80 = vld [vmem:[%s38 + $0xa0] sm:$0xff]
        %81 = vst [vmem:[%s39 + $0xa0] sm:$0xff] %v80
        %v82 = vld [vmem:[%s38 + $0xa8] sm:$0xff]
        %83 = vst [vmem:[%s39 + $0xa8] sm:$0xff] %v82
        %v84 = vld [vmem:[%s38 + $0xb0] sm:$0xff]
        %85 = vst [vmem:[%s39 + $0xb0] sm:$0xff] %v84
        %v86 = vld [vmem:[%s38 + $0xb8] sm:$0xff]
        %87 = vst [vmem:[%s39 + $0xb8] sm:$0xff] %v86
        %v88 = vld [vmem:[%s38 + $0xc0] sm:$0xff]
        %89 = vst [vmem:[%s39 + $0xc0] sm:$0xff] %v88
        %v90 = vld [vmem:[%s38 + $0xc8] sm:$0xff]
        %91 = vst [vmem:[%s39 + $0xc8] sm:$0xff] %v90
        %v92 = vld [vmem:[%s38 + $0xd0] sm:$0xff]
        %93 = vst [vmem:[%s39 + $0xd0] sm:$0xff] %v92
        %v94 = vld [vmem:[%s38 + $0xd8] sm:$0xff]
        %95 = vst [vmem:[%s39 + $0xd8] sm:$0xff] %v94
        %v96 = vld [vmem:[%s38 + $0xe0] sm:$0xff]
        %97 = vst [vmem:[%s39 + $0xe0] sm:$0xff] %v96
        %v98 = vld [vmem:[%s38 + $0xe8] sm:$0xff]
        %99 = vst [vmem:[%s39 + $0xe8] sm:$0xff] %v98
        %v100 = vld [vmem:[%s38 + $0xf0] sm:$0xff]
        %101 = vst [vmem:[%s39 + $0xf0] sm:$0xff] %v100
        %v102 = vld [vmem:[%s38 + $0xf8] sm:$0xff]
        %103 = vst [vmem:[%s39 + $0xf8] sm:$0xff] %v102
        %v104 = vld [vmem:[%s38 + $0x100] sm:$0xff]
        %105 = vst [vmem:[%s39 + $0x100] sm:$0xff] %v104
        %v106 = vld [vmem:[%s38 + $0x108] sm:$0xff]
        %107 = vst [vmem:[%s39 + $0x108] sm:$0xff] %v106
        %v108 = vld [vmem:[%s38 + $0x110] sm:$0xff]
        %109 = vst [vmem:[%s39 + $0x110] sm:$0xff] %v108
        %v110 = vld [vmem:[%s38 + $0x118] sm:$0xff]
        %111 = vst [vmem:[%s39 + $0x118] sm:$0xff] %v110
        %v112 = vld [vmem:[%s38 + $0x120] sm:$0xff]
        %113 = vst [vmem:[%s39 + $0x120] sm:$0xff] %v112
        %v114 = vld [vmem:[%s38 + $0x128] sm:$0xff]
        %115 = vst [vmem:[%s39 + $0x128] sm:$0xff] %v114
        %v116 = vld [vmem:[%s38 + $0x130] sm:$0xff]
        %117 = vst [vmem:[%s39 + $0x130] sm:$0xff] %v116
        %v118 = vld [vmem:[%s38 + $0x138] sm:$0xff]
        %119 = vst [vmem:[%s39 + $0x138] sm:$0xff] %v118
        %v120 = vld [vmem:[%s38 + $0x140] sm:$0xff]
        %121 = vst [vmem:[%s39 + $0x140] sm:$0xff] %v120
        %v122 = vld [vmem:[%s38 + $0x148] sm:$0xff]
        %123 = vst [vmem:[%s39 + $0x148] sm:$0xff] %v122
        %v124 = vld [vmem:[%s38 + $0x150] sm:$0xff]
        %125 = vst [vmem:[%s39 + $0x150] sm:$0xff] %v124
        %v126 = vld [vmem:[%s38 + $0x158] sm:$0xff]
        %127 = vst [vmem:[%s39 + $0x158] sm:$0xff] %v126
        %v128 = vld [vmem:[%s38 + $0x160] sm:$0xff]
        %129 = vst [vmem:[%s39 + $0x160] sm:$0xff] %v128
        %v130 = vld [vmem:[%s38 + $0x168] sm:$0xff]
        %131 = vst [vmem:[%s39 + $0x168] sm:$0xff] %v130
        %v132 = vld [vmem:[%s38 + $0x170] sm:$0xff]
        %133 = vst [vmem:[%s39 + $0x170] sm:$0xff] %v132
        %v134 = vld [vmem:[%s38 + $0x178] sm:$0xff]
        %135 = vst [vmem:[%s39 + $0x178] sm:$0xff] %v134
        %v136 = vld [vmem:[%s38 + $0x180] sm:$0xff]
        %137 = vst [vmem:[%s39 + $0x180] sm:$0xff] %v136
        %v138 = vld [vmem:[%s38 + $0x188] sm:$0xff]
        %139 = vst [vmem:[%s39 + $0x188] sm:$0xff] %v138
        %v140 = vld [vmem:[%s38 + $0x190] sm:$0xff]
        %141 = vst [vmem:[%s39 + $0x190] sm:$0xff] %v140
        %v142 = vld [vmem:[%s38 + $0x198] sm:$0xff]
        %143 = vst [vmem:[%s39 + $0x198] sm:$0xff] %v142
        %v144 = vld [vmem:[%s38 + $0x1a0] sm:$0xff]
        %145 = vst [vmem:[%s39 + $0x1a0] sm:$0xff] %v144
        %v146 = vld [vmem:[%s38 + $0x1a8] sm:$0xff]
        %147 = vst [vmem:[%s39 + $0x1a8] sm:$0xff] %v146
        %v148 = vld [vmem:[%s38 + $0x1b0] sm:$0xff]
        %149 = vst [vmem:[%s39 + $0x1b0] sm:$0xff] %v148
        %v150 = vld [vmem:[%s38 + $0x1b8] sm:$0xff]
        %151 = vst [vmem:[%s39 + $0x1b8] sm:$0xff] %v150
        %v152 = vld [vmem:[%s38 + $0x1c0] sm:$0xff]
        %153 = vst [vmem:[%s39 + $0x1c0] sm:$0xff] %v152
        %v154 = vld [vmem:[%s38 + $0x1c8] sm:$0xff]
        %155 = vst [vmem:[%s39 + $0x1c8] sm:$0xff] %v154
        %v156 = vld [vmem:[%s38 + $0x1d0] sm:$0xff]
        %157 = vst [vmem:[%s39 + $0x1d0] sm:$0xff] %v156
        %v158 = vld [vmem:[%s38 + $0x1d8] sm:$0xff]
        %159 = vst [vmem:[%s39 + $0x1d8] sm:$0xff] %v158
        %v160 = vld [vmem:[%s38 + $0x1e0] sm:$0xff]
        %161 = vst [vmem:[%s39 + $0x1e0] sm:$0xff] %v160
        %v162 = vld [vmem:[%s38 + $0x1e8] sm:$0xff]
        %163 = vst [vmem:[%s39 + $0x1e8] sm:$0xff] %v162
        %v164 = vld [vmem:[%s38 + $0x1f0] sm:$0xff]
        %165 = vst [vmem:[%s39 + $0x1f0] sm:$0xff] %v164
        %v166 = vld [vmem:[%s38 + $0x1f8] sm:$0xff]
        %167 = vst [vmem:[%s39 + $0x1f8] sm:$0xff] %v166
      $region34: #{mv_lstm_forward.1} parent=28 // loop_footer
        %s37 = sadd.s32 1, %s33
      $region35: #{mv_lstm_forward.1} parent=28 // loop_footer_branch
        %32 = sbr.rel target = $region31
      $region36: #{mv_lstm_forward.1} parent=28 // loop_exit
        _
    $region29: #{mv_lstm_forward.1} parent=1 // pred_fallthru
      _
    // Predicated region
    $region37: #{mv_lstm_forward.1} parent=1 // pred_check
      _
    $region38: #{mv_lstm_forward.1} parent=1 // pred_check_branch
      %169 = sbr.rel target = $region40
    $region39: #{mv_lstm_forward.1} parent=1 // pred_region
      _
    $region40: #{mv_lstm_forward.1} parent=1 // pred_fallthru
      _
    // Predicated region
    $region41: #{mv_lstm_forward.1} parent=1 // pred_check
      _
    $region42: #{mv_lstm_forward.1} parent=1 // pred_check_branch
      %172 = sbr.rel (0) target = $region44
    $region43: #{mv_lstm_forward.1} parent=1 // pred_region
      %173 = vsyncadd [#allocation4], 8192
    $region44: #{mv_lstm_forward.1} parent=1 // pred_fallthru
      _
    %s174 = scalar_lea.sflag [#allocation4], 2
    // Predicated region
    $region45: #{mv_lstm_forward.1} parent=1 // pred_check
      _
    $region46: #{mv_lstm_forward.1} parent=1 // pred_check_branch
      %176 = sbr.rel (0) target = $region48
    $region47: #{mv_lstm_forward.1} parent=1 // pred_region
      loop: start=0, step=1, limit=1
      $region49: #{mv_lstm_forward.1} parent=47 // loop_pre_header
        _
      $region50: #{mv_lstm_forward.1} parent=47 // loop_header
        %s178 = sphi 0, %s182
        %p179 = scmp.ge.s32.totalorder %s178, 1
        %s183 = sphi %s7, %s7
        %s184 = sphi [#allocation3], [#allocation3]
      $region51: #{mv_lstm_forward.1} parent=47 // loop_header_branch
        %181 = sbr.rel (%p179) target = $region55
      $region52: #{mv_lstm_forward.1} parent=47 // loop_body
        %v185 = vld [vmem:[%s183] sm:$0xff]
        %186 = vst [vmem:[%s184] sm:$0xff] %v185
        %v187 = vld [vmem:[%s183 + $0x8] sm:$0xff]
        %188 = vst [vmem:[%s184 + $0x8] sm:$0xff] %v187
        %v189 = vld [vmem:[%s183 + $0x10] sm:$0xff]
        %190 = vst [vmem:[%s184 + $0x10] sm:$0xff] %v189
        %v191 = vld [vmem:[%s183 + $0x18] sm:$0xff]
        %192 = vst [vmem:[%s184 + $0x18] sm:$0xff] %v191
        %v193 = vld [vmem:[%s183 + $0x20] sm:$0xff]
        %194 = vst [vmem:[%s184 + $0x20] sm:$0xff] %v193
        %v195 = vld [vmem:[%s183 + $0x28] sm:$0xff]
        %196 = vst [vmem:[%s184 + $0x28] sm:$0xff] %v195
        %v197 = vld [vmem:[%s183 + $0x30] sm:$0xff]
        %198 = vst [vmem:[%s184 + $0x30] sm:$0xff] %v197
        %v199 = vld [vmem:[%s183 + $0x38] sm:$0xff]
        %200 = vst [vmem:[%s184 + $0x38] sm:$0xff] %v199
        %v201 = vld [vmem:[%s183 + $0x40] sm:$0xff]
        %202 = vst [vmem:[%s184 + $0x40] sm:$0xff] %v201
        %v203 = vld [vmem:[%s183 + $0x48] sm:$0xff]
        %204 = vst [vmem:[%s184 + $0x48] sm:$0xff] %v203
        %v205 = vld [vmem:[%s183 + $0x50] sm:$0xff]
        %206 = vst [vmem:[%s184 + $0x50] sm:$0xff] %v205
        %v207 = vld [vmem:[%s183 + $0x58] sm:$0xff]
        %208 = vst [vmem:[%s184 + $0x58] sm:$0xff] %v207
        %v209 = vld [vmem:[%s183 + $0x60] sm:$0xff]
        %210 = vst [vmem:[%s184 + $0x60] sm:$0xff] %v209
        %v211 = vld [vmem:[%s183 + $0x68] sm:$0xff]
        %212 = vst [vmem:[%s184 + $0x68] sm:$0xff] %v211
        %v213 = vld [vmem:[%s183 + $0x70] sm:$0xff]
        %214 = vst [vmem:[%s184 + $0x70] sm:$0xff] %v213
        %v215 = vld [vmem:[%s183 + $0x78] sm:$0xff]
        %216 = vst [vmem:[%s184 + $0x78] sm:$0xff] %v215
        %v217 = vld [vmem:[%s183 + $0x80] sm:$0xff]
        %218 = vst [vmem:[%s184 + $0x80] sm:$0xff] %v217
        %v219 = vld [vmem:[%s183 + $0x88] sm:$0xff]
        %220 = vst [vmem:[%s184 + $0x88] sm:$0xff] %v219
        %v221 = vld [vmem:[%s183 + $0x90] sm:$0xff]
        %222 = vst [vmem:[%s184 + $0x90] sm:$0xff] %v221
        %v223 = vld [vmem:[%s183 + $0x98] sm:$0xff]
        %224 = vst [vmem:[%s184 + $0x98] sm:$0xff] %v223
        %v225 = vld [vmem:[%s183 + $0xa0] sm:$0xff]
        %226 = vst [vmem:[%s184 + $0xa0] sm:$0xff] %v225
        %v227 = vld [vmem:[%s183 + $0xa8] sm:$0xff]
        %228 = vst [vmem:[%s184 + $0xa8] sm:$0xff] %v227
        %v229 = vld [vmem:[%s183 + $0xb0] sm:$0xff]
        %230 = vst [vmem:[%s184 + $0xb0] sm:$0xff] %v229
        %v231 = vld [vmem:[%s183 + $0xb8] sm:$0xff]
        %232 = vst [vmem:[%s184 + $0xb8] sm:$0xff] %v231
        %v233 = vld [vmem:[%s183 + $0xc0] sm:$0xff]
        %234 = vst [vmem:[%s184 + $0xc0] sm:$0xff] %v233
        %v235 = vld [vmem:[%s183 + $0xc8] sm:$0xff]
        %236 = vst [vmem:[%s184 + $0xc8] sm:$0xff] %v235
        %v237 = vld [vmem:[%s183 + $0xd0] sm:$0xff]
        %238 = vst [vmem:[%s184 + $0xd0] sm:$0xff] %v237
        %v239 = vld [vmem:[%s183 + $0xd8] sm:$0xff]
        %240 = vst [vmem:[%s184 + $0xd8] sm:$0xff] %v239
        %v241 = vld [vmem:[%s183 + $0xe0] sm:$0xff]
        %242 = vst [vmem:[%s184 + $0xe0] sm:$0xff] %v241
        %v243 = vld [vmem:[%s183 + $0xe8] sm:$0xff]
        %244 = vst [vmem:[%s184 + $0xe8] sm:$0xff] %v243
        %v245 = vld [vmem:[%s183 + $0xf0] sm:$0xff]
        %246 = vst [vmem:[%s184 + $0xf0] sm:$0xff] %v245
        %v247 = vld [vmem:[%s183 + $0xf8] sm:$0xff]
        %248 = vst [vmem:[%s184 + $0xf8] sm:$0xff] %v247
        %v249 = vld [vmem:[%s183 + $0x100] sm:$0xff]
        %250 = vst [vmem:[%s184 + $0x100] sm:$0xff] %v249
        %v251 = vld [vmem:[%s183 + $0x108] sm:$0xff]
        %252 = vst [vmem:[%s184 + $0x108] sm:$0xff] %v251
        %v253 = vld [vmem:[%s183 + $0x110] sm:$0xff]
        %254 = vst [vmem:[%s184 + $0x110] sm:$0xff] %v253
        %v255 = vld [vmem:[%s183 + $0x118] sm:$0xff]
        %256 = vst [vmem:[%s184 + $0x118] sm:$0xff] %v255
        %v257 = vld [vmem:[%s183 + $0x120] sm:$0xff]
        %258 = vst [vmem:[%s184 + $0x120] sm:$0xff] %v257
        %v259 = vld [vmem:[%s183 + $0x128] sm:$0xff]
        %260 = vst [vmem:[%s184 + $0x128] sm:$0xff] %v259
        %v261 = vld [vmem:[%s183 + $0x130] sm:$0xff]
        %262 = vst [vmem:[%s184 + $0x130] sm:$0xff] %v261
        %v263 = vld [vmem:[%s183 + $0x138] sm:$0xff]
        %264 = vst [vmem:[%s184 + $0x138] sm:$0xff] %v263
        %v265 = vld [vmem:[%s183 + $0x140] sm:$0xff]
        %266 = vst [vmem:[%s184 + $0x140] sm:$0xff] %v265
        %v267 = vld [vmem:[%s183 + $0x148] sm:$0xff]
        %268 = vst [vmem:[%s184 + $0x148] sm:$0xff] %v267
        %v269 = vld [vmem:[%s183 + $0x150] sm:$0xff]
        %270 = vst [vmem:[%s184 + $0x150] sm:$0xff] %v269
        %v271 = vld [vmem:[%s183 + $0x158] sm:$0xff]
        %272 = vst [vmem:[%s184 + $0x158] sm:$0xff] %v271
        %v273 = vld [vmem:[%s183 + $0x160] sm:$0xff]
        %274 = vst [vmem:[%s184 + $0x160] sm:$0xff] %v273
        %v275 = vld [vmem:[%s183 + $0x168] sm:$0xff]
        %276 = vst [vmem:[%s184 + $0x168] sm:$0xff] %v275
        %v277 = vld [vmem:[%s183 + $0x170] sm:$0xff]
        %278 = vst [vmem:[%s184 + $0x170] sm:$0xff] %v277
        %v279 = vld [vmem:[%s183 + $0x178] sm:$0xff]
        %280 = vst [vmem:[%s184 + $0x178] sm:$0xff] %v279
        %v281 = vld [vmem:[%s183 + $0x180] sm:$0xff]
        %282 = vst [vmem:[%s184 + $0x180] sm:$0xff] %v281
        %v283 = vld [vmem:[%s183 + $0x188] sm:$0xff]
        %284 = vst [vmem:[%s184 + $0x188] sm:$0xff] %v283
        %v285 = vld [vmem:[%s183 + $0x190] sm:$0xff]
        %286 = vst [vmem:[%s184 + $0x190] sm:$0xff] %v285
        %v287 = vld [vmem:[%s183 + $0x198] sm:$0xff]
        %288 = vst [vmem:[%s184 + $0x198] sm:$0xff] %v287
        %v289 = vld [vmem:[%s183 + $0x1a0] sm:$0xff]
        %290 = vst [vmem:[%s184 + $0x1a0] sm:$0xff] %v289
        %v291 = vld [vmem:[%s183 + $0x1a8] sm:$0xff]
        %292 = vst [vmem:[%s184 + $0x1a8] sm:$0xff] %v291
        %v293 = vld [vmem:[%s183 + $0x1b0] sm:$0xff]
        %294 = vst [vmem:[%s184 + $0x1b0] sm:$0xff] %v293
        %v295 = vld [vmem:[%s183 + $0x1b8] sm:$0xff]
        %296 = vst [vmem:[%s184 + $0x1b8] sm:$0xff] %v295
        %v297 = vld [vmem:[%s183 + $0x1c0] sm:$0xff]
        %298 = vst [vmem:[%s184 + $0x1c0] sm:$0xff] %v297
        %v299 = vld [vmem:[%s183 + $0x1c8] sm:$0xff]
        %300 = vst [vmem:[%s184 + $0x1c8] sm:$0xff] %v299
        %v301 = vld [vmem:[%s183 + $0x1d0] sm:$0xff]
        %302 = vst [vmem:[%s184 + $0x1d0] sm:$0xff] %v301
        %v303 = vld [vmem:[%s183 + $0x1d8] sm:$0xff]
        %304 = vst [vmem:[%s184 + $0x1d8] sm:$0xff] %v303
        %v305 = vld [vmem:[%s183 + $0x1e0] sm:$0xff]
        %306 = vst [vmem:[%s184 + $0x1e0] sm:$0xff] %v305
        %v307 = vld [vmem:[%s183 + $0x1e8] sm:$0xff]
        %308 = vst [vmem:[%s184 + $0x1e8] sm:$0xff] %v307
        %v309 = vld [vmem:[%s183 + $0x1f0] sm:$0xff]
        %310 = vst [vmem:[%s184 + $0x1f0] sm:$0xff] %v309
        %v311 = vld [vmem:[%s183 + $0x1f8] sm:$0xff]
        %312 = vst [vmem:[%s184 + $0x1f8] sm:$0xff] %v311
      $region53: #{mv_lstm_forward.1} parent=47 // loop_footer
        %s182 = sadd.s32 1, %s178
      $region54: #{mv_lstm_forward.1} parent=47 // loop_footer_branch
        %177 = sbr.rel target = $region50
      $region55: #{mv_lstm_forward.1} parent=47 // loop_exit
        _
    $region48: #{mv_lstm_forward.1} parent=1 // pred_fallthru
      _
    // Predicated region
    $region56: #{mv_lstm_forward.1} parent=1 // pred_check
      _
    $region57: #{mv_lstm_forward.1} parent=1 // pred_check_branch
      %314 = sbr.rel target = $region59
    $region58: #{mv_lstm_forward.1} parent=1 // pred_region
      _
    $region59: #{mv_lstm_forward.1} parent=1 // pred_fallthru
      _
    // Predicated region
    $region60: #{mv_lstm_forward.1} parent=1 // pred_check
      _
    $region61: #{mv_lstm_forward.1} parent=1 // pred_check_branch
      %317 = sbr.rel (0) target = $region63
    $region62: #{mv_lstm_forward.1} parent=1 // pred_region
      %318 = vsyncadd %s174, 8192
    $region63: #{mv_lstm_forward.1} parent=1 // pred_fallthru
      _
    %v319 = vld [vmem:[%s0] sm:$0xff]
    %v320 = vld [vmem:[%s0 + $0x8] sm:$0xff]
    %v321 = vld [vmem:[%s0 + $0x10] sm:$0xff]
    %v322 = vld [vmem:[%s0 + $0x18] sm:$0xff]
    %v323 = vld [vmem:[%s0 + $0x20] sm:$0xff]
    %v324 = vld [vmem:[%s0 + $0x28] sm:$0xff]
    %v325 = vld [vmem:[%s0 + $0x30] sm:$0xff]
    %v326 = vld [vmem:[%s0 + $0x38] sm:$0xff]
    %s327 = smul.u32 8, 16
    %s328 = smul.u32 %s327, 4
    %s329 = sshll.u32 %s328, 4
    %330 = dma.done [#allocation4], %s329
    %v331 = vld [vmem:[#allocation2] sm:$0xff]
    %v332 = vld [vmem:[#allocation2 + $0x8] sm:$0xff]
    %v333 = vld [vmem:[#allocation2 + $0x10] sm:$0xff]
    %v334 = vld [vmem:[#allocation2 + $0x18] sm:$0xff]
    %v335 = vld [vmem:[#allocation2 + $0x20] sm:$0xff]
    %v336 = vld [vmem:[#allocation2 + $0x28] sm:$0xff]
    %v337 = vld [vmem:[#allocation2 + $0x30] sm:$0xff]
    %v338 = vld [vmem:[#allocation2 + $0x38] sm:$0xff]
    %v339 = vld [vmem:[#allocation2 + $0x40] sm:$0xff]
    %v340 = vld [vmem:[#allocation2 + $0x48] sm:$0xff]
    %v341 = vld [vmem:[#allocation2 + $0x50] sm:$0xff]
    %v342 = vld [vmem:[#allocation2 + $0x58] sm:$0xff]
    %v343 = vld [vmem:[#allocation2 + $0x60] sm:$0xff]
    %v344 = vld [vmem:[#allocation2 + $0x68] sm:$0xff]
    %v345 = vld [vmem:[#allocation2 + $0x70] sm:$0xff]
    %v346 = vld [vmem:[#allocation2 + $0x78] sm:$0xff]
    %v347 = vld [vmem:[#allocation2 + $0x80] sm:$0xff]
    %v348 = vld [vmem:[#allocation2 + $0x88] sm:$0xff]
    %v349 = vld [vmem:[#allocation2 + $0x90] sm:$0xff]
    %v350 = vld [vmem:[#allocation2 + $0x98] sm:$0xff]
    %v351 = vld [vmem:[#allocation2 + $0xa0] sm:$0xff]
    %v352 = vld [vmem:[#allocation2 + $0xa8] sm:$0xff]
    %v353 = vld [vmem:[#allocation2 + $0xb0] sm:$0xff]
    %v354 = vld [vmem:[#allocation2 + $0xb8] sm:$0xff]
    %v355 = vld [vmem:[#allocation2 + $0xc0] sm:$0xff]
    %v356 = vld [vmem:[#allocation2 + $0xc8] sm:$0xff]
    %v357 = vld [vmem:[#allocation2 + $0xd0] sm:$0xff]
    %v358 = vld [vmem:[#allocation2 + $0xd8] sm:$0xff]
    %v359 = vld [vmem:[#allocation2 + $0xe0] sm:$0xff]
    %v360 = vld [vmem:[#allocation2 + $0xe8] sm:$0xff]
    %v361 = vld [vmem:[#allocation2 + $0xf0] sm:$0xff]
    %v362 = vld [vmem:[#allocation2 + $0xf8] sm:$0xff]
    %v363 = vld [vmem:[#allocation2 + $0x100] sm:$0xff]
    %v364 = vld [vmem:[#allocation2 + $0x108] sm:$0xff]
    %v365 = vld [vmem:[#allocation2 + $0x110] sm:$0xff]
    %v366 = vld [vmem:[#allocation2 + $0x118] sm:$0xff]
    %v367 = vld [vmem:[#allocation2 + $0x120] sm:$0xff]
    %v368 = vld [vmem:[#allocation2 + $0x128] sm:$0xff]
    %v369 = vld [vmem:[#allocation2 + $0x130] sm:$0xff]
    %v370 = vld [vmem:[#allocation2 + $0x138] sm:$0xff]
    %v371 = vld [vmem:[#allocation2 + $0x140] sm:$0xff]
    %v372 = vld [vmem:[#allocation2 + $0x148] sm:$0xff]
    %v373 = vld [vmem:[#allocation2 + $0x150] sm:$0xff]
    %v374 = vld [vmem:[#allocation2 + $0x158] sm:$0xff]
    %v375 = vld [vmem:[#allocation2 + $0x160] sm:$0xff]
    %v376 = vld [vmem:[#allocation2 + $0x168] sm:$0xff]
    %v377 = vld [vmem:[#allocation2 + $0x170] sm:$0xff]
    %v378 = vld [vmem:[#allocation2 + $0x178] sm:$0xff]
    %v379 = vld [vmem:[#allocation2 + $0x180] sm:$0xff]
    %v380 = vld [vmem:[#allocation2 + $0x188] sm:$0xff]
    %v381 = vld [vmem:[#allocation2 + $0x190] sm:$0xff]
    %v382 = vld [vmem:[#allocation2 + $0x198] sm:$0xff]
    %v383 = vld [vmem:[#allocation2 + $0x1a0] sm:$0xff]
    %v384 = vld [vmem:[#allocation2 + $0x1a8] sm:$0xff]
    %v385 = vld [vmem:[#allocation2 + $0x1b0] sm:$0xff]
    %v386 = vld [vmem:[#allocation2 + $0x1b8] sm:$0xff]
    %v387 = vld [vmem:[#allocation2 + $0x1c0] sm:$0xff]
    %v388 = vld [vmem:[#allocation2 + $0x1c8] sm:$0xff]
    %v389 = vld [vmem:[#allocation2 + $0x1d0] sm:$0xff]
    %v390 = vld [vmem:[#allocation2 + $0x1d8] sm:$0xff]
    %v391 = vld [vmem:[#allocation2 + $0x1e0] sm:$0xff]
    %v392 = vld [vmem:[#allocation2 + $0x1e8] sm:$0xff]
    %v393 = vld [vmem:[#allocation2 + $0x1f0] sm:$0xff]
    %v394 = vld [vmem:[#allocation2 + $0x1f8] sm:$0xff]
    %v395 = vld [vmem:[%s3] sm:$0xf]
    %v397 = vperm.slane %v395, 0
    %v398 = vperm.slane %v395, 1
    %v399 = vperm.slane %v395, 2
    %v400 = vperm.slane %v395, 3
    %405 = vmatpush.msra.mxu0 %v391
    %406 = vmatpush.msra.mxu0 %v387
    %407 = vmatpush.msra.mxu0 %v383
    %408 = vmatpush.msra.mxu0 %v379
    %409 = vmatpush.msra.mxu0 %v375
    %410 = vmatpush.msra.mxu0 %v371
    %411 = vmatpush.msra.mxu0 %v367
    %412 = vmatpush.msra.mxu0 %v363
    %413 = vmatpush.msra.mxu0 %v359
    %414 = vmatpush.msra.mxu0 %v355
    %415 = vmatpush.msra.mxu0 %v351
    %416 = vmatpush.msra.mxu0 %v347
    %417 = vmatpush.msra.mxu0 %v343
    %418 = vmatpush.msra.mxu0 %v339
    %419 = vmatpush.msra.mxu0 %v335
    %420 = vmatpush.msra.mxu0 %v331
    %421 = vmatmul.f32.gmra.mxu0 %v319
    %v422 = vpop.f32.mrf.mxu0
    %v423 = vadd.f32 %v397, %v422
    %424 = vmatmul.f32.gmra.mxu0 %v320
    %v425 = vpop.f32.mrf.mxu0
    %v426 = vadd.f32 %v397, %v425
    %427 = vmatmul.f32.gmra.mxu0 %v321
    %v428 = vpop.f32.mrf.mxu0
    %v429 = vadd.f32 %v397, %v428
    %430 = vmatmul.f32.gmra.mxu0 %v322
    %v431 = vpop.f32.mrf.mxu0
    %v432 = vadd.f32 %v397, %v431
    %433 = vmatmul.f32.gmra.mxu0 %v323
    %v434 = vpop.f32.mrf.mxu0
    %v435 = vadd.f32 %v397, %v434
    %436 = vmatmul.f32.gmra.mxu0 %v324
    %v437 = vpop.f32.mrf.mxu0
    %v438 = vadd.f32 %v397, %v437
    %439 = vmatmul.f32.gmra.mxu0 %v325
    %v440 = vpop.f32.mrf.mxu0
    %v441 = vadd.f32 %v397, %v440
    %442 = vmatmul.f32.gmra.mxu0 %v326
    %v443 = vpop.f32.mrf.mxu0
    %v444 = vadd.f32 %v397, %v443
    %445 = vdwg.mxu0
    %446 = vmatpush.msra.mxu0 %v392
    %447 = vmatpush.msra.mxu0 %v388
    %448 = vmatpush.msra.mxu0 %v384
    %449 = vmatpush.msra.mxu0 %v380
    %450 = vmatpush.msra.mxu0 %v376
    %451 = vmatpush.msra.mxu0 %v372
    %452 = vmatpush.msra.mxu0 %v368
    %453 = vmatpush.msra.mxu0 %v364
    %454 = vmatpush.msra.mxu0 %v360
    %455 = vmatpush.msra.mxu0 %v356
    %456 = vmatpush.msra.mxu0 %v352
    %457 = vmatpush.msra.mxu0 %v348
    %458 = vmatpush.msra.mxu0 %v344
    %459 = vmatpush.msra.mxu0 %v340
    %460 = vmatpush.msra.mxu0 %v336
    %461 = vmatpush.msra.mxu0 %v332
    %462 = vmatmul.f32.gmra.mxu0 %v319
    %v463 = vpop.f32.mrf.mxu0
    %v464 = vadd.f32 %v398, %v463
    %465 = vmatmul.f32.gmra.mxu0 %v320
    %v466 = vpop.f32.mrf.mxu0
    %v467 = vadd.f32 %v398, %v466
    %468 = vmatmul.f32.gmra.mxu0 %v321
    %v469 = vpop.f32.mrf.mxu0
    %v470 = vadd.f32 %v398, %v469
    %471 = vmatmul.f32.gmra.mxu0 %v322
    %v472 = vpop.f32.mrf.mxu0
    %v473 = vadd.f32 %v398, %v472
    %474 = vmatmul.f32.gmra.mxu0 %v323
    %v475 = vpop.f32.mrf.mxu0
    %v476 = vadd.f32 %v398, %v475
    %477 = vmatmul.f32.gmra.mxu0 %v324
    %v478 = vpop.f32.mrf.mxu0
    %v479 = vadd.f32 %v398, %v478
    %480 = vmatmul.f32.gmra.mxu0 %v325
    %v481 = vpop.f32.mrf.mxu0
    %v482 = vadd.f32 %v398, %v481
    %483 = vmatmul.f32.gmra.mxu0 %v326
    %v484 = vpop.f32.mrf.mxu0
    %v485 = vadd.f32 %v398, %v484
    %486 = vdwg.mxu0
    %487 = vmatpush.msra.mxu0 %v393
    %488 = vmatpush.msra.mxu0 %v389
    %489 = vmatpush.msra.mxu0 %v385
    %490 = vmatpush.msra.mxu0 %v381
    %491 = vmatpush.msra.mxu0 %v377
    %492 = vmatpush.msra.mxu0 %v373
    %493 = vmatpush.msra.mxu0 %v369
    %494 = vmatpush.msra.mxu0 %v365
    %495 = vmatpush.msra.mxu0 %v361
    %496 = vmatpush.msra.mxu0 %v357
    %497 = vmatpush.msra.mxu0 %v353
    %498 = vmatpush.msra.mxu0 %v349
    %499 = vmatpush.msra.mxu0 %v345
    %500 = vmatpush.msra.mxu0 %v341
    %501 = vmatpush.msra.mxu0 %v337
    %502 = vmatpush.msra.mxu0 %v333
    %503 = vmatmul.f32.gmra.mxu0 %v319
    %v504 = vpop.f32.mrf.mxu0
    %v505 = vadd.f32 %v399, %v504
    %506 = vmatmul.f32.gmra.mxu0 %v320
    %v507 = vpop.f32.mrf.mxu0
    %v508 = vadd.f32 %v399, %v507
    %509 = vmatmul.f32.gmra.mxu0 %v321
    %v510 = vpop.f32.mrf.mxu0
    %v511 = vadd.f32 %v399, %v510
    %512 = vmatmul.f32.gmra.mxu0 %v322
    %v513 = vpop.f32.mrf.mxu0
    %v514 = vadd.f32 %v399, %v513
    %515 = vmatmul.f32.gmra.mxu0 %v323
    %v516 = vpop.f32.mrf.mxu0
    %v517 = vadd.f32 %v399, %v516
    %518 = vmatmul.f32.gmra.mxu0 %v324
    %v519 = vpop.f32.mrf.mxu0
    %v520 = vadd.f32 %v399, %v519
    %521 = vmatmul.f32.gmra.mxu0 %v325
    %v522 = vpop.f32.mrf.mxu0
    %v523 = vadd.f32 %v399, %v522
    %524 = vmatmul.f32.gmra.mxu0 %v326
    %v525 = vpop.f32.mrf.mxu0
    %v526 = vadd.f32 %v399, %v525
    %527 = vdwg.mxu0
    %528 = vmatpush.msra.mxu0 %v394
    %529 = vmatpush.msra.mxu0 %v390
    %530 = vmatpush.msra.mxu0 %v386
    %531 = vmatpush.msra.mxu0 %v382
    %532 = vmatpush.msra.mxu0 %v378
    %533 = vmatpush.msra.mxu0 %v374
    %534 = vmatpush.msra.mxu0 %v370
    %535 = vmatpush.msra.mxu0 %v366
    %536 = vmatpush.msra.mxu0 %v362
    %537 = vmatpush.msra.mxu0 %v358
    %538 = vmatpush.msra.mxu0 %v354
    %539 = vmatpush.msra.mxu0 %v350
    %540 = vmatpush.msra.mxu0 %v346
    %541 = vmatpush.msra.mxu0 %v342
    %542 = vmatpush.msra.mxu0 %v338
    %543 = vmatpush.msra.mxu0 %v334
    %544 = vmatmul.f32.gmra.mxu0 %v319
    %v545 = vpop.f32.mrf.mxu0
    %v546 = vadd.f32 %v400, %v545
    %547 = vmatmul.f32.gmra.mxu0 %v320
    %v548 = vpop.f32.mrf.mxu0
    %v549 = vadd.f32 %v400, %v548
    %550 = vmatmul.f32.gmra.mxu0 %v321
    %v551 = vpop.f32.mrf.mxu0
    %v552 = vadd.f32 %v400, %v551
    %553 = vmatmul.f32.gmra.mxu0 %v322
    %v554 = vpop.f32.mrf.mxu0
    %v555 = vadd.f32 %v400, %v554
    %556 = vmatmul.f32.gmra.mxu0 %v323
    %v557 = vpop.f32.mrf.mxu0
    %v558 = vadd.f32 %v400, %v557
    %559 = vmatmul.f32.gmra.mxu0 %v324
    %v560 = vpop.f32.mrf.mxu0
    %v561 = vadd.f32 %v400, %v560
    %562 = vmatmul.f32.gmra.mxu0 %v325
    %v563 = vpop.f32.mrf.mxu0
    %v564 = vadd.f32 %v400, %v563
    %565 = vmatmul.f32.gmra.mxu0 %v326
    %v566 = vpop.f32.mrf.mxu0
    %v567 = vadd.f32 %v400, %v566
    %568 = vdwg.mxu0
    %s569 = sshll.u32 %s328, 4
    %570 = dma.done %s174, %s569
    %v571 = vld [vmem:[#allocation3] sm:$0xff]
    %v572 = vld [vmem:[#allocation3 + $0x8] sm:$0xff]
    %v573 = vld [vmem:[#allocation3 + $0x10] sm:$0xff]
    %v574 = vld [vmem:[#allocation3 + $0x18] sm:$0xff]
    %v575 = vld [vmem:[#allocation3 + $0x20] sm:$0xff]
    %v576 = vld [vmem:[#allocation3 + $0x28] sm:$0xff]
    %v577 = vld [vmem:[#allocation3 + $0x30] sm:$0xff]
    %v578 = vld [vmem:[#allocation3 + $0x38] sm:$0xff]
    %v579 = vld [vmem:[#allocation3 + $0x40] sm:$0xff]
    %v580 = vld [vmem:[#allocation3 + $0x48] sm:$0xff]
    %v581 = vld [vmem:[#allocation3 + $0x50] sm:$0xff]
    %v582 = vld [vmem:[#allocation3 + $0x58] sm:$0xff]
    %v583 = vld [vmem:[#allocation3 + $0x60] sm:$0xff]
    %v584 = vld [vmem:[#allocation3 + $0x68] sm:$0xff]
    %v585 = vld [vmem:[#allocation3 + $0x70] sm:$0xff]
    %v586 = vld [vmem:[#allocation3 + $0x78] sm:$0xff]
    %v587 = vld [vmem:[#allocation3 + $0x80] sm:$0xff]
    %v588 = vld [vmem:[#allocation3 + $0x88] sm:$0xff]
    %v589 = vld [vmem:[#allocation3 + $0x90] sm:$0xff]
    %v590 = vld [vmem:[#allocation3 + $0x98] sm:$0xff]
    %v591 = vld [vmem:[#allocation3 + $0xa0] sm:$0xff]
    %v592 = vld [vmem:[#allocation3 + $0xa8] sm:$0xff]
    %v593 = vld [vmem:[#allocation3 + $0xb0] sm:$0xff]
    %v594 = vld [vmem:[#allocation3 + $0xb8] sm:$0xff]
    %v595 = vld [vmem:[#allocation3 + $0xc0] sm:$0xff]
    %v596 = vld [vmem:[#allocation3 + $0xc8] sm:$0xff]
    %v597 = vld [vmem:[#allocation3 + $0xd0] sm:$0xff]
    %v598 = vld [vmem:[#allocation3 + $0xd8] sm:$0xff]
    %v599 = vld [vmem:[#allocation3 + $0xe0] sm:$0xff]
    %v600 = vld [vmem:[#allocation3 + $0xe8] sm:$0xff]
    %v601 = vld [vmem:[#allocation3 + $0xf0] sm:$0xff]
    %v602 = vld [vmem:[#allocation3 + $0xf8] sm:$0xff]
    %v603 = vld [vmem:[#allocation3 + $0x100] sm:$0xff]
    %v604 = vld [vmem:[#allocation3 + $0x108] sm:$0xff]
    %v605 = vld [vmem:[#allocation3 + $0x110] sm:$0xff]
    %v606 = vld [vmem:[#allocation3 + $0x118] sm:$0xff]
    %v607 = vld [vmem:[#allocation3 + $0x120] sm:$0xff]
    %v608 = vld [vmem:[#allocation3 + $0x128] sm:$0xff]
    %v609 = vld [vmem:[#allocation3 + $0x130] sm:$0xff]
    %v610 = vld [vmem:[#allocation3 + $0x138] sm:$0xff]
    %v611 = vld [vmem:[#allocation3 + $0x140] sm:$0xff]
    %v612 = vld [vmem:[#allocation3 + $0x148] sm:$0xff]
    %v613 = vld [vmem:[#allocation3 + $0x150] sm:$0xff]
    %v614 = vld [vmem:[#allocation3 + $0x158] sm:$0xff]
    %v615 = vld [vmem:[#allocation3 + $0x160] sm:$0xff]
    %v616 = vld [vmem:[#allocation3 + $0x168] sm:$0xff]
    %v617 = vld [vmem:[#allocation3 + $0x170] sm:$0xff]
    %v618 = vld [vmem:[#allocation3 + $0x178] sm:$0xff]
    %v619 = vld [vmem:[#allocation3 + $0x180] sm:$0xff]
    %v620 = vld [vmem:[#allocation3 + $0x188] sm:$0xff]
    %v621 = vld [vmem:[#allocation3 + $0x190] sm:$0xff]
    %v622 = vld [vmem:[#allocation3 + $0x198] sm:$0xff]
    %v623 = vld [vmem:[#allocation3 + $0x1a0] sm:$0xff]
    %v624 = vld [vmem:[#allocation3 + $0x1a8] sm:$0xff]
    %v625 = vld [vmem:[#allocation3 + $0x1b0] sm:$0xff]
    %v626 = vld [vmem:[#allocation3 + $0x1b8] sm:$0xff]
    %v627 = vld [vmem:[#allocation3 + $0x1c0] sm:$0xff]
    %v628 = vld [vmem:[#allocation3 + $0x1c8] sm:$0xff]
    %v629 = vld [vmem:[#allocation3 + $0x1d0] sm:$0xff]
    %v630 = vld [vmem:[#allocation3 + $0x1d8] sm:$0xff]
    %v631 = vld [vmem:[#allocation3 + $0x1e0] sm:$0xff]
    %v632 = vld [vmem:[#allocation3 + $0x1e8] sm:$0xff]
    %v633 = vld [vmem:[#allocation3 + $0x1f0] sm:$0xff]
    %v634 = vld [vmem:[#allocation3 + $0x1f8] sm:$0xff]
    %s635 = scalar_lea.vmem %s6, 512
    %s636 = scalar_lea.vmem [#allocation2], 512
    %s637 = scalar_lea.sflag [#allocation4], 1
    // Predicated region
    $region64: #{mv_lstm_forward.1} parent=1 // pred_check
      _
    $region65: #{mv_lstm_forward.1} parent=1 // pred_check_branch
      %639 = sbr.rel (0) target = $region67
    $region66: #{mv_lstm_forward.1} parent=1 // pred_region
      loop: start=0, step=1, limit=1
      $region68: #{mv_lstm_forward.1} parent=66 // loop_pre_header
        _
      $region69: #{mv_lstm_forward.1} parent=66 // loop_header
        %s641 = sphi 0, %s645
        %p642 = scmp.ge.s32.totalorder %s641, 1
        %s646 = sphi %s635, %s635
        %s647 = sphi %s636, %s636
      $region70: #{mv_lstm_forward.1} parent=66 // loop_header_branch
        %644 = sbr.rel (%p642) target = $region74
      $region71: #{mv_lstm_forward.1} parent=66 // loop_body
        %v648 = vld [vmem:[%s646] sm:$0xff]
        %649 = vst [vmem:[%s647] sm:$0xff] %v648
        %v650 = vld [vmem:[%s646 + $0x8] sm:$0xff]
        %651 = vst [vmem:[%s647 + $0x8] sm:$0xff] %v650
        %v652 = vld [vmem:[%s646 + $0x10] sm:$0xff]
        %653 = vst [vmem:[%s647 + $0x10] sm:$0xff] %v652
        %v654 = vld [vmem:[%s646 + $0x18] sm:$0xff]
        %655 = vst [vmem:[%s647 + $0x18] sm:$0xff] %v654
        %v656 = vld [vmem:[%s646 + $0x20] sm:$0xff]
        %657 = vst [vmem:[%s647 + $0x20] sm:$0xff] %v656
        %v658 = vld [vmem:[%s646 + $0x28] sm:$0xff]
        %659 = vst [vmem:[%s647 + $0x28] sm:$0xff] %v658
        %v660 = vld [vmem:[%s646 + $0x30] sm:$0xff]
        %661 = vst [vmem:[%s647 + $0x30] sm:$0xff] %v660
        %v662 = vld [vmem:[%s646 + $0x38] sm:$0xff]
        %663 = vst [vmem:[%s647 + $0x38] sm:$0xff] %v662
        %v664 = vld [vmem:[%s646 + $0x40] sm:$0xff]
        %665 = vst [vmem:[%s647 + $0x40] sm:$0xff] %v664
        %v666 = vld [vmem:[%s646 + $0x48] sm:$0xff]
        %667 = vst [vmem:[%s647 + $0x48] sm:$0xff] %v666
        %v668 = vld [vmem:[%s646 + $0x50] sm:$0xff]
        %669 = vst [vmem:[%s647 + $0x50] sm:$0xff] %v668
        %v670 = vld [vmem:[%s646 + $0x58] sm:$0xff]
        %671 = vst [vmem:[%s647 + $0x58] sm:$0xff] %v670
        %v672 = vld [vmem:[%s646 + $0x60] sm:$0xff]
        %673 = vst [vmem:[%s647 + $0x60] sm:$0xff] %v672
        %v674 = vld [vmem:[%s646 + $0x68] sm:$0xff]
        %675 = vst [vmem:[%s647 + $0x68] sm:$0xff] %v674
        %v676 = vld [vmem:[%s646 + $0x70] sm:$0xff]
        %677 = vst [vmem:[%s647 + $0x70] sm:$0xff] %v676
        %v678 = vld [vmem:[%s646 + $0x78] sm:$0xff]
        %679 = vst [vmem:[%s647 + $0x78] sm:$0xff] %v678
        %v680 = vld [vmem:[%s646 + $0x80] sm:$0xff]
        %681 = vst [vmem:[%s647 + $0x80] sm:$0xff] %v680
        %v682 = vld [vmem:[%s646 + $0x88] sm:$0xff]
        %683 = vst [vmem:[%s647 + $0x88] sm:$0xff] %v682
        %v684 = vld [vmem:[%s646 + $0x90] sm:$0xff]
        %685 = vst [vmem:[%s647 + $0x90] sm:$0xff] %v684
        %v686 = vld [vmem:[%s646 + $0x98] sm:$0xff]
        %687 = vst [vmem:[%s647 + $0x98] sm:$0xff] %v686
        %v688 = vld [vmem:[%s646 + $0xa0] sm:$0xff]
        %689 = vst [vmem:[%s647 + $0xa0] sm:$0xff] %v688
        %v690 = vld [vmem:[%s646 + $0xa8] sm:$0xff]
        %691 = vst [vmem:[%s647 + $0xa8] sm:$0xff] %v690
        %v692 = vld [vmem:[%s646 + $0xb0] sm:$0xff]
        %693 = vst [vmem:[%s647 + $0xb0] sm:$0xff] %v692
        %v694 = vld [vmem:[%s646 + $0xb8] sm:$0xff]
        %695 = vst [vmem:[%s647 + $0xb8] sm:$0xff] %v694
        %v696 = vld [vmem:[%s646 + $0xc0] sm:$0xff]
        %697 = vst [vmem:[%s647 + $0xc0] sm:$0xff] %v696
        %v698 = vld [vmem:[%s646 + $0xc8] sm:$0xff]
        %699 = vst [vmem:[%s647 + $0xc8] sm:$0xff] %v698
        %v700 = vld [vmem:[%s646 + $0xd0] sm:$0xff]
        %701 = vst [vmem:[%s647 + $0xd0] sm:$0xff] %v700
        %v702 = vld [vmem:[%s646 + $0xd8] sm:$0xff]
        %703 = vst [vmem:[%s647 + $0xd8] sm:$0xff] %v702
        %v704 = vld [vmem:[%s646 + $0xe0] sm:$0xff]
        %705 = vst [vmem:[%s647 + $0xe0] sm:$0xff] %v704
        %v706 = vld [vmem:[%s646 + $0xe8] sm:$0xff]
        %707 = vst [vmem:[%s647 + $0xe8] sm:$0xff] %v706
        %v708 = vld [vmem:[%s646 + $0xf0] sm:$0xff]
        %709 = vst [vmem:[%s647 + $0xf0] sm:$0xff] %v708
        %v710 = vld [vmem:[%s646 + $0xf8] sm:$0xff]
        %711 = vst [vmem:[%s647 + $0xf8] sm:$0xff] %v710
        %v712 = vld [vmem:[%s646 + $0x100] sm:$0xff]
        %713 = vst [vmem:[%s647 + $0x100] sm:$0xff] %v712
        %v714 = vld [vmem:[%s646 + $0x108] sm:$0xff]
        %715 = vst [vmem:[%s647 + $0x108] sm:$0xff] %v714
        %v716 = vld [vmem:[%s646 + $0x110] sm:$0xff]
        %717 = vst [vmem:[%s647 + $0x110] sm:$0xff] %v716
        %v718 = vld [vmem:[%s646 + $0x118] sm:$0xff]
        %719 = vst [vmem:[%s647 + $0x118] sm:$0xff] %v718
        %v720 = vld [vmem:[%s646 + $0x120] sm:$0xff]
        %721 = vst [vmem:[%s647 + $0x120] sm:$0xff] %v720
        %v722 = vld [vmem:[%s646 + $0x128] sm:$0xff]
        %723 = vst [vmem:[%s647 + $0x128] sm:$0xff] %v722
        %v724 = vld [vmem:[%s646 + $0x130] sm:$0xff]
        %725 = vst [vmem:[%s647 + $0x130] sm:$0xff] %v724
        %v726 = vld [vmem:[%s646 + $0x138] sm:$0xff]
        %727 = vst [vmem:[%s647 + $0x138] sm:$0xff] %v726
        %v728 = vld [vmem:[%s646 + $0x140] sm:$0xff]
        %729 = vst [vmem:[%s647 + $0x140] sm:$0xff] %v728
        %v730 = vld [vmem:[%s646 + $0x148] sm:$0xff]
        %731 = vst [vmem:[%s647 + $0x148] sm:$0xff] %v730
        %v732 = vld [vmem:[%s646 + $0x150] sm:$0xff]
        %733 = vst [vmem:[%s647 + $0x150] sm:$0xff] %v732
        %v734 = vld [vmem:[%s646 + $0x158] sm:$0xff]
        %735 = vst [vmem:[%s647 + $0x158] sm:$0xff] %v734
        %v736 = vld [vmem:[%s646 + $0x160] sm:$0xff]
        %737 = vst [vmem:[%s647 + $0x160] sm:$0xff] %v736
        %v738 = vld [vmem:[%s646 + $0x168] sm:$0xff]
        %739 = vst [vmem:[%s647 + $0x168] sm:$0xff] %v738
        %v740 = vld [vmem:[%s646 + $0x170] sm:$0xff]
        %741 = vst [vmem:[%s647 + $0x170] sm:$0xff] %v740
        %v742 = vld [vmem:[%s646 + $0x178] sm:$0xff]
        %743 = vst [vmem:[%s647 + $0x178] sm:$0xff] %v742
        %v744 = vld [vmem:[%s646 + $0x180] sm:$0xff]
        %745 = vst [vmem:[%s647 + $0x180] sm:$0xff] %v744
        %v746 = vld [vmem:[%s646 + $0x188] sm:$0xff]
        %747 = vst [vmem:[%s647 + $0x188] sm:$0xff] %v746
        %v748 = vld [vmem:[%s646 + $0x190] sm:$0xff]
        %749 = vst [vmem:[%s647 + $0x190] sm:$0xff] %v748
        %v750 = vld [vmem:[%s646 + $0x198] sm:$0xff]
        %751 = vst [vmem:[%s647 + $0x198] sm:$0xff] %v750
        %v752 = vld [vmem:[%s646 + $0x1a0] sm:$0xff]
        %753 = vst [vmem:[%s647 + $0x1a0] sm:$0xff] %v752
        %v754 = vld [vmem:[%s646 + $0x1a8] sm:$0xff]
        %755 = vst [vmem:[%s647 + $0x1a8] sm:$0xff] %v754
        %v756 = vld [vmem:[%s646 + $0x1b0] sm:$0xff]
        %757 = vst [vmem:[%s647 + $0x1b0] sm:$0xff] %v756
        %v758 = vld [vmem:[%s646 + $0x1b8] sm:$0xff]
        %759 = vst [vmem:[%s647 + $0x1b8] sm:$0xff] %v758
        %v760 = vld [vmem:[%s646 + $0x1c0] sm:$0xff]
        %761 = vst [vmem:[%s647 + $0x1c0] sm:$0xff] %v760
        %v762 = vld [vmem:[%s646 + $0x1c8] sm:$0xff]
        %763 = vst [vmem:[%s647 + $0x1c8] sm:$0xff] %v762
        %v764 = vld [vmem:[%s646 + $0x1d0] sm:$0xff]
        %765 = vst [vmem:[%s647 + $0x1d0] sm:$0xff] %v764
        %v766 = vld [vmem:[%s646 + $0x1d8] sm:$0xff]
        %767 = vst [vmem:[%s647 + $0x1d8] sm:$0xff] %v766
        %v768 = vld [vmem:[%s646 + $0x1e0] sm:$0xff]
        %769 = vst [vmem:[%s647 + $0x1e0] sm:$0xff] %v768
        %v770 = vld [vmem:[%s646 + $0x1e8] sm:$0xff]
        %771 = vst [vmem:[%s647 + $0x1e8] sm:$0xff] %v770
        %v772 = vld [vmem:[%s646 + $0x1f0] sm:$0xff]
        %773 = vst [vmem:[%s647 + $0x1f0] sm:$0xff] %v772
        %v774 = vld [vmem:[%s646 + $0x1f8] sm:$0xff]
        %775 = vst [vmem:[%s647 + $0x1f8] sm:$0xff] %v774
      $region72: #{mv_lstm_forward.1} parent=66 // loop_footer
        %s645 = sadd.s32 1, %s641
      $region73: #{mv_lstm_forward.1} parent=66 // loop_footer_branch
        %640 = sbr.rel target = $region69
      $region74: #{mv_lstm_forward.1} parent=66 // loop_exit
        _
    $region67: #{mv_lstm_forward.1} parent=1 // pred_fallthru
      _
    // Predicated region
    $region75: #{mv_lstm_forward.1} parent=1 // pred_check
      _
    $region76: #{mv_lstm_forward.1} parent=1 // pred_check_branch
      %777 = sbr.rel target = $region78
    $region77: #{mv_lstm_forward.1} parent=1 // pred_region
      _
    $region78: #{mv_lstm_forward.1} parent=1 // pred_fallthru
      _
    // Predicated region
    $region79: #{mv_lstm_forward.1} parent=1 // pred_check
      _
    $region80: #{mv_lstm_forward.1} parent=1 // pred_check_branch
      %780 = sbr.rel (0) target = $region82
    $region81: #{mv_lstm_forward.1} parent=1 // pred_region
      %781 = vsyncadd %s637, 8192
    $region82: #{mv_lstm_forward.1} parent=1 // pred_fallthru
      _
    %s782 = scalar_lea.vmem %s7, 512
    %s783 = scalar_lea.vmem [#allocation3], 512
    %s784 = scalar_lea.sflag [#allocation4], 3
    // Predicated region
    $region83: #{mv_lstm_forward.1} parent=1 // pred_check
      _
    $region84: #{mv_lstm_forward.1} parent=1 // pred_check_branch
      %786 = sbr.rel (0) target = $region86
    $region85: #{mv_lstm_forward.1} parent=1 // pred_region
      loop: start=0, step=1, limit=1
      $region87: #{mv_lstm_forward.1} parent=85 // loop_pre_header
        _
      $region88: #{mv_lstm_forward.1} parent=85 // loop_header
        %s788 = sphi 0, %s792
        %p789 = scmp.ge.s32.totalorder %s788, 1
        %s793 = sphi %s782, %s782
        %s794 = sphi %s783, %s783
      $region89: #{mv_lstm_forward.1} parent=85 // loop_header_branch
        %791 = sbr.rel (%p789) target = $region93
      $region90: #{mv_lstm_forward.1} parent=85 // loop_body
        %v795 = vld [vmem:[%s793] sm:$0xff]
        %796 = vst [vmem:[%s794] sm:$0xff] %v795
        %v797 = vld [vmem:[%s793 + $0x8] sm:$0xff]
        %798 = vst [vmem:[%s794 + $0x8] sm:$0xff] %v797
        %v799 = vld [vmem:[%s793 + $0x10] sm:$0xff]
        %800 = vst [vmem:[%s794 + $0x10] sm:$0xff] %v799
        %v801 = vld [vmem:[%s793 + $0x18] sm:$0xff]
        %802 = vst [vmem:[%s794 + $0x18] sm:$0xff] %v801
        %v803 = vld [vmem:[%s793 + $0x20] sm:$0xff]
        %804 = vst [vmem:[%s794 + $0x20] sm:$0xff] %v803
        %v805 = vld [vmem:[%s793 + $0x28] sm:$0xff]
        %806 = vst [vmem:[%s794 + $0x28] sm:$0xff] %v805
        %v807 = vld [vmem:[%s793 + $0x30] sm:$0xff]
        %808 = vst [vmem:[%s794 + $0x30] sm:$0xff] %v807
        %v809 = vld [vmem:[%s793 + $0x38] sm:$0xff]
        %810 = vst [vmem:[%s794 + $0x38] sm:$0xff] %v809
        %v811 = vld [vmem:[%s793 + $0x40] sm:$0xff]
        %812 = vst [vmem:[%s794 + $0x40] sm:$0xff] %v811
        %v813 = vld [vmem:[%s793 + $0x48] sm:$0xff]
        %814 = vst [vmem:[%s794 + $0x48] sm:$0xff] %v813
        %v815 = vld [vmem:[%s793 + $0x50] sm:$0xff]
        %816 = vst [vmem:[%s794 + $0x50] sm:$0xff] %v815
        %v817 = vld [vmem:[%s793 + $0x58] sm:$0xff]
        %818 = vst [vmem:[%s794 + $0x58] sm:$0xff] %v817
        %v819 = vld [vmem:[%s793 + $0x60] sm:$0xff]
        %820 = vst [vmem:[%s794 + $0x60] sm:$0xff] %v819
        %v821 = vld [vmem:[%s793 + $0x68] sm:$0xff]
        %822 = vst [vmem:[%s794 + $0x68] sm:$0xff] %v821
        %v823 = vld [vmem:[%s793 + $0x70] sm:$0xff]
        %824 = vst [vmem:[%s794 + $0x70] sm:$0xff] %v823
        %v825 = vld [vmem:[%s793 + $0x78] sm:$0xff]
        %826 = vst [vmem:[%s794 + $0x78] sm:$0xff] %v825
        %v827 = vld [vmem:[%s793 + $0x80] sm:$0xff]
        %828 = vst [vmem:[%s794 + $0x80] sm:$0xff] %v827
        %v829 = vld [vmem:[%s793 + $0x88] sm:$0xff]
        %830 = vst [vmem:[%s794 + $0x88] sm:$0xff] %v829
        %v831 = vld [vmem:[%s793 + $0x90] sm:$0xff]
        %832 = vst [vmem:[%s794 + $0x90] sm:$0xff] %v831
        %v833 = vld [vmem:[%s793 + $0x98] sm:$0xff]
        %834 = vst [vmem:[%s794 + $0x98] sm:$0xff] %v833
        %v835 = vld [vmem:[%s793 + $0xa0] sm:$0xff]
        %836 = vst [vmem:[%s794 + $0xa0] sm:$0xff] %v835
        %v837 = vld [vmem:[%s793 + $0xa8] sm:$0xff]
        %838 = vst [vmem:[%s794 + $0xa8] sm:$0xff] %v837
        %v839 = vld [vmem:[%s793 + $0xb0] sm:$0xff]
        %840 = vst [vmem:[%s794 + $0xb0] sm:$0xff] %v839
        %v841 = vld [vmem:[%s793 + $0xb8] sm:$0xff]
        %842 = vst [vmem:[%s794 + $0xb8] sm:$0xff] %v841
        %v843 = vld [vmem:[%s793 + $0xc0] sm:$0xff]
        %844 = vst [vmem:[%s794 + $0xc0] sm:$0xff] %v843
        %v845 = vld [vmem:[%s793 + $0xc8] sm:$0xff]
        %846 = vst [vmem:[%s794 + $0xc8] sm:$0xff] %v845
        %v847 = vld [vmem:[%s793 + $0xd0] sm:$0xff]
        %848 = vst [vmem:[%s794 + $0xd0] sm:$0xff] %v847
        %v849 = vld [vmem:[%s793 + $0xd8] sm:$0xff]
        %850 = vst [vmem:[%s794 + $0xd8] sm:$0xff] %v849
        %v851 = vld [vmem:[%s793 + $0xe0] sm:$0xff]
        %852 = vst [vmem:[%s794 + $0xe0] sm:$0xff] %v851
        %v853 = vld [vmem:[%s793 + $0xe8] sm:$0xff]
        %854 = vst [vmem:[%s794 + $0xe8] sm:$0xff] %v853
        %v855 = vld [vmem:[%s793 + $0xf0] sm:$0xff]
        %856 = vst [vmem:[%s794 + $0xf0] sm:$0xff] %v855
        %v857 = vld [vmem:[%s793 + $0xf8] sm:$0xff]
        %858 = vst [vmem:[%s794 + $0xf8] sm:$0xff] %v857
        %v859 = vld [vmem:[%s793 + $0x100] sm:$0xff]
        %860 = vst [vmem:[%s794 + $0x100] sm:$0xff] %v859
        %v861 = vld [vmem:[%s793 + $0x108] sm:$0xff]
        %862 = vst [vmem:[%s794 + $0x108] sm:$0xff] %v861
        %v863 = vld [vmem:[%s793 + $0x110] sm:$0xff]
        %864 = vst [vmem:[%s794 + $0x110] sm:$0xff] %v863
        %v865 = vld [vmem:[%s793 + $0x118] sm:$0xff]
        %866 = vst [vmem:[%s794 + $0x118] sm:$0xff] %v865
        %v867 = vld [vmem:[%s793 + $0x120] sm:$0xff]
        %868 = vst [vmem:[%s794 + $0x120] sm:$0xff] %v867
        %v869 = vld [vmem:[%s793 + $0x128] sm:$0xff]
        %870 = vst [vmem:[%s794 + $0x128] sm:$0xff] %v869
        %v871 = vld [vmem:[%s793 + $0x130] sm:$0xff]
        %872 = vst [vmem:[%s794 + $0x130] sm:$0xff] %v871
        %v873 = vld [vmem:[%s793 + $0x138] sm:$0xff]
        %874 = vst [vmem:[%s794 + $0x138] sm:$0xff] %v873
        %v875 = vld [vmem:[%s793 + $0x140] sm:$0xff]
        %876 = vst [vmem:[%s794 + $0x140] sm:$0xff] %v875
        %v877 = vld [vmem:[%s793 + $0x148] sm:$0xff]
        %878 = vst [vmem:[%s794 + $0x148] sm:$0xff] %v877
        %v879 = vld [vmem:[%s793 + $0x150] sm:$0xff]
        %880 = vst [vmem:[%s794 + $0x150] sm:$0xff] %v879
        %v881 = vld [vmem:[%s793 + $0x158] sm:$0xff]
        %882 = vst [vmem:[%s794 + $0x158] sm:$0xff] %v881
        %v883 = vld [vmem:[%s793 + $0x160] sm:$0xff]
        %884 = vst [vmem:[%s794 + $0x160] sm:$0xff] %v883
        %v885 = vld [vmem:[%s793 + $0x168] sm:$0xff]
        %886 = vst [vmem:[%s794 + $0x168] sm:$0xff] %v885
        %v887 = vld [vmem:[%s793 + $0x170] sm:$0xff]
        %888 = vst [vmem:[%s794 + $0x170] sm:$0xff] %v887
        %v889 = vld [vmem:[%s793 + $0x178] sm:$0xff]
        %890 = vst [vmem:[%s794 + $0x178] sm:$0xff] %v889
        %v891 = vld [vmem:[%s793 + $0x180] sm:$0xff]
        %892 = vst [vmem:[%s794 + $0x180] sm:$0xff] %v891
        %v893 = vld [vmem:[%s793 + $0x188] sm:$0xff]
        %894 = vst [vmem:[%s794 + $0x188] sm:$0xff] %v893
        %v895 = vld [vmem:[%s793 + $0x190] sm:$0xff]
        %896 = vst [vmem:[%s794 + $0x190] sm:$0xff] %v895
        %v897 = vld [vmem:[%s793 + $0x198] sm:$0xff]
        %898 = vst [vmem:[%s794 + $0x198] sm:$0xff] %v897
        %v899 = vld [vmem:[%s793 + $0x1a0] sm:$0xff]
        %900 = vst [vmem:[%s794 + $0x1a0] sm:$0xff] %v899
        %v901 = vld [vmem:[%s793 + $0x1a8] sm:$0xff]
        %902 = vst [vmem:[%s794 + $0x1a8] sm:$0xff] %v901
        %v903 = vld [vmem:[%s793 + $0x1b0] sm:$0xff]
        %904 = vst [vmem:[%s794 + $0x1b0] sm:$0xff] %v903
        %v905 = vld [vmem:[%s793 + $0x1b8] sm:$0xff]
        %906 = vst [vmem:[%s794 + $0x1b8] sm:$0xff] %v905
        %v907 = vld [vmem:[%s793 + $0x1c0] sm:$0xff]
        %908 = vst [vmem:[%s794 + $0x1c0] sm:$0xff] %v907
        %v909 = vld [vmem:[%s793 + $0x1c8] sm:$0xff]
        %910 = vst [vmem:[%s794 + $0x1c8] sm:$0xff] %v909
        %v911 = vld [vmem:[%s793 + $0x1d0] sm:$0xff]
        %912 = vst [vmem:[%s794 + $0x1d0] sm:$0xff] %v911
        %v913 = vld [vmem:[%s793 + $0x1d8] sm:$0xff]
        %914 = vst [vmem:[%s794 + $0x1d8] sm:$0xff] %v913
        %v915 = vld [vmem:[%s793 + $0x1e0] sm:$0xff]
        %916 = vst [vmem:[%s794 + $0x1e0] sm:$0xff] %v915
        %v917 = vld [vmem:[%s793 + $0x1e8] sm:$0xff]
        %918 = vst [vmem:[%s794 + $0x1e8] sm:$0xff] %v917
        %v919 = vld [vmem:[%s793 + $0x1f0] sm:$0xff]
        %920 = vst [vmem:[%s794 + $0x1f0] sm:$0xff] %v919
        %v921 = vld [vmem:[%s793 + $0x1f8] sm:$0xff]
        %922 = vst [vmem:[%s794 + $0x1f8] sm:$0xff] %v921
      $region91: #{mv_lstm_forward.1} parent=85 // loop_footer
        %s792 = sadd.s32 1, %s788
      $region92: #{mv_lstm_forward.1} parent=85 // loop_footer_branch
        %787 = sbr.rel target = $region88
      $region93: #{mv_lstm_forward.1} parent=85 // loop_exit
        _
    $region86: #{mv_lstm_forward.1} parent=1 // pred_fallthru
      _
    // Predicated region
    $region94: #{mv_lstm_forward.1} parent=1 // pred_check
      _
    $region95: #{mv_lstm_forward.1} parent=1 // pred_check_branch
      %924 = sbr.rel target = $region97
    $region96: #{mv_lstm_forward.1} parent=1 // pred_region
      _
    $region97: #{mv_lstm_forward.1} parent=1 // pred_fallthru
      _
    // Predicated region
    $region98: #{mv_lstm_forward.1} parent=1 // pred_check
      _
    $region99: #{mv_lstm_forward.1} parent=1 // pred_check_branch
      %927 = sbr.rel (0) target = $region101
    $region100: #{mv_lstm_forward.1} parent=1 // pred_region
      %928 = vsyncadd %s784, 8192
    $region101: #{mv_lstm_forward.1} parent=1 // pred_fallthru
      _
    %v929 = vld [vmem:[%s1] sm:$0xff]
    %v930 = vld [vmem:[%s2] sm:$0xff]
    %931 = vmatpush.msra.mxu0 %v631
    %932 = vmatpush.msra.mxu0 %v627
    %933 = vmatpush.msra.mxu0 %v623
    %934 = vmatpush.msra.mxu0 %v619
    %935 = vmatpush.msra.mxu0 %v615
    %936 = vmatpush.msra.mxu0 %v611
    %937 = vmatpush.msra.mxu0 %v607
    %938 = vmatpush.msra.mxu0 %v603
    %939 = vmatpush.msra.mxu0 %v599
    %940 = vmatpush.msra.mxu0 %v595
    %941 = vmatpush.msra.mxu0 %v591
    %942 = vmatpush.msra.mxu0 %v587
    %943 = vmatpush.msra.mxu0 %v583
    %944 = vmatpush.msra.mxu0 %v579
    %945 = vmatpush.msra.mxu0 %v575
    %946 = vmatpush.msra.mxu0 %v571
    %947 = vmatmul.f32.gmra.mxu0 %v929
    %v948 = vpop.f32.mrf.mxu0
    %v949 = vadd.f32 0.0, %v948
    %950 = vdwg.mxu0
    %951 = vmatpush.msra.mxu0 %v632
    %952 = vmatpush.msra.mxu0 %v628
    %953 = vmatpush.msra.mxu0 %v624
    %954 = vmatpush.msra.mxu0 %v620
    %955 = vmatpush.msra.mxu0 %v616
    %956 = vmatpush.msra.mxu0 %v612
    %957 = vmatpush.msra.mxu0 %v608
    %958 = vmatpush.msra.mxu0 %v604
    %959 = vmatpush.msra.mxu0 %v600
    %960 = vmatpush.msra.mxu0 %v596
    %961 = vmatpush.msra.mxu0 %v592
    %962 = vmatpush.msra.mxu0 %v588
    %963 = vmatpush.msra.mxu0 %v584
    %964 = vmatpush.msra.mxu0 %v580
    %965 = vmatpush.msra.mxu0 %v576
    %966 = vmatpush.msra.mxu0 %v572
    %967 = vmatmul.f32.gmra.mxu0 %v929
    %v968 = vpop.f32.mrf.mxu0
    %v969 = vadd.f32 0.0, %v968
    %970 = vdwg.mxu0
    %971 = vmatpush.msra.mxu0 %v633
    %972 = vmatpush.msra.mxu0 %v629
    %973 = vmatpush.msra.mxu0 %v625
    %974 = vmatpush.msra.mxu0 %v621
    %975 = vmatpush.msra.mxu0 %v617
    %976 = vmatpush.msra.mxu0 %v613
    %977 = vmatpush.msra.mxu0 %v609
    %978 = vmatpush.msra.mxu0 %v605
    %979 = vmatpush.msra.mxu0 %v601
    %980 = vmatpush.msra.mxu0 %v597
    %981 = vmatpush.msra.mxu0 %v593
    %982 = vmatpush.msra.mxu0 %v589
    %983 = vmatpush.msra.mxu0 %v585
    %984 = vmatpush.msra.mxu0 %v581
    %985 = vmatpush.msra.mxu0 %v577
    %986 = vmatpush.msra.mxu0 %v573
    %987 = vmatmul.f32.gmra.mxu0 %v929
    %v988 = vpop.f32.mrf.mxu0
    %v989 = vadd.f32 0.0, %v988
    %990 = vdwg.mxu0
    %991 = vmatpush.msra.mxu0 %v634
    %992 = vmatpush.msra.mxu0 %v630
    %993 = vmatpush.msra.mxu0 %v626
    %994 = vmatpush.msra.mxu0 %v622
    %995 = vmatpush.msra.mxu0 %v618
    %996 = vmatpush.msra.mxu0 %v614
    %997 = vmatpush.msra.mxu0 %v610
    %998 = vmatpush.msra.mxu0 %v606
    %999 = vmatpush.msra.mxu0 %v602
    %1000 = vmatpush.msra.mxu0 %v598
    %1001 = vmatpush.msra.mxu0 %v594
    %1002 = vmatpush.msra.mxu0 %v590
    %1003 = vmatpush.msra.mxu0 %v586
    %1004 = vmatpush.msra.mxu0 %v582
    %1005 = vmatpush.msra.mxu0 %v578
    %1006 = vmatpush.msra.mxu0 %v574
    %1007 = vmatmul.f32.gmra.mxu0 %v929
    %v1008 = vpop.f32.mrf.mxu0
    %v1009 = vadd.f32 0.0, %v1008
    %1010 = vdwg.mxu0
    %v1011 = vadd.f32 %v423, %v949
    %v1012 = vadd.f32 %v464, %v969
    %v1013 = vadd.f32 %v505, %v989
    %v1014 = vadd.f32 %v546, %v1009
    %v1015 = vtanh.pop %v1011
    %v1016 = vtanh.pop %v1012
    %v1017 = vtanh.pop %v1013
    %v1018 = vtanh.pop %v1014
    %v1019 = vmul.f32 %v1015, 0.5
    %v1020 = vadd.f32 %v1019, 0.5
    %v1021 = vmul.f32 %v1016, 0.5
    %v1022 = vadd.f32 %v1021, 0.5
    %v1023 = vmul.f32 %v1018, 0.5
    %v1024 = vadd.f32 %v1023, 0.5
    %v1025 = vmul.f32 %v1022, %v930
    %v1026 = vmul.f32 %v1020, %v1017
    %v1027 = vadd.f32 %v1025, %v1026
    %v1028 = vtanh.pop %v1027
    %v1029 = vmul.f32 %v1024, %v1028
    %1030 = vmatpush.msra.mxu0 %v631
    %1031 = vmatpush.msra.mxu0 %v627
    %1032 = vmatpush.msra.mxu0 %v623
    %1033 = vmatpush.msra.mxu0 %v619
    %1034 = vmatpush.msra.mxu0 %v615
    %1035 = vmatpush.msra.mxu0 %v611
    %1036 = vmatpush.msra.mxu0 %v607
    %1037 = vmatpush.msra.mxu0 %v603
    %1038 = vmatpush.msra.mxu0 %v599
    %1039 = vmatpush.msra.mxu0 %v595
    %1040 = vmatpush.msra.mxu0 %v591
    %1041 = vmatpush.msra.mxu0 %v587
    %1042 = vmatpush.msra.mxu0 %v583
    %1043 = vmatpush.msra.mxu0 %v579
    %1044 = vmatpush.msra.mxu0 %v575
    %1045 = vmatpush.msra.mxu0 %v571
    %1046 = vmatmul.f32.gmra.mxu0 %v1029
    %v1047 = vpop.f32.mrf.mxu0
    %v1048 = vadd.f32 0.0, %v1047
    %1049 = vdwg.mxu0
    %1050 = vmatpush.msra.mxu0 %v632
    %1051 = vmatpush.msra.mxu0 %v628
    %1052 = vmatpush.msra.mxu0 %v624
    %1053 = vmatpush.msra.mxu0 %v620
    %1054 = vmatpush.msra.mxu0 %v616
    %1055 = vmatpush.msra.mxu0 %v612
    %1056 = vmatpush.msra.mxu0 %v608
    %1057 = vmatpush.msra.mxu0 %v604
    %1058 = vmatpush.msra.mxu0 %v600
    %1059 = vmatpush.msra.mxu0 %v596
    %1060 = vmatpush.msra.mxu0 %v592
    %1061 = vmatpush.msra.mxu0 %v588
    %1062 = vmatpush.msra.mxu0 %v584
    %1063 = vmatpush.msra.mxu0 %v580
    %1064 = vmatpush.msra.mxu0 %v576
    %1065 = vmatpush.msra.mxu0 %v572
    %1066 = vmatmul.f32.gmra.mxu0 %v1029
    %v1067 = vpop.f32.mrf.mxu0
    %v1068 = vadd.f32 0.0, %v1067
    %1069 = vdwg.mxu0
    %1070 = vmatpush.msra.mxu0 %v633
    %1071 = vmatpush.msra.mxu0 %v629
    %1072 = vmatpush.msra.mxu0 %v625
    %1073 = vmatpush.msra.mxu0 %v621
    %1074 = vmatpush.msra.mxu0 %v617
    %1075 = vmatpush.msra.mxu0 %v613
    %1076 = vmatpush.msra.mxu0 %v609
    %1077 = vmatpush.msra.mxu0 %v605
    %1078 = vmatpush.msra.mxu0 %v601
    %1079 = vmatpush.msra.mxu0 %v597
    %1080 = vmatpush.msra.mxu0 %v593
    %1081 = vmatpush.msra.mxu0 %v589
    %1082 = vmatpush.msra.mxu0 %v585
    %1083 = vmatpush.msra.mxu0 %v581
    %1084 = vmatpush.msra.mxu0 %v577
    %1085 = vmatpush.msra.mxu0 %v573
    %1086 = vmatmul.f32.gmra.mxu0 %v1029
    %v1087 = vpop.f32.mrf.mxu0
    %v1088 = vadd.f32 0.0, %v1087
    %1089 = vdwg.mxu0
    %1090 = vmatpush.msra.mxu0 %v634
    %1091 = vmatpush.msra.mxu0 %v630
    %1092 = vmatpush.msra.mxu0 %v626
    %1093 = vmatpush.msra.mxu0 %v622
    %1094 = vmatpush.msra.mxu0 %v618
    %1095 = vmatpush.msra.mxu0 %v614
    %1096 = vmatpush.msra.mxu0 %v610
    %1097 = vmatpush.msra.mxu0 %v606
    %1098 = vmatpush.msra.mxu0 %v602
    %1099 = vmatpush.msra.mxu0 %v598
    %1100 = vmatpush.msra.mxu0 %v594
    %1101 = vmatpush.msra.mxu0 %v590
    %1102 = vmatpush.msra.mxu0 %v586
    %1103 = vmatpush.msra.mxu0 %v582
    %1104 = vmatpush.msra.mxu0 %v578
    %1105 = vmatpush.msra.mxu0 %v574
    %1106 = vmatmul.f32.gmra.mxu0 %v1029
    %v1107 = vpop.f32.mrf.mxu0
    %v1108 = vadd.f32 0.0, %v1107
    %1109 = vdwg.mxu0
    %v1110 = vadd.f32 %v426, %v1048
    %v1111 = vadd.f32 %v467, %v1068
    %v1112 = vadd.f32 %v508, %v1088
    %v1113 = vadd.f32 %v549, %v1108
    %v1114 = vtanh.pop %v1110
    %v1115 = vtanh.pop %v1111
    %v1116 = vtanh.pop %v1112
    %v1117 = vtanh.pop %v1113
    %v1118 = vmul.f32 %v1114, 0.5
    %v1119 = vadd.f32 %v1118, 0.5
    %v1120 = vmul.f32 %v1115, 0.5
    %v1121 = vadd.f32 %v1120, 0.5
    %v1122 = vmul.f32 %v1117, 0.5
    %v1123 = vadd.f32 %v1122, 0.5
    %v1124 = vmul.f32 %v1121, %v1027
    %v1125 = vmul.f32 %v1119, %v1116
    %v1126 = vadd.f32 %v1124, %v1125
    %v1127 = vtanh.pop %v1126
    %v1128 = vmul.f32 %v1123, %v1127
    %1129 = vmatpush.msra.mxu0 %v631
    %1130 = vmatpush.msra.mxu0 %v627
    %1131 = vmatpush.msra.mxu0 %v623
    %1132 = vmatpush.msra.mxu0 %v619
    %1133 = vmatpush.msra.mxu0 %v615
    %1134 = vmatpush.msra.mxu0 %v611
    %1135 = vmatpush.msra.mxu0 %v607
    %1136 = vmatpush.msra.mxu0 %v603
    %1137 = vmatpush.msra.mxu0 %v599
    %1138 = vmatpush.msra.mxu0 %v595
    %1139 = vmatpush.msra.mxu0 %v591
    %1140 = vmatpush.msra.mxu0 %v587
    %1141 = vmatpush.msra.mxu0 %v583
    %1142 = vmatpush.msra.mxu0 %v579
    %1143 = vmatpush.msra.mxu0 %v575
    %1144 = vmatpush.msra.mxu0 %v571
    %1145 = vmatmul.f32.gmra.mxu0 %v1128
    %v1146 = vpop.f32.mrf.mxu0
    %v1147 = vadd.f32 0.0, %v1146
    %1148 = vdwg.mxu0
    %1149 = vmatpush.msra.mxu0 %v632
    %1150 = vmatpush.msra.mxu0 %v628
    %1151 = vmatpush.msra.mxu0 %v624
    %1152 = vmatpush.msra.mxu0 %v620
    %1153 = vmatpush.msra.mxu0 %v616
    %1154 = vmatpush.msra.mxu0 %v612
    %1155 = vmatpush.msra.mxu0 %v608
    %1156 = vmatpush.msra.mxu0 %v604
    %1157 = vmatpush.msra.mxu0 %v600
    %1158 = vmatpush.msra.mxu0 %v596
    %1159 = vmatpush.msra.mxu0 %v592
    %1160 = vmatpush.msra.mxu0 %v588
    %1161 = vmatpush.msra.mxu0 %v584
    %1162 = vmatpush.msra.mxu0 %v580
    %1163 = vmatpush.msra.mxu0 %v576
    %1164 = vmatpush.msra.mxu0 %v572
    %1165 = vmatmul.f32.gmra.mxu0 %v1128
    %v1166 = vpop.f32.mrf.mxu0
    %v1167 = vadd.f32 0.0, %v1166
    %1168 = vdwg.mxu0
    %1169 = vmatpush.msra.mxu0 %v633
    %1170 = vmatpush.msra.mxu0 %v629
    %1171 = vmatpush.msra.mxu0 %v625
    %1172 = vmatpush.msra.mxu0 %v621
    %1173 = vmatpush.msra.mxu0 %v617
    %1174 = vmatpush.msra.mxu0 %v613
    %1175 = vmatpush.msra.mxu0 %v609
    %1176 = vmatpush.msra.mxu0 %v605
    %1177 = vmatpush.msra.mxu0 %v601
    %1178 = vmatpush.msra.mxu0 %v597
    %1179 = vmatpush.msra.mxu0 %v593
    %1180 = vmatpush.msra.mxu0 %v589
    %1181 = vmatpush.msra.mxu0 %v585
    %1182 = vmatpush.msra.mxu0 %v581
    %1183 = vmatpush.msra.mxu0 %v577
    %1184 = vmatpush.msra.mxu0 %v573
    %1185 = vmatmul.f32.gmra.mxu0 %v1128
    %v1186 = vpop.f32.mrf.mxu0
    %v1187 = vadd.f32 0.0, %v1186
    %1188 = vdwg.mxu0
    %1189 = vmatpush.msra.mxu0 %v634
    %1190 = vmatpush.msra.mxu0 %v630
    %1191 = vmatpush.msra.mxu0 %v626
    %1192 = vmatpush.msra.mxu0 %v622
    %1193 = vmatpush.msra.mxu0 %v618
    %1194 = vmatpush.msra.mxu0 %v614
    %1195 = vmatpush.msra.mxu0 %v610
    %1196 = vmatpush.msra.mxu0 %v606
    %1197 = vmatpush.msra.mxu0 %v602
    %1198 = vmatpush.msra.mxu0 %v598
    %1199 = vmatpush.msra.mxu0 %v594
    %1200 = vmatpush.msra.mxu0 %v590
    %1201 = vmatpush.msra.mxu0 %v586
    %1202 = vmatpush.msra.mxu0 %v582
    %1203 = vmatpush.msra.mxu0 %v578
    %1204 = vmatpush.msra.mxu0 %v574
    %1205 = vmatmul.f32.gmra.mxu0 %v1128
    %v1206 = vpop.f32.mrf.mxu0
    %v1207 = vadd.f32 0.0, %v1206
    %1208 = vdwg.mxu0
    %v1209 = vadd.f32 %v429, %v1147
    %v1210 = vadd.f32 %v470, %v1167
    %v1211 = vadd.f32 %v511, %v1187
    %v1212 = vadd.f32 %v552, %v1207
    %v1213 = vtanh.pop %v1209
    %v1214 = vtanh.pop %v1210
    %v1215 = vtanh.pop %v1211
    %v1216 = vtanh.pop %v1212
    %v1217 = vmul.f32 %v1213, 0.5
    %v1218 = vadd.f32 %v1217, 0.5
    %v1219 = vmul.f32 %v1214, 0.5
    %v1220 = vadd.f32 %v1219, 0.5
    %v1221 = vmul.f32 %v1216, 0.5
    %v1222 = vadd.f32 %v1221, 0.5
    %v1223 = vmul.f32 %v1220, %v1126
    %v1224 = vmul.f32 %v1218, %v1215
    %v1225 = vadd.f32 %v1223, %v1224
    %v1226 = vtanh.pop %v1225
    %v1227 = vmul.f32 %v1222, %v1226
    %1228 = vmatpush.msra.mxu0 %v631
    %1229 = vmatpush.msra.mxu0 %v627
    %1230 = vmatpush.msra.mxu0 %v623
    %1231 = vmatpush.msra.mxu0 %v619
    %1232 = vmatpush.msra.mxu0 %v615
    %1233 = vmatpush.msra.mxu0 %v611
    %1234 = vmatpush.msra.mxu0 %v607
    %1235 = vmatpush.msra.mxu0 %v603
    %1236 = vmatpush.msra.mxu0 %v599
    %1237 = vmatpush.msra.mxu0 %v595
    %1238 = vmatpush.msra.mxu0 %v591
    %1239 = vmatpush.msra.mxu0 %v587
    %1240 = vmatpush.msra.mxu0 %v583
    %1241 = vmatpush.msra.mxu0 %v579
    %1242 = vmatpush.msra.mxu0 %v575
    %1243 = vmatpush.msra.mxu0 %v571
    %1244 = vmatmul.f32.gmra.mxu0 %v1227
    %v1245 = vpop.f32.mrf.mxu0
    %v1246 = vadd.f32 0.0, %v1245
    %1247 = vdwg.mxu0
    %1248 = vmatpush.msra.mxu0 %v632
    %1249 = vmatpush.msra.mxu0 %v628
    %1250 = vmatpush.msra.mxu0 %v624
    %1251 = vmatpush.msra.mxu0 %v620
    %1252 = vmatpush.msra.mxu0 %v616
    %1253 = vmatpush.msra.mxu0 %v612
    %1254 = vmatpush.msra.mxu0 %v608
    %1255 = vmatpush.msra.mxu0 %v604
    %1256 = vmatpush.msra.mxu0 %v600
    %1257 = vmatpush.msra.mxu0 %v596
    %1258 = vmatpush.msra.mxu0 %v592
    %1259 = vmatpush.msra.mxu0 %v588
    %1260 = vmatpush.msra.mxu0 %v584
    %1261 = vmatpush.msra.mxu0 %v580
    %1262 = vmatpush.msra.mxu0 %v576
    %1263 = vmatpush.msra.mxu0 %v572
    %1264 = vmatmul.f32.gmra.mxu0 %v1227
    %v1265 = vpop.f32.mrf.mxu0
    %v1266 = vadd.f32 0.0, %v1265
    %1267 = vdwg.mxu0
    %1268 = vmatpush.msra.mxu0 %v633
    %1269 = vmatpush.msra.mxu0 %v629
    %1270 = vmatpush.msra.mxu0 %v625
    %1271 = vmatpush.msra.mxu0 %v621
    %1272 = vmatpush.msra.mxu0 %v617
    %1273 = vmatpush.msra.mxu0 %v613
    %1274 = vmatpush.msra.mxu0 %v609
    %1275 = vmatpush.msra.mxu0 %v605
    %1276 = vmatpush.msra.mxu0 %v601
    %1277 = vmatpush.msra.mxu0 %v597
    %1278 = vmatpush.msra.mxu0 %v593
    %1279 = vmatpush.msra.mxu0 %v589
    %1280 = vmatpush.msra.mxu0 %v585
    %1281 = vmatpush.msra.mxu0 %v581
    %1282 = vmatpush.msra.mxu0 %v577
    %1283 = vmatpush.msra.mxu0 %v573
    %1284 = vmatmul.f32.gmra.mxu0 %v1227
    %v1285 = vpop.f32.mrf.mxu0
    %v1286 = vadd.f32 0.0, %v1285
    %1287 = vdwg.mxu0
    %1288 = vmatpush.msra.mxu0 %v634
    %1289 = vmatpush.msra.mxu0 %v630
    %1290 = vmatpush.msra.mxu0 %v626
    %1291 = vmatpush.msra.mxu0 %v622
    %1292 = vmatpush.msra.mxu0 %v618
    %1293 = vmatpush.msra.mxu0 %v614
    %1294 = vmatpush.msra.mxu0 %v610
    %1295 = vmatpush.msra.mxu0 %v606
    %1296 = vmatpush.msra.mxu0 %v602
    %1297 = vmatpush.msra.mxu0 %v598
    %1298 = vmatpush.msra.mxu0 %v594
    %1299 = vmatpush.msra.mxu0 %v590
    %1300 = vmatpush.msra.mxu0 %v586
    %1301 = vmatpush.msra.mxu0 %v582
    %1302 = vmatpush.msra.mxu0 %v578
    %1303 = vmatpush.msra.mxu0 %v574
    %1304 = vmatmul.f32.gmra.mxu0 %v1227
    %v1305 = vpop.f32.mrf.mxu0
    %v1306 = vadd.f32 0.0, %v1305
    %1307 = vdwg.mxu0
    %v1308 = vadd.f32 %v432, %v1246
    %v1309 = vadd.f32 %v473, %v1266
    %v1310 = vadd.f32 %v514, %v1286
    %v1311 = vadd.f32 %v555, %v1306
    %v1312 = vtanh.pop %v1308
    %v1313 = vtanh.pop %v1309
    %v1314 = vtanh.pop %v1310
    %v1315 = vtanh.pop %v1311
    %v1316 = vmul.f32 %v1312, 0.5
    %v1317 = vadd.f32 %v1316, 0.5
    %v1318 = vmul.f32 %v1313, 0.5
    %v1319 = vadd.f32 %v1318, 0.5
    %v1320 = vmul.f32 %v1315, 0.5
    %v1321 = vadd.f32 %v1320, 0.5
    %v1322 = vmul.f32 %v1319, %v1225
    %v1323 = vmul.f32 %v1317, %v1314
    %v1324 = vadd.f32 %v1322, %v1323
    %v1325 = vtanh.pop %v1324
    %v1326 = vmul.f32 %v1321, %v1325
    %1327 = vmatpush.msra.mxu0 %v631
    %1328 = vmatpush.msra.mxu0 %v627
    %1329 = vmatpush.msra.mxu0 %v623
    %1330 = vmatpush.msra.mxu0 %v619
    %1331 = vmatpush.msra.mxu0 %v615
    %1332 = vmatpush.msra.mxu0 %v611
    %1333 = vmatpush.msra.mxu0 %v607
    %1334 = vmatpush.msra.mxu0 %v603
    %1335 = vmatpush.msra.mxu0 %v599
    %1336 = vmatpush.msra.mxu0 %v595
    %1337 = vmatpush.msra.mxu0 %v591
    %1338 = vmatpush.msra.mxu0 %v587
    %1339 = vmatpush.msra.mxu0 %v583
    %1340 = vmatpush.msra.mxu0 %v579
    %1341 = vmatpush.msra.mxu0 %v575
    %1342 = vmatpush.msra.mxu0 %v571
    %1343 = vmatmul.f32.gmra.mxu0 %v1326
    %v1344 = vpop.f32.mrf.mxu0
    %v1345 = vadd.f32 0.0, %v1344
    %1346 = vdwg.mxu0
    %1347 = vmatpush.msra.mxu0 %v632
    %1348 = vmatpush.msra.mxu0 %v628
    %1349 = vmatpush.msra.mxu0 %v624
    %1350 = vmatpush.msra.mxu0 %v620
    %1351 = vmatpush.msra.mxu0 %v616
    %1352 = vmatpush.msra.mxu0 %v612
    %1353 = vmatpush.msra.mxu0 %v608
    %1354 = vmatpush.msra.mxu0 %v604
    %1355 = vmatpush.msra.mxu0 %v600
    %1356 = vmatpush.msra.mxu0 %v596
    %1357 = vmatpush.msra.mxu0 %v592
    %1358 = vmatpush.msra.mxu0 %v588
    %1359 = vmatpush.msra.mxu0 %v584
    %1360 = vmatpush.msra.mxu0 %v580
    %1361 = vmatpush.msra.mxu0 %v576
    %1362 = vmatpush.msra.mxu0 %v572
    %1363 = vmatmul.f32.gmra.mxu0 %v1326
    %v1364 = vpop.f32.mrf.mxu0
    %v1365 = vadd.f32 0.0, %v1364
    %1366 = vdwg.mxu0
    %1367 = vmatpush.msra.mxu0 %v633
    %1368 = vmatpush.msra.mxu0 %v629
    %1369 = vmatpush.msra.mxu0 %v625
    %1370 = vmatpush.msra.mxu0 %v621
    %1371 = vmatpush.msra.mxu0 %v617
    %1372 = vmatpush.msra.mxu0 %v613
    %1373 = vmatpush.msra.mxu0 %v609
    %1374 = vmatpush.msra.mxu0 %v605
    %1375 = vmatpush.msra.mxu0 %v601
    %1376 = vmatpush.msra.mxu0 %v597
    %1377 = vmatpush.msra.mxu0 %v593
    %1378 = vmatpush.msra.mxu0 %v589
    %1379 = vmatpush.msra.mxu0 %v585
    %1380 = vmatpush.msra.mxu0 %v581
    %1381 = vmatpush.msra.mxu0 %v577
    %1382 = vmatpush.msra.mxu0 %v573
    %1383 = vmatmul.f32.gmra.mxu0 %v1326
    %v1384 = vpop.f32.mrf.mxu0
    %v1385 = vadd.f32 0.0, %v1384
    %1386 = vdwg.mxu0
    %1387 = vmatpush.msra.mxu0 %v634
    %1388 = vmatpush.msra.mxu0 %v630
    %1389 = vmatpush.msra.mxu0 %v626
    %1390 = vmatpush.msra.mxu0 %v622
    %1391 = vmatpush.msra.mxu0 %v618
    %1392 = vmatpush.msra.mxu0 %v614
    %1393 = vmatpush.msra.mxu0 %v610
    %1394 = vmatpush.msra.mxu0 %v606
    %1395 = vmatpush.msra.mxu0 %v602
    %1396 = vmatpush.msra.mxu0 %v598
    %1397 = vmatpush.msra.mxu0 %v594
    %1398 = vmatpush.msra.mxu0 %v590
    %1399 = vmatpush.msra.mxu0 %v586
    %1400 = vmatpush.msra.mxu0 %v582
    %1401 = vmatpush.msra.mxu0 %v578
    %1402 = vmatpush.msra.mxu0 %v574
    %1403 = vmatmul.f32.gmra.mxu0 %v1326
    %v1404 = vpop.f32.mrf.mxu0
    %v1405 = vadd.f32 0.0, %v1404
    %1406 = vdwg.mxu0
    %v1407 = vadd.f32 %v435, %v1345
    %v1408 = vadd.f32 %v476, %v1365
    %v1409 = vadd.f32 %v517, %v1385
    %v1410 = vadd.f32 %v558, %v1405
    %v1411 = vtanh.pop %v1407
    %v1412 = vtanh.pop %v1408
    %v1413 = vtanh.pop %v1409
    %v1414 = vtanh.pop %v1410
    %v1415 = vmul.f32 %v1411, 0.5
    %v1416 = vadd.f32 %v1415, 0.5
    %v1417 = vmul.f32 %v1412, 0.5
    %v1418 = vadd.f32 %v1417, 0.5
    %v1419 = vmul.f32 %v1414, 0.5
    %v1420 = vadd.f32 %v1419, 0.5
    %v1421 = vmul.f32 %v1418, %v1324
    %v1422 = vmul.f32 %v1416, %v1413
    %v1423 = vadd.f32 %v1421, %v1422
    %v1424 = vtanh.pop %v1423
    %v1425 = vmul.f32 %v1420, %v1424
    %1426 = vmatpush.msra.mxu0 %v631
    %1427 = vmatpush.msra.mxu0 %v627
    %1428 = vmatpush.msra.mxu0 %v623
    %1429 = vmatpush.msra.mxu0 %v619
    %1430 = vmatpush.msra.mxu0 %v615
    %1431 = vmatpush.msra.mxu0 %v611
    %1432 = vmatpush.msra.mxu0 %v607
    %1433 = vmatpush.msra.mxu0 %v603
    %1434 = vmatpush.msra.mxu0 %v599
    %1435 = vmatpush.msra.mxu0 %v595
    %1436 = vmatpush.msra.mxu0 %v591
    %1437 = vmatpush.msra.mxu0 %v587
    %1438 = vmatpush.msra.mxu0 %v583
    %1439 = vmatpush.msra.mxu0 %v579
    %1440 = vmatpush.msra.mxu0 %v575
    %1441 = vmatpush.msra.mxu0 %v571
    %1442 = vmatmul.f32.gmra.mxu0 %v1425
    %v1443 = vpop.f32.mrf.mxu0
    %v1444 = vadd.f32 0.0, %v1443
    %1445 = vdwg.mxu0
    %1446 = vmatpush.msra.mxu0 %v632
    %1447 = vmatpush.msra.mxu0 %v628
    %1448 = vmatpush.msra.mxu0 %v624
    %1449 = vmatpush.msra.mxu0 %v620
    %1450 = vmatpush.msra.mxu0 %v616
    %1451 = vmatpush.msra.mxu0 %v612
    %1452 = vmatpush.msra.mxu0 %v608
    %1453 = vmatpush.msra.mxu0 %v604
    %1454 = vmatpush.msra.mxu0 %v600
    %1455 = vmatpush.msra.mxu0 %v596
    %1456 = vmatpush.msra.mxu0 %v592
    %1457 = vmatpush.msra.mxu0 %v588
    %1458 = vmatpush.msra.mxu0 %v584
    %1459 = vmatpush.msra.mxu0 %v580
    %1460 = vmatpush.msra.mxu0 %v576
    %1461 = vmatpush.msra.mxu0 %v572
    %1462 = vmatmul.f32.gmra.mxu0 %v1425
    %v1463 = vpop.f32.mrf.mxu0
    %v1464 = vadd.f32 0.0, %v1463
    %1465 = vdwg.mxu0
    %1466 = vmatpush.msra.mxu0 %v633
    %1467 = vmatpush.msra.mxu0 %v629
    %1468 = vmatpush.msra.mxu0 %v625
    %1469 = vmatpush.msra.mxu0 %v621
    %1470 = vmatpush.msra.mxu0 %v617
    %1471 = vmatpush.msra.mxu0 %v613
    %1472 = vmatpush.msra.mxu0 %v609
    %1473 = vmatpush.msra.mxu0 %v605
    %1474 = vmatpush.msra.mxu0 %v601
    %1475 = vmatpush.msra.mxu0 %v597
    %1476 = vmatpush.msra.mxu0 %v593
    %1477 = vmatpush.msra.mxu0 %v589
    %1478 = vmatpush.msra.mxu0 %v585
    %1479 = vmatpush.msra.mxu0 %v581
    %1480 = vmatpush.msra.mxu0 %v577
    %1481 = vmatpush.msra.mxu0 %v573
    %1482 = vmatmul.f32.gmra.mxu0 %v1425
    %v1483 = vpop.f32.mrf.mxu0
    %v1484 = vadd.f32 0.0, %v1483
    %1485 = vdwg.mxu0
    %1486 = vmatpush.msra.mxu0 %v634
    %1487 = vmatpush.msra.mxu0 %v630
    %1488 = vmatpush.msra.mxu0 %v626
    %1489 = vmatpush.msra.mxu0 %v622
    %1490 = vmatpush.msra.mxu0 %v618
    %1491 = vmatpush.msra.mxu0 %v614
    %1492 = vmatpush.msra.mxu0 %v610
    %1493 = vmatpush.msra.mxu0 %v606
    %1494 = vmatpush.msra.mxu0 %v602
    %1495 = vmatpush.msra.mxu0 %v598
    %1496 = vmatpush.msra.mxu0 %v594
    %1497 = vmatpush.msra.mxu0 %v590
    %1498 = vmatpush.msra.mxu0 %v586
    %1499 = vmatpush.msra.mxu0 %v582
    %1500 = vmatpush.msra.mxu0 %v578
    %1501 = vmatpush.msra.mxu0 %v574
    %1502 = vmatmul.f32.gmra.mxu0 %v1425
    %v1503 = vpop.f32.mrf.mxu0
    %v1504 = vadd.f32 0.0, %v1503
    %1505 = vdwg.mxu0
    %v1506 = vadd.f32 %v438, %v1444
    %v1507 = vadd.f32 %v479, %v1464
    %v1508 = vadd.f32 %v520, %v1484
    %v1509 = vadd.f32 %v561, %v1504
    %v1510 = vtanh.pop %v1506
    %v1511 = vtanh.pop %v1507
    %v1512 = vtanh.pop %v1508
    %v1513 = vtanh.pop %v1509
    %v1514 = vmul.f32 %v1510, 0.5
    %v1515 = vadd.f32 %v1514, 0.5
    %v1516 = vmul.f32 %v1511, 0.5
    %v1517 = vadd.f32 %v1516, 0.5
    %v1518 = vmul.f32 %v1513, 0.5
    %v1519 = vadd.f32 %v1518, 0.5
    %v1520 = vmul.f32 %v1517, %v1423
    %v1521 = vmul.f32 %v1515, %v1512
    %v1522 = vadd.f32 %v1520, %v1521
    %v1523 = vtanh.pop %v1522
    %v1524 = vmul.f32 %v1519, %v1523
    %1525 = vmatpush.msra.mxu0 %v631
    %1526 = vmatpush.msra.mxu0 %v627
    %1527 = vmatpush.msra.mxu0 %v623
    %1528 = vmatpush.msra.mxu0 %v619
    %1529 = vmatpush.msra.mxu0 %v615
    %1530 = vmatpush.msra.mxu0 %v611
    %1531 = vmatpush.msra.mxu0 %v607
    %1532 = vmatpush.msra.mxu0 %v603
    %1533 = vmatpush.msra.mxu0 %v599
    %1534 = vmatpush.msra.mxu0 %v595
    %1535 = vmatpush.msra.mxu0 %v591
    %1536 = vmatpush.msra.mxu0 %v587
    %1537 = vmatpush.msra.mxu0 %v583
    %1538 = vmatpush.msra.mxu0 %v579
    %1539 = vmatpush.msra.mxu0 %v575
    %1540 = vmatpush.msra.mxu0 %v571
    %1541 = vmatmul.f32.gmra.mxu0 %v1524
    %v1542 = vpop.f32.mrf.mxu0
    %v1543 = vadd.f32 0.0, %v1542
    %1544 = vdwg.mxu0
    %1545 = vmatpush.msra.mxu0 %v632
    %1546 = vmatpush.msra.mxu0 %v628
    %1547 = vmatpush.msra.mxu0 %v624
    %1548 = vmatpush.msra.mxu0 %v620
    %1549 = vmatpush.msra.mxu0 %v616
    %1550 = vmatpush.msra.mxu0 %v612
    %1551 = vmatpush.msra.mxu0 %v608
    %1552 = vmatpush.msra.mxu0 %v604
    %1553 = vmatpush.msra.mxu0 %v600
    %1554 = vmatpush.msra.mxu0 %v596
    %1555 = vmatpush.msra.mxu0 %v592
    %1556 = vmatpush.msra.mxu0 %v588
    %1557 = vmatpush.msra.mxu0 %v584
    %1558 = vmatpush.msra.mxu0 %v580
    %1559 = vmatpush.msra.mxu0 %v576
    %1560 = vmatpush.msra.mxu0 %v572
    %1561 = vmatmul.f32.gmra.mxu0 %v1524
    %v1562 = vpop.f32.mrf.mxu0
    %v1563 = vadd.f32 0.0, %v1562
    %1564 = vdwg.mxu0
    %1565 = vmatpush.msra.mxu0 %v633
    %1566 = vmatpush.msra.mxu0 %v629
    %1567 = vmatpush.msra.mxu0 %v625
    %1568 = vmatpush.msra.mxu0 %v621
    %1569 = vmatpush.msra.mxu0 %v617
    %1570 = vmatpush.msra.mxu0 %v613
    %1571 = vmatpush.msra.mxu0 %v609
    %1572 = vmatpush.msra.mxu0 %v605
    %1573 = vmatpush.msra.mxu0 %v601
    %1574 = vmatpush.msra.mxu0 %v597
    %1575 = vmatpush.msra.mxu0 %v593
    %1576 = vmatpush.msra.mxu0 %v589
    %1577 = vmatpush.msra.mxu0 %v585
    %1578 = vmatpush.msra.mxu0 %v581
    %1579 = vmatpush.msra.mxu0 %v577
    %1580 = vmatpush.msra.mxu0 %v573
    %1581 = vmatmul.f32.gmra.mxu0 %v1524
    %v1582 = vpop.f32.mrf.mxu0
    %v1583 = vadd.f32 0.0, %v1582
    %1584 = vdwg.mxu0
    %1585 = vmatpush.msra.mxu0 %v634
    %1586 = vmatpush.msra.mxu0 %v630
    %1587 = vmatpush.msra.mxu0 %v626
    %1588 = vmatpush.msra.mxu0 %v622
    %1589 = vmatpush.msra.mxu0 %v618
    %1590 = vmatpush.msra.mxu0 %v614
    %1591 = vmatpush.msra.mxu0 %v610
    %1592 = vmatpush.msra.mxu0 %v606
    %1593 = vmatpush.msra.mxu0 %v602
    %1594 = vmatpush.msra.mxu0 %v598
    %1595 = vmatpush.msra.mxu0 %v594
    %1596 = vmatpush.msra.mxu0 %v590
    %1597 = vmatpush.msra.mxu0 %v586
    %1598 = vmatpush.msra.mxu0 %v582
    %1599 = vmatpush.msra.mxu0 %v578
    %1600 = vmatpush.msra.mxu0 %v574
    %1601 = vmatmul.f32.gmra.mxu0 %v1524
    %v1602 = vpop.f32.mrf.mxu0
    %v1603 = vadd.f32 0.0, %v1602
    %1604 = vdwg.mxu0
    %v1605 = vadd.f32 %v441, %v1543
    %v1606 = vadd.f32 %v482, %v1563
    %v1607 = vadd.f32 %v523, %v1583
    %v1608 = vadd.f32 %v564, %v1603
    %v1609 = vtanh.pop %v1605
    %v1610 = vtanh.pop %v1606
    %v1611 = vtanh.pop %v1607
    %v1612 = vtanh.pop %v1608
    %v1613 = vmul.f32 %v1609, 0.5
    %v1614 = vadd.f32 %v1613, 0.5
    %v1615 = vmul.f32 %v1610, 0.5
    %v1616 = vadd.f32 %v1615, 0.5
    %v1617 = vmul.f32 %v1612, 0.5
    %v1618 = vadd.f32 %v1617, 0.5
    %v1619 = vmul.f32 %v1616, %v1522
    %v1620 = vmul.f32 %v1614, %v1611
    %v1621 = vadd.f32 %v1619, %v1620
    %v1622 = vtanh.pop %v1621
    %v1623 = vmul.f32 %v1618, %v1622
    %1624 = vmatpush.msra.mxu0 %v631
    %1625 = vmatpush.msra.mxu0 %v627
    %1626 = vmatpush.msra.mxu0 %v623
    %1627 = vmatpush.msra.mxu0 %v619
    %1628 = vmatpush.msra.mxu0 %v615
    %1629 = vmatpush.msra.mxu0 %v611
    %1630 = vmatpush.msra.mxu0 %v607
    %1631 = vmatpush.msra.mxu0 %v603
    %1632 = vmatpush.msra.mxu0 %v599
    %1633 = vmatpush.msra.mxu0 %v595
    %1634 = vmatpush.msra.mxu0 %v591
    %1635 = vmatpush.msra.mxu0 %v587
    %1636 = vmatpush.msra.mxu0 %v583
    %1637 = vmatpush.msra.mxu0 %v579
    %1638 = vmatpush.msra.mxu0 %v575
    %1639 = vmatpush.msra.mxu0 %v571
    %1640 = vmatmul.f32.gmra.mxu0 %v1623
    %v1641 = vpop.f32.mrf.mxu0
    %v1642 = vadd.f32 0.0, %v1641
    %1643 = vdwg.mxu0
    %1644 = vmatpush.msra.mxu0 %v632
    %1645 = vmatpush.msra.mxu0 %v628
    %1646 = vmatpush.msra.mxu0 %v624
    %1647 = vmatpush.msra.mxu0 %v620
    %1648 = vmatpush.msra.mxu0 %v616
    %1649 = vmatpush.msra.mxu0 %v612
    %1650 = vmatpush.msra.mxu0 %v608
    %1651 = vmatpush.msra.mxu0 %v604
    %1652 = vmatpush.msra.mxu0 %v600
    %1653 = vmatpush.msra.mxu0 %v596
    %1654 = vmatpush.msra.mxu0 %v592
    %1655 = vmatpush.msra.mxu0 %v588
    %1656 = vmatpush.msra.mxu0 %v584
    %1657 = vmatpush.msra.mxu0 %v580
    %1658 = vmatpush.msra.mxu0 %v576
    %1659 = vmatpush.msra.mxu0 %v572
    %1660 = vmatmul.f32.gmra.mxu0 %v1623
    %v1661 = vpop.f32.mrf.mxu0
    %v1662 = vadd.f32 0.0, %v1661
    %1663 = vdwg.mxu0
    %1664 = vmatpush.msra.mxu0 %v633
    %1665 = vmatpush.msra.mxu0 %v629
    %1666 = vmatpush.msra.mxu0 %v625
    %1667 = vmatpush.msra.mxu0 %v621
    %1668 = vmatpush.msra.mxu0 %v617
    %1669 = vmatpush.msra.mxu0 %v613
    %1670 = vmatpush.msra.mxu0 %v609
    %1671 = vmatpush.msra.mxu0 %v605
    %1672 = vmatpush.msra.mxu0 %v601
    %1673 = vmatpush.msra.mxu0 %v597
    %1674 = vmatpush.msra.mxu0 %v593
    %1675 = vmatpush.msra.mxu0 %v589
    %1676 = vmatpush.msra.mxu0 %v585
    %1677 = vmatpush.msra.mxu0 %v581
    %1678 = vmatpush.msra.mxu0 %v577
    %1679 = vmatpush.msra.mxu0 %v573
    %1680 = vmatmul.f32.gmra.mxu0 %v1623
    %v1681 = vpop.f32.mrf.mxu0
    %v1682 = vadd.f32 0.0, %v1681
    %1683 = vdwg.mxu0
    %1684 = vmatpush.msra.mxu0 %v634
    %1685 = vmatpush.msra.mxu0 %v630
    %1686 = vmatpush.msra.mxu0 %v626
    %1687 = vmatpush.msra.mxu0 %v622
    %1688 = vmatpush.msra.mxu0 %v618
    %1689 = vmatpush.msra.mxu0 %v614
    %1690 = vmatpush.msra.mxu0 %v610
    %1691 = vmatpush.msra.mxu0 %v606
    %1692 = vmatpush.msra.mxu0 %v602
    %1693 = vmatpush.msra.mxu0 %v598
    %1694 = vmatpush.msra.mxu0 %v594
    %1695 = vmatpush.msra.mxu0 %v590
    %1696 = vmatpush.msra.mxu0 %v586
    %1697 = vmatpush.msra.mxu0 %v582
    %1698 = vmatpush.msra.mxu0 %v578
    %1699 = vmatpush.msra.mxu0 %v574
    %1700 = vmatmul.f32.gmra.mxu0 %v1623
    %v1701 = vpop.f32.mrf.mxu0
    %v1702 = vadd.f32 0.0, %v1701
    %1703 = vdwg.mxu0
    %v1704 = vadd.f32 %v444, %v1642
    %v1705 = vadd.f32 %v485, %v1662
    %v1706 = vadd.f32 %v526, %v1682
    %v1707 = vadd.f32 %v567, %v1702
    %v1708 = vtanh.pop %v1704
    %v1709 = vtanh.pop %v1705
    %v1710 = vtanh.pop %v1706
    %v1711 = vtanh.pop %v1707
    %v1712 = vmul.f32 %v1708, 0.5
    %v1713 = vadd.f32 %v1712, 0.5
    %v1714 = vmul.f32 %v1709, 0.5
    %v1715 = vadd.f32 %v1714, 0.5
    %v1716 = vmul.f32 %v1711, 0.5
    %v1717 = vadd.f32 %v1716, 0.5
    %v1718 = vmul.f32 %v1715, %v1621
    %v1719 = vmul.f32 %v1713, %v1710
    %v1720 = vadd.f32 %v1718, %v1719
    %v1721 = vtanh.pop %v1720
    %v1722 = vmul.f32 %v1717, %v1721
    %1723 = vst [vmem:[#allocation5] sm:$0xff] %v1722
    %1724 = vst [vmem:[#allocation7] sm:$0xff] %v1720
    %s1725 = sshll.u32 %s328, 4
    %1726 = dma.done %s637, %s1725
    %v1727 = vld [vmem:[%s636] sm:$0xff]
    %v1728 = vld [vmem:[%s636 + $0x8] sm:$0xff]
    %v1729 = vld [vmem:[%s636 + $0x10] sm:$0xff]
    %v1730 = vld [vmem:[%s636 + $0x18] sm:$0xff]
    %v1731 = vld [vmem:[%s636 + $0x20] sm:$0xff]
    %v1732 = vld [vmem:[%s636 + $0x28] sm:$0xff]
    %v1733 = vld [vmem:[%s636 + $0x30] sm:$0xff]
    %v1734 = vld [vmem:[%s636 + $0x38] sm:$0xff]
    %v1735 = vld [vmem:[%s636 + $0x40] sm:$0xff]
    %v1736 = vld [vmem:[%s636 + $0x48] sm:$0xff]
    %v1737 = vld [vmem:[%s636 + $0x50] sm:$0xff]
    %v1738 = vld [vmem:[%s636 + $0x58] sm:$0xff]
    %v1739 = vld [vmem:[%s636 + $0x60] sm:$0xff]
    %v1740 = vld [vmem:[%s636 + $0x68] sm:$0xff]
    %v1741 = vld [vmem:[%s636 + $0x70] sm:$0xff]
    %v1742 = vld [vmem:[%s636 + $0x78] sm:$0xff]
    %v1743 = vld [vmem:[%s636 + $0x80] sm:$0xff]
    %v1744 = vld [vmem:[%s636 + $0x88] sm:$0xff]
    %v1745 = vld [vmem:[%s636 + $0x90] sm:$0xff]
    %v1746 = vld [vmem:[%s636 + $0x98] sm:$0xff]
    %v1747 = vld [vmem:[%s636 + $0xa0] sm:$0xff]
    %v1748 = vld [vmem:[%s636 + $0xa8] sm:$0xff]
    %v1749 = vld [vmem:[%s636 + $0xb0] sm:$0xff]
    %v1750 = vld [vmem:[%s636 + $0xb8] sm:$0xff]
    %v1751 = vld [vmem:[%s636 + $0xc0] sm:$0xff]
    %v1752 = vld [vmem:[%s636 + $0xc8] sm:$0xff]
    %v1753 = vld [vmem:[%s636 + $0xd0] sm:$0xff]
    %v1754 = vld [vmem:[%s636 + $0xd8] sm:$0xff]
    %v1755 = vld [vmem:[%s636 + $0xe0] sm:$0xff]
    %v1756 = vld [vmem:[%s636 + $0xe8] sm:$0xff]
    %v1757 = vld [vmem:[%s636 + $0xf0] sm:$0xff]
    %v1758 = vld [vmem:[%s636 + $0xf8] sm:$0xff]
    %v1759 = vld [vmem:[%s636 + $0x100] sm:$0xff]
    %v1760 = vld [vmem:[%s636 + $0x108] sm:$0xff]
    %v1761 = vld [vmem:[%s636 + $0x110] sm:$0xff]
    %v1762 = vld [vmem:[%s636 + $0x118] sm:$0xff]
    %v1763 = vld [vmem:[%s636 + $0x120] sm:$0xff]
    %v1764 = vld [vmem:[%s636 + $0x128] sm:$0xff]
    %v1765 = vld [vmem:[%s636 + $0x130] sm:$0xff]
    %v1766 = vld [vmem:[%s636 + $0x138] sm:$0xff]
    %v1767 = vld [vmem:[%s636 + $0x140] sm:$0xff]
    %v1768 = vld [vmem:[%s636 + $0x148] sm:$0xff]
    %v1769 = vld [vmem:[%s636 + $0x150] sm:$0xff]
    %v1770 = vld [vmem:[%s636 + $0x158] sm:$0xff]
    %v1771 = vld [vmem:[%s636 + $0x160] sm:$0xff]
    %v1772 = vld [vmem:[%s636 + $0x168] sm:$0xff]
    %v1773 = vld [vmem:[%s636 + $0x170] sm:$0xff]
    %v1774 = vld [vmem:[%s636 + $0x178] sm:$0xff]
    %v1775 = vld [vmem:[%s636 + $0x180] sm:$0xff]
    %v1776 = vld [vmem:[%s636 + $0x188] sm:$0xff]
    %v1777 = vld [vmem:[%s636 + $0x190] sm:$0xff]
    %v1778 = vld [vmem:[%s636 + $0x198] sm:$0xff]
    %v1779 = vld [vmem:[%s636 + $0x1a0] sm:$0xff]
    %v1780 = vld [vmem:[%s636 + $0x1a8] sm:$0xff]
    %v1781 = vld [vmem:[%s636 + $0x1b0] sm:$0xff]
    %v1782 = vld [vmem:[%s636 + $0x1b8] sm:$0xff]
    %v1783 = vld [vmem:[%s636 + $0x1c0] sm:$0xff]
    %v1784 = vld [vmem:[%s636 + $0x1c8] sm:$0xff]
    %v1785 = vld [vmem:[%s636 + $0x1d0] sm:$0xff]
    %v1786 = vld [vmem:[%s636 + $0x1d8] sm:$0xff]
    %v1787 = vld [vmem:[%s636 + $0x1e0] sm:$0xff]
    %v1788 = vld [vmem:[%s636 + $0x1e8] sm:$0xff]
    %v1789 = vld [vmem:[%s636 + $0x1f0] sm:$0xff]
    %v1790 = vld [vmem:[%s636 + $0x1f8] sm:$0xff]
    %s1791 = scalar_lea.vmem %s3, 4
    %v1792 = vld [vmem:[%s1791] sm:$0xf]
    %v1794 = vperm.slane %v1792, 0
    %v1795 = vperm.slane %v1792, 1
    %v1796 = vperm.slane %v1792, 2
    %v1797 = vperm.slane %v1792, 3
    %1802 = vmatpush.msra.mxu0 %v1787
    %1803 = vmatpush.msra.mxu0 %v1783
    %1804 = vmatpush.msra.mxu0 %v1779
    %1805 = vmatpush.msra.mxu0 %v1775
    %1806 = vmatpush.msra.mxu0 %v1771
    %1807 = vmatpush.msra.mxu0 %v1767
    %1808 = vmatpush.msra.mxu0 %v1763
    %1809 = vmatpush.msra.mxu0 %v1759
    %1810 = vmatpush.msra.mxu0 %v1755
    %1811 = vmatpush.msra.mxu0 %v1751
    %1812 = vmatpush.msra.mxu0 %v1747
    %1813 = vmatpush.msra.mxu0 %v1743
    %1814 = vmatpush.msra.mxu0 %v1739
    %1815 = vmatpush.msra.mxu0 %v1735
    %1816 = vmatpush.msra.mxu0 %v1731
    %1817 = vmatpush.msra.mxu0 %v1727
    %1818 = vmatmul.f32.gmra.mxu0 %v1029
    %v1819 = vpop.f32.mrf.mxu0
    %v1820 = vadd.f32 %v1794, %v1819
    %1821 = vmatmul.f32.gmra.mxu0 %v1128
    %v1822 = vpop.f32.mrf.mxu0
    %v1823 = vadd.f32 %v1794, %v1822
    %1824 = vmatmul.f32.gmra.mxu0 %v1227
    %v1825 = vpop.f32.mrf.mxu0
    %v1826 = vadd.f32 %v1794, %v1825
    %1827 = vmatmul.f32.gmra.mxu0 %v1326
    %v1828 = vpop.f32.mrf.mxu0
    %v1829 = vadd.f32 %v1794, %v1828
    %1830 = vmatmul.f32.gmra.mxu0 %v1425
    %v1831 = vpop.f32.mrf.mxu0
    %v1832 = vadd.f32 %v1794, %v1831
    %1833 = vmatmul.f32.gmra.mxu0 %v1524
    %v1834 = vpop.f32.mrf.mxu0
    %v1835 = vadd.f32 %v1794, %v1834
    %1836 = vmatmul.f32.gmra.mxu0 %v1623
    %v1837 = vpop.f32.mrf.mxu0
    %v1838 = vadd.f32 %v1794, %v1837
    %1839 = vmatmul.f32.gmra.mxu0 %v1722
    %v1840 = vpop.f32.mrf.mxu0
    %v1841 = vadd.f32 %v1794, %v1840
    %1842 = vdwg.mxu0
    %1843 = vmatpush.msra.mxu0 %v1788
    %1844 = vmatpush.msra.mxu0 %v1784
    %1845 = vmatpush.msra.mxu0 %v1780
    %1846 = vmatpush.msra.mxu0 %v1776
    %1847 = vmatpush.msra.mxu0 %v1772
    %1848 = vmatpush.msra.mxu0 %v1768
    %1849 = vmatpush.msra.mxu0 %v1764
    %1850 = vmatpush.msra.mxu0 %v1760
    %1851 = vmatpush.msra.mxu0 %v1756
    %1852 = vmatpush.msra.mxu0 %v1752
    %1853 = vmatpush.msra.mxu0 %v1748
    %1854 = vmatpush.msra.mxu0 %v1744
    %1855 = vmatpush.msra.mxu0 %v1740
    %1856 = vmatpush.msra.mxu0 %v1736
    %1857 = vmatpush.msra.mxu0 %v1732
    %1858 = vmatpush.msra.mxu0 %v1728
    %1859 = vmatmul.f32.gmra.mxu0 %v1029
    %v1860 = vpop.f32.mrf.mxu0
    %v1861 = vadd.f32 %v1795, %v1860
    %1862 = vmatmul.f32.gmra.mxu0 %v1128
    %v1863 = vpop.f32.mrf.mxu0
    %v1864 = vadd.f32 %v1795, %v1863
    %1865 = vmatmul.f32.gmra.mxu0 %v1227
    %v1866 = vpop.f32.mrf.mxu0
    %v1867 = vadd.f32 %v1795, %v1866
    %1868 = vmatmul.f32.gmra.mxu0 %v1326
    %v1869 = vpop.f32.mrf.mxu0
    %v1870 = vadd.f32 %v1795, %v1869
    %1871 = vmatmul.f32.gmra.mxu0 %v1425
    %v1872 = vpop.f32.mrf.mxu0
    %v1873 = vadd.f32 %v1795, %v1872
    %1874 = vmatmul.f32.gmra.mxu0 %v1524
    %v1875 = vpop.f32.mrf.mxu0
    %v1876 = vadd.f32 %v1795, %v1875
    %1877 = vmatmul.f32.gmra.mxu0 %v1623
    %v1878 = vpop.f32.mrf.mxu0
    %v1879 = vadd.f32 %v1795, %v1878
    %1880 = vmatmul.f32.gmra.mxu0 %v1722
    %v1881 = vpop.f32.mrf.mxu0
    %v1882 = vadd.f32 %v1795, %v1881
    %1883 = vdwg.mxu0
    %1884 = vmatpush.msra.mxu0 %v1789
    %1885 = vmatpush.msra.mxu0 %v1785
    %1886 = vmatpush.msra.mxu0 %v1781
    %1887 = vmatpush.msra.mxu0 %v1777
    %1888 = vmatpush.msra.mxu0 %v1773
    %1889 = vmatpush.msra.mxu0 %v1769
    %1890 = vmatpush.msra.mxu0 %v1765
    %1891 = vmatpush.msra.mxu0 %v1761
    %1892 = vmatpush.msra.mxu0 %v1757
    %1893 = vmatpush.msra.mxu0 %v1753
    %1894 = vmatpush.msra.mxu0 %v1749
    %1895 = vmatpush.msra.mxu0 %v1745
    %1896 = vmatpush.msra.mxu0 %v1741
    %1897 = vmatpush.msra.mxu0 %v1737
    %1898 = vmatpush.msra.mxu0 %v1733
    %1899 = vmatpush.msra.mxu0 %v1729
    %1900 = vmatmul.f32.gmra.mxu0 %v1029
    %v1901 = vpop.f32.mrf.mxu0
    %v1902 = vadd.f32 %v1796, %v1901
    %1903 = vmatmul.f32.gmra.mxu0 %v1128
    %v1904 = vpop.f32.mrf.mxu0
    %v1905 = vadd.f32 %v1796, %v1904
    %1906 = vmatmul.f32.gmra.mxu0 %v1227
    %v1907 = vpop.f32.mrf.mxu0
    %v1908 = vadd.f32 %v1796, %v1907
    %1909 = vmatmul.f32.gmra.mxu0 %v1326
    %v1910 = vpop.f32.mrf.mxu0
    %v1911 = vadd.f32 %v1796, %v1910
    %1912 = vmatmul.f32.gmra.mxu0 %v1425
    %v1913 = vpop.f32.mrf.mxu0
    %v1914 = vadd.f32 %v1796, %v1913
    %1915 = vmatmul.f32.gmra.mxu0 %v1524
    %v1916 = vpop.f32.mrf.mxu0
    %v1917 = vadd.f32 %v1796, %v1916
    %1918 = vmatmul.f32.gmra.mxu0 %v1623
    %v1919 = vpop.f32.mrf.mxu0
    %v1920 = vadd.f32 %v1796, %v1919
    %1921 = vmatmul.f32.gmra.mxu0 %v1722
    %v1922 = vpop.f32.mrf.mxu0
    %v1923 = vadd.f32 %v1796, %v1922
    %1924 = vdwg.mxu0
    %1925 = vmatpush.msra.mxu0 %v1790
    %1926 = vmatpush.msra.mxu0 %v1786
    %1927 = vmatpush.msra.mxu0 %v1782
    %1928 = vmatpush.msra.mxu0 %v1778
    %1929 = vmatpush.msra.mxu0 %v1774
    %1930 = vmatpush.msra.mxu0 %v1770
    %1931 = vmatpush.msra.mxu0 %v1766
    %1932 = vmatpush.msra.mxu0 %v1762
    %1933 = vmatpush.msra.mxu0 %v1758
    %1934 = vmatpush.msra.mxu0 %v1754
    %1935 = vmatpush.msra.mxu0 %v1750
    %1936 = vmatpush.msra.mxu0 %v1746
    %1937 = vmatpush.msra.mxu0 %v1742
    %1938 = vmatpush.msra.mxu0 %v1738
    %1939 = vmatpush.msra.mxu0 %v1734
    %1940 = vmatpush.msra.mxu0 %v1730
    %1941 = vmatmul.f32.gmra.mxu0 %v1029
    %v1942 = vpop.f32.mrf.mxu0
    %v1943 = vadd.f32 %v1797, %v1942
    %1944 = vmatmul.f32.gmra.mxu0 %v1128
    %v1945 = vpop.f32.mrf.mxu0
    %v1946 = vadd.f32 %v1797, %v1945
    %1947 = vmatmul.f32.gmra.mxu0 %v1227
    %v1948 = vpop.f32.mrf.mxu0
    %v1949 = vadd.f32 %v1797, %v1948
    %1950 = vmatmul.f32.gmra.mxu0 %v1326
    %v1951 = vpop.f32.mrf.mxu0
    %v1952 = vadd.f32 %v1797, %v1951
    %1953 = vmatmul.f32.gmra.mxu0 %v1425
    %v1954 = vpop.f32.mrf.mxu0
    %v1955 = vadd.f32 %v1797, %v1954
    %1956 = vmatmul.f32.gmra.mxu0 %v1524
    %v1957 = vpop.f32.mrf.mxu0
    %v1958 = vadd.f32 %v1797, %v1957
    %1959 = vmatmul.f32.gmra.mxu0 %v1623
    %v1960 = vpop.f32.mrf.mxu0
    %v1961 = vadd.f32 %v1797, %v1960
    %1962 = vmatmul.f32.gmra.mxu0 %v1722
    %v1963 = vpop.f32.mrf.mxu0
    %v1964 = vadd.f32 %v1797, %v1963
    %1965 = vdwg.mxu0
    %s1966 = sshll.u32 %s328, 4
    %1967 = dma.done %s784, %s1966
    %v1968 = vld [vmem:[%s783] sm:$0xff]
    %v1969 = vld [vmem:[%s783 + $0x8] sm:$0xff]
    %v1970 = vld [vmem:[%s783 + $0x10] sm:$0xff]
    %v1971 = vld [vmem:[%s783 + $0x18] sm:$0xff]
    %v1972 = vld [vmem:[%s783 + $0x20] sm:$0xff]
    %v1973 = vld [vmem:[%s783 + $0x28] sm:$0xff]
    %v1974 = vld [vmem:[%s783 + $0x30] sm:$0xff]
    %v1975 = vld [vmem:[%s783 + $0x38] sm:$0xff]
    %v1976 = vld [vmem:[%s783 + $0x40] sm:$0xff]
    %v1977 = vld [vmem:[%s783 + $0x48] sm:$0xff]
    %v1978 = vld [vmem:[%s783 + $0x50] sm:$0xff]
    %v1979 = vld [vmem:[%s783 + $0x58] sm:$0xff]
    %v1980 = vld [vmem:[%s783 + $0x60] sm:$0xff]
    %v1981 = vld [vmem:[%s783 + $0x68] sm:$0xff]
    %v1982 = vld [vmem:[%s783 + $0x70] sm:$0xff]
    %v1983 = vld [vmem:[%s783 + $0x78] sm:$0xff]
    %v1984 = vld [vmem:[%s783 + $0x80] sm:$0xff]
    %v1985 = vld [vmem:[%s783 + $0x88] sm:$0xff]
    %v1986 = vld [vmem:[%s783 + $0x90] sm:$0xff]
    %v1987 = vld [vmem:[%s783 + $0x98] sm:$0xff]
    %v1988 = vld [vmem:[%s783 + $0xa0] sm:$0xff]
    %v1989 = vld [vmem:[%s783 + $0xa8] sm:$0xff]
    %v1990 = vld [vmem:[%s783 + $0xb0] sm:$0xff]
    %v1991 = vld [vmem:[%s783 + $0xb8] sm:$0xff]
    %v1992 = vld [vmem:[%s783 + $0xc0] sm:$0xff]
    %v1993 = vld [vmem:[%s783 + $0xc8] sm:$0xff]
    %v1994 = vld [vmem:[%s783 + $0xd0] sm:$0xff]
    %v1995 = vld [vmem:[%s783 + $0xd8] sm:$0xff]
    %v1996 = vld [vmem:[%s783 + $0xe0] sm:$0xff]
    %v1997 = vld [vmem:[%s783 + $0xe8] sm:$0xff]
    %v1998 = vld [vmem:[%s783 + $0xf0] sm:$0xff]
    %v1999 = vld [vmem:[%s783 + $0xf8] sm:$0xff]
    %v2000 = vld [vmem:[%s783 + $0x100] sm:$0xff]
    %v2001 = vld [vmem:[%s783 + $0x108] sm:$0xff]
    %v2002 = vld [vmem:[%s783 + $0x110] sm:$0xff]
    %v2003 = vld [vmem:[%s783 + $0x118] sm:$0xff]
    %v2004 = vld [vmem:[%s783 + $0x120] sm:$0xff]
    %v2005 = vld [vmem:[%s783 + $0x128] sm:$0xff]
    %v2006 = vld [vmem:[%s783 + $0x130] sm:$0xff]
    %v2007 = vld [vmem:[%s783 + $0x138] sm:$0xff]
    %v2008 = vld [vmem:[%s783 + $0x140] sm:$0xff]
    %v2009 = vld [vmem:[%s783 + $0x148] sm:$0xff]
    %v2010 = vld [vmem:[%s783 + $0x150] sm:$0xff]
    %v2011 = vld [vmem:[%s783 + $0x158] sm:$0xff]
    %v2012 = vld [vmem:[%s783 + $0x160] sm:$0xff]
    %v2013 = vld [vmem:[%s783 + $0x168] sm:$0xff]
    %v2014 = vld [vmem:[%s783 + $0x170] sm:$0xff]
    %v2015 = vld [vmem:[%s783 + $0x178] sm:$0xff]
    %v2016 = vld [vmem:[%s783 + $0x180] sm:$0xff]
    %v2017 = vld [vmem:[%s783 + $0x188] sm:$0xff]
    %v2018 = vld [vmem:[%s783 + $0x190] sm:$0xff]
    %v2019 = vld [vmem:[%s783 + $0x198] sm:$0xff]
    %v2020 = vld [vmem:[%s783 + $0x1a0] sm:$0xff]
    %v2021 = vld [vmem:[%s783 + $0x1a8] sm:$0xff]
    %v2022 = vld [vmem:[%s783 + $0x1b0] sm:$0xff]
    %v2023 = vld [vmem:[%s783 + $0x1b8] sm:$0xff]
    %v2024 = vld [vmem:[%s783 + $0x1c0] sm:$0xff]
    %v2025 = vld [vmem:[%s783 + $0x1c8] sm:$0xff]
    %v2026 = vld [vmem:[%s783 + $0x1d0] sm:$0xff]
    %v2027 = vld [vmem:[%s783 + $0x1d8] sm:$0xff]
    %v2028 = vld [vmem:[%s783 + $0x1e0] sm:$0xff]
    %v2029 = vld [vmem:[%s783 + $0x1e8] sm:$0xff]
    %v2030 = vld [vmem:[%s783 + $0x1f0] sm:$0xff]
    %v2031 = vld [vmem:[%s783 + $0x1f8] sm:$0xff]
    %s2032 = scalar_lea.vmem %s6, 1024
    // Predicated region
    $region102: #{mv_lstm_forward.1} parent=1 // pred_check
      _
    $region103: #{mv_lstm_forward.1} parent=1 // pred_check_branch
      %2034 = sbr.rel (0) target = $region105
    $region104: #{mv_lstm_forward.1} parent=1 // pred_region
      loop: start=0, step=1, limit=1
      $region106: #{mv_lstm_forward.1} parent=104 // loop_pre_header
        _
      $region107: #{mv_lstm_forward.1} parent=104 // loop_header
        %s2036 = sphi 0, %s2040
        %p2037 = scmp.ge.s32.totalorder %s2036, 1
        %s2041 = sphi %s2032, %s2032
        %s2042 = sphi [#allocation2], [#allocation2]
      $region108: #{mv_lstm_forward.1} parent=104 // loop_header_branch
        %2039 = sbr.rel (%p2037) target = $region112
      $region109: #{mv_lstm_forward.1} parent=104 // loop_body
        %v2043 = vld [vmem:[%s2041] sm:$0xff]
        %2044 = vst [vmem:[%s2042] sm:$0xff] %v2043
        %v2045 = vld [vmem:[%s2041 + $0x8] sm:$0xff]
        %2046 = vst [vmem:[%s2042 + $0x8] sm:$0xff] %v2045
        %v2047 = vld [vmem:[%s2041 + $0x10] sm:$0xff]
        %2048 = vst [vmem:[%s2042 + $0x10] sm:$0xff] %v2047
        %v2049 = vld [vmem:[%s2041 + $0x18] sm:$0xff]
        %2050 = vst [vmem:[%s2042 + $0x18] sm:$0xff] %v2049
        %v2051 = vld [vmem:[%s2041 + $0x20] sm:$0xff]
        %2052 = vst [vmem:[%s2042 + $0x20] sm:$0xff] %v2051
        %v2053 = vld [vmem:[%s2041 + $0x28] sm:$0xff]
        %2054 = vst [vmem:[%s2042 + $0x28] sm:$0xff] %v2053
        %v2055 = vld [vmem:[%s2041 + $0x30] sm:$0xff]
        %2056 = vst [vmem:[%s2042 + $0x30] sm:$0xff] %v2055
        %v2057 = vld [vmem:[%s2041 + $0x38] sm:$0xff]
        %2058 = vst [vmem:[%s2042 + $0x38] sm:$0xff] %v2057
        %v2059 = vld [vmem:[%s2041 + $0x40] sm:$0xff]
        %2060 = vst [vmem:[%s2042 + $0x40] sm:$0xff] %v2059
        %v2061 = vld [vmem:[%s2041 + $0x48] sm:$0xff]
        %2062 = vst [vmem:[%s2042 + $0x48] sm:$0xff] %v2061
        %v2063 = vld [vmem:[%s2041 + $0x50] sm:$0xff]
        %2064 = vst [vmem:[%s2042 + $0x50] sm:$0xff] %v2063
        %v2065 = vld [vmem:[%s2041 + $0x58] sm:$0xff]
        %2066 = vst [vmem:[%s2042 + $0x58] sm:$0xff] %v2065
        %v2067 = vld [vmem:[%s2041 + $0x60] sm:$0xff]
        %2068 = vst [vmem:[%s2042 + $0x60] sm:$0xff] %v2067
        %v2069 = vld [vmem:[%s2041 + $0x68] sm:$0xff]
        %2070 = vst [vmem:[%s2042 + $0x68] sm:$0xff] %v2069
        %v2071 = vld [vmem:[%s2041 + $0x70] sm:$0xff]
        %2072 = vst [vmem:[%s2042 + $0x70] sm:$0xff] %v2071
        %v2073 = vld [vmem:[%s2041 + $0x78] sm:$0xff]
        %2074 = vst [vmem:[%s2042 + $0x78] sm:$0xff] %v2073
        %v2075 = vld [vmem:[%s2041 + $0x80] sm:$0xff]
        %2076 = vst [vmem:[%s2042 + $0x80] sm:$0xff] %v2075
        %v2077 = vld [vmem:[%s2041 + $0x88] sm:$0xff]
        %2078 = vst [vmem:[%s2042 + $0x88] sm:$0xff] %v2077
        %v2079 = vld [vmem:[%s2041 + $0x90] sm:$0xff]
        %2080 = vst [vmem:[%s2042 + $0x90] sm:$0xff] %v2079
        %v2081 = vld [vmem:[%s2041 + $0x98] sm:$0xff]
        %2082 = vst [vmem:[%s2042 + $0x98] sm:$0xff] %v2081
        %v2083 = vld [vmem:[%s2041 + $0xa0] sm:$0xff]
        %2084 = vst [vmem:[%s2042 + $0xa0] sm:$0xff] %v2083
        %v2085 = vld [vmem:[%s2041 + $0xa8] sm:$0xff]
        %2086 = vst [vmem:[%s2042 + $0xa8] sm:$0xff] %v2085
        %v2087 = vld [vmem:[%s2041 + $0xb0] sm:$0xff]
        %2088 = vst [vmem:[%s2042 + $0xb0] sm:$0xff] %v2087
        %v2089 = vld [vmem:[%s2041 + $0xb8] sm:$0xff]
        %2090 = vst [vmem:[%s2042 + $0xb8] sm:$0xff] %v2089
        %v2091 = vld [vmem:[%s2041 + $0xc0] sm:$0xff]
        %2092 = vst [vmem:[%s2042 + $0xc0] sm:$0xff] %v2091
        %v2093 = vld [vmem:[%s2041 + $0xc8] sm:$0xff]
        %2094 = vst [vmem:[%s2042 + $0xc8] sm:$0xff] %v2093
        %v2095 = vld [vmem:[%s2041 + $0xd0] sm:$0xff]
        %2096 = vst [vmem:[%s2042 + $0xd0] sm:$0xff] %v2095
        %v2097 = vld [vmem:[%s2041 + $0xd8] sm:$0xff]
        %2098 = vst [vmem:[%s2042 + $0xd8] sm:$0xff] %v2097
        %v2099 = vld [vmem:[%s2041 + $0xe0] sm:$0xff]
        %2100 = vst [vmem:[%s2042 + $0xe0] sm:$0xff] %v2099
        %v2101 = vld [vmem:[%s2041 + $0xe8] sm:$0xff]
        %2102 = vst [vmem:[%s2042 + $0xe8] sm:$0xff] %v2101
        %v2103 = vld [vmem:[%s2041 + $0xf0] sm:$0xff]
        %2104 = vst [vmem:[%s2042 + $0xf0] sm:$0xff] %v2103
        %v2105 = vld [vmem:[%s2041 + $0xf8] sm:$0xff]
        %2106 = vst [vmem:[%s2042 + $0xf8] sm:$0xff] %v2105
        %v2107 = vld [vmem:[%s2041 + $0x100] sm:$0xff]
        %2108 = vst [vmem:[%s2042 + $0x100] sm:$0xff] %v2107
        %v2109 = vld [vmem:[%s2041 + $0x108] sm:$0xff]
        %2110 = vst [vmem:[%s2042 + $0x108] sm:$0xff] %v2109
        %v2111 = vld [vmem:[%s2041 + $0x110] sm:$0xff]
        %2112 = vst [vmem:[%s2042 + $0x110] sm:$0xff] %v2111
        %v2113 = vld [vmem:[%s2041 + $0x118] sm:$0xff]
        %2114 = vst [vmem:[%s2042 + $0x118] sm:$0xff] %v2113
        %v2115 = vld [vmem:[%s2041 + $0x120] sm:$0xff]
        %2116 = vst [vmem:[%s2042 + $0x120] sm:$0xff] %v2115
        %v2117 = vld [vmem:[%s2041 + $0x128] sm:$0xff]
        %2118 = vst [vmem:[%s2042 + $0x128] sm:$0xff] %v2117
        %v2119 = vld [vmem:[%s2041 + $0x130] sm:$0xff]
        %2120 = vst [vmem:[%s2042 + $0x130] sm:$0xff] %v2119
        %v2121 = vld [vmem:[%s2041 + $0x138] sm:$0xff]
        %2122 = vst [vmem:[%s2042 + $0x138] sm:$0xff] %v2121
        %v2123 = vld [vmem:[%s2041 + $0x140] sm:$0xff]
        %2124 = vst [vmem:[%s2042 + $0x140] sm:$0xff] %v2123
        %v2125 = vld [vmem:[%s2041 + $0x148] sm:$0xff]
        %2126 = vst [vmem:[%s2042 + $0x148] sm:$0xff] %v2125
        %v2127 = vld [vmem:[%s2041 + $0x150] sm:$0xff]
        %2128 = vst [vmem:[%s2042 + $0x150] sm:$0xff] %v2127
        %v2129 = vld [vmem:[%s2041 + $0x158] sm:$0xff]
        %2130 = vst [vmem:[%s2042 + $0x158] sm:$0xff] %v2129
        %v2131 = vld [vmem:[%s2041 + $0x160] sm:$0xff]
        %2132 = vst [vmem:[%s2042 + $0x160] sm:$0xff] %v2131
        %v2133 = vld [vmem:[%s2041 + $0x168] sm:$0xff]
        %2134 = vst [vmem:[%s2042 + $0x168] sm:$0xff] %v2133
        %v2135 = vld [vmem:[%s2041 + $0x170] sm:$0xff]
        %2136 = vst [vmem:[%s2042 + $0x170] sm:$0xff] %v2135
        %v2137 = vld [vmem:[%s2041 + $0x178] sm:$0xff]
        %2138 = vst [vmem:[%s2042 + $0x178] sm:$0xff] %v2137
        %v2139 = vld [vmem:[%s2041 + $0x180] sm:$0xff]
        %2140 = vst [vmem:[%s2042 + $0x180] sm:$0xff] %v2139
        %v2141 = vld [vmem:[%s2041 + $0x188] sm:$0xff]
        %2142 = vst [vmem:[%s2042 + $0x188] sm:$0xff] %v2141
        %v2143 = vld [vmem:[%s2041 + $0x190] sm:$0xff]
        %2144 = vst [vmem:[%s2042 + $0x190] sm:$0xff] %v2143
        %v2145 = vld [vmem:[%s2041 + $0x198] sm:$0xff]
        %2146 = vst [vmem:[%s2042 + $0x198] sm:$0xff] %v2145
        %v2147 = vld [vmem:[%s2041 + $0x1a0] sm:$0xff]
        %2148 = vst [vmem:[%s2042 + $0x1a0] sm:$0xff] %v2147
        %v2149 = vld [vmem:[%s2041 + $0x1a8] sm:$0xff]
        %2150 = vst [vmem:[%s2042 + $0x1a8] sm:$0xff] %v2149
        %v2151 = vld [vmem:[%s2041 + $0x1b0] sm:$0xff]
        %2152 = vst [vmem:[%s2042 + $0x1b0] sm:$0xff] %v2151
        %v2153 = vld [vmem:[%s2041 + $0x1b8] sm:$0xff]
        %2154 = vst [vmem:[%s2042 + $0x1b8] sm:$0xff] %v2153
        %v2155 = vld [vmem:[%s2041 + $0x1c0] sm:$0xff]
        %2156 = vst [vmem:[%s2042 + $0x1c0] sm:$0xff] %v2155
        %v2157 = vld [vmem:[%s2041 + $0x1c8] sm:$0xff]
        %2158 = vst [vmem:[%s2042 + $0x1c8] sm:$0xff] %v2157
        %v2159 = vld [vmem:[%s2041 + $0x1d0] sm:$0xff]
        %2160 = vst [vmem:[%s2042 + $0x1d0] sm:$0xff] %v2159
        %v2161 = vld [vmem:[%s2041 + $0x1d8] sm:$0xff]
        %2162 = vst [vmem:[%s2042 + $0x1d8] sm:$0xff] %v2161
        %v2163 = vld [vmem:[%s2041 + $0x1e0] sm:$0xff]
        %2164 = vst [vmem:[%s2042 + $0x1e0] sm:$0xff] %v2163
        %v2165 = vld [vmem:[%s2041 + $0x1e8] sm:$0xff]
        %2166 = vst [vmem:[%s2042 + $0x1e8] sm:$0xff] %v2165
        %v2167 = vld [vmem:[%s2041 + $0x1f0] sm:$0xff]
        %2168 = vst [vmem:[%s2042 + $0x1f0] sm:$0xff] %v2167
        %v2169 = vld [vmem:[%s2041 + $0x1f8] sm:$0xff]
        %2170 = vst [vmem:[%s2042 + $0x1f8] sm:$0xff] %v2169
      $region110: #{mv_lstm_forward.1} parent=104 // loop_footer
        %s2040 = sadd.s32 1, %s2036
      $region111: #{mv_lstm_forward.1} parent=104 // loop_footer_branch
        %2035 = sbr.rel target = $region107
      $region112: #{mv_lstm_forward.1} parent=104 // loop_exit
        _
    $region105: #{mv_lstm_forward.1} parent=1 // pred_fallthru
      _
    // Predicated region
    $region113: #{mv_lstm_forward.1} parent=1 // pred_check
      _
    $region114: #{mv_lstm_forward.1} parent=1 // pred_check_branch
      %2172 = sbr.rel target = $region116
    $region115: #{mv_lstm_forward.1} parent=1 // pred_region
      _
    $region116: #{mv_lstm_forward.1} parent=1 // pred_fallthru
      _
    // Predicated region
    $region117: #{mv_lstm_forward.1} parent=1 // pred_check
      _
    $region118: #{mv_lstm_forward.1} parent=1 // pred_check_branch
      %2175 = sbr.rel (0) target = $region120
    $region119: #{mv_lstm_forward.1} parent=1 // pred_region
      %2176 = vsyncadd [#allocation4], 8192
    $region120: #{mv_lstm_forward.1} parent=1 // pred_fallthru
      _
    %s2177 = scalar_lea.vmem %s7, 1024
    // Predicated region
    $region121: #{mv_lstm_forward.1} parent=1 // pred_check
      _
    $region122: #{mv_lstm_forward.1} parent=1 // pred_check_branch
      %2179 = sbr.rel (0) target = $region124
    $region123: #{mv_lstm_forward.1} parent=1 // pred_region
      loop: start=0, step=1, limit=1
      $region125: #{mv_lstm_forward.1} parent=123 // loop_pre_header
        _
      $region126: #{mv_lstm_forward.1} parent=123 // loop_header
        %s2181 = sphi 0, %s2185
        %p2182 = scmp.ge.s32.totalorder %s2181, 1
        %s2186 = sphi %s2177, %s2177
        %s2187 = sphi [#allocation3], [#allocation3]
      $region127: #{mv_lstm_forward.1} parent=123 // loop_header_branch
        %2184 = sbr.rel (%p2182) target = $region131
      $region128: #{mv_lstm_forward.1} parent=123 // loop_body
        %v2188 = vld [vmem:[%s2186] sm:$0xff]
        %2189 = vst [vmem:[%s2187] sm:$0xff] %v2188
        %v2190 = vld [vmem:[%s2186 + $0x8] sm:$0xff]
        %2191 = vst [vmem:[%s2187 + $0x8] sm:$0xff] %v2190
        %v2192 = vld [vmem:[%s2186 + $0x10] sm:$0xff]
        %2193 = vst [vmem:[%s2187 + $0x10] sm:$0xff] %v2192
        %v2194 = vld [vmem:[%s2186 + $0x18] sm:$0xff]
        %2195 = vst [vmem:[%s2187 + $0x18] sm:$0xff] %v2194
        %v2196 = vld [vmem:[%s2186 + $0x20] sm:$0xff]
        %2197 = vst [vmem:[%s2187 + $0x20] sm:$0xff] %v2196
        %v2198 = vld [vmem:[%s2186 + $0x28] sm:$0xff]
        %2199 = vst [vmem:[%s2187 + $0x28] sm:$0xff] %v2198
        %v2200 = vld [vmem:[%s2186 + $0x30] sm:$0xff]
        %2201 = vst [vmem:[%s2187 + $0x30] sm:$0xff] %v2200
        %v2202 = vld [vmem:[%s2186 + $0x38] sm:$0xff]
        %2203 = vst [vmem:[%s2187 + $0x38] sm:$0xff] %v2202
        %v2204 = vld [vmem:[%s2186 + $0x40] sm:$0xff]
        %2205 = vst [vmem:[%s2187 + $0x40] sm:$0xff] %v2204
        %v2206 = vld [vmem:[%s2186 + $0x48] sm:$0xff]
        %2207 = vst [vmem:[%s2187 + $0x48] sm:$0xff] %v2206
        %v2208 = vld [vmem:[%s2186 + $0x50] sm:$0xff]
        %2209 = vst [vmem:[%s2187 + $0x50] sm:$0xff] %v2208
        %v2210 = vld [vmem:[%s2186 + $0x58] sm:$0xff]
        %2211 = vst [vmem:[%s2187 + $0x58] sm:$0xff] %v2210
        %v2212 = vld [vmem:[%s2186 + $0x60] sm:$0xff]
        %2213 = vst [vmem:[%s2187 + $0x60] sm:$0xff] %v2212
        %v2214 = vld [vmem:[%s2186 + $0x68] sm:$0xff]
        %2215 = vst [vmem:[%s2187 + $0x68] sm:$0xff] %v2214
        %v2216 = vld [vmem:[%s2186 + $0x70] sm:$0xff]
        %2217 = vst [vmem:[%s2187 + $0x70] sm:$0xff] %v2216
        %v2218 = vld [vmem:[%s2186 + $0x78] sm:$0xff]
        %2219 = vst [vmem:[%s2187 + $0x78] sm:$0xff] %v2218
        %v2220 = vld [vmem:[%s2186 + $0x80] sm:$0xff]
        %2221 = vst [vmem:[%s2187 + $0x80] sm:$0xff] %v2220
        %v2222 = vld [vmem:[%s2186 + $0x88] sm:$0xff]
        %2223 = vst [vmem:[%s2187 + $0x88] sm:$0xff] %v2222
        %v2224 = vld [vmem:[%s2186 + $0x90] sm:$0xff]
        %2225 = vst [vmem:[%s2187 + $0x90] sm:$0xff] %v2224
        %v2226 = vld [vmem:[%s2186 + $0x98] sm:$0xff]
        %2227 = vst [vmem:[%s2187 + $0x98] sm:$0xff] %v2226
        %v2228 = vld [vmem:[%s2186 + $0xa0] sm:$0xff]
        %2229 = vst [vmem:[%s2187 + $0xa0] sm:$0xff] %v2228
        %v2230 = vld [vmem:[%s2186 + $0xa8] sm:$0xff]
        %2231 = vst [vmem:[%s2187 + $0xa8] sm:$0xff] %v2230
        %v2232 = vld [vmem:[%s2186 + $0xb0] sm:$0xff]
        %2233 = vst [vmem:[%s2187 + $0xb0] sm:$0xff] %v2232
        %v2234 = vld [vmem:[%s2186 + $0xb8] sm:$0xff]
        %2235 = vst [vmem:[%s2187 + $0xb8] sm:$0xff] %v2234
        %v2236 = vld [vmem:[%s2186 + $0xc0] sm:$0xff]
        %2237 = vst [vmem:[%s2187 + $0xc0] sm:$0xff] %v2236
        %v2238 = vld [vmem:[%s2186 + $0xc8] sm:$0xff]
        %2239 = vst [vmem:[%s2187 + $0xc8] sm:$0xff] %v2238
        %v2240 = vld [vmem:[%s2186 + $0xd0] sm:$0xff]
        %2241 = vst [vmem:[%s2187 + $0xd0] sm:$0xff] %v2240
        %v2242 = vld [vmem:[%s2186 + $0xd8] sm:$0xff]
        %2243 = vst [vmem:[%s2187 + $0xd8] sm:$0xff] %v2242
        %v2244 = vld [vmem:[%s2186 + $0xe0] sm:$0xff]
        %2245 = vst [vmem:[%s2187 + $0xe0] sm:$0xff] %v2244
        %v2246 = vld [vmem:[%s2186 + $0xe8] sm:$0xff]
        %2247 = vst [vmem:[%s2187 + $0xe8] sm:$0xff] %v2246
        %v2248 = vld [vmem:[%s2186 + $0xf0] sm:$0xff]
        %2249 = vst [vmem:[%s2187 + $0xf0] sm:$0xff] %v2248
        %v2250 = vld [vmem:[%s2186 + $0xf8] sm:$0xff]
        %2251 = vst [vmem:[%s2187 + $0xf8] sm:$0xff] %v2250
        %v2252 = vld [vmem:[%s2186 + $0x100] sm:$0xff]
        %2253 = vst [vmem:[%s2187 + $0x100] sm:$0xff] %v2252
        %v2254 = vld [vmem:[%s2186 + $0x108] sm:$0xff]
        %2255 = vst [vmem:[%s2187 + $0x108] sm:$0xff] %v2254
        %v2256 = vld [vmem:[%s2186 + $0x110] sm:$0xff]
        %2257 = vst [vmem:[%s2187 + $0x110] sm:$0xff] %v2256
        %v2258 = vld [vmem:[%s2186 + $0x118] sm:$0xff]
        %2259 = vst [vmem:[%s2187 + $0x118] sm:$0xff] %v2258
        %v2260 = vld [vmem:[%s2186 + $0x120] sm:$0xff]
        %2261 = vst [vmem:[%s2187 + $0x120] sm:$0xff] %v2260
        %v2262 = vld [vmem:[%s2186 + $0x128] sm:$0xff]
        %2263 = vst [vmem:[%s2187 + $0x128] sm:$0xff] %v2262
        %v2264 = vld [vmem:[%s2186 + $0x130] sm:$0xff]
        %2265 = vst [vmem:[%s2187 + $0x130] sm:$0xff] %v2264
        %v2266 = vld [vmem:[%s2186 + $0x138] sm:$0xff]
        %2267 = vst [vmem:[%s2187 + $0x138] sm:$0xff] %v2266
        %v2268 = vld [vmem:[%s2186 + $0x140] sm:$0xff]
        %2269 = vst [vmem:[%s2187 + $0x140] sm:$0xff] %v2268
        %v2270 = vld [vmem:[%s2186 + $0x148] sm:$0xff]
        %2271 = vst [vmem:[%s2187 + $0x148] sm:$0xff] %v2270
        %v2272 = vld [vmem:[%s2186 + $0x150] sm:$0xff]
        %2273 = vst [vmem:[%s2187 + $0x150] sm:$0xff] %v2272
        %v2274 = vld [vmem:[%s2186 + $0x158] sm:$0xff]
        %2275 = vst [vmem:[%s2187 + $0x158] sm:$0xff] %v2274
        %v2276 = vld [vmem:[%s2186 + $0x160] sm:$0xff]
        %2277 = vst [vmem:[%s2187 + $0x160] sm:$0xff] %v2276
        %v2278 = vld [vmem:[%s2186 + $0x168] sm:$0xff]
        %2279 = vst [vmem:[%s2187 + $0x168] sm:$0xff] %v2278
        %v2280 = vld [vmem:[%s2186 + $0x170] sm:$0xff]
        %2281 = vst [vmem:[%s2187 + $0x170] sm:$0xff] %v2280
        %v2282 = vld [vmem:[%s2186 + $0x178] sm:$0xff]
        %2283 = vst [vmem:[%s2187 + $0x178] sm:$0xff] %v2282
        %v2284 = vld [vmem:[%s2186 + $0x180] sm:$0xff]
        %2285 = vst [vmem:[%s2187 + $0x180] sm:$0xff] %v2284
        %v2286 = vld [vmem:[%s2186 + $0x188] sm:$0xff]
        %2287 = vst [vmem:[%s2187 + $0x188] sm:$0xff] %v2286
        %v2288 = vld [vmem:[%s2186 + $0x190] sm:$0xff]
        %2289 = vst [vmem:[%s2187 + $0x190] sm:$0xff] %v2288
        %v2290 = vld [vmem:[%s2186 + $0x198] sm:$0xff]
        %2291 = vst [vmem:[%s2187 + $0x198] sm:$0xff] %v2290
        %v2292 = vld [vmem:[%s2186 + $0x1a0] sm:$0xff]
        %2293 = vst [vmem:[%s2187 + $0x1a0] sm:$0xff] %v2292
        %v2294 = vld [vmem:[%s2186 + $0x1a8] sm:$0xff]
        %2295 = vst [vmem:[%s2187 + $0x1a8] sm:$0xff] %v2294
        %v2296 = vld [vmem:[%s2186 + $0x1b0] sm:$0xff]
        %2297 = vst [vmem:[%s2187 + $0x1b0] sm:$0xff] %v2296
        %v2298 = vld [vmem:[%s2186 + $0x1b8] sm:$0xff]
        %2299 = vst [vmem:[%s2187 + $0x1b8] sm:$0xff] %v2298
        %v2300 = vld [vmem:[%s2186 + $0x1c0] sm:$0xff]
        %2301 = vst [vmem:[%s2187 + $0x1c0] sm:$0xff] %v2300
        %v2302 = vld [vmem:[%s2186 + $0x1c8] sm:$0xff]
        %2303 = vst [vmem:[%s2187 + $0x1c8] sm:$0xff] %v2302
        %v2304 = vld [vmem:[%s2186 + $0x1d0] sm:$0xff]
        %2305 = vst [vmem:[%s2187 + $0x1d0] sm:$0xff] %v2304
        %v2306 = vld [vmem:[%s2186 + $0x1d8] sm:$0xff]
        %2307 = vst [vmem:[%s2187 + $0x1d8] sm:$0xff] %v2306
        %v2308 = vld [vmem:[%s2186 + $0x1e0] sm:$0xff]
        %2309 = vst [vmem:[%s2187 + $0x1e0] sm:$0xff] %v2308
        %v2310 = vld [vmem:[%s2186 + $0x1e8] sm:$0xff]
        %2311 = vst [vmem:[%s2187 + $0x1e8] sm:$0xff] %v2310
        %v2312 = vld [vmem:[%s2186 + $0x1f0] sm:$0xff]
        %2313 = vst [vmem:[%s2187 + $0x1f0] sm:$0xff] %v2312
        %v2314 = vld [vmem:[%s2186 + $0x1f8] sm:$0xff]
        %2315 = vst [vmem:[%s2187 + $0x1f8] sm:$0xff] %v2314
      $region129: #{mv_lstm_forward.1} parent=123 // loop_footer
        %s2185 = sadd.s32 1, %s2181
      $region130: #{mv_lstm_forward.1} parent=123 // loop_footer_branch
        %2180 = sbr.rel target = $region126
      $region131: #{mv_lstm_forward.1} parent=123 // loop_exit
        _
    $region124: #{mv_lstm_forward.1} parent=1 // pred_fallthru
      _
    // Predicated region
    $region132: #{mv_lstm_forward.1} parent=1 // pred_check
      _
    $region133: #{mv_lstm_forward.1} parent=1 // pred_check_branch
      %2317 = sbr.rel target = $region135
    $region134: #{mv_lstm_forward.1} parent=1 // pred_region
      _
    $region135: #{mv_lstm_forward.1} parent=1 // pred_fallthru
      _
    // Predicated region
    $region136: #{mv_lstm_forward.1} parent=1 // pred_check
      _
    $region137: #{mv_lstm_forward.1} parent=1 // pred_check_branch
      %2320 = sbr.rel (0) target = $region139
    $region138: #{mv_lstm_forward.1} parent=1 // pred_region
      %2321 = vsyncadd %s174, 8192
    $region139: #{mv_lstm_forward.1} parent=1 // pred_fallthru
      _
    %s2322 = scalar_lea.vmem %s1, 8
    %v2323 = vld [vmem:[%s2322] sm:$0xff]
    %s2324 = scalar_lea.vmem %s2, 8
    %v2325 = vld [vmem:[%s2324] sm:$0xff]
    %2326 = vmatpush.msra.mxu0 %v2028
    %2327 = vmatpush.msra.mxu0 %v2024
    %2328 = vmatpush.msra.mxu0 %v2020
    %2329 = vmatpush.msra.mxu0 %v2016
    %2330 = vmatpush.msra.mxu0 %v2012
    %2331 = vmatpush.msra.mxu0 %v2008
    %2332 = vmatpush.msra.mxu0 %v2004
    %2333 = vmatpush.msra.mxu0 %v2000
    %2334 = vmatpush.msra.mxu0 %v1996
    %2335 = vmatpush.msra.mxu0 %v1992
    %2336 = vmatpush.msra.mxu0 %v1988
    %2337 = vmatpush.msra.mxu0 %v1984
    %2338 = vmatpush.msra.mxu0 %v1980
    %2339 = vmatpush.msra.mxu0 %v1976
    %2340 = vmatpush.msra.mxu0 %v1972
    %2341 = vmatpush.msra.mxu0 %v1968
    %2342 = vmatmul.f32.gmra.mxu0 %v2323
    %v2343 = vpop.f32.mrf.mxu0
    %v2344 = vadd.f32 0.0, %v2343
    %2345 = vdwg.mxu0
    %2346 = vmatpush.msra.mxu0 %v2029
    %2347 = vmatpush.msra.mxu0 %v2025
    %2348 = vmatpush.msra.mxu0 %v2021
    %2349 = vmatpush.msra.mxu0 %v2017
    %2350 = vmatpush.msra.mxu0 %v2013
    %2351 = vmatpush.msra.mxu0 %v2009
    %2352 = vmatpush.msra.mxu0 %v2005
    %2353 = vmatpush.msra.mxu0 %v2001
    %2354 = vmatpush.msra.mxu0 %v1997
    %2355 = vmatpush.msra.mxu0 %v1993
    %2356 = vmatpush.msra.mxu0 %v1989
    %2357 = vmatpush.msra.mxu0 %v1985
    %2358 = vmatpush.msra.mxu0 %v1981
    %2359 = vmatpush.msra.mxu0 %v1977
    %2360 = vmatpush.msra.mxu0 %v1973
    %2361 = vmatpush.msra.mxu0 %v1969
    %2362 = vmatmul.f32.gmra.mxu0 %v2323
    %v2363 = vpop.f32.mrf.mxu0
    %v2364 = vadd.f32 0.0, %v2363
    %2365 = vdwg.mxu0
    %2366 = vmatpush.msra.mxu0 %v2030
    %2367 = vmatpush.msra.mxu0 %v2026
    %2368 = vmatpush.msra.mxu0 %v2022
    %2369 = vmatpush.msra.mxu0 %v2018
    %2370 = vmatpush.msra.mxu0 %v2014
    %2371 = vmatpush.msra.mxu0 %v2010
    %2372 = vmatpush.msra.mxu0 %v2006
    %2373 = vmatpush.msra.mxu0 %v2002
    %2374 = vmatpush.msra.mxu0 %v1998
    %2375 = vmatpush.msra.mxu0 %v1994
    %2376 = vmatpush.msra.mxu0 %v1990
    %2377 = vmatpush.msra.mxu0 %v1986
    %2378 = vmatpush.msra.mxu0 %v1982
    %2379 = vmatpush.msra.mxu0 %v1978
    %2380 = vmatpush.msra.mxu0 %v1974
    %2381 = vmatpush.msra.mxu0 %v1970
    %2382 = vmatmul.f32.gmra.mxu0 %v2323
    %v2383 = vpop.f32.mrf.mxu0
    %v2384 = vadd.f32 0.0, %v2383
    %2385 = vdwg.mxu0
    %2386 = vmatpush.msra.mxu0 %v2031
    %2387 = vmatpush.msra.mxu0 %v2027
    %2388 = vmatpush.msra.mxu0 %v2023
    %2389 = vmatpush.msra.mxu0 %v2019
    %2390 = vmatpush.msra.mxu0 %v2015
    %2391 = vmatpush.msra.mxu0 %v2011
    %2392 = vmatpush.msra.mxu0 %v2007
    %2393 = vmatpush.msra.mxu0 %v2003
    %2394 = vmatpush.msra.mxu0 %v1999
    %2395 = vmatpush.msra.mxu0 %v1995
    %2396 = vmatpush.msra.mxu0 %v1991
    %2397 = vmatpush.msra.mxu0 %v1987
    %2398 = vmatpush.msra.mxu0 %v1983
    %2399 = vmatpush.msra.mxu0 %v1979
    %2400 = vmatpush.msra.mxu0 %v1975
    %2401 = vmatpush.msra.mxu0 %v1971
    %2402 = vmatmul.f32.gmra.mxu0 %v2323
    %v2403 = vpop.f32.mrf.mxu0
    %v2404 = vadd.f32 0.0, %v2403
    %2405 = vdwg.mxu0
    %v2406 = vadd.f32 %v1820, %v2344
    %v2407 = vadd.f32 %v1861, %v2364
    %v2408 = vadd.f32 %v1902, %v2384
    %v2409 = vadd.f32 %v1943, %v2404
    %v2410 = vtanh.pop %v2406
    %v2411 = vtanh.pop %v2407
    %v2412 = vtanh.pop %v2408
    %v2413 = vtanh.pop %v2409
    %v2414 = vmul.f32 %v2410, 0.5
    %v2415 = vadd.f32 %v2414, 0.5
    %v2416 = vmul.f32 %v2411, 0.5
    %v2417 = vadd.f32 %v2416, 0.5
    %v2418 = vmul.f32 %v2413, 0.5
    %v2419 = vadd.f32 %v2418, 0.5
    %v2420 = vmul.f32 %v2417, %v2325
    %v2421 = vmul.f32 %v2415, %v2412
    %v2422 = vadd.f32 %v2420, %v2421
    %v2423 = vtanh.pop %v2422
    %v2424 = vmul.f32 %v2419, %v2423
    %2425 = vmatpush.msra.mxu0 %v2028
    %2426 = vmatpush.msra.mxu0 %v2024
    %2427 = vmatpush.msra.mxu0 %v2020
    %2428 = vmatpush.msra.mxu0 %v2016
    %2429 = vmatpush.msra.mxu0 %v2012
    %2430 = vmatpush.msra.mxu0 %v2008
    %2431 = vmatpush.msra.mxu0 %v2004
    %2432 = vmatpush.msra.mxu0 %v2000
    %2433 = vmatpush.msra.mxu0 %v1996
    %2434 = vmatpush.msra.mxu0 %v1992
    %2435 = vmatpush.msra.mxu0 %v1988
    %2436 = vmatpush.msra.mxu0 %v1984
    %2437 = vmatpush.msra.mxu0 %v1980
    %2438 = vmatpush.msra.mxu0 %v1976
    %2439 = vmatpush.msra.mxu0 %v1972
    %2440 = vmatpush.msra.mxu0 %v1968
    %2441 = vmatmul.f32.gmra.mxu0 %v2424
    %v2442 = vpop.f32.mrf.mxu0
    %v2443 = vadd.f32 0.0, %v2442
    %2444 = vdwg.mxu0
    %2445 = vmatpush.msra.mxu0 %v2029
    %2446 = vmatpush.msra.mxu0 %v2025
    %2447 = vmatpush.msra.mxu0 %v2021
    %2448 = vmatpush.msra.mxu0 %v2017
    %2449 = vmatpush.msra.mxu0 %v2013
    %2450 = vmatpush.msra.mxu0 %v2009
    %2451 = vmatpush.msra.mxu0 %v2005
    %2452 = vmatpush.msra.mxu0 %v2001
    %2453 = vmatpush.msra.mxu0 %v1997
    %2454 = vmatpush.msra.mxu0 %v1993
    %2455 = vmatpush.msra.mxu0 %v1989
    %2456 = vmatpush.msra.mxu0 %v1985
    %2457 = vmatpush.msra.mxu0 %v1981
    %2458 = vmatpush.msra.mxu0 %v1977
    %2459 = vmatpush.msra.mxu0 %v1973
    %2460 = vmatpush.msra.mxu0 %v1969
    %2461 = vmatmul.f32.gmra.mxu0 %v2424
    %v2462 = vpop.f32.mrf.mxu0
    %v2463 = vadd.f32 0.0, %v2462
    %2464 = vdwg.mxu0
    %2465 = vmatpush.msra.mxu0 %v2030
    %2466 = vmatpush.msra.mxu0 %v2026
    %2467 = vmatpush.msra.mxu0 %v2022
    %2468 = vmatpush.msra.mxu0 %v2018
    %2469 = vmatpush.msra.mxu0 %v2014
    %2470 = vmatpush.msra.mxu0 %v2010
    %2471 = vmatpush.msra.mxu0 %v2006
    %2472 = vmatpush.msra.mxu0 %v2002
    %2473 = vmatpush.msra.mxu0 %v1998
    %2474 = vmatpush.msra.mxu0 %v1994
    %2475 = vmatpush.msra.mxu0 %v1990
    %2476 = vmatpush.msra.mxu0 %v1986
    %2477 = vmatpush.msra.mxu0 %v1982
    %2478 = vmatpush.msra.mxu0 %v1978
    %2479 = vmatpush.msra.mxu0 %v1974
    %2480 = vmatpush.msra.mxu0 %v1970
    %2481 = vmatmul.f32.gmra.mxu0 %v2424
    %v2482 = vpop.f32.mrf.mxu0
    %v2483 = vadd.f32 0.0, %v2482
    %2484 = vdwg.mxu0
    %2485 = vmatpush.msra.mxu0 %v2031
    %2486 = vmatpush.msra.mxu0 %v2027
    %2487 = vmatpush.msra.mxu0 %v2023
    %2488 = vmatpush.msra.mxu0 %v2019
    %2489 = vmatpush.msra.mxu0 %v2015
    %2490 = vmatpush.msra.mxu0 %v2011
    %2491 = vmatpush.msra.mxu0 %v2007
    %2492 = vmatpush.msra.mxu0 %v2003
    %2493 = vmatpush.msra.mxu0 %v1999
    %2494 = vmatpush.msra.mxu0 %v1995
    %2495 = vmatpush.msra.mxu0 %v1991
    %2496 = vmatpush.msra.mxu0 %v1987
    %2497 = vmatpush.msra.mxu0 %v1983
    %2498 = vmatpush.msra.mxu0 %v1979
    %2499 = vmatpush.msra.mxu0 %v1975
    %2500 = vmatpush.msra.mxu0 %v1971
    %2501 = vmatmul.f32.gmra.mxu0 %v2424
    %v2502 = vpop.f32.mrf.mxu0
    %v2503 = vadd.f32 0.0, %v2502
    %2504 = vdwg.mxu0
    %v2505 = vadd.f32 %v1823, %v2443
    %v2506 = vadd.f32 %v1864, %v2463
    %v2507 = vadd.f32 %v1905, %v2483
    %v2508 = vadd.f32 %v1946, %v2503
    %v2509 = vtanh.pop %v2505
    %v2510 = vtanh.pop %v2506
    %v2511 = vtanh.pop %v2507
    %v2512 = vtanh.pop %v2508
    %v2513 = vmul.f32 %v2509, 0.5
    %v2514 = vadd.f32 %v2513, 0.5
    %v2515 = vmul.f32 %v2510, 0.5
    %v2516 = vadd.f32 %v2515, 0.5
    %v2517 = vmul.f32 %v2512, 0.5
    %v2518 = vadd.f32 %v2517, 0.5
    %v2519 = vmul.f32 %v2516, %v2422
    %v2520 = vmul.f32 %v2514, %v2511
    %v2521 = vadd.f32 %v2519, %v2520
    %v2522 = vtanh.pop %v2521
    %v2523 = vmul.f32 %v2518, %v2522
    %2524 = vmatpush.msra.mxu0 %v2028
    %2525 = vmatpush.msra.mxu0 %v2024
    %2526 = vmatpush.msra.mxu0 %v2020
    %2527 = vmatpush.msra.mxu0 %v2016
    %2528 = vmatpush.msra.mxu0 %v2012
    %2529 = vmatpush.msra.mxu0 %v2008
    %2530 = vmatpush.msra.mxu0 %v2004
    %2531 = vmatpush.msra.mxu0 %v2000
    %2532 = vmatpush.msra.mxu0 %v1996
    %2533 = vmatpush.msra.mxu0 %v1992
    %2534 = vmatpush.msra.mxu0 %v1988
    %2535 = vmatpush.msra.mxu0 %v1984
    %2536 = vmatpush.msra.mxu0 %v1980
    %2537 = vmatpush.msra.mxu0 %v1976
    %2538 = vmatpush.msra.mxu0 %v1972
    %2539 = vmatpush.msra.mxu0 %v1968
    %2540 = vmatmul.f32.gmra.mxu0 %v2523
    %v2541 = vpop.f32.mrf.mxu0
    %v2542 = vadd.f32 0.0, %v2541
    %2543 = vdwg.mxu0
    %2544 = vmatpush.msra.mxu0 %v2029
    %2545 = vmatpush.msra.mxu0 %v2025
    %2546 = vmatpush.msra.mxu0 %v2021
    %2547 = vmatpush.msra.mxu0 %v2017
    %2548 = vmatpush.msra.mxu0 %v2013
    %2549 = vmatpush.msra.mxu0 %v2009
    %2550 = vmatpush.msra.mxu0 %v2005
    %2551 = vmatpush.msra.mxu0 %v2001
    %2552 = vmatpush.msra.mxu0 %v1997
    %2553 = vmatpush.msra.mxu0 %v1993
    %2554 = vmatpush.msra.mxu0 %v1989
    %2555 = vmatpush.msra.mxu0 %v1985
    %2556 = vmatpush.msra.mxu0 %v1981
    %2557 = vmatpush.msra.mxu0 %v1977
    %2558 = vmatpush.msra.mxu0 %v1973
    %2559 = vmatpush.msra.mxu0 %v1969
    %2560 = vmatmul.f32.gmra.mxu0 %v2523
    %v2561 = vpop.f32.mrf.mxu0
    %v2562 = vadd.f32 0.0, %v2561
    %2563 = vdwg.mxu0
    %2564 = vmatpush.msra.mxu0 %v2030
    %2565 = vmatpush.msra.mxu0 %v2026
    %2566 = vmatpush.msra.mxu0 %v2022
    %2567 = vmatpush.msra.mxu0 %v2018
    %2568 = vmatpush.msra.mxu0 %v2014
    %2569 = vmatpush.msra.mxu0 %v2010
    %2570 = vmatpush.msra.mxu0 %v2006
    %2571 = vmatpush.msra.mxu0 %v2002
    %2572 = vmatpush.msra.mxu0 %v1998
    %2573 = vmatpush.msra.mxu0 %v1994
    %2574 = vmatpush.msra.mxu0 %v1990
    %2575 = vmatpush.msra.mxu0 %v1986
    %2576 = vmatpush.msra.mxu0 %v1982
    %2577 = vmatpush.msra.mxu0 %v1978
    %2578 = vmatpush.msra.mxu0 %v1974
    %2579 = vmatpush.msra.mxu0 %v1970
    %2580 = vmatmul.f32.gmra.mxu0 %v2523
    %v2581 = vpop.f32.mrf.mxu0
    %v2582 = vadd.f32 0.0, %v2581
    %2583 = vdwg.mxu0
    %2584 = vmatpush.msra.mxu0 %v2031
    %2585 = vmatpush.msra.mxu0 %v2027
    %2586 = vmatpush.msra.mxu0 %v2023
    %2587 = vmatpush.msra.mxu0 %v2019
    %2588 = vmatpush.msra.mxu0 %v2015
    %2589 = vmatpush.msra.mxu0 %v2011
    %2590 = vmatpush.msra.mxu0 %v2007
    %2591 = vmatpush.msra.mxu0 %v2003
    %2592 = vmatpush.msra.mxu0 %v1999
    %2593 = vmatpush.msra.mxu0 %v1995
    %2594 = vmatpush.msra.mxu0 %v1991
    %2595 = vmatpush.msra.mxu0 %v1987
    %2596 = vmatpush.msra.mxu0 %v1983
    %2597 = vmatpush.msra.mxu0 %v1979
    %2598 = vmatpush.msra.mxu0 %v1975
    %2599 = vmatpush.msra.mxu0 %v1971
    %2600 = vmatmul.f32.gmra.mxu0 %v2523
    %v2601 = vpop.f32.mrf.mxu0
    %v2602 = vadd.f32 0.0, %v2601
    %2603 = vdwg.mxu0
    %v2604 = vadd.f32 %v1826, %v2542
    %v2605 = vadd.f32 %v1867, %v2562
    %v2606 = vadd.f32 %v1908, %v2582
    %v2607 = vadd.f32 %v1949, %v2602
    %v2608 = vtanh.pop %v2604
    %v2609 = vtanh.pop %v2605
    %v2610 = vtanh.pop %v2606
    %v2611 = vtanh.pop %v2607
    %v2612 = vmul.f32 %v2608, 0.5
    %v2613 = vadd.f32 %v2612, 0.5
    %v2614 = vmul.f32 %v2609, 0.5
    %v2615 = vadd.f32 %v2614, 0.5
    %v2616 = vmul.f32 %v2611, 0.5
    %v2617 = vadd.f32 %v2616, 0.5
    %v2618 = vmul.f32 %v2615, %v2521
    %v2619 = vmul.f32 %v2613, %v2610
    %v2620 = vadd.f32 %v2618, %v2619
    %v2621 = vtanh.pop %v2620
    %v2622 = vmul.f32 %v2617, %v2621
    %2623 = vmatpush.msra.mxu0 %v2028
    %2624 = vmatpush.msra.mxu0 %v2024
    %2625 = vmatpush.msra.mxu0 %v2020
    %2626 = vmatpush.msra.mxu0 %v2016
    %2627 = vmatpush.msra.mxu0 %v2012
    %2628 = vmatpush.msra.mxu0 %v2008
    %2629 = vmatpush.msra.mxu0 %v2004
    %2630 = vmatpush.msra.mxu0 %v2000
    %2631 = vmatpush.msra.mxu0 %v1996
    %2632 = vmatpush.msra.mxu0 %v1992
    %2633 = vmatpush.msra.mxu0 %v1988
    %2634 = vmatpush.msra.mxu0 %v1984
    %2635 = vmatpush.msra.mxu0 %v1980
    %2636 = vmatpush.msra.mxu0 %v1976
    %2637 = vmatpush.msra.mxu0 %v1972
    %2638 = vmatpush.msra.mxu0 %v1968
    %2639 = vmatmul.f32.gmra.mxu0 %v2622
    %v2640 = vpop.f32.mrf.mxu0
    %v2641 = vadd.f32 0.0, %v2640
    %2642 = vdwg.mxu0
    %2643 = vmatpush.msra.mxu0 %v2029
    %2644 = vmatpush.msra.mxu0 %v2025
    %2645 = vmatpush.msra.mxu0 %v2021
    %2646 = vmatpush.msra.mxu0 %v2017
    %2647 = vmatpush.msra.mxu0 %v2013
    %2648 = vmatpush.msra.mxu0 %v2009
    %2649 = vmatpush.msra.mxu0 %v2005
    %2650 = vmatpush.msra.mxu0 %v2001
    %2651 = vmatpush.msra.mxu0 %v1997
    %2652 = vmatpush.msra.mxu0 %v1993
    %2653 = vmatpush.msra.mxu0 %v1989
    %2654 = vmatpush.msra.mxu0 %v1985
    %2655 = vmatpush.msra.mxu0 %v1981
    %2656 = vmatpush.msra.mxu0 %v1977
    %2657 = vmatpush.msra.mxu0 %v1973
    %2658 = vmatpush.msra.mxu0 %v1969
    %2659 = vmatmul.f32.gmra.mxu0 %v2622
    %v2660 = vpop.f32.mrf.mxu0
    %v2661 = vadd.f32 0.0, %v2660
    %2662 = vdwg.mxu0
    %2663 = vmatpush.msra.mxu0 %v2030
    %2664 = vmatpush.msra.mxu0 %v2026
    %2665 = vmatpush.msra.mxu0 %v2022
    %2666 = vmatpush.msra.mxu0 %v2018
    %2667 = vmatpush.msra.mxu0 %v2014
    %2668 = vmatpush.msra.mxu0 %v2010
    %2669 = vmatpush.msra.mxu0 %v2006
    %2670 = vmatpush.msra.mxu0 %v2002
    %2671 = vmatpush.msra.mxu0 %v1998
    %2672 = vmatpush.msra.mxu0 %v1994
    %2673 = vmatpush.msra.mxu0 %v1990
    %2674 = vmatpush.msra.mxu0 %v1986
    %2675 = vmatpush.msra.mxu0 %v1982
    %2676 = vmatpush.msra.mxu0 %v1978
    %2677 = vmatpush.msra.mxu0 %v1974
    %2678 = vmatpush.msra.mxu0 %v1970
    %2679 = vmatmul.f32.gmra.mxu0 %v2622
    %v2680 = vpop.f32.mrf.mxu0
    %v2681 = vadd.f32 0.0, %v2680
    %2682 = vdwg.mxu0
    %2683 = vmatpush.msra.mxu0 %v2031
    %2684 = vmatpush.msra.mxu0 %v2027
    %2685 = vmatpush.msra.mxu0 %v2023
    %2686 = vmatpush.msra.mxu0 %v2019
    %2687 = vmatpush.msra.mxu0 %v2015
    %2688 = vmatpush.msra.mxu0 %v2011
    %2689 = vmatpush.msra.mxu0 %v2007
    %2690 = vmatpush.msra.mxu0 %v2003
    %2691 = vmatpush.msra.mxu0 %v1999
    %2692 = vmatpush.msra.mxu0 %v1995
    %2693 = vmatpush.msra.mxu0 %v1991
    %2694 = vmatpush.msra.mxu0 %v1987
    %2695 = vmatpush.msra.mxu0 %v1983
    %2696 = vmatpush.msra.mxu0 %v1979
    %2697 = vmatpush.msra.mxu0 %v1975
    %2698 = vmatpush.msra.mxu0 %v1971
    %2699 = vmatmul.f32.gmra.mxu0 %v2622
    %v2700 = vpop.f32.mrf.mxu0
    %v2701 = vadd.f32 0.0, %v2700
    %2702 = vdwg.mxu0
    %v2703 = vadd.f32 %v1829, %v2641
    %v2704 = vadd.f32 %v1870, %v2661
    %v2705 = vadd.f32 %v1911, %v2681
    %v2706 = vadd.f32 %v1952, %v2701
    %v2707 = vtanh.pop %v2703
    %v2708 = vtanh.pop %v2704
    %v2709 = vtanh.pop %v2705
    %v2710 = vtanh.pop %v2706
    %v2711 = vmul.f32 %v2707, 0.5
    %v2712 = vadd.f32 %v2711, 0.5
    %v2713 = vmul.f32 %v2708, 0.5
    %v2714 = vadd.f32 %v2713, 0.5
    %v2715 = vmul.f32 %v2710, 0.5
    %v2716 = vadd.f32 %v2715, 0.5
    %v2717 = vmul.f32 %v2714, %v2620
    %v2718 = vmul.f32 %v2712, %v2709
    %v2719 = vadd.f32 %v2717, %v2718
    %v2720 = vtanh.pop %v2719
    %v2721 = vmul.f32 %v2716, %v2720
    %2722 = vmatpush.msra.mxu0 %v2028
    %2723 = vmatpush.msra.mxu0 %v2024
    %2724 = vmatpush.msra.mxu0 %v2020
    %2725 = vmatpush.msra.mxu0 %v2016
    %2726 = vmatpush.msra.mxu0 %v2012
    %2727 = vmatpush.msra.mxu0 %v2008
    %2728 = vmatpush.msra.mxu0 %v2004
    %2729 = vmatpush.msra.mxu0 %v2000
    %2730 = vmatpush.msra.mxu0 %v1996
    %2731 = vmatpush.msra.mxu0 %v1992
    %2732 = vmatpush.msra.mxu0 %v1988
    %2733 = vmatpush.msra.mxu0 %v1984
    %2734 = vmatpush.msra.mxu0 %v1980
    %2735 = vmatpush.msra.mxu0 %v1976
    %2736 = vmatpush.msra.mxu0 %v1972
    %2737 = vmatpush.msra.mxu0 %v1968
    %2738 = vmatmul.f32.gmra.mxu0 %v2721
    %v2739 = vpop.f32.mrf.mxu0
    %v2740 = vadd.f32 0.0, %v2739
    %2741 = vdwg.mxu0
    %2742 = vmatpush.msra.mxu0 %v2029
    %2743 = vmatpush.msra.mxu0 %v2025
    %2744 = vmatpush.msra.mxu0 %v2021
    %2745 = vmatpush.msra.mxu0 %v2017
    %2746 = vmatpush.msra.mxu0 %v2013
    %2747 = vmatpush.msra.mxu0 %v2009
    %2748 = vmatpush.msra.mxu0 %v2005
    %2749 = vmatpush.msra.mxu0 %v2001
    %2750 = vmatpush.msra.mxu0 %v1997
    %2751 = vmatpush.msra.mxu0 %v1993
    %2752 = vmatpush.msra.mxu0 %v1989
    %2753 = vmatpush.msra.mxu0 %v1985
    %2754 = vmatpush.msra.mxu0 %v1981
    %2755 = vmatpush.msra.mxu0 %v1977
    %2756 = vmatpush.msra.mxu0 %v1973
    %2757 = vmatpush.msra.mxu0 %v1969
    %2758 = vmatmul.f32.gmra.mxu0 %v2721
    %v2759 = vpop.f32.mrf.mxu0
    %v2760 = vadd.f32 0.0, %v2759
    %2761 = vdwg.mxu0
    %2762 = vmatpush.msra.mxu0 %v2030
    %2763 = vmatpush.msra.mxu0 %v2026
    %2764 = vmatpush.msra.mxu0 %v2022
    %2765 = vmatpush.msra.mxu0 %v2018
    %2766 = vmatpush.msra.mxu0 %v2014
    %2767 = vmatpush.msra.mxu0 %v2010
    %2768 = vmatpush.msra.mxu0 %v2006
    %2769 = vmatpush.msra.mxu0 %v2002
    %2770 = vmatpush.msra.mxu0 %v1998
    %2771 = vmatpush.msra.mxu0 %v1994
    %2772 = vmatpush.msra.mxu0 %v1990
    %2773 = vmatpush.msra.mxu0 %v1986
    %2774 = vmatpush.msra.mxu0 %v1982
    %2775 = vmatpush.msra.mxu0 %v1978
    %2776 = vmatpush.msra.mxu0 %v1974
    %2777 = vmatpush.msra.mxu0 %v1970
    %2778 = vmatmul.f32.gmra.mxu0 %v2721
    %v2779 = vpop.f32.mrf.mxu0
    %v2780 = vadd.f32 0.0, %v2779
    %2781 = vdwg.mxu0
    %2782 = vmatpush.msra.mxu0 %v2031
    %2783 = vmatpush.msra.mxu0 %v2027
    %2784 = vmatpush.msra.mxu0 %v2023
    %2785 = vmatpush.msra.mxu0 %v2019
    %2786 = vmatpush.msra.mxu0 %v2015
    %2787 = vmatpush.msra.mxu0 %v2011
    %2788 = vmatpush.msra.mxu0 %v2007
    %2789 = vmatpush.msra.mxu0 %v2003
    %2790 = vmatpush.msra.mxu0 %v1999
    %2791 = vmatpush.msra.mxu0 %v1995
    %2792 = vmatpush.msra.mxu0 %v1991
    %2793 = vmatpush.msra.mxu0 %v1987
    %2794 = vmatpush.msra.mxu0 %v1983
    %2795 = vmatpush.msra.mxu0 %v1979
    %2796 = vmatpush.msra.mxu0 %v1975
    %2797 = vmatpush.msra.mxu0 %v1971
    %2798 = vmatmul.f32.gmra.mxu0 %v2721
    %v2799 = vpop.f32.mrf.mxu0
    %v2800 = vadd.f32 0.0, %v2799
    %2801 = vdwg.mxu0
    %v2802 = vadd.f32 %v1832, %v2740
    %v2803 = vadd.f32 %v1873, %v2760
    %v2804 = vadd.f32 %v1914, %v2780
    %v2805 = vadd.f32 %v1955, %v2800
    %v2806 = vtanh.pop %v2802
    %v2807 = vtanh.pop %v2803
    %v2808 = vtanh.pop %v2804
    %v2809 = vtanh.pop %v2805
    %v2810 = vmul.f32 %v2806, 0.5
    %v2811 = vadd.f32 %v2810, 0.5
    %v2812 = vmul.f32 %v2807, 0.5
    %v2813 = vadd.f32 %v2812, 0.5
    %v2814 = vmul.f32 %v2809, 0.5
    %v2815 = vadd.f32 %v2814, 0.5
    %v2816 = vmul.f32 %v2813, %v2719
    %v2817 = vmul.f32 %v2811, %v2808
    %v2818 = vadd.f32 %v2816, %v2817
    %v2819 = vtanh.pop %v2818
    %v2820 = vmul.f32 %v2815, %v2819
    %2821 = vmatpush.msra.mxu0 %v2028
    %2822 = vmatpush.msra.mxu0 %v2024
    %2823 = vmatpush.msra.mxu0 %v2020
    %2824 = vmatpush.msra.mxu0 %v2016
    %2825 = vmatpush.msra.mxu0 %v2012
    %2826 = vmatpush.msra.mxu0 %v2008
    %2827 = vmatpush.msra.mxu0 %v2004
    %2828 = vmatpush.msra.mxu0 %v2000
    %2829 = vmatpush.msra.mxu0 %v1996
    %2830 = vmatpush.msra.mxu0 %v1992
    %2831 = vmatpush.msra.mxu0 %v1988
    %2832 = vmatpush.msra.mxu0 %v1984
    %2833 = vmatpush.msra.mxu0 %v1980
    %2834 = vmatpush.msra.mxu0 %v1976
    %2835 = vmatpush.msra.mxu0 %v1972
    %2836 = vmatpush.msra.mxu0 %v1968
    %2837 = vmatmul.f32.gmra.mxu0 %v2820
    %v2838 = vpop.f32.mrf.mxu0
    %v2839 = vadd.f32 0.0, %v2838
    %2840 = vdwg.mxu0
    %2841 = vmatpush.msra.mxu0 %v2029
    %2842 = vmatpush.msra.mxu0 %v2025
    %2843 = vmatpush.msra.mxu0 %v2021
    %2844 = vmatpush.msra.mxu0 %v2017
    %2845 = vmatpush.msra.mxu0 %v2013
    %2846 = vmatpush.msra.mxu0 %v2009
    %2847 = vmatpush.msra.mxu0 %v2005
    %2848 = vmatpush.msra.mxu0 %v2001
    %2849 = vmatpush.msra.mxu0 %v1997
    %2850 = vmatpush.msra.mxu0 %v1993
    %2851 = vmatpush.msra.mxu0 %v1989
    %2852 = vmatpush.msra.mxu0 %v1985
    %2853 = vmatpush.msra.mxu0 %v1981
    %2854 = vmatpush.msra.mxu0 %v1977
    %2855 = vmatpush.msra.mxu0 %v1973
    %2856 = vmatpush.msra.mxu0 %v1969
    %2857 = vmatmul.f32.gmra.mxu0 %v2820
    %v2858 = vpop.f32.mrf.mxu0
    %v2859 = vadd.f32 0.0, %v2858
    %2860 = vdwg.mxu0
    %2861 = vmatpush.msra.mxu0 %v2030
    %2862 = vmatpush.msra.mxu0 %v2026
    %2863 = vmatpush.msra.mxu0 %v2022
    %2864 = vmatpush.msra.mxu0 %v2018
    %2865 = vmatpush.msra.mxu0 %v2014
    %2866 = vmatpush.msra.mxu0 %v2010
    %2867 = vmatpush.msra.mxu0 %v2006
    %2868 = vmatpush.msra.mxu0 %v2002
    %2869 = vmatpush.msra.mxu0 %v1998
    %2870 = vmatpush.msra.mxu0 %v1994
    %2871 = vmatpush.msra.mxu0 %v1990
    %2872 = vmatpush.msra.mxu0 %v1986
    %2873 = vmatpush.msra.mxu0 %v1982
    %2874 = vmatpush.msra.mxu0 %v1978
    %2875 = vmatpush.msra.mxu0 %v1974
    %2876 = vmatpush.msra.mxu0 %v1970
    %2877 = vmatmul.f32.gmra.mxu0 %v2820
    %v2878 = vpop.f32.mrf.mxu0
    %v2879 = vadd.f32 0.0, %v2878
    %2880 = vdwg.mxu0
    %2881 = vmatpush.msra.mxu0 %v2031
    %2882 = vmatpush.msra.mxu0 %v2027
    %2883 = vmatpush.msra.mxu0 %v2023
    %2884 = vmatpush.msra.mxu0 %v2019
    %2885 = vmatpush.msra.mxu0 %v2015
    %2886 = vmatpush.msra.mxu0 %v2011
    %2887 = vmatpush.msra.mxu0 %v2007
    %2888 = vmatpush.msra.mxu0 %v2003
    %2889 = vmatpush.msra.mxu0 %v1999
    %2890 = vmatpush.msra.mxu0 %v1995
    %2891 = vmatpush.msra.mxu0 %v1991
    %2892 = vmatpush.msra.mxu0 %v1987
    %2893 = vmatpush.msra.mxu0 %v1983
    %2894 = vmatpush.msra.mxu0 %v1979
    %2895 = vmatpush.msra.mxu0 %v1975
    %2896 = vmatpush.msra.mxu0 %v1971
    %2897 = vmatmul.f32.gmra.mxu0 %v2820
    %v2898 = vpop.f32.mrf.mxu0
    %v2899 = vadd.f32 0.0, %v2898
    %2900 = vdwg.mxu0
    %v2901 = vadd.f32 %v1835, %v2839
    %v2902 = vadd.f32 %v1876, %v2859
    %v2903 = vadd.f32 %v1917, %v2879
    %v2904 = vadd.f32 %v1958, %v2899
    %v2905 = vtanh.pop %v2901
    %v2906 = vtanh.pop %v2902
    %v2907 = vtanh.pop %v2903
    %v2908 = vtanh.pop %v2904
    %v2909 = vmul.f32 %v2905, 0.5
    %v2910 = vadd.f32 %v2909, 0.5
    %v2911 = vmul.f32 %v2906, 0.5
    %v2912 = vadd.f32 %v2911, 0.5
    %v2913 = vmul.f32 %v2908, 0.5
    %v2914 = vadd.f32 %v2913, 0.5
    %v2915 = vmul.f32 %v2912, %v2818
    %v2916 = vmul.f32 %v2910, %v2907
    %v2917 = vadd.f32 %v2915, %v2916
    %v2918 = vtanh.pop %v2917
    %v2919 = vmul.f32 %v2914, %v2918
    %2920 = vmatpush.msra.mxu0 %v2028
    %2921 = vmatpush.msra.mxu0 %v2024
    %2922 = vmatpush.msra.mxu0 %v2020
    %2923 = vmatpush.msra.mxu0 %v2016
    %2924 = vmatpush.msra.mxu0 %v2012
    %2925 = vmatpush.msra.mxu0 %v2008
    %2926 = vmatpush.msra.mxu0 %v2004
    %2927 = vmatpush.msra.mxu0 %v2000
    %2928 = vmatpush.msra.mxu0 %v1996
    %2929 = vmatpush.msra.mxu0 %v1992
    %2930 = vmatpush.msra.mxu0 %v1988
    %2931 = vmatpush.msra.mxu0 %v1984
    %2932 = vmatpush.msra.mxu0 %v1980
    %2933 = vmatpush.msra.mxu0 %v1976
    %2934 = vmatpush.msra.mxu0 %v1972
    %2935 = vmatpush.msra.mxu0 %v1968
    %2936 = vmatmul.f32.gmra.mxu0 %v2919
    %v2937 = vpop.f32.mrf.mxu0
    %v2938 = vadd.f32 0.0, %v2937
    %2939 = vdwg.mxu0
    %2940 = vmatpush.msra.mxu0 %v2029
    %2941 = vmatpush.msra.mxu0 %v2025
    %2942 = vmatpush.msra.mxu0 %v2021
    %2943 = vmatpush.msra.mxu0 %v2017
    %2944 = vmatpush.msra.mxu0 %v2013
    %2945 = vmatpush.msra.mxu0 %v2009
    %2946 = vmatpush.msra.mxu0 %v2005
    %2947 = vmatpush.msra.mxu0 %v2001
    %2948 = vmatpush.msra.mxu0 %v1997
    %2949 = vmatpush.msra.mxu0 %v1993
    %2950 = vmatpush.msra.mxu0 %v1989
    %2951 = vmatpush.msra.mxu0 %v1985
    %2952 = vmatpush.msra.mxu0 %v1981
    %2953 = vmatpush.msra.mxu0 %v1977
    %2954 = vmatpush.msra.mxu0 %v1973
    %2955 = vmatpush.msra.mxu0 %v1969
    %2956 = vmatmul.f32.gmra.mxu0 %v2919
    %v2957 = vpop.f32.mrf.mxu0
    %v2958 = vadd.f32 0.0, %v2957
    %2959 = vdwg.mxu0
    %2960 = vmatpush.msra.mxu0 %v2030
    %2961 = vmatpush.msra.mxu0 %v2026
    %2962 = vmatpush.msra.mxu0 %v2022
    %2963 = vmatpush.msra.mxu0 %v2018
    %2964 = vmatpush.msra.mxu0 %v2014
    %2965 = vmatpush.msra.mxu0 %v2010
    %2966 = vmatpush.msra.mxu0 %v2006
    %2967 = vmatpush.msra.mxu0 %v2002
    %2968 = vmatpush.msra.mxu0 %v1998
    %2969 = vmatpush.msra.mxu0 %v1994
    %2970 = vmatpush.msra.mxu0 %v1990
    %2971 = vmatpush.msra.mxu0 %v1986
    %2972 = vmatpush.msra.mxu0 %v1982
    %2973 = vmatpush.msra.mxu0 %v1978
    %2974 = vmatpush.msra.mxu0 %v1974
    %2975 = vmatpush.msra.mxu0 %v1970
    %2976 = vmatmul.f32.gmra.mxu0 %v2919
    %v2977 = vpop.f32.mrf.mxu0
    %v2978 = vadd.f32 0.0, %v2977
    %2979 = vdwg.mxu0
    %2980 = vmatpush.msra.mxu0 %v2031
    %2981 = vmatpush.msra.mxu0 %v2027
    %2982 = vmatpush.msra.mxu0 %v2023
    %2983 = vmatpush.msra.mxu0 %v2019
    %2984 = vmatpush.msra.mxu0 %v2015
    %2985 = vmatpush.msra.mxu0 %v2011
    %2986 = vmatpush.msra.mxu0 %v2007
    %2987 = vmatpush.msra.mxu0 %v2003
    %2988 = vmatpush.msra.mxu0 %v1999
    %2989 = vmatpush.msra.mxu0 %v1995
    %2990 = vmatpush.msra.mxu0 %v1991
    %2991 = vmatpush.msra.mxu0 %v1987
    %2992 = vmatpush.msra.mxu0 %v1983
    %2993 = vmatpush.msra.mxu0 %v1979
    %2994 = vmatpush.msra.mxu0 %v1975
    %2995 = vmatpush.msra.mxu0 %v1971
    %2996 = vmatmul.f32.gmra.mxu0 %v2919
    %v2997 = vpop.f32.mrf.mxu0
    %v2998 = vadd.f32 0.0, %v2997
    %2999 = vdwg.mxu0
    %v3000 = vadd.f32 %v1838, %v2938
    %v3001 = vadd.f32 %v1879, %v2958
    %v3002 = vadd.f32 %v1920, %v2978
    %v3003 = vadd.f32 %v1961, %v2998
    %v3004 = vtanh.pop %v3000
    %v3005 = vtanh.pop %v3001
    %v3006 = vtanh.pop %v3002
    %v3007 = vtanh.pop %v3003
    %v3008 = vmul.f32 %v3004, 0.5
    %v3009 = vadd.f32 %v3008, 0.5
    %v3010 = vmul.f32 %v3005, 0.5
    %v3011 = vadd.f32 %v3010, 0.5
    %v3012 = vmul.f32 %v3007, 0.5
    %v3013 = vadd.f32 %v3012, 0.5
    %v3014 = vmul.f32 %v3011, %v2917
    %v3015 = vmul.f32 %v3009, %v3006
    %v3016 = vadd.f32 %v3014, %v3015
    %v3017 = vtanh.pop %v3016
    %v3018 = vmul.f32 %v3013, %v3017
    %3019 = vmatpush.msra.mxu0 %v2028
    %3020 = vmatpush.msra.mxu0 %v2024
    %3021 = vmatpush.msra.mxu0 %v2020
    %3022 = vmatpush.msra.mxu0 %v2016
    %3023 = vmatpush.msra.mxu0 %v2012
    %3024 = vmatpush.msra.mxu0 %v2008
    %3025 = vmatpush.msra.mxu0 %v2004
    %3026 = vmatpush.msra.mxu0 %v2000
    %3027 = vmatpush.msra.mxu0 %v1996
    %3028 = vmatpush.msra.mxu0 %v1992
    %3029 = vmatpush.msra.mxu0 %v1988
    %3030 = vmatpush.msra.mxu0 %v1984
    %3031 = vmatpush.msra.mxu0 %v1980
    %3032 = vmatpush.msra.mxu0 %v1976
    %3033 = vmatpush.msra.mxu0 %v1972
    %3034 = vmatpush.msra.mxu0 %v1968
    %3035 = vmatmul.f32.gmra.mxu0 %v3018
    %v3036 = vpop.f32.mrf.mxu0
    %v3037 = vadd.f32 0.0, %v3036
    %3038 = vdwg.mxu0
    %3039 = vmatpush.msra.mxu0 %v2029
    %3040 = vmatpush.msra.mxu0 %v2025
    %3041 = vmatpush.msra.mxu0 %v2021
    %3042 = vmatpush.msra.mxu0 %v2017
    %3043 = vmatpush.msra.mxu0 %v2013
    %3044 = vmatpush.msra.mxu0 %v2009
    %3045 = vmatpush.msra.mxu0 %v2005
    %3046 = vmatpush.msra.mxu0 %v2001
    %3047 = vmatpush.msra.mxu0 %v1997
    %3048 = vmatpush.msra.mxu0 %v1993
    %3049 = vmatpush.msra.mxu0 %v1989
    %3050 = vmatpush.msra.mxu0 %v1985
    %3051 = vmatpush.msra.mxu0 %v1981
    %3052 = vmatpush.msra.mxu0 %v1977
    %3053 = vmatpush.msra.mxu0 %v1973
    %3054 = vmatpush.msra.mxu0 %v1969
    %3055 = vmatmul.f32.gmra.mxu0 %v3018
    %v3056 = vpop.f32.mrf.mxu0
    %v3057 = vadd.f32 0.0, %v3056
    %3058 = vdwg.mxu0
    %3059 = vmatpush.msra.mxu0 %v2030
    %3060 = vmatpush.msra.mxu0 %v2026
    %3061 = vmatpush.msra.mxu0 %v2022
    %3062 = vmatpush.msra.mxu0 %v2018
    %3063 = vmatpush.msra.mxu0 %v2014
    %3064 = vmatpush.msra.mxu0 %v2010
    %3065 = vmatpush.msra.mxu0 %v2006
    %3066 = vmatpush.msra.mxu0 %v2002
    %3067 = vmatpush.msra.mxu0 %v1998
    %3068 = vmatpush.msra.mxu0 %v1994
    %3069 = vmatpush.msra.mxu0 %v1990
    %3070 = vmatpush.msra.mxu0 %v1986
    %3071 = vmatpush.msra.mxu0 %v1982
    %3072 = vmatpush.msra.mxu0 %v1978
    %3073 = vmatpush.msra.mxu0 %v1974
    %3074 = vmatpush.msra.mxu0 %v1970
    %3075 = vmatmul.f32.gmra.mxu0 %v3018
    %v3076 = vpop.f32.mrf.mxu0
    %v3077 = vadd.f32 0.0, %v3076
    %3078 = vdwg.mxu0
    %3079 = vmatpush.msra.mxu0 %v2031
    %3080 = vmatpush.msra.mxu0 %v2027
    %3081 = vmatpush.msra.mxu0 %v2023
    %3082 = vmatpush.msra.mxu0 %v2019
    %3083 = vmatpush.msra.mxu0 %v2015
    %3084 = vmatpush.msra.mxu0 %v2011
    %3085 = vmatpush.msra.mxu0 %v2007
    %3086 = vmatpush.msra.mxu0 %v2003
    %3087 = vmatpush.msra.mxu0 %v1999
    %3088 = vmatpush.msra.mxu0 %v1995
    %3089 = vmatpush.msra.mxu0 %v1991
    %3090 = vmatpush.msra.mxu0 %v1987
    %3091 = vmatpush.msra.mxu0 %v1983
    %3092 = vmatpush.msra.mxu0 %v1979
    %3093 = vmatpush.msra.mxu0 %v1975
    %3094 = vmatpush.msra.mxu0 %v1971
    %3095 = vmatmul.f32.gmra.mxu0 %v3018
    %v3096 = vpop.f32.mrf.mxu0
    %v3097 = vadd.f32 0.0, %v3096
    %3098 = vdwg.mxu0
    %v3099 = vadd.f32 %v1841, %v3037
    %v3100 = vadd.f32 %v1882, %v3057
    %v3101 = vadd.f32 %v1923, %v3077
    %v3102 = vadd.f32 %v1964, %v3097
    %v3103 = vtanh.pop %v3099
    %v3104 = vtanh.pop %v3100
    %v3105 = vtanh.pop %v3101
    %v3106 = vtanh.pop %v3102
    %v3107 = vmul.f32 %v3103, 0.5
    %v3108 = vadd.f32 %v3107, 0.5
    %v3109 = vmul.f32 %v3104, 0.5
    %v3110 = vadd.f32 %v3109, 0.5
    %v3111 = vmul.f32 %v3106, 0.5
    %v3112 = vadd.f32 %v3111, 0.5
    %v3113 = vmul.f32 %v3110, %v3016
    %v3114 = vmul.f32 %v3108, %v3105
    %v3115 = vadd.f32 %v3113, %v3114
    %v3116 = vtanh.pop %v3115
    %v3117 = vmul.f32 %v3112, %v3116
    %s3118 = scalar_lea.vmem [#allocation5], 8
    %3119 = vst [vmem:[%s3118] sm:$0xff] %v3117
    %s3120 = scalar_lea.vmem [#allocation7], 8
    %3121 = vst [vmem:[%s3120] sm:$0xff] %v3115
    %s3122 = sshll.u32 %s328, 4
    %3123 = dma.done [#allocation4], %s3122
    %v3124 = vld [vmem:[#allocation2] sm:$0xff]
    %v3125 = vld [vmem:[#allocation2 + $0x8] sm:$0xff]
    %v3126 = vld [vmem:[#allocation2 + $0x10] sm:$0xff]
    %v3127 = vld [vmem:[#allocation2 + $0x18] sm:$0xff]
    %v3128 = vld [vmem:[#allocation2 + $0x20] sm:$0xff]
    %v3129 = vld [vmem:[#allocation2 + $0x28] sm:$0xff]
    %v3130 = vld [vmem:[#allocation2 + $0x30] sm:$0xff]
    %v3131 = vld [vmem:[#allocation2 + $0x38] sm:$0xff]
    %v3132 = vld [vmem:[#allocation2 + $0x40] sm:$0xff]
    %v3133 = vld [vmem:[#allocation2 + $0x48] sm:$0xff]
    %v3134 = vld [vmem:[#allocation2 + $0x50] sm:$0xff]
    %v3135 = vld [vmem:[#allocation2 + $0x58] sm:$0xff]
    %v3136 = vld [vmem:[#allocation2 + $0x60] sm:$0xff]
    %v3137 = vld [vmem:[#allocation2 + $0x68] sm:$0xff]
    %v3138 = vld [vmem:[#allocation2 + $0x70] sm:$0xff]
    %v3139 = vld [vmem:[#allocation2 + $0x78] sm:$0xff]
    %v3140 = vld [vmem:[#allocation2 + $0x80] sm:$0xff]
    %v3141 = vld [vmem:[#allocation2 + $0x88] sm:$0xff]
    %v3142 = vld [vmem:[#allocation2 + $0x90] sm:$0xff]
    %v3143 = vld [vmem:[#allocation2 + $0x98] sm:$0xff]
    %v3144 = vld [vmem:[#allocation2 + $0xa0] sm:$0xff]
    %v3145 = vld [vmem:[#allocation2 + $0xa8] sm:$0xff]
    %v3146 = vld [vmem:[#allocation2 + $0xb0] sm:$0xff]
    %v3147 = vld [vmem:[#allocation2 + $0xb8] sm:$0xff]
    %v3148 = vld [vmem:[#allocation2 + $0xc0] sm:$0xff]
    %v3149 = vld [vmem:[#allocation2 + $0xc8] sm:$0xff]
    %v3150 = vld [vmem:[#allocation2 + $0xd0] sm:$0xff]
    %v3151 = vld [vmem:[#allocation2 + $0xd8] sm:$0xff]
    %v3152 = vld [vmem:[#allocation2 + $0xe0] sm:$0xff]
    %v3153 = vld [vmem:[#allocation2 + $0xe8] sm:$0xff]
    %v3154 = vld [vmem:[#allocation2 + $0xf0] sm:$0xff]
    %v3155 = vld [vmem:[#allocation2 + $0xf8] sm:$0xff]
    %v3156 = vld [vmem:[#allocation2 + $0x100] sm:$0xff]
    %v3157 = vld [vmem:[#allocation2 + $0x108] sm:$0xff]
    %v3158 = vld [vmem:[#allocation2 + $0x110] sm:$0xff]
    %v3159 = vld [vmem:[#allocation2 + $0x118] sm:$0xff]
    %v3160 = vld [vmem:[#allocation2 + $0x120] sm:$0xff]
    %v3161 = vld [vmem:[#allocation2 + $0x128] sm:$0xff]
    %v3162 = vld [vmem:[#allocation2 + $0x130] sm:$0xff]
    %v3163 = vld [vmem:[#allocation2 + $0x138] sm:$0xff]
    %v3164 = vld [vmem:[#allocation2 + $0x140] sm:$0xff]
    %v3165 = vld [vmem:[#allocation2 + $0x148] sm:$0xff]
    %v3166 = vld [vmem:[#allocation2 + $0x150] sm:$0xff]
    %v3167 = vld [vmem:[#allocation2 + $0x158] sm:$0xff]
    %v3168 = vld [vmem:[#allocation2 + $0x160] sm:$0xff]
    %v3169 = vld [vmem:[#allocation2 + $0x168] sm:$0xff]
    %v3170 = vld [vmem:[#allocation2 + $0x170] sm:$0xff]
    %v3171 = vld [vmem:[#allocation2 + $0x178] sm:$0xff]
    %v3172 = vld [vmem:[#allocation2 + $0x180] sm:$0xff]
    %v3173 = vld [vmem:[#allocation2 + $0x188] sm:$0xff]
    %v3174 = vld [vmem:[#allocation2 + $0x190] sm:$0xff]
    %v3175 = vld [vmem:[#allocation2 + $0x198] sm:$0xff]
    %v3176 = vld [vmem:[#allocation2 + $0x1a0] sm:$0xff]
    %v3177 = vld [vmem:[#allocation2 + $0x1a8] sm:$0xff]
    %v3178 = vld [vmem:[#allocation2 + $0x1b0] sm:$0xff]
    %v3179 = vld [vmem:[#allocation2 + $0x1b8] sm:$0xff]
    %v3180 = vld [vmem:[#allocation2 + $0x1c0] sm:$0xff]
    %v3181 = vld [vmem:[#allocation2 + $0x1c8] sm:$0xff]
    %v3182 = vld [vmem:[#allocation2 + $0x1d0] sm:$0xff]
    %v3183 = vld [vmem:[#allocation2 + $0x1d8] sm:$0xff]
    %v3184 = vld [vmem:[#allocation2 + $0x1e0] sm:$0xff]
    %v3185 = vld [vmem:[#allocation2 + $0x1e8] sm:$0xff]
    %v3186 = vld [vmem:[#allocation2 + $0x1f0] sm:$0xff]
    %v3187 = vld [vmem:[#allocation2 + $0x1f8] sm:$0xff]
    %s3188 = scalar_lea.vmem %s3, 8
    %v3189 = vld [vmem:[%s3188] sm:$0xf]
    %v3191 = vperm.slane %v3189, 0
    %v3192 = vperm.slane %v3189, 1
    %v3193 = vperm.slane %v3189, 2
    %v3194 = vperm.slane %v3189, 3
    %3199 = vmatpush.msra.mxu0 %v3184
    %3200 = vmatpush.msra.mxu0 %v3180
    %3201 = vmatpush.msra.mxu0 %v3176
    %3202 = vmatpush.msra.mxu0 %v3172
    %3203 = vmatpush.msra.mxu0 %v3168
    %3204 = vmatpush.msra.mxu0 %v3164
    %3205 = vmatpush.msra.mxu0 %v3160
    %3206 = vmatpush.msra.mxu0 %v3156
    %3207 = vmatpush.msra.mxu0 %v3152
    %3208 = vmatpush.msra.mxu0 %v3148
    %3209 = vmatpush.msra.mxu0 %v3144
    %3210 = vmatpush.msra.mxu0 %v3140
    %3211 = vmatpush.msra.mxu0 %v3136
    %3212 = vmatpush.msra.mxu0 %v3132
    %3213 = vmatpush.msra.mxu0 %v3128
    %3214 = vmatpush.msra.mxu0 %v3124
    %3215 = vmatmul.f32.gmra.mxu0 %v2424
    %v3216 = vpop.f32.mrf.mxu0
    %v3217 = vadd.f32 %v3191, %v3216
    %3218 = vmatmul.f32.gmra.mxu0 %v2523
    %v3219 = vpop.f32.mrf.mxu0
    %v3220 = vadd.f32 %v3191, %v3219
    %3221 = vmatmul.f32.gmra.mxu0 %v2622
    %v3222 = vpop.f32.mrf.mxu0
    %v3223 = vadd.f32 %v3191, %v3222
    %3224 = vmatmul.f32.gmra.mxu0 %v2721
    %v3225 = vpop.f32.mrf.mxu0
    %v3226 = vadd.f32 %v3191, %v3225
    %3227 = vmatmul.f32.gmra.mxu0 %v2820
    %v3228 = vpop.f32.mrf.mxu0
    %v3229 = vadd.f32 %v3191, %v3228
    %3230 = vmatmul.f32.gmra.mxu0 %v2919
    %v3231 = vpop.f32.mrf.mxu0
    %v3232 = vadd.f32 %v3191, %v3231
    %3233 = vmatmul.f32.gmra.mxu0 %v3018
    %v3234 = vpop.f32.mrf.mxu0
    %v3235 = vadd.f32 %v3191, %v3234
    %3236 = vmatmul.f32.gmra.mxu0 %v3117
    %v3237 = vpop.f32.mrf.mxu0
    %v3238 = vadd.f32 %v3191, %v3237
    %3239 = vdwg.mxu0
    %3240 = vmatpush.msra.mxu0 %v3185
    %3241 = vmatpush.msra.mxu0 %v3181
    %3242 = vmatpush.msra.mxu0 %v3177
    %3243 = vmatpush.msra.mxu0 %v3173
    %3244 = vmatpush.msra.mxu0 %v3169
    %3245 = vmatpush.msra.mxu0 %v3165
    %3246 = vmatpush.msra.mxu0 %v3161
    %3247 = vmatpush.msra.mxu0 %v3157
    %3248 = vmatpush.msra.mxu0 %v3153
    %3249 = vmatpush.msra.mxu0 %v3149
    %3250 = vmatpush.msra.mxu0 %v3145
    %3251 = vmatpush.msra.mxu0 %v3141
    %3252 = vmatpush.msra.mxu0 %v3137
    %3253 = vmatpush.msra.mxu0 %v3133
    %3254 = vmatpush.msra.mxu0 %v3129
    %3255 = vmatpush.msra.mxu0 %v3125
    %3256 = vmatmul.f32.gmra.mxu0 %v2424
    %v3257 = vpop.f32.mrf.mxu0
    %v3258 = vadd.f32 %v3192, %v3257
    %3259 = vmatmul.f32.gmra.mxu0 %v2523
    %v3260 = vpop.f32.mrf.mxu0
    %v3261 = vadd.f32 %v3192, %v3260
    %3262 = vmatmul.f32.gmra.mxu0 %v2622
    %v3263 = vpop.f32.mrf.mxu0
    %v3264 = vadd.f32 %v3192, %v3263
    %3265 = vmatmul.f32.gmra.mxu0 %v2721
    %v3266 = vpop.f32.mrf.mxu0
    %v3267 = vadd.f32 %v3192, %v3266
    %3268 = vmatmul.f32.gmra.mxu0 %v2820
    %v3269 = vpop.f32.mrf.mxu0
    %v3270 = vadd.f32 %v3192, %v3269
    %3271 = vmatmul.f32.gmra.mxu0 %v2919
    %v3272 = vpop.f32.mrf.mxu0
    %v3273 = vadd.f32 %v3192, %v3272
    %3274 = vmatmul.f32.gmra.mxu0 %v3018
    %v3275 = vpop.f32.mrf.mxu0
    %v3276 = vadd.f32 %v3192, %v3275
    %3277 = vmatmul.f32.gmra.mxu0 %v3117
    %v3278 = vpop.f32.mrf.mxu0
    %v3279 = vadd.f32 %v3192, %v3278
    %3280 = vdwg.mxu0
    %3281 = vmatpush.msra.mxu0 %v3186
    %3282 = vmatpush.msra.mxu0 %v3182
    %3283 = vmatpush.msra.mxu0 %v3178
    %3284 = vmatpush.msra.mxu0 %v3174
    %3285 = vmatpush.msra.mxu0 %v3170
    %3286 = vmatpush.msra.mxu0 %v3166
    %3287 = vmatpush.msra.mxu0 %v3162
    %3288 = vmatpush.msra.mxu0 %v3158
    %3289 = vmatpush.msra.mxu0 %v3154
    %3290 = vmatpush.msra.mxu0 %v3150
    %3291 = vmatpush.msra.mxu0 %v3146
    %3292 = vmatpush.msra.mxu0 %v3142
    %3293 = vmatpush.msra.mxu0 %v3138
    %3294 = vmatpush.msra.mxu0 %v3134
    %3295 = vmatpush.msra.mxu0 %v3130
    %3296 = vmatpush.msra.mxu0 %v3126
    %3297 = vmatmul.f32.gmra.mxu0 %v2424
    %v3298 = vpop.f32.mrf.mxu0
    %v3299 = vadd.f32 %v3193, %v3298
    %3300 = vmatmul.f32.gmra.mxu0 %v2523
    %v3301 = vpop.f32.mrf.mxu0
    %v3302 = vadd.f32 %v3193, %v3301
    %3303 = vmatmul.f32.gmra.mxu0 %v2622
    %v3304 = vpop.f32.mrf.mxu0
    %v3305 = vadd.f32 %v3193, %v3304
    %3306 = vmatmul.f32.gmra.mxu0 %v2721
    %v3307 = vpop.f32.mrf.mxu0
    %v3308 = vadd.f32 %v3193, %v3307
    %3309 = vmatmul.f32.gmra.mxu0 %v2820
    %v3310 = vpop.f32.mrf.mxu0
    %v3311 = vadd.f32 %v3193, %v3310
    %3312 = vmatmul.f32.gmra.mxu0 %v2919
    %v3313 = vpop.f32.mrf.mxu0
    %v3314 = vadd.f32 %v3193, %v3313
    %3315 = vmatmul.f32.gmra.mxu0 %v3018
    %v3316 = vpop.f32.mrf.mxu0
    %v3317 = vadd.f32 %v3193, %v3316
    %3318 = vmatmul.f32.gmra.mxu0 %v3117
    %v3319 = vpop.f32.mrf.mxu0
    %v3320 = vadd.f32 %v3193, %v3319
    %3321 = vdwg.mxu0
    %3322 = vmatpush.msra.mxu0 %v3187
    %3323 = vmatpush.msra.mxu0 %v3183
    %3324 = vmatpush.msra.mxu0 %v3179
    %3325 = vmatpush.msra.mxu0 %v3175
    %3326 = vmatpush.msra.mxu0 %v3171
    %3327 = vmatpush.msra.mxu0 %v3167
    %3328 = vmatpush.msra.mxu0 %v3163
    %3329 = vmatpush.msra.mxu0 %v3159
    %3330 = vmatpush.msra.mxu0 %v3155
    %3331 = vmatpush.msra.mxu0 %v3151
    %3332 = vmatpush.msra.mxu0 %v3147
    %3333 = vmatpush.msra.mxu0 %v3143
    %3334 = vmatpush.msra.mxu0 %v3139
    %3335 = vmatpush.msra.mxu0 %v3135
    %3336 = vmatpush.msra.mxu0 %v3131
    %3337 = vmatpush.msra.mxu0 %v3127
    %3338 = vmatmul.f32.gmra.mxu0 %v2424
    %v3339 = vpop.f32.mrf.mxu0
    %v3340 = vadd.f32 %v3194, %v3339
    %3341 = vmatmul.f32.gmra.mxu0 %v2523
    %v3342 = vpop.f32.mrf.mxu0
    %v3343 = vadd.f32 %v3194, %v3342
    %3344 = vmatmul.f32.gmra.mxu0 %v2622
    %v3345 = vpop.f32.mrf.mxu0
    %v3346 = vadd.f32 %v3194, %v3345
    %3347 = vmatmul.f32.gmra.mxu0 %v2721
    %v3348 = vpop.f32.mrf.mxu0
    %v3349 = vadd.f32 %v3194, %v3348
    %3350 = vmatmul.f32.gmra.mxu0 %v2820
    %v3351 = vpop.f32.mrf.mxu0
    %v3352 = vadd.f32 %v3194, %v3351
    %3353 = vmatmul.f32.gmra.mxu0 %v2919
    %v3354 = vpop.f32.mrf.mxu0
    %v3355 = vadd.f32 %v3194, %v3354
    %3356 = vmatmul.f32.gmra.mxu0 %v3018
    %v3357 = vpop.f32.mrf.mxu0
    %v3358 = vadd.f32 %v3194, %v3357
    %3359 = vmatmul.f32.gmra.mxu0 %v3117
    %v3360 = vpop.f32.mrf.mxu0
    %v3361 = vadd.f32 %v3194, %v3360
    %3362 = vdwg.mxu0
    %s3363 = sshll.u32 %s328, 4
    %3364 = dma.done %s174, %s3363
    %v3365 = vld [vmem:[#allocation3] sm:$0xff]
    %v3366 = vld [vmem:[#allocation3 + $0x8] sm:$0xff]
    %v3367 = vld [vmem:[#allocation3 + $0x10] sm:$0xff]
    %v3368 = vld [vmem:[#allocation3 + $0x18] sm:$0xff]
    %v3369 = vld [vmem:[#allocation3 + $0x20] sm:$0xff]
    %v3370 = vld [vmem:[#allocation3 + $0x28] sm:$0xff]
    %v3371 = vld [vmem:[#allocation3 + $0x30] sm:$0xff]
    %v3372 = vld [vmem:[#allocation3 + $0x38] sm:$0xff]
    %v3373 = vld [vmem:[#allocation3 + $0x40] sm:$0xff]
    %v3374 = vld [vmem:[#allocation3 + $0x48] sm:$0xff]
    %v3375 = vld [vmem:[#allocation3 + $0x50] sm:$0xff]
    %v3376 = vld [vmem:[#allocation3 + $0x58] sm:$0xff]
    %v3377 = vld [vmem:[#allocation3 + $0x60] sm:$0xff]
    %v3378 = vld [vmem:[#allocation3 + $0x68] sm:$0xff]
    %v3379 = vld [vmem:[#allocation3 + $0x70] sm:$0xff]
    %v3380 = vld [vmem:[#allocation3 + $0x78] sm:$0xff]
    %v3381 = vld [vmem:[#allocation3 + $0x80] sm:$0xff]
    %v3382 = vld [vmem:[#allocation3 + $0x88] sm:$0xff]
    %v3383 = vld [vmem:[#allocation3 + $0x90] sm:$0xff]
    %v3384 = vld [vmem:[#allocation3 + $0x98] sm:$0xff]
    %v3385 = vld [vmem:[#allocation3 + $0xa0] sm:$0xff]
    %v3386 = vld [vmem:[#allocation3 + $0xa8] sm:$0xff]
    %v3387 = vld [vmem:[#allocation3 + $0xb0] sm:$0xff]
    %v3388 = vld [vmem:[#allocation3 + $0xb8] sm:$0xff]
    %v3389 = vld [vmem:[#allocation3 + $0xc0] sm:$0xff]
    %v3390 = vld [vmem:[#allocation3 + $0xc8] sm:$0xff]
    %v3391 = vld [vmem:[#allocation3 + $0xd0] sm:$0xff]
    %v3392 = vld [vmem:[#allocation3 + $0xd8] sm:$0xff]
    %v3393 = vld [vmem:[#allocation3 + $0xe0] sm:$0xff]
    %v3394 = vld [vmem:[#allocation3 + $0xe8] sm:$0xff]
    %v3395 = vld [vmem:[#allocation3 + $0xf0] sm:$0xff]
    %v3396 = vld [vmem:[#allocation3 + $0xf8] sm:$0xff]
    %v3397 = vld [vmem:[#allocation3 + $0x100] sm:$0xff]
    %v3398 = vld [vmem:[#allocation3 + $0x108] sm:$0xff]
    %v3399 = vld [vmem:[#allocation3 + $0x110] sm:$0xff]
    %v3400 = vld [vmem:[#allocation3 + $0x118] sm:$0xff]
    %v3401 = vld [vmem:[#allocation3 + $0x120] sm:$0xff]
    %v3402 = vld [vmem:[#allocation3 + $0x128] sm:$0xff]
    %v3403 = vld [vmem:[#allocation3 + $0x130] sm:$0xff]
    %v3404 = vld [vmem:[#allocation3 + $0x138] sm:$0xff]
    %v3405 = vld [vmem:[#allocation3 + $0x140] sm:$0xff]
    %v3406 = vld [vmem:[#allocation3 + $0x148] sm:$0xff]
    %v3407 = vld [vmem:[#allocation3 + $0x150] sm:$0xff]
    %v3408 = vld [vmem:[#allocation3 + $0x158] sm:$0xff]
    %v3409 = vld [vmem:[#allocation3 + $0x160] sm:$0xff]
    %v3410 = vld [vmem:[#allocation3 + $0x168] sm:$0xff]
    %v3411 = vld [vmem:[#allocation3 + $0x170] sm:$0xff]
    %v3412 = vld [vmem:[#allocation3 + $0x178] sm:$0xff]
    %v3413 = vld [vmem:[#allocation3 + $0x180] sm:$0xff]
    %v3414 = vld [vmem:[#allocation3 + $0x188] sm:$0xff]
    %v3415 = vld [vmem:[#allocation3 + $0x190] sm:$0xff]
    %v3416 = vld [vmem:[#allocation3 + $0x198] sm:$0xff]
    %v3417 = vld [vmem:[#allocation3 + $0x1a0] sm:$0xff]
    %v3418 = vld [vmem:[#allocation3 + $0x1a8] sm:$0xff]
    %v3419 = vld [vmem:[#allocation3 + $0x1b0] sm:$0xff]
    %v3420 = vld [vmem:[#allocation3 + $0x1b8] sm:$0xff]
    %v3421 = vld [vmem:[#allocation3 + $0x1c0] sm:$0xff]
    %v3422 = vld [vmem:[#allocation3 + $0x1c8] sm:$0xff]
    %v3423 = vld [vmem:[#allocation3 + $0x1d0] sm:$0xff]
    %v3424 = vld [vmem:[#allocation3 + $0x1d8] sm:$0xff]
    %v3425 = vld [vmem:[#allocation3 + $0x1e0] sm:$0xff]
    %v3426 = vld [vmem:[#allocation3 + $0x1e8] sm:$0xff]
    %v3427 = vld [vmem:[#allocation3 + $0x1f0] sm:$0xff]
    %v3428 = vld [vmem:[#allocation3 + $0x1f8] sm:$0xff]
    %s3429 = scalar_lea.vmem %s6, 1536
    // Predicated region
    $region140: #{mv_lstm_forward.1} parent=1 // pred_check
      _
    $region141: #{mv_lstm_forward.1} parent=1 // pred_check_branch
      %3431 = sbr.rel (0) target = $region143
    $region142: #{mv_lstm_forward.1} parent=1 // pred_region
      loop: start=0, step=1, limit=1
      $region144: #{mv_lstm_forward.1} parent=142 // loop_pre_header
        _
      $region145: #{mv_lstm_forward.1} parent=142 // loop_header
        %s3433 = sphi 0, %s3437
        %p3434 = scmp.ge.s32.totalorder %s3433, 1
        %s3438 = sphi %s3429, %s3429
        %s3439 = sphi %s636, %s636
      $region146: #{mv_lstm_forward.1} parent=142 // loop_header_branch
        %3436 = sbr.rel (%p3434) target = $region150
      $region147: #{mv_lstm_forward.1} parent=142 // loop_body
        %v3440 = vld [vmem:[%s3438] sm:$0xff]
        %3441 = vst [vmem:[%s3439] sm:$0xff] %v3440
        %v3442 = vld [vmem:[%s3438 + $0x8] sm:$0xff]
        %3443 = vst [vmem:[%s3439 + $0x8] sm:$0xff] %v3442
        %v3444 = vld [vmem:[%s3438 + $0x10] sm:$0xff]
        %3445 = vst [vmem:[%s3439 + $0x10] sm:$0xff] %v3444
        %v3446 = vld [vmem:[%s3438 + $0x18] sm:$0xff]
        %3447 = vst [vmem:[%s3439 + $0x18] sm:$0xff] %v3446
        %v3448 = vld [vmem:[%s3438 + $0x20] sm:$0xff]
        %3449 = vst [vmem:[%s3439 + $0x20] sm:$0xff] %v3448
        %v3450 = vld [vmem:[%s3438 + $0x28] sm:$0xff]
        %3451 = vst [vmem:[%s3439 + $0x28] sm:$0xff] %v3450
        %v3452 = vld [vmem:[%s3438 + $0x30] sm:$0xff]
        %3453 = vst [vmem:[%s3439 + $0x30] sm:$0xff] %v3452
        %v3454 = vld [vmem:[%s3438 + $0x38] sm:$0xff]
        %3455 = vst [vmem:[%s3439 + $0x38] sm:$0xff] %v3454
        %v3456 = vld [vmem:[%s3438 + $0x40] sm:$0xff]
        %3457 = vst [vmem:[%s3439 + $0x40] sm:$0xff] %v3456
        %v3458 = vld [vmem:[%s3438 + $0x48] sm:$0xff]
        %3459 = vst [vmem:[%s3439 + $0x48] sm:$0xff] %v3458
        %v3460 = vld [vmem:[%s3438 + $0x50] sm:$0xff]
        %3461 = vst [vmem:[%s3439 + $0x50] sm:$0xff] %v3460
        %v3462 = vld [vmem:[%s3438 + $0x58] sm:$0xff]
        %3463 = vst [vmem:[%s3439 + $0x58] sm:$0xff] %v3462
        %v3464 = vld [vmem:[%s3438 + $0x60] sm:$0xff]
        %3465 = vst [vmem:[%s3439 + $0x60] sm:$0xff] %v3464
        %v3466 = vld [vmem:[%s3438 + $0x68] sm:$0xff]
        %3467 = vst [vmem:[%s3439 + $0x68] sm:$0xff] %v3466
        %v3468 = vld [vmem:[%s3438 + $0x70] sm:$0xff]
        %3469 = vst [vmem:[%s3439 + $0x70] sm:$0xff] %v3468
        %v3470 = vld [vmem:[%s3438 + $0x78] sm:$0xff]
        %3471 = vst [vmem:[%s3439 + $0x78] sm:$0xff] %v3470
        %v3472 = vld [vmem:[%s3438 + $0x80] sm:$0xff]
        %3473 = vst [vmem:[%s3439 + $0x80] sm:$0xff] %v3472
        %v3474 = vld [vmem:[%s3438 + $0x88] sm:$0xff]
        %3475 = vst [vmem:[%s3439 + $0x88] sm:$0xff] %v3474
        %v3476 = vld [vmem:[%s3438 + $0x90] sm:$0xff]
        %3477 = vst [vmem:[%s3439 + $0x90] sm:$0xff] %v3476
        %v3478 = vld [vmem:[%s3438 + $0x98] sm:$0xff]
        %3479 = vst [vmem:[%s3439 + $0x98] sm:$0xff] %v3478
        %v3480 = vld [vmem:[%s3438 + $0xa0] sm:$0xff]
        %3481 = vst [vmem:[%s3439 + $0xa0] sm:$0xff] %v3480
        %v3482 = vld [vmem:[%s3438 + $0xa8] sm:$0xff]
        %3483 = vst [vmem:[%s3439 + $0xa8] sm:$0xff] %v3482
        %v3484 = vld [vmem:[%s3438 + $0xb0] sm:$0xff]
        %3485 = vst [vmem:[%s3439 + $0xb0] sm:$0xff] %v3484
        %v3486 = vld [vmem:[%s3438 + $0xb8] sm:$0xff]
        %3487 = vst [vmem:[%s3439 + $0xb8] sm:$0xff] %v3486
        %v3488 = vld [vmem:[%s3438 + $0xc0] sm:$0xff]
        %3489 = vst [vmem:[%s3439 + $0xc0] sm:$0xff] %v3488
        %v3490 = vld [vmem:[%s3438 + $0xc8] sm:$0xff]
        %3491 = vst [vmem:[%s3439 + $0xc8] sm:$0xff] %v3490
        %v3492 = vld [vmem:[%s3438 + $0xd0] sm:$0xff]
        %3493 = vst [vmem:[%s3439 + $0xd0] sm:$0xff] %v3492
        %v3494 = vld [vmem:[%s3438 + $0xd8] sm:$0xff]
        %3495 = vst [vmem:[%s3439 + $0xd8] sm:$0xff] %v3494
        %v3496 = vld [vmem:[%s3438 + $0xe0] sm:$0xff]
        %3497 = vst [vmem:[%s3439 + $0xe0] sm:$0xff] %v3496
        %v3498 = vld [vmem:[%s3438 + $0xe8] sm:$0xff]
        %3499 = vst [vmem:[%s3439 + $0xe8] sm:$0xff] %v3498
        %v3500 = vld [vmem:[%s3438 + $0xf0] sm:$0xff]
        %3501 = vst [vmem:[%s3439 + $0xf0] sm:$0xff] %v3500
        %v3502 = vld [vmem:[%s3438 + $0xf8] sm:$0xff]
        %3503 = vst [vmem:[%s3439 + $0xf8] sm:$0xff] %v3502
        %v3504 = vld [vmem:[%s3438 + $0x100] sm:$0xff]
        %3505 = vst [vmem:[%s3439 + $0x100] sm:$0xff] %v3504
        %v3506 = vld [vmem:[%s3438 + $0x108] sm:$0xff]
        %3507 = vst [vmem:[%s3439 + $0x108] sm:$0xff] %v3506
        %v3508 = vld [vmem:[%s3438 + $0x110] sm:$0xff]
        %3509 = vst [vmem:[%s3439 + $0x110] sm:$0xff] %v3508
        %v3510 = vld [vmem:[%s3438 + $0x118] sm:$0xff]
        %3511 = vst [vmem:[%s3439 + $0x118] sm:$0xff] %v3510
        %v3512 = vld [vmem:[%s3438 + $0x120] sm:$0xff]
        %3513 = vst [vmem:[%s3439 + $0x120] sm:$0xff] %v3512
        %v3514 = vld [vmem:[%s3438 + $0x128] sm:$0xff]
        %3515 = vst [vmem:[%s3439 + $0x128] sm:$0xff] %v3514
        %v3516 = vld [vmem:[%s3438 + $0x130] sm:$0xff]
        %3517 = vst [vmem:[%s3439 + $0x130] sm:$0xff] %v3516
        %v3518 = vld [vmem:[%s3438 + $0x138] sm:$0xff]
        %3519 = vst [vmem:[%s3439 + $0x138] sm:$0xff] %v3518
        %v3520 = vld [vmem:[%s3438 + $0x140] sm:$0xff]
        %3521 = vst [vmem:[%s3439 + $0x140] sm:$0xff] %v3520
        %v3522 = vld [vmem:[%s3438 + $0x148] sm:$0xff]
        %3523 = vst [vmem:[%s3439 + $0x148] sm:$0xff] %v3522
        %v3524 = vld [vmem:[%s3438 + $0x150] sm:$0xff]
        %3525 = vst [vmem:[%s3439 + $0x150] sm:$0xff] %v3524
        %v3526 = vld [vmem:[%s3438 + $0x158] sm:$0xff]
        %3527 = vst [vmem:[%s3439 + $0x158] sm:$0xff] %v3526
        %v3528 = vld [vmem:[%s3438 + $0x160] sm:$0xff]
        %3529 = vst [vmem:[%s3439 + $0x160] sm:$0xff] %v3528
        %v3530 = vld [vmem:[%s3438 + $0x168] sm:$0xff]
        %3531 = vst [vmem:[%s3439 + $0x168] sm:$0xff] %v3530
        %v3532 = vld [vmem:[%s3438 + $0x170] sm:$0xff]
        %3533 = vst [vmem:[%s3439 + $0x170] sm:$0xff] %v3532
        %v3534 = vld [vmem:[%s3438 + $0x178] sm:$0xff]
        %3535 = vst [vmem:[%s3439 + $0x178] sm:$0xff] %v3534
        %v3536 = vld [vmem:[%s3438 + $0x180] sm:$0xff]
        %3537 = vst [vmem:[%s3439 + $0x180] sm:$0xff] %v3536
        %v3538 = vld [vmem:[%s3438 + $0x188] sm:$0xff]
        %3539 = vst [vmem:[%s3439 + $0x188] sm:$0xff] %v3538
        %v3540 = vld [vmem:[%s3438 + $0x190] sm:$0xff]
        %3541 = vst [vmem:[%s3439 + $0x190] sm:$0xff] %v3540
        %v3542 = vld [vmem:[%s3438 + $0x198] sm:$0xff]
        %3543 = vst [vmem:[%s3439 + $0x198] sm:$0xff] %v3542
        %v3544 = vld [vmem:[%s3438 + $0x1a0] sm:$0xff]
        %3545 = vst [vmem:[%s3439 + $0x1a0] sm:$0xff] %v3544
        %v3546 = vld [vmem:[%s3438 + $0x1a8] sm:$0xff]
        %3547 = vst [vmem:[%s3439 + $0x1a8] sm:$0xff] %v3546
        %v3548 = vld [vmem:[%s3438 + $0x1b0] sm:$0xff]
        %3549 = vst [vmem:[%s3439 + $0x1b0] sm:$0xff] %v3548
        %v3550 = vld [vmem:[%s3438 + $0x1b8] sm:$0xff]
        %3551 = vst [vmem:[%s3439 + $0x1b8] sm:$0xff] %v3550
        %v3552 = vld [vmem:[%s3438 + $0x1c0] sm:$0xff]
        %3553 = vst [vmem:[%s3439 + $0x1c0] sm:$0xff] %v3552
        %v3554 = vld [vmem:[%s3438 + $0x1c8] sm:$0xff]
        %3555 = vst [vmem:[%s3439 + $0x1c8] sm:$0xff] %v3554
        %v3556 = vld [vmem:[%s3438 + $0x1d0] sm:$0xff]
        %3557 = vst [vmem:[%s3439 + $0x1d0] sm:$0xff] %v3556
        %v3558 = vld [vmem:[%s3438 + $0x1d8] sm:$0xff]
        %3559 = vst [vmem:[%s3439 + $0x1d8] sm:$0xff] %v3558
        %v3560 = vld [vmem:[%s3438 + $0x1e0] sm:$0xff]
        %3561 = vst [vmem:[%s3439 + $0x1e0] sm:$0xff] %v3560
        %v3562 = vld [vmem:[%s3438 + $0x1e8] sm:$0xff]
        %3563 = vst [vmem:[%s3439 + $0x1e8] sm:$0xff] %v3562
        %v3564 = vld [vmem:[%s3438 + $0x1f0] sm:$0xff]
        %3565 = vst [vmem:[%s3439 + $0x1f0] sm:$0xff] %v3564
        %v3566 = vld [vmem:[%s3438 + $0x1f8] sm:$0xff]
        %3567 = vst [vmem:[%s3439 + $0x1f8] sm:$0xff] %v3566
      $region148: #{mv_lstm_forward.1} parent=142 // loop_footer
        %s3437 = sadd.s32 1, %s3433
      $region149: #{mv_lstm_forward.1} parent=142 // loop_footer_branch
        %3432 = sbr.rel target = $region145
      $region150: #{mv_lstm_forward.1} parent=142 // loop_exit
        _
    $region143: #{mv_lstm_forward.1} parent=1 // pred_fallthru
      _
    // Predicated region
    $region151: #{mv_lstm_forward.1} parent=1 // pred_check
      _
    $region152: #{mv_lstm_forward.1} parent=1 // pred_check_branch
      %3569 = sbr.rel target = $region154
    $region153: #{mv_lstm_forward.1} parent=1 // pred_region
      _
    $region154: #{mv_lstm_forward.1} parent=1 // pred_fallthru
      _
    // Predicated region
    $region155: #{mv_lstm_forward.1} parent=1 // pred_check
      _
    $region156: #{mv_lstm_forward.1} parent=1 // pred_check_branch
      %3572 = sbr.rel (0) target = $region158
    $region157: #{mv_lstm_forward.1} parent=1 // pred_region
      %3573 = vsyncadd %s637, 8192
    $region158: #{mv_lstm_forward.1} parent=1 // pred_fallthru
      _
    %s3574 = scalar_lea.vmem %s7, 1536
    // Predicated region
    $region159: #{mv_lstm_forward.1} parent=1 // pred_check
      _
    $region160: #{mv_lstm_forward.1} parent=1 // pred_check_branch
      %3576 = sbr.rel (0) target = $region162
    $region161: #{mv_lstm_forward.1} parent=1 // pred_region
      loop: start=0, step=1, limit=1
      $region163: #{mv_lstm_forward.1} parent=161 // loop_pre_header
        _
      $region164: #{mv_lstm_forward.1} parent=161 // loop_header
        %s3578 = sphi 0, %s3582
        %p3579 = scmp.ge.s32.totalorder %s3578, 1
        %s3583 = sphi %s3574, %s3574
        %s3584 = sphi %s783, %s783
      $region165: #{mv_lstm_forward.1} parent=161 // loop_header_branch
        %3581 = sbr.rel (%p3579) target = $region169
      $region166: #{mv_lstm_forward.1} parent=161 // loop_body
        %v3585 = vld [vmem:[%s3583] sm:$0xff]
        %3586 = vst [vmem:[%s3584] sm:$0xff] %v3585
        %v3587 = vld [vmem:[%s3583 + $0x8] sm:$0xff]
        %3588 = vst [vmem:[%s3584 + $0x8] sm:$0xff] %v3587
        %v3589 = vld [vmem:[%s3583 + $0x10] sm:$0xff]
        %3590 = vst [vmem:[%s3584 + $0x10] sm:$0xff] %v3589
        %v3591 = vld [vmem:[%s3583 + $0x18] sm:$0xff]
        %3592 = vst [vmem:[%s3584 + $0x18] sm:$0xff] %v3591
        %v3593 = vld [vmem:[%s3583 + $0x20] sm:$0xff]
        %3594 = vst [vmem:[%s3584 + $0x20] sm:$0xff] %v3593
        %v3595 = vld [vmem:[%s3583 + $0x28] sm:$0xff]
        %3596 = vst [vmem:[%s3584 + $0x28] sm:$0xff] %v3595
        %v3597 = vld [vmem:[%s3583 + $0x30] sm:$0xff]
        %3598 = vst [vmem:[%s3584 + $0x30] sm:$0xff] %v3597
        %v3599 = vld [vmem:[%s3583 + $0x38] sm:$0xff]
        %3600 = vst [vmem:[%s3584 + $0x38] sm:$0xff] %v3599
        %v3601 = vld [vmem:[%s3583 + $0x40] sm:$0xff]
        %3602 = vst [vmem:[%s3584 + $0x40] sm:$0xff] %v3601
        %v3603 = vld [vmem:[%s3583 + $0x48] sm:$0xff]
        %3604 = vst [vmem:[%s3584 + $0x48] sm:$0xff] %v3603
        %v3605 = vld [vmem:[%s3583 + $0x50] sm:$0xff]
        %3606 = vst [vmem:[%s3584 + $0x50] sm:$0xff] %v3605
        %v3607 = vld [vmem:[%s3583 + $0x58] sm:$0xff]
        %3608 = vst [vmem:[%s3584 + $0x58] sm:$0xff] %v3607
        %v3609 = vld [vmem:[%s3583 + $0x60] sm:$0xff]
        %3610 = vst [vmem:[%s3584 + $0x60] sm:$0xff] %v3609
        %v3611 = vld [vmem:[%s3583 + $0x68] sm:$0xff]
        %3612 = vst [vmem:[%s3584 + $0x68] sm:$0xff] %v3611
        %v3613 = vld [vmem:[%s3583 + $0x70] sm:$0xff]
        %3614 = vst [vmem:[%s3584 + $0x70] sm:$0xff] %v3613
        %v3615 = vld [vmem:[%s3583 + $0x78] sm:$0xff]
        %3616 = vst [vmem:[%s3584 + $0x78] sm:$0xff] %v3615
        %v3617 = vld [vmem:[%s3583 + $0x80] sm:$0xff]
        %3618 = vst [vmem:[%s3584 + $0x80] sm:$0xff] %v3617
        %v3619 = vld [vmem:[%s3583 + $0x88] sm:$0xff]
        %3620 = vst [vmem:[%s3584 + $0x88] sm:$0xff] %v3619
        %v3621 = vld [vmem:[%s3583 + $0x90] sm:$0xff]
        %3622 = vst [vmem:[%s3584 + $0x90] sm:$0xff] %v3621
        %v3623 = vld [vmem:[%s3583 + $0x98] sm:$0xff]
        %3624 = vst [vmem:[%s3584 + $0x98] sm:$0xff] %v3623
        %v3625 = vld [vmem:[%s3583 + $0xa0] sm:$0xff]
        %3626 = vst [vmem:[%s3584 + $0xa0] sm:$0xff] %v3625
        %v3627 = vld [vmem:[%s3583 + $0xa8] sm:$0xff]
        %3628 = vst [vmem:[%s3584 + $0xa8] sm:$0xff] %v3627
        %v3629 = vld [vmem:[%s3583 + $0xb0] sm:$0xff]
        %3630 = vst [vmem:[%s3584 + $0xb0] sm:$0xff] %v3629
        %v3631 = vld [vmem:[%s3583 + $0xb8] sm:$0xff]
        %3632 = vst [vmem:[%s3584 + $0xb8] sm:$0xff] %v3631
        %v3633 = vld [vmem:[%s3583 + $0xc0] sm:$0xff]
        %3634 = vst [vmem:[%s3584 + $0xc0] sm:$0xff] %v3633
        %v3635 = vld [vmem:[%s3583 + $0xc8] sm:$0xff]
        %3636 = vst [vmem:[%s3584 + $0xc8] sm:$0xff] %v3635
        %v3637 = vld [vmem:[%s3583 + $0xd0] sm:$0xff]
        %3638 = vst [vmem:[%s3584 + $0xd0] sm:$0xff] %v3637
        %v3639 = vld [vmem:[%s3583 + $0xd8] sm:$0xff]
        %3640 = vst [vmem:[%s3584 + $0xd8] sm:$0xff] %v3639
        %v3641 = vld [vmem:[%s3583 + $0xe0] sm:$0xff]
        %3642 = vst [vmem:[%s3584 + $0xe0] sm:$0xff] %v3641
        %v3643 = vld [vmem:[%s3583 + $0xe8] sm:$0xff]
        %3644 = vst [vmem:[%s3584 + $0xe8] sm:$0xff] %v3643
        %v3645 = vld [vmem:[%s3583 + $0xf0] sm:$0xff]
        %3646 = vst [vmem:[%s3584 + $0xf0] sm:$0xff] %v3645
        %v3647 = vld [vmem:[%s3583 + $0xf8] sm:$0xff]
        %3648 = vst [vmem:[%s3584 + $0xf8] sm:$0xff] %v3647
        %v3649 = vld [vmem:[%s3583 + $0x100] sm:$0xff]
        %3650 = vst [vmem:[%s3584 + $0x100] sm:$0xff] %v3649
        %v3651 = vld [vmem:[%s3583 + $0x108] sm:$0xff]
        %3652 = vst [vmem:[%s3584 + $0x108] sm:$0xff] %v3651
        %v3653 = vld [vmem:[%s3583 + $0x110] sm:$0xff]
        %3654 = vst [vmem:[%s3584 + $0x110] sm:$0xff] %v3653
        %v3655 = vld [vmem:[%s3583 + $0x118] sm:$0xff]
        %3656 = vst [vmem:[%s3584 + $0x118] sm:$0xff] %v3655
        %v3657 = vld [vmem:[%s3583 + $0x120] sm:$0xff]
        %3658 = vst [vmem:[%s3584 + $0x120] sm:$0xff] %v3657
        %v3659 = vld [vmem:[%s3583 + $0x128] sm:$0xff]
        %3660 = vst [vmem:[%s3584 + $0x128] sm:$0xff] %v3659
        %v3661 = vld [vmem:[%s3583 + $0x130] sm:$0xff]
        %3662 = vst [vmem:[%s3584 + $0x130] sm:$0xff] %v3661
        %v3663 = vld [vmem:[%s3583 + $0x138] sm:$0xff]
        %3664 = vst [vmem:[%s3584 + $0x138] sm:$0xff] %v3663
        %v3665 = vld [vmem:[%s3583 + $0x140] sm:$0xff]
        %3666 = vst [vmem:[%s3584 + $0x140] sm:$0xff] %v3665
        %v3667 = vld [vmem:[%s3583 + $0x148] sm:$0xff]
        %3668 = vst [vmem:[%s3584 + $0x148] sm:$0xff] %v3667
        %v3669 = vld [vmem:[%s3583 + $0x150] sm:$0xff]
        %3670 = vst [vmem:[%s3584 + $0x150] sm:$0xff] %v3669
        %v3671 = vld [vmem:[%s3583 + $0x158] sm:$0xff]
        %3672 = vst [vmem:[%s3584 + $0x158] sm:$0xff] %v3671
        %v3673 = vld [vmem:[%s3583 + $0x160] sm:$0xff]
        %3674 = vst [vmem:[%s3584 + $0x160] sm:$0xff] %v3673
        %v3675 = vld [vmem:[%s3583 + $0x168] sm:$0xff]
        %3676 = vst [vmem:[%s3584 + $0x168] sm:$0xff] %v3675
        %v3677 = vld [vmem:[%s3583 + $0x170] sm:$0xff]
        %3678 = vst [vmem:[%s3584 + $0x170] sm:$0xff] %v3677
        %v3679 = vld [vmem:[%s3583 + $0x178] sm:$0xff]
        %3680 = vst [vmem:[%s3584 + $0x178] sm:$0xff] %v3679
        %v3681 = vld [vmem:[%s3583 + $0x180] sm:$0xff]
        %3682 = vst [vmem:[%s3584 + $0x180] sm:$0xff] %v3681
        %v3683 = vld [vmem:[%s3583 + $0x188] sm:$0xff]
        %3684 = vst [vmem:[%s3584 + $0x188] sm:$0xff] %v3683
        %v3685 = vld [vmem:[%s3583 + $0x190] sm:$0xff]
        %3686 = vst [vmem:[%s3584 + $0x190] sm:$0xff] %v3685
        %v3687 = vld [vmem:[%s3583 + $0x198] sm:$0xff]
        %3688 = vst [vmem:[%s3584 + $0x198] sm:$0xff] %v3687
        %v3689 = vld [vmem:[%s3583 + $0x1a0] sm:$0xff]
        %3690 = vst [vmem:[%s3584 + $0x1a0] sm:$0xff] %v3689
        %v3691 = vld [vmem:[%s3583 + $0x1a8] sm:$0xff]
        %3692 = vst [vmem:[%s3584 + $0x1a8] sm:$0xff] %v3691
        %v3693 = vld [vmem:[%s3583 + $0x1b0] sm:$0xff]
        %3694 = vst [vmem:[%s3584 + $0x1b0] sm:$0xff] %v3693
        %v3695 = vld [vmem:[%s3583 + $0x1b8] sm:$0xff]
        %3696 = vst [vmem:[%s3584 + $0x1b8] sm:$0xff] %v3695
        %v3697 = vld [vmem:[%s3583 + $0x1c0] sm:$0xff]
        %3698 = vst [vmem:[%s3584 + $0x1c0] sm:$0xff] %v3697
        %v3699 = vld [vmem:[%s3583 + $0x1c8] sm:$0xff]
        %3700 = vst [vmem:[%s3584 + $0x1c8] sm:$0xff] %v3699
        %v3701 = vld [vmem:[%s3583 + $0x1d0] sm:$0xff]
        %3702 = vst [vmem:[%s3584 + $0x1d0] sm:$0xff] %v3701
        %v3703 = vld [vmem:[%s3583 + $0x1d8] sm:$0xff]
        %3704 = vst [vmem:[%s3584 + $0x1d8] sm:$0xff] %v3703
        %v3705 = vld [vmem:[%s3583 + $0x1e0] sm:$0xff]
        %3706 = vst [vmem:[%s3584 + $0x1e0] sm:$0xff] %v3705
        %v3707 = vld [vmem:[%s3583 + $0x1e8] sm:$0xff]
        %3708 = vst [vmem:[%s3584 + $0x1e8] sm:$0xff] %v3707
        %v3709 = vld [vmem:[%s3583 + $0x1f0] sm:$0xff]
        %3710 = vst [vmem:[%s3584 + $0x1f0] sm:$0xff] %v3709
        %v3711 = vld [vmem:[%s3583 + $0x1f8] sm:$0xff]
        %3712 = vst [vmem:[%s3584 + $0x1f8] sm:$0xff] %v3711
      $region167: #{mv_lstm_forward.1} parent=161 // loop_footer
        %s3582 = sadd.s32 1, %s3578
      $region168: #{mv_lstm_forward.1} parent=161 // loop_footer_branch
        %3577 = sbr.rel target = $region164
      $region169: #{mv_lstm_forward.1} parent=161 // loop_exit
        _
    $region162: #{mv_lstm_forward.1} parent=1 // pred_fallthru
      _
    // Predicated region
    $region170: #{mv_lstm_forward.1} parent=1 // pred_check
      _
    $region171: #{mv_lstm_forward.1} parent=1 // pred_check_branch
      %3714 = sbr.rel target = $region173
    $region172: #{mv_lstm_forward.1} parent=1 // pred_region
      _
    $region173: #{mv_lstm_forward.1} parent=1 // pred_fallthru
      _
    // Predicated region
    $region174: #{mv_lstm_forward.1} parent=1 // pred_check
      _
    $region175: #{mv_lstm_forward.1} parent=1 // pred_check_branch
      %3717 = sbr.rel (0) target = $region177
    $region176: #{mv_lstm_forward.1} parent=1 // pred_region
      %3718 = vsyncadd %s784, 8192
    $region177: #{mv_lstm_forward.1} parent=1 // pred_fallthru
      _
    %s3719 = scalar_lea.vmem %s1, 16
    %v3720 = vld [vmem:[%s3719] sm:$0xff]
    %s3721 = scalar_lea.vmem %s2, 16
    %v3722 = vld [vmem:[%s3721] sm:$0xff]
    %3723 = vmatpush.msra.mxu0 %v3425
    %3724 = vmatpush.msra.mxu0 %v3421
    %3725 = vmatpush.msra.mxu0 %v3417
    %3726 = vmatpush.msra.mxu0 %v3413
    %3727 = vmatpush.msra.mxu0 %v3409
    %3728 = vmatpush.msra.mxu0 %v3405
    %3729 = vmatpush.msra.mxu0 %v3401
    %3730 = vmatpush.msra.mxu0 %v3397
    %3731 = vmatpush.msra.mxu0 %v3393
    %3732 = vmatpush.msra.mxu0 %v3389
    %3733 = vmatpush.msra.mxu0 %v3385
    %3734 = vmatpush.msra.mxu0 %v3381
    %3735 = vmatpush.msra.mxu0 %v3377
    %3736 = vmatpush.msra.mxu0 %v3373
    %3737 = vmatpush.msra.mxu0 %v3369
    %3738 = vmatpush.msra.mxu0 %v3365
    %3739 = vmatmul.f32.gmra.mxu0 %v3720
    %v3740 = vpop.f32.mrf.mxu0
    %v3741 = vadd.f32 0.0, %v3740
    %3742 = vdwg.mxu0
    %3743 = vmatpush.msra.mxu0 %v3426
    %3744 = vmatpush.msra.mxu0 %v3422
    %3745 = vmatpush.msra.mxu0 %v3418
    %3746 = vmatpush.msra.mxu0 %v3414
    %3747 = vmatpush.msra.mxu0 %v3410
    %3748 = vmatpush.msra.mxu0 %v3406
    %3749 = vmatpush.msra.mxu0 %v3402
    %3750 = vmatpush.msra.mxu0 %v3398
    %3751 = vmatpush.msra.mxu0 %v3394
    %3752 = vmatpush.msra.mxu0 %v3390
    %3753 = vmatpush.msra.mxu0 %v3386
    %3754 = vmatpush.msra.mxu0 %v3382
    %3755 = vmatpush.msra.mxu0 %v3378
    %3756 = vmatpush.msra.mxu0 %v3374
    %3757 = vmatpush.msra.mxu0 %v3370
    %3758 = vmatpush.msra.mxu0 %v3366
    %3759 = vmatmul.f32.gmra.mxu0 %v3720
    %v3760 = vpop.f32.mrf.mxu0
    %v3761 = vadd.f32 0.0, %v3760
    %3762 = vdwg.mxu0
    %3763 = vmatpush.msra.mxu0 %v3427
    %3764 = vmatpush.msra.mxu0 %v3423
    %3765 = vmatpush.msra.mxu0 %v3419
    %3766 = vmatpush.msra.mxu0 %v3415
    %3767 = vmatpush.msra.mxu0 %v3411
    %3768 = vmatpush.msra.mxu0 %v3407
    %3769 = vmatpush.msra.mxu0 %v3403
    %3770 = vmatpush.msra.mxu0 %v3399
    %3771 = vmatpush.msra.mxu0 %v3395
    %3772 = vmatpush.msra.mxu0 %v3391
    %3773 = vmatpush.msra.mxu0 %v3387
    %3774 = vmatpush.msra.mxu0 %v3383
    %3775 = vmatpush.msra.mxu0 %v3379
    %3776 = vmatpush.msra.mxu0 %v3375
    %3777 = vmatpush.msra.mxu0 %v3371
    %3778 = vmatpush.msra.mxu0 %v3367
    %3779 = vmatmul.f32.gmra.mxu0 %v3720
    %v3780 = vpop.f32.mrf.mxu0
    %v3781 = vadd.f32 0.0, %v3780
    %3782 = vdwg.mxu0
    %3783 = vmatpush.msra.mxu0 %v3428
    %3784 = vmatpush.msra.mxu0 %v3424
    %3785 = vmatpush.msra.mxu0 %v3420
    %3786 = vmatpush.msra.mxu0 %v3416
    %3787 = vmatpush.msra.mxu0 %v3412
    %3788 = vmatpush.msra.mxu0 %v3408
    %3789 = vmatpush.msra.mxu0 %v3404
    %3790 = vmatpush.msra.mxu0 %v3400
    %3791 = vmatpush.msra.mxu0 %v3396
    %3792 = vmatpush.msra.mxu0 %v3392
    %3793 = vmatpush.msra.mxu0 %v3388
    %3794 = vmatpush.msra.mxu0 %v3384
    %3795 = vmatpush.msra.mxu0 %v3380
    %3796 = vmatpush.msra.mxu0 %v3376
    %3797 = vmatpush.msra.mxu0 %v3372
    %3798 = vmatpush.msra.mxu0 %v3368
    %3799 = vmatmul.f32.gmra.mxu0 %v3720
    %v3800 = vpop.f32.mrf.mxu0
    %v3801 = vadd.f32 0.0, %v3800
    %3802 = vdwg.mxu0
    %v3803 = vadd.f32 %v3217, %v3741
    %v3804 = vadd.f32 %v3258, %v3761
    %v3805 = vadd.f32 %v3299, %v3781
    %v3806 = vadd.f32 %v3340, %v3801
    %v3807 = vtanh.pop %v3803
    %v3808 = vtanh.pop %v3804
    %v3809 = vtanh.pop %v3805
    %v3810 = vtanh.pop %v3806
    %v3811 = vmul.f32 %v3807, 0.5
    %v3812 = vadd.f32 %v3811, 0.5
    %v3813 = vmul.f32 %v3808, 0.5
    %v3814 = vadd.f32 %v3813, 0.5
    %v3815 = vmul.f32 %v3810, 0.5
    %v3816 = vadd.f32 %v3815, 0.5
    %v3817 = vmul.f32 %v3814, %v3722
    %v3818 = vmul.f32 %v3812, %v3809
    %v3819 = vadd.f32 %v3817, %v3818
    %v3820 = vtanh.pop %v3819
    %v3821 = vmul.f32 %v3816, %v3820
    %3822 = vmatpush.msra.mxu0 %v3425
    %3823 = vmatpush.msra.mxu0 %v3421
    %3824 = vmatpush.msra.mxu0 %v3417
    %3825 = vmatpush.msra.mxu0 %v3413
    %3826 = vmatpush.msra.mxu0 %v3409
    %3827 = vmatpush.msra.mxu0 %v3405
    %3828 = vmatpush.msra.mxu0 %v3401
    %3829 = vmatpush.msra.mxu0 %v3397
    %3830 = vmatpush.msra.mxu0 %v3393
    %3831 = vmatpush.msra.mxu0 %v3389
    %3832 = vmatpush.msra.mxu0 %v3385
    %3833 = vmatpush.msra.mxu0 %v3381
    %3834 = vmatpush.msra.mxu0 %v3377
    %3835 = vmatpush.msra.mxu0 %v3373
    %3836 = vmatpush.msra.mxu0 %v3369
    %3837 = vmatpush.msra.mxu0 %v3365
    %3838 = vmatmul.f32.gmra.mxu0 %v3821
    %v3839 = vpop.f32.mrf.mxu0
    %v3840 = vadd.f32 0.0, %v3839
    %3841 = vdwg.mxu0
    %3842 = vmatpush.msra.mxu0 %v3426
    %3843 = vmatpush.msra.mxu0 %v3422
    %3844 = vmatpush.msra.mxu0 %v3418
    %3845 = vmatpush.msra.mxu0 %v3414
    %3846 = vmatpush.msra.mxu0 %v3410
    %3847 = vmatpush.msra.mxu0 %v3406
    %3848 = vmatpush.msra.mxu0 %v3402
    %3849 = vmatpush.msra.mxu0 %v3398
    %3850 = vmatpush.msra.mxu0 %v3394
    %3851 = vmatpush.msra.mxu0 %v3390
    %3852 = vmatpush.msra.mxu0 %v3386
    %3853 = vmatpush.msra.mxu0 %v3382
    %3854 = vmatpush.msra.mxu0 %v3378
    %3855 = vmatpush.msra.mxu0 %v3374
    %3856 = vmatpush.msra.mxu0 %v3370
    %3857 = vmatpush.msra.mxu0 %v3366
    %3858 = vmatmul.f32.gmra.mxu0 %v3821
    %v3859 = vpop.f32.mrf.mxu0
    %v3860 = vadd.f32 0.0, %v3859
    %3861 = vdwg.mxu0
    %3862 = vmatpush.msra.mxu0 %v3427
    %3863 = vmatpush.msra.mxu0 %v3423
    %3864 = vmatpush.msra.mxu0 %v3419
    %3865 = vmatpush.msra.mxu0 %v3415
    %3866 = vmatpush.msra.mxu0 %v3411
    %3867 = vmatpush.msra.mxu0 %v3407
    %3868 = vmatpush.msra.mxu0 %v3403
    %3869 = vmatpush.msra.mxu0 %v3399
    %3870 = vmatpush.msra.mxu0 %v3395
    %3871 = vmatpush.msra.mxu0 %v3391
    %3872 = vmatpush.msra.mxu0 %v3387
    %3873 = vmatpush.msra.mxu0 %v3383
    %3874 = vmatpush.msra.mxu0 %v3379
    %3875 = vmatpush.msra.mxu0 %v3375
    %3876 = vmatpush.msra.mxu0 %v3371
    %3877 = vmatpush.msra.mxu0 %v3367
    %3878 = vmatmul.f32.gmra.mxu0 %v3821
    %v3879 = vpop.f32.mrf.mxu0
    %v3880 = vadd.f32 0.0, %v3879
    %3881 = vdwg.mxu0
    %3882 = vmatpush.msra.mxu0 %v3428
    %3883 = vmatpush.msra.mxu0 %v3424
    %3884 = vmatpush.msra.mxu0 %v3420
    %3885 = vmatpush.msra.mxu0 %v3416
    %3886 = vmatpush.msra.mxu0 %v3412
    %3887 = vmatpush.msra.mxu0 %v3408
    %3888 = vmatpush.msra.mxu0 %v3404
    %3889 = vmatpush.msra.mxu0 %v3400
    %3890 = vmatpush.msra.mxu0 %v3396
    %3891 = vmatpush.msra.mxu0 %v3392
    %3892 = vmatpush.msra.mxu0 %v3388
    %3893 = vmatpush.msra.mxu0 %v3384
    %3894 = vmatpush.msra.mxu0 %v3380
    %3895 = vmatpush.msra.mxu0 %v3376
    %3896 = vmatpush.msra.mxu0 %v3372
    %3897 = vmatpush.msra.mxu0 %v3368
    %3898 = vmatmul.f32.gmra.mxu0 %v3821
    %v3899 = vpop.f32.mrf.mxu0
    %v3900 = vadd.f32 0.0, %v3899
    %3901 = vdwg.mxu0
    %v3902 = vadd.f32 %v3220, %v3840
    %v3903 = vadd.f32 %v3261, %v3860
    %v3904 = vadd.f32 %v3302, %v3880
    %v3905 = vadd.f32 %v3343, %v3900
    %v3906 = vtanh.pop %v3902
    %v3907 = vtanh.pop %v3903
    %v3908 = vtanh.pop %v3904
    %v3909 = vtanh.pop %v3905
    %v3910 = vmul.f32 %v3906, 0.5
    %v3911 = vadd.f32 %v3910, 0.5
    %v3912 = vmul.f32 %v3907, 0.5
    %v3913 = vadd.f32 %v3912, 0.5
    %v3914 = vmul.f32 %v3909, 0.5
    %v3915 = vadd.f32 %v3914, 0.5
    %v3916 = vmul.f32 %v3913, %v3819
    %v3917 = vmul.f32 %v3911, %v3908
    %v3918 = vadd.f32 %v3916, %v3917
    %v3919 = vtanh.pop %v3918
    %v3920 = vmul.f32 %v3915, %v3919
    %3921 = vmatpush.msra.mxu0 %v3425
    %3922 = vmatpush.msra.mxu0 %v3421
    %3923 = vmatpush.msra.mxu0 %v3417
    %3924 = vmatpush.msra.mxu0 %v3413
    %3925 = vmatpush.msra.mxu0 %v3409
    %3926 = vmatpush.msra.mxu0 %v3405
    %3927 = vmatpush.msra.mxu0 %v3401
    %3928 = vmatpush.msra.mxu0 %v3397
    %3929 = vmatpush.msra.mxu0 %v3393
    %3930 = vmatpush.msra.mxu0 %v3389
    %3931 = vmatpush.msra.mxu0 %v3385
    %3932 = vmatpush.msra.mxu0 %v3381
    %3933 = vmatpush.msra.mxu0 %v3377
    %3934 = vmatpush.msra.mxu0 %v3373
    %3935 = vmatpush.msra.mxu0 %v3369
    %3936 = vmatpush.msra.mxu0 %v3365
    %3937 = vmatmul.f32.gmra.mxu0 %v3920
    %v3938 = vpop.f32.mrf.mxu0
    %v3939 = vadd.f32 0.0, %v3938
    %3940 = vdwg.mxu0
    %3941 = vmatpush.msra.mxu0 %v3426
    %3942 = vmatpush.msra.mxu0 %v3422
    %3943 = vmatpush.msra.mxu0 %v3418
    %3944 = vmatpush.msra.mxu0 %v3414
    %3945 = vmatpush.msra.mxu0 %v3410
    %3946 = vmatpush.msra.mxu0 %v3406
    %3947 = vmatpush.msra.mxu0 %v3402
    %3948 = vmatpush.msra.mxu0 %v3398
    %3949 = vmatpush.msra.mxu0 %v3394
    %3950 = vmatpush.msra.mxu0 %v3390
    %3951 = vmatpush.msra.mxu0 %v3386
    %3952 = vmatpush.msra.mxu0 %v3382
    %3953 = vmatpush.msra.mxu0 %v3378
    %3954 = vmatpush.msra.mxu0 %v3374
    %3955 = vmatpush.msra.mxu0 %v3370
    %3956 = vmatpush.msra.mxu0 %v3366
    %3957 = vmatmul.f32.gmra.mxu0 %v3920
    %v3958 = vpop.f32.mrf.mxu0
    %v3959 = vadd.f32 0.0, %v3958
    %3960 = vdwg.mxu0
    %3961 = vmatpush.msra.mxu0 %v3427
    %3962 = vmatpush.msra.mxu0 %v3423
    %3963 = vmatpush.msra.mxu0 %v3419
    %3964 = vmatpush.msra.mxu0 %v3415
    %3965 = vmatpush.msra.mxu0 %v3411
    %3966 = vmatpush.msra.mxu0 %v3407
    %3967 = vmatpush.msra.mxu0 %v3403
    %3968 = vmatpush.msra.mxu0 %v3399
    %3969 = vmatpush.msra.mxu0 %v3395
    %3970 = vmatpush.msra.mxu0 %v3391
    %3971 = vmatpush.msra.mxu0 %v3387
    %3972 = vmatpush.msra.mxu0 %v3383
    %3973 = vmatpush.msra.mxu0 %v3379
    %3974 = vmatpush.msra.mxu0 %v3375
    %3975 = vmatpush.msra.mxu0 %v3371
    %3976 = vmatpush.msra.mxu0 %v3367
    %3977 = vmatmul.f32.gmra.mxu0 %v3920
    %v3978 = vpop.f32.mrf.mxu0
    %v3979 = vadd.f32 0.0, %v3978
    %3980 = vdwg.mxu0
    %3981 = vmatpush.msra.mxu0 %v3428
    %3982 = vmatpush.msra.mxu0 %v3424
    %3983 = vmatpush.msra.mxu0 %v3420
    %3984 = vmatpush.msra.mxu0 %v3416
    %3985 = vmatpush.msra.mxu0 %v3412
    %3986 = vmatpush.msra.mxu0 %v3408
    %3987 = vmatpush.msra.mxu0 %v3404
    %3988 = vmatpush.msra.mxu0 %v3400
    %3989 = vmatpush.msra.mxu0 %v3396
    %3990 = vmatpush.msra.mxu0 %v3392
    %3991 = vmatpush.msra.mxu0 %v3388
    %3992 = vmatpush.msra.mxu0 %v3384
    %3993 = vmatpush.msra.mxu0 %v3380
    %3994 = vmatpush.msra.mxu0 %v3376
    %3995 = vmatpush.msra.mxu0 %v3372
    %3996 = vmatpush.msra.mxu0 %v3368
    %3997 = vmatmul.f32.gmra.mxu0 %v3920
    %v3998 = vpop.f32.mrf.mxu0
    %v3999 = vadd.f32 0.0, %v3998
    %4000 = vdwg.mxu0
    %v4001 = vadd.f32 %v3223, %v3939
    %v4002 = vadd.f32 %v3264, %v3959
    %v4003 = vadd.f32 %v3305, %v3979
    %v4004 = vadd.f32 %v3346, %v3999
    %v4005 = vtanh.pop %v4001
    %v4006 = vtanh.pop %v4002
    %v4007 = vtanh.pop %v4003
    %v4008 = vtanh.pop %v4004
    %v4009 = vmul.f32 %v4005, 0.5
    %v4010 = vadd.f32 %v4009, 0.5
    %v4011 = vmul.f32 %v4006, 0.5
    %v4012 = vadd.f32 %v4011, 0.5
    %v4013 = vmul.f32 %v4008, 0.5
    %v4014 = vadd.f32 %v4013, 0.5
    %v4015 = vmul.f32 %v4012, %v3918
    %v4016 = vmul.f32 %v4010, %v4007
    %v4017 = vadd.f32 %v4015, %v4016
    %v4018 = vtanh.pop %v4017
    %v4019 = vmul.f32 %v4014, %v4018
    %4020 = vmatpush.msra.mxu0 %v3425
    %4021 = vmatpush.msra.mxu0 %v3421
    %4022 = vmatpush.msra.mxu0 %v3417
    %4023 = vmatpush.msra.mxu0 %v3413
    %4024 = vmatpush.msra.mxu0 %v3409
    %4025 = vmatpush.msra.mxu0 %v3405
    %4026 = vmatpush.msra.mxu0 %v3401
    %4027 = vmatpush.msra.mxu0 %v3397
    %4028 = vmatpush.msra.mxu0 %v3393
    %4029 = vmatpush.msra.mxu0 %v3389
    %4030 = vmatpush.msra.mxu0 %v3385
    %4031 = vmatpush.msra.mxu0 %v3381
    %4032 = vmatpush.msra.mxu0 %v3377
    %4033 = vmatpush.msra.mxu0 %v3373
    %4034 = vmatpush.msra.mxu0 %v3369
    %4035 = vmatpush.msra.mxu0 %v3365
    %4036 = vmatmul.f32.gmra.mxu0 %v4019
    %v4037 = vpop.f32.mrf.mxu0
    %v4038 = vadd.f32 0.0, %v4037
    %4039 = vdwg.mxu0
    %4040 = vmatpush.msra.mxu0 %v3426
    %4041 = vmatpush.msra.mxu0 %v3422
    %4042 = vmatpush.msra.mxu0 %v3418
    %4043 = vmatpush.msra.mxu0 %v3414
    %4044 = vmatpush.msra.mxu0 %v3410
    %4045 = vmatpush.msra.mxu0 %v3406
    %4046 = vmatpush.msra.mxu0 %v3402
    %4047 = vmatpush.msra.mxu0 %v3398
    %4048 = vmatpush.msra.mxu0 %v3394
    %4049 = vmatpush.msra.mxu0 %v3390
    %4050 = vmatpush.msra.mxu0 %v3386
    %4051 = vmatpush.msra.mxu0 %v3382
    %4052 = vmatpush.msra.mxu0 %v3378
    %4053 = vmatpush.msra.mxu0 %v3374
    %4054 = vmatpush.msra.mxu0 %v3370
    %4055 = vmatpush.msra.mxu0 %v3366
    %4056 = vmatmul.f32.gmra.mxu0 %v4019
    %v4057 = vpop.f32.mrf.mxu0
    %v4058 = vadd.f32 0.0, %v4057
    %4059 = vdwg.mxu0
    %4060 = vmatpush.msra.mxu0 %v3427
    %4061 = vmatpush.msra.mxu0 %v3423
    %4062 = vmatpush.msra.mxu0 %v3419
    %4063 = vmatpush.msra.mxu0 %v3415
    %4064 = vmatpush.msra.mxu0 %v3411
    %4065 = vmatpush.msra.mxu0 %v3407
    %4066 = vmatpush.msra.mxu0 %v3403
    %4067 = vmatpush.msra.mxu0 %v3399
    %4068 = vmatpush.msra.mxu0 %v3395
    %4069 = vmatpush.msra.mxu0 %v3391
    %4070 = vmatpush.msra.mxu0 %v3387
    %4071 = vmatpush.msra.mxu0 %v3383
    %4072 = vmatpush.msra.mxu0 %v3379
    %4073 = vmatpush.msra.mxu0 %v3375
    %4074 = vmatpush.msra.mxu0 %v3371
    %4075 = vmatpush.msra.mxu0 %v3367
    %4076 = vmatmul.f32.gmra.mxu0 %v4019
    %v4077 = vpop.f32.mrf.mxu0
    %v4078 = vadd.f32 0.0, %v4077
    %4079 = vdwg.mxu0
    %4080 = vmatpush.msra.mxu0 %v3428
    %4081 = vmatpush.msra.mxu0 %v3424
    %4082 = vmatpush.msra.mxu0 %v3420
    %4083 = vmatpush.msra.mxu0 %v3416
    %4084 = vmatpush.msra.mxu0 %v3412
    %4085 = vmatpush.msra.mxu0 %v3408
    %4086 = vmatpush.msra.mxu0 %v3404
    %4087 = vmatpush.msra.mxu0 %v3400
    %4088 = vmatpush.msra.mxu0 %v3396
    %4089 = vmatpush.msra.mxu0 %v3392
    %4090 = vmatpush.msra.mxu0 %v3388
    %4091 = vmatpush.msra.mxu0 %v3384
    %4092 = vmatpush.msra.mxu0 %v3380
    %4093 = vmatpush.msra.mxu0 %v3376
    %4094 = vmatpush.msra.mxu0 %v3372
    %4095 = vmatpush.msra.mxu0 %v3368
    %4096 = vmatmul.f32.gmra.mxu0 %v4019
    %v4097 = vpop.f32.mrf.mxu0
    %v4098 = vadd.f32 0.0, %v4097
    %4099 = vdwg.mxu0
    %v4100 = vadd.f32 %v3226, %v4038
    %v4101 = vadd.f32 %v3267, %v4058
    %v4102 = vadd.f32 %v3308, %v4078
    %v4103 = vadd.f32 %v3349, %v4098
    %v4104 = vtanh.pop %v4100
    %v4105 = vtanh.pop %v4101
    %v4106 = vtanh.pop %v4102
    %v4107 = vtanh.pop %v4103
    %v4108 = vmul.f32 %v4104, 0.5
    %v4109 = vadd.f32 %v4108, 0.5
    %v4110 = vmul.f32 %v4105, 0.5
    %v4111 = vadd.f32 %v4110, 0.5
    %v4112 = vmul.f32 %v4107, 0.5
    %v4113 = vadd.f32 %v4112, 0.5
    %v4114 = vmul.f32 %v4111, %v4017
    %v4115 = vmul.f32 %v4109, %v4106
    %v4116 = vadd.f32 %v4114, %v4115
    %v4117 = vtanh.pop %v4116
    %v4118 = vmul.f32 %v4113, %v4117
    %4119 = vmatpush.msra.mxu0 %v3425
    %4120 = vmatpush.msra.mxu0 %v3421
    %4121 = vmatpush.msra.mxu0 %v3417
    %4122 = vmatpush.msra.mxu0 %v3413
    %4123 = vmatpush.msra.mxu0 %v3409
    %4124 = vmatpush.msra.mxu0 %v3405
    %4125 = vmatpush.msra.mxu0 %v3401
    %4126 = vmatpush.msra.mxu0 %v3397
    %4127 = vmatpush.msra.mxu0 %v3393
    %4128 = vmatpush.msra.mxu0 %v3389
    %4129 = vmatpush.msra.mxu0 %v3385
    %4130 = vmatpush.msra.mxu0 %v3381
    %4131 = vmatpush.msra.mxu0 %v3377
    %4132 = vmatpush.msra.mxu0 %v3373
    %4133 = vmatpush.msra.mxu0 %v3369
    %4134 = vmatpush.msra.mxu0 %v3365
    %4135 = vmatmul.f32.gmra.mxu0 %v4118
    %v4136 = vpop.f32.mrf.mxu0
    %v4137 = vadd.f32 0.0, %v4136
    %4138 = vdwg.mxu0
    %4139 = vmatpush.msra.mxu0 %v3426
    %4140 = vmatpush.msra.mxu0 %v3422
    %4141 = vmatpush.msra.mxu0 %v3418
    %4142 = vmatpush.msra.mxu0 %v3414
    %4143 = vmatpush.msra.mxu0 %v3410
    %4144 = vmatpush.msra.mxu0 %v3406
    %4145 = vmatpush.msra.mxu0 %v3402
    %4146 = vmatpush.msra.mxu0 %v3398
    %4147 = vmatpush.msra.mxu0 %v3394
    %4148 = vmatpush.msra.mxu0 %v3390
    %4149 = vmatpush.msra.mxu0 %v3386
    %4150 = vmatpush.msra.mxu0 %v3382
    %4151 = vmatpush.msra.mxu0 %v3378
    %4152 = vmatpush.msra.mxu0 %v3374
    %4153 = vmatpush.msra.mxu0 %v3370
    %4154 = vmatpush.msra.mxu0 %v3366
    %4155 = vmatmul.f32.gmra.mxu0 %v4118
    %v4156 = vpop.f32.mrf.mxu0
    %v4157 = vadd.f32 0.0, %v4156
    %4158 = vdwg.mxu0
    %4159 = vmatpush.msra.mxu0 %v3427
    %4160 = vmatpush.msra.mxu0 %v3423
    %4161 = vmatpush.msra.mxu0 %v3419
    %4162 = vmatpush.msra.mxu0 %v3415
    %4163 = vmatpush.msra.mxu0 %v3411
    %4164 = vmatpush.msra.mxu0 %v3407
    %4165 = vmatpush.msra.mxu0 %v3403
    %4166 = vmatpush.msra.mxu0 %v3399
    %4167 = vmatpush.msra.mxu0 %v3395
    %4168 = vmatpush.msra.mxu0 %v3391
    %4169 = vmatpush.msra.mxu0 %v3387
    %4170 = vmatpush.msra.mxu0 %v3383
    %4171 = vmatpush.msra.mxu0 %v3379
    %4172 = vmatpush.msra.mxu0 %v3375
    %4173 = vmatpush.msra.mxu0 %v3371
    %4174 = vmatpush.msra.mxu0 %v3367
    %4175 = vmatmul.f32.gmra.mxu0 %v4118
    %v4176 = vpop.f32.mrf.mxu0
    %v4177 = vadd.f32 0.0, %v4176
    %4178 = vdwg.mxu0
    %4179 = vmatpush.msra.mxu0 %v3428
    %4180 = vmatpush.msra.mxu0 %v3424
    %4181 = vmatpush.msra.mxu0 %v3420
    %4182 = vmatpush.msra.mxu0 %v3416
    %4183 = vmatpush.msra.mxu0 %v3412
    %4184 = vmatpush.msra.mxu0 %v3408
    %4185 = vmatpush.msra.mxu0 %v3404
    %4186 = vmatpush.msra.mxu0 %v3400
    %4187 = vmatpush.msra.mxu0 %v3396
    %4188 = vmatpush.msra.mxu0 %v3392
    %4189 = vmatpush.msra.mxu0 %v3388
    %4190 = vmatpush.msra.mxu0 %v3384
    %4191 = vmatpush.msra.mxu0 %v3380
    %4192 = vmatpush.msra.mxu0 %v3376
    %4193 = vmatpush.msra.mxu0 %v3372
    %4194 = vmatpush.msra.mxu0 %v3368
    %4195 = vmatmul.f32.gmra.mxu0 %v4118
    %v4196 = vpop.f32.mrf.mxu0
    %v4197 = vadd.f32 0.0, %v4196
    %4198 = vdwg.mxu0
    %v4199 = vadd.f32 %v3229, %v4137
    %v4200 = vadd.f32 %v3270, %v4157
    %v4201 = vadd.f32 %v3311, %v4177
    %v4202 = vadd.f32 %v3352, %v4197
    %v4203 = vtanh.pop %v4199
    %v4204 = vtanh.pop %v4200
    %v4205 = vtanh.pop %v4201
    %v4206 = vtanh.pop %v4202
    %v4207 = vmul.f32 %v4203, 0.5
    %v4208 = vadd.f32 %v4207, 0.5
    %v4209 = vmul.f32 %v4204, 0.5
    %v4210 = vadd.f32 %v4209, 0.5
    %v4211 = vmul.f32 %v4206, 0.5
    %v4212 = vadd.f32 %v4211, 0.5
    %v4213 = vmul.f32 %v4210, %v4116
    %v4214 = vmul.f32 %v4208, %v4205
    %v4215 = vadd.f32 %v4213, %v4214
    %v4216 = vtanh.pop %v4215
    %v4217 = vmul.f32 %v4212, %v4216
    %4218 = vmatpush.msra.mxu0 %v3425
    %4219 = vmatpush.msra.mxu0 %v3421
    %4220 = vmatpush.msra.mxu0 %v3417
    %4221 = vmatpush.msra.mxu0 %v3413
    %4222 = vmatpush.msra.mxu0 %v3409
    %4223 = vmatpush.msra.mxu0 %v3405
    %4224 = vmatpush.msra.mxu0 %v3401
    %4225 = vmatpush.msra.mxu0 %v3397
    %4226 = vmatpush.msra.mxu0 %v3393
    %4227 = vmatpush.msra.mxu0 %v3389
    %4228 = vmatpush.msra.mxu0 %v3385
    %4229 = vmatpush.msra.mxu0 %v3381
    %4230 = vmatpush.msra.mxu0 %v3377
    %4231 = vmatpush.msra.mxu0 %v3373
    %4232 = vmatpush.msra.mxu0 %v3369
    %4233 = vmatpush.msra.mxu0 %v3365
    %4234 = vmatmul.f32.gmra.mxu0 %v4217
    %v4235 = vpop.f32.mrf.mxu0
    %v4236 = vadd.f32 0.0, %v4235
    %4237 = vdwg.mxu0
    %4238 = vmatpush.msra.mxu0 %v3426
    %4239 = vmatpush.msra.mxu0 %v3422
    %4240 = vmatpush.msra.mxu0 %v3418
    %4241 = vmatpush.msra.mxu0 %v3414
    %4242 = vmatpush.msra.mxu0 %v3410
    %4243 = vmatpush.msra.mxu0 %v3406
    %4244 = vmatpush.msra.mxu0 %v3402
    %4245 = vmatpush.msra.mxu0 %v3398
    %4246 = vmatpush.msra.mxu0 %v3394
    %4247 = vmatpush.msra.mxu0 %v3390
    %4248 = vmatpush.msra.mxu0 %v3386
    %4249 = vmatpush.msra.mxu0 %v3382
    %4250 = vmatpush.msra.mxu0 %v3378
    %4251 = vmatpush.msra.mxu0 %v3374
    %4252 = vmatpush.msra.mxu0 %v3370
    %4253 = vmatpush.msra.mxu0 %v3366
    %4254 = vmatmul.f32.gmra.mxu0 %v4217
    %v4255 = vpop.f32.mrf.mxu0
    %v4256 = vadd.f32 0.0, %v4255
    %4257 = vdwg.mxu0
    %4258 = vmatpush.msra.mxu0 %v3427
    %4259 = vmatpush.msra.mxu0 %v3423
    %4260 = vmatpush.msra.mxu0 %v3419
    %4261 = vmatpush.msra.mxu0 %v3415
    %4262 = vmatpush.msra.mxu0 %v3411
    %4263 = vmatpush.msra.mxu0 %v3407
    %4264 = vmatpush.msra.mxu0 %v3403
    %4265 = vmatpush.msra.mxu0 %v3399
    %4266 = vmatpush.msra.mxu0 %v3395
    %4267 = vmatpush.msra.mxu0 %v3391
    %4268 = vmatpush.msra.mxu0 %v3387
    %4269 = vmatpush.msra.mxu0 %v3383
    %4270 = vmatpush.msra.mxu0 %v3379
    %4271 = vmatpush.msra.mxu0 %v3375
    %4272 = vmatpush.msra.mxu0 %v3371
    %4273 = vmatpush.msra.mxu0 %v3367
    %4274 = vmatmul.f32.gmra.mxu0 %v4217
    %v4275 = vpop.f32.mrf.mxu0
    %v4276 = vadd.f32 0.0, %v4275
    %4277 = vdwg.mxu0
    %4278 = vmatpush.msra.mxu0 %v3428
    %4279 = vmatpush.msra.mxu0 %v3424
    %4280 = vmatpush.msra.mxu0 %v3420
    %4281 = vmatpush.msra.mxu0 %v3416
    %4282 = vmatpush.msra.mxu0 %v3412
    %4283 = vmatpush.msra.mxu0 %v3408
    %4284 = vmatpush.msra.mxu0 %v3404
    %4285 = vmatpush.msra.mxu0 %v3400
    %4286 = vmatpush.msra.mxu0 %v3396
    %4287 = vmatpush.msra.mxu0 %v3392
    %4288 = vmatpush.msra.mxu0 %v3388
    %4289 = vmatpush.msra.mxu0 %v3384
    %4290 = vmatpush.msra.mxu0 %v3380
    %4291 = vmatpush.msra.mxu0 %v3376
    %4292 = vmatpush.msra.mxu0 %v3372
    %4293 = vmatpush.msra.mxu0 %v3368
    %4294 = vmatmul.f32.gmra.mxu0 %v4217
    %v4295 = vpop.f32.mrf.mxu0
    %v4296 = vadd.f32 0.0, %v4295
    %4297 = vdwg.mxu0
    %v4298 = vadd.f32 %v3232, %v4236
    %v4299 = vadd.f32 %v3273, %v4256
    %v4300 = vadd.f32 %v3314, %v4276
    %v4301 = vadd.f32 %v3355, %v4296
    %v4302 = vtanh.pop %v4298
    %v4303 = vtanh.pop %v4299
    %v4304 = vtanh.pop %v4300
    %v4305 = vtanh.pop %v4301
    %v4306 = vmul.f32 %v4302, 0.5
    %v4307 = vadd.f32 %v4306, 0.5
    %v4308 = vmul.f32 %v4303, 0.5
    %v4309 = vadd.f32 %v4308, 0.5
    %v4310 = vmul.f32 %v4305, 0.5
    %v4311 = vadd.f32 %v4310, 0.5
    %v4312 = vmul.f32 %v4309, %v4215
    %v4313 = vmul.f32 %v4307, %v4304
    %v4314 = vadd.f32 %v4312, %v4313
    %v4315 = vtanh.pop %v4314
    %v4316 = vmul.f32 %v4311, %v4315
    %4317 = vmatpush.msra.mxu0 %v3425
    %4318 = vmatpush.msra.mxu0 %v3421
    %4319 = vmatpush.msra.mxu0 %v3417
    %4320 = vmatpush.msra.mxu0 %v3413
    %4321 = vmatpush.msra.mxu0 %v3409
    %4322 = vmatpush.msra.mxu0 %v3405
    %4323 = vmatpush.msra.mxu0 %v3401
    %4324 = vmatpush.msra.mxu0 %v3397
    %4325 = vmatpush.msra.mxu0 %v3393
    %4326 = vmatpush.msra.mxu0 %v3389
    %4327 = vmatpush.msra.mxu0 %v3385
    %4328 = vmatpush.msra.mxu0 %v3381
    %4329 = vmatpush.msra.mxu0 %v3377
    %4330 = vmatpush.msra.mxu0 %v3373
    %4331 = vmatpush.msra.mxu0 %v3369
    %4332 = vmatpush.msra.mxu0 %v3365
    %4333 = vmatmul.f32.gmra.mxu0 %v4316
    %v4334 = vpop.f32.mrf.mxu0
    %v4335 = vadd.f32 0.0, %v4334
    %4336 = vdwg.mxu0
    %4337 = vmatpush.msra.mxu0 %v3426
    %4338 = vmatpush.msra.mxu0 %v3422
    %4339 = vmatpush.msra.mxu0 %v3418
    %4340 = vmatpush.msra.mxu0 %v3414
    %4341 = vmatpush.msra.mxu0 %v3410
    %4342 = vmatpush.msra.mxu0 %v3406
    %4343 = vmatpush.msra.mxu0 %v3402
    %4344 = vmatpush.msra.mxu0 %v3398
    %4345 = vmatpush.msra.mxu0 %v3394
    %4346 = vmatpush.msra.mxu0 %v3390
    %4347 = vmatpush.msra.mxu0 %v3386
    %4348 = vmatpush.msra.mxu0 %v3382
    %4349 = vmatpush.msra.mxu0 %v3378
    %4350 = vmatpush.msra.mxu0 %v3374
    %4351 = vmatpush.msra.mxu0 %v3370
    %4352 = vmatpush.msra.mxu0 %v3366
    %4353 = vmatmul.f32.gmra.mxu0 %v4316
    %v4354 = vpop.f32.mrf.mxu0
    %v4355 = vadd.f32 0.0, %v4354
    %4356 = vdwg.mxu0
    %4357 = vmatpush.msra.mxu0 %v3427
    %4358 = vmatpush.msra.mxu0 %v3423
    %4359 = vmatpush.msra.mxu0 %v3419
    %4360 = vmatpush.msra.mxu0 %v3415
    %4361 = vmatpush.msra.mxu0 %v3411
    %4362 = vmatpush.msra.mxu0 %v3407
    %4363 = vmatpush.msra.mxu0 %v3403
    %4364 = vmatpush.msra.mxu0 %v3399
    %4365 = vmatpush.msra.mxu0 %v3395
    %4366 = vmatpush.msra.mxu0 %v3391
    %4367 = vmatpush.msra.mxu0 %v3387
    %4368 = vmatpush.msra.mxu0 %v3383
    %4369 = vmatpush.msra.mxu0 %v3379
    %4370 = vmatpush.msra.mxu0 %v3375
    %4371 = vmatpush.msra.mxu0 %v3371
    %4372 = vmatpush.msra.mxu0 %v3367
    %4373 = vmatmul.f32.gmra.mxu0 %v4316
    %v4374 = vpop.f32.mrf.mxu0
    %v4375 = vadd.f32 0.0, %v4374
    %4376 = vdwg.mxu0
    %4377 = vmatpush.msra.mxu0 %v3428
    %4378 = vmatpush.msra.mxu0 %v3424
    %4379 = vmatpush.msra.mxu0 %v3420
    %4380 = vmatpush.msra.mxu0 %v3416
    %4381 = vmatpush.msra.mxu0 %v3412
    %4382 = vmatpush.msra.mxu0 %v3408
    %4383 = vmatpush.msra.mxu0 %v3404
    %4384 = vmatpush.msra.mxu0 %v3400
    %4385 = vmatpush.msra.mxu0 %v3396
    %4386 = vmatpush.msra.mxu0 %v3392
    %4387 = vmatpush.msra.mxu0 %v3388
    %4388 = vmatpush.msra.mxu0 %v3384
    %4389 = vmatpush.msra.mxu0 %v3380
    %4390 = vmatpush.msra.mxu0 %v3376
    %4391 = vmatpush.msra.mxu0 %v3372
    %4392 = vmatpush.msra.mxu0 %v3368
    %4393 = vmatmul.f32.gmra.mxu0 %v4316
    %v4394 = vpop.f32.mrf.mxu0
    %v4395 = vadd.f32 0.0, %v4394
    %4396 = vdwg.mxu0
    %v4397 = vadd.f32 %v3235, %v4335
    %v4398 = vadd.f32 %v3276, %v4355
    %v4399 = vadd.f32 %v3317, %v4375
    %v4400 = vadd.f32 %v3358, %v4395
    %v4401 = vtanh.pop %v4397
    %v4402 = vtanh.pop %v4398
    %v4403 = vtanh.pop %v4399
    %v4404 = vtanh.pop %v4400
    %v4405 = vmul.f32 %v4401, 0.5
    %v4406 = vadd.f32 %v4405, 0.5
    %v4407 = vmul.f32 %v4402, 0.5
    %v4408 = vadd.f32 %v4407, 0.5
    %v4409 = vmul.f32 %v4404, 0.5
    %v4410 = vadd.f32 %v4409, 0.5
    %v4411 = vmul.f32 %v4408, %v4314
    %v4412 = vmul.f32 %v4406, %v4403
    %v4413 = vadd.f32 %v4411, %v4412
    %v4414 = vtanh.pop %v4413
    %v4415 = vmul.f32 %v4410, %v4414
    %4416 = vmatpush.msra.mxu0 %v3425
    %4417 = vmatpush.msra.mxu0 %v3421
    %4418 = vmatpush.msra.mxu0 %v3417
    %4419 = vmatpush.msra.mxu0 %v3413
    %4420 = vmatpush.msra.mxu0 %v3409
    %4421 = vmatpush.msra.mxu0 %v3405
    %4422 = vmatpush.msra.mxu0 %v3401
    %4423 = vmatpush.msra.mxu0 %v3397
    %4424 = vmatpush.msra.mxu0 %v3393
    %4425 = vmatpush.msra.mxu0 %v3389
    %4426 = vmatpush.msra.mxu0 %v3385
    %4427 = vmatpush.msra.mxu0 %v3381
    %4428 = vmatpush.msra.mxu0 %v3377
    %4429 = vmatpush.msra.mxu0 %v3373
    %4430 = vmatpush.msra.mxu0 %v3369
    %4431 = vmatpush.msra.mxu0 %v3365
    %4432 = vmatmul.f32.gmra.mxu0 %v4415
    %v4433 = vpop.f32.mrf.mxu0
    %v4434 = vadd.f32 0.0, %v4433
    %4435 = vdwg.mxu0
    %4436 = vmatpush.msra.mxu0 %v3426
    %4437 = vmatpush.msra.mxu0 %v3422
    %4438 = vmatpush.msra.mxu0 %v3418
    %4439 = vmatpush.msra.mxu0 %v3414
    %4440 = vmatpush.msra.mxu0 %v3410
    %4441 = vmatpush.msra.mxu0 %v3406
    %4442 = vmatpush.msra.mxu0 %v3402
    %4443 = vmatpush.msra.mxu0 %v3398
    %4444 = vmatpush.msra.mxu0 %v3394
    %4445 = vmatpush.msra.mxu0 %v3390
    %4446 = vmatpush.msra.mxu0 %v3386
    %4447 = vmatpush.msra.mxu0 %v3382
    %4448 = vmatpush.msra.mxu0 %v3378
    %4449 = vmatpush.msra.mxu0 %v3374
    %4450 = vmatpush.msra.mxu0 %v3370
    %4451 = vmatpush.msra.mxu0 %v3366
    %4452 = vmatmul.f32.gmra.mxu0 %v4415
    %v4453 = vpop.f32.mrf.mxu0
    %v4454 = vadd.f32 0.0, %v4453
    %4455 = vdwg.mxu0
    %4456 = vmatpush.msra.mxu0 %v3427
    %4457 = vmatpush.msra.mxu0 %v3423
    %4458 = vmatpush.msra.mxu0 %v3419
    %4459 = vmatpush.msra.mxu0 %v3415
    %4460 = vmatpush.msra.mxu0 %v3411
    %4461 = vmatpush.msra.mxu0 %v3407
    %4462 = vmatpush.msra.mxu0 %v3403
    %4463 = vmatpush.msra.mxu0 %v3399
    %4464 = vmatpush.msra.mxu0 %v3395
    %4465 = vmatpush.msra.mxu0 %v3391
    %4466 = vmatpush.msra.mxu0 %v3387
    %4467 = vmatpush.msra.mxu0 %v3383
    %4468 = vmatpush.msra.mxu0 %v3379
    %4469 = vmatpush.msra.mxu0 %v3375
    %4470 = vmatpush.msra.mxu0 %v3371
    %4471 = vmatpush.msra.mxu0 %v3367
    %4472 = vmatmul.f32.gmra.mxu0 %v4415
    %v4473 = vpop.f32.mrf.mxu0
    %v4474 = vadd.f32 0.0, %v4473
    %4475 = vdwg.mxu0
    %4476 = vmatpush.msra.mxu0 %v3428
    %4477 = vmatpush.msra.mxu0 %v3424
    %4478 = vmatpush.msra.mxu0 %v3420
    %4479 = vmatpush.msra.mxu0 %v3416
    %4480 = vmatpush.msra.mxu0 %v3412
    %4481 = vmatpush.msra.mxu0 %v3408
    %4482 = vmatpush.msra.mxu0 %v3404
    %4483 = vmatpush.msra.mxu0 %v3400
    %4484 = vmatpush.msra.mxu0 %v3396
    %4485 = vmatpush.msra.mxu0 %v3392
    %4486 = vmatpush.msra.mxu0 %v3388
    %4487 = vmatpush.msra.mxu0 %v3384
    %4488 = vmatpush.msra.mxu0 %v3380
    %4489 = vmatpush.msra.mxu0 %v3376
    %4490 = vmatpush.msra.mxu0 %v3372
    %4491 = vmatpush.msra.mxu0 %v3368
    %4492 = vmatmul.f32.gmra.mxu0 %v4415
    %v4493 = vpop.f32.mrf.mxu0
    %v4494 = vadd.f32 0.0, %v4493
    %4495 = vdwg.mxu0
    %v4496 = vadd.f32 %v3238, %v4434
    %v4497 = vadd.f32 %v3279, %v4454
    %v4498 = vadd.f32 %v3320, %v4474
    %v4499 = vadd.f32 %v3361, %v4494
    %v4500 = vtanh.pop %v4496
    %v4501 = vtanh.pop %v4497
    %v4502 = vtanh.pop %v4498
    %v4503 = vtanh.pop %v4499
    %v4504 = vmul.f32 %v4500, 0.5
    %v4505 = vadd.f32 %v4504, 0.5
    %v4506 = vmul.f32 %v4501, 0.5
    %v4507 = vadd.f32 %v4506, 0.5
    %v4508 = vmul.f32 %v4503, 0.5
    %v4509 = vadd.f32 %v4508, 0.5
    %v4510 = vmul.f32 %v4507, %v4413
    %v4511 = vmul.f32 %v4505, %v4502
    %v4512 = vadd.f32 %v4510, %v4511
    %v4513 = vtanh.pop %v4512
    %v4514 = vmul.f32 %v4509, %v4513
    %s4515 = scalar_lea.vmem [#allocation5], 16
    %4516 = vst [vmem:[%s4515] sm:$0xff] %v4514
    %s4517 = scalar_lea.vmem [#allocation7], 16
    %4518 = vst [vmem:[%s4517] sm:$0xff] %v4512
    %s4519 = sshll.u32 %s328, 4
    %4520 = dma.done %s637, %s4519
    %v4521 = vld [vmem:[%s636] sm:$0xff]
    %v4522 = vld [vmem:[%s636 + $0x8] sm:$0xff]
    %v4523 = vld [vmem:[%s636 + $0x10] sm:$0xff]
    %v4524 = vld [vmem:[%s636 + $0x18] sm:$0xff]
    %v4525 = vld [vmem:[%s636 + $0x20] sm:$0xff]
    %v4526 = vld [vmem:[%s636 + $0x28] sm:$0xff]
    %v4527 = vld [vmem:[%s636 + $0x30] sm:$0xff]
    %v4528 = vld [vmem:[%s636 + $0x38] sm:$0xff]
    %v4529 = vld [vmem:[%s636 + $0x40] sm:$0xff]
    %v4530 = vld [vmem:[%s636 + $0x48] sm:$0xff]
    %v4531 = vld [vmem:[%s636 + $0x50] sm:$0xff]
    %v4532 = vld [vmem:[%s636 + $0x58] sm:$0xff]
    %v4533 = vld [vmem:[%s636 + $0x60] sm:$0xff]
    %v4534 = vld [vmem:[%s636 + $0x68] sm:$0xff]
    %v4535 = vld [vmem:[%s636 + $0x70] sm:$0xff]
    %v4536 = vld [vmem:[%s636 + $0x78] sm:$0xff]
    %v4537 = vld [vmem:[%s636 + $0x80] sm:$0xff]
    %v4538 = vld [vmem:[%s636 + $0x88] sm:$0xff]
    %v4539 = vld [vmem:[%s636 + $0x90] sm:$0xff]
    %v4540 = vld [vmem:[%s636 + $0x98] sm:$0xff]
    %v4541 = vld [vmem:[%s636 + $0xa0] sm:$0xff]
    %v4542 = vld [vmem:[%s636 + $0xa8] sm:$0xff]
    %v4543 = vld [vmem:[%s636 + $0xb0] sm:$0xff]
    %v4544 = vld [vmem:[%s636 + $0xb8] sm:$0xff]
    %v4545 = vld [vmem:[%s636 + $0xc0] sm:$0xff]
    %v4546 = vld [vmem:[%s636 + $0xc8] sm:$0xff]
    %v4547 = vld [vmem:[%s636 + $0xd0] sm:$0xff]
    %v4548 = vld [vmem:[%s636 + $0xd8] sm:$0xff]
    %v4549 = vld [vmem:[%s636 + $0xe0] sm:$0xff]
    %v4550 = vld [vmem:[%s636 + $0xe8] sm:$0xff]
    %v4551 = vld [vmem:[%s636 + $0xf0] sm:$0xff]
    %v4552 = vld [vmem:[%s636 + $0xf8] sm:$0xff]
    %v4553 = vld [vmem:[%s636 + $0x100] sm:$0xff]
    %v4554 = vld [vmem:[%s636 + $0x108] sm:$0xff]
    %v4555 = vld [vmem:[%s636 + $0x110] sm:$0xff]
    %v4556 = vld [vmem:[%s636 + $0x118] sm:$0xff]
    %v4557 = vld [vmem:[%s636 + $0x120] sm:$0xff]
    %v4558 = vld [vmem:[%s636 + $0x128] sm:$0xff]
    %v4559 = vld [vmem:[%s636 + $0x130] sm:$0xff]
    %v4560 = vld [vmem:[%s636 + $0x138] sm:$0xff]
    %v4561 = vld [vmem:[%s636 + $0x140] sm:$0xff]
    %v4562 = vld [vmem:[%s636 + $0x148] sm:$0xff]
    %v4563 = vld [vmem:[%s636 + $0x150] sm:$0xff]
    %v4564 = vld [vmem:[%s636 + $0x158] sm:$0xff]
    %v4565 = vld [vmem:[%s636 + $0x160] sm:$0xff]
    %v4566 = vld [vmem:[%s636 + $0x168] sm:$0xff]
    %v4567 = vld [vmem:[%s636 + $0x170] sm:$0xff]
    %v4568 = vld [vmem:[%s636 + $0x178] sm:$0xff]
    %v4569 = vld [vmem:[%s636 + $0x180] sm:$0xff]
    %v4570 = vld [vmem:[%s636 + $0x188] sm:$0xff]
    %v4571 = vld [vmem:[%s636 + $0x190] sm:$0xff]
    %v4572 = vld [vmem:[%s636 + $0x198] sm:$0xff]
    %v4573 = vld [vmem:[%s636 + $0x1a0] sm:$0xff]
    %v4574 = vld [vmem:[%s636 + $0x1a8] sm:$0xff]
    %v4575 = vld [vmem:[%s636 + $0x1b0] sm:$0xff]
    %v4576 = vld [vmem:[%s636 + $0x1b8] sm:$0xff]
    %v4577 = vld [vmem:[%s636 + $0x1c0] sm:$0xff]
    %v4578 = vld [vmem:[%s636 + $0x1c8] sm:$0xff]
    %v4579 = vld [vmem:[%s636 + $0x1d0] sm:$0xff]
    %v4580 = vld [vmem:[%s636 + $0x1d8] sm:$0xff]
    %v4581 = vld [vmem:[%s636 + $0x1e0] sm:$0xff]
    %v4582 = vld [vmem:[%s636 + $0x1e8] sm:$0xff]
    %v4583 = vld [vmem:[%s636 + $0x1f0] sm:$0xff]
    %v4584 = vld [vmem:[%s636 + $0x1f8] sm:$0xff]
    %s4585 = scalar_lea.vmem %s3, 12
    %v4586 = vld [vmem:[%s4585] sm:$0xf]
    %v4588 = vperm.slane %v4586, 0
    %v4589 = vperm.slane %v4586, 1
    %v4590 = vperm.slane %v4586, 2
    %v4591 = vperm.slane %v4586, 3
    %4596 = vmatpush.msra.mxu0 %v4581
    %4597 = vmatpush.msra.mxu0 %v4577
    %4598 = vmatpush.msra.mxu0 %v4573
    %4599 = vmatpush.msra.mxu0 %v4569
    %4600 = vmatpush.msra.mxu0 %v4565
    %4601 = vmatpush.msra.mxu0 %v4561
    %4602 = vmatpush.msra.mxu0 %v4557
    %4603 = vmatpush.msra.mxu0 %v4553
    %4604 = vmatpush.msra.mxu0 %v4549
    %4605 = vmatpush.msra.mxu0 %v4545
    %4606 = vmatpush.msra.mxu0 %v4541
    %4607 = vmatpush.msra.mxu0 %v4537
    %4608 = vmatpush.msra.mxu0 %v4533
    %4609 = vmatpush.msra.mxu0 %v4529
    %4610 = vmatpush.msra.mxu0 %v4525
    %4611 = vmatpush.msra.mxu0 %v4521
    %4612 = vmatmul.f32.gmra.mxu0 %v3821
    %v4613 = vpop.f32.mrf.mxu0
    %v4614 = vadd.f32 %v4588, %v4613
    %4615 = vmatmul.f32.gmra.mxu0 %v3920
    %v4616 = vpop.f32.mrf.mxu0
    %v4617 = vadd.f32 %v4588, %v4616
    %4618 = vmatmul.f32.gmra.mxu0 %v4019
    %v4619 = vpop.f32.mrf.mxu0
    %v4620 = vadd.f32 %v4588, %v4619
    %4621 = vmatmul.f32.gmra.mxu0 %v4118
    %v4622 = vpop.f32.mrf.mxu0
    %v4623 = vadd.f32 %v4588, %v4622
    %4624 = vmatmul.f32.gmra.mxu0 %v4217
    %v4625 = vpop.f32.mrf.mxu0
    %v4626 = vadd.f32 %v4588, %v4625
    %4627 = vmatmul.f32.gmra.mxu0 %v4316
    %v4628 = vpop.f32.mrf.mxu0
    %v4629 = vadd.f32 %v4588, %v4628
    %4630 = vmatmul.f32.gmra.mxu0 %v4415
    %v4631 = vpop.f32.mrf.mxu0
    %v4632 = vadd.f32 %v4588, %v4631
    %4633 = vmatmul.f32.gmra.mxu0 %v4514
    %v4634 = vpop.f32.mrf.mxu0
    %v4635 = vadd.f32 %v4588, %v4634
    %4636 = vdwg.mxu0
    %4637 = vmatpush.msra.mxu0 %v4582
    %4638 = vmatpush.msra.mxu0 %v4578
    %4639 = vmatpush.msra.mxu0 %v4574
    %4640 = vmatpush.msra.mxu0 %v4570
    %4641 = vmatpush.msra.mxu0 %v4566
    %4642 = vmatpush.msra.mxu0 %v4562
    %4643 = vmatpush.msra.mxu0 %v4558
    %4644 = vmatpush.msra.mxu0 %v4554
    %4645 = vmatpush.msra.mxu0 %v4550
    %4646 = vmatpush.msra.mxu0 %v4546
    %4647 = vmatpush.msra.mxu0 %v4542
    %4648 = vmatpush.msra.mxu0 %v4538
    %4649 = vmatpush.msra.mxu0 %v4534
    %4650 = vmatpush.msra.mxu0 %v4530
    %4651 = vmatpush.msra.mxu0 %v4526
    %4652 = vmatpush.msra.mxu0 %v4522
    %4653 = vmatmul.f32.gmra.mxu0 %v3821
    %v4654 = vpop.f32.mrf.mxu0
    %v4655 = vadd.f32 %v4589, %v4654
    %4656 = vmatmul.f32.gmra.mxu0 %v3920
    %v4657 = vpop.f32.mrf.mxu0
    %v4658 = vadd.f32 %v4589, %v4657
    %4659 = vmatmul.f32.gmra.mxu0 %v4019
    %v4660 = vpop.f32.mrf.mxu0
    %v4661 = vadd.f32 %v4589, %v4660
    %4662 = vmatmul.f32.gmra.mxu0 %v4118
    %v4663 = vpop.f32.mrf.mxu0
    %v4664 = vadd.f32 %v4589, %v4663
    %4665 = vmatmul.f32.gmra.mxu0 %v4217
    %v4666 = vpop.f32.mrf.mxu0
    %v4667 = vadd.f32 %v4589, %v4666
    %4668 = vmatmul.f32.gmra.mxu0 %v4316
    %v4669 = vpop.f32.mrf.mxu0
    %v4670 = vadd.f32 %v4589, %v4669
    %4671 = vmatmul.f32.gmra.mxu0 %v4415
    %v4672 = vpop.f32.mrf.mxu0
    %v4673 = vadd.f32 %v4589, %v4672
    %4674 = vmatmul.f32.gmra.mxu0 %v4514
    %v4675 = vpop.f32.mrf.mxu0
    %v4676 = vadd.f32 %v4589, %v4675
    %4677 = vdwg.mxu0
    %4678 = vmatpush.msra.mxu0 %v4583
    %4679 = vmatpush.msra.mxu0 %v4579
    %4680 = vmatpush.msra.mxu0 %v4575
    %4681 = vmatpush.msra.mxu0 %v4571
    %4682 = vmatpush.msra.mxu0 %v4567
    %4683 = vmatpush.msra.mxu0 %v4563
    %4684 = vmatpush.msra.mxu0 %v4559
    %4685 = vmatpush.msra.mxu0 %v4555
    %4686 = vmatpush.msra.mxu0 %v4551
    %4687 = vmatpush.msra.mxu0 %v4547
    %4688 = vmatpush.msra.mxu0 %v4543
    %4689 = vmatpush.msra.mxu0 %v4539
    %4690 = vmatpush.msra.mxu0 %v4535
    %4691 = vmatpush.msra.mxu0 %v4531
    %4692 = vmatpush.msra.mxu0 %v4527
    %4693 = vmatpush.msra.mxu0 %v4523
    %4694 = vmatmul.f32.gmra.mxu0 %v3821
    %v4695 = vpop.f32.mrf.mxu0
    %v4696 = vadd.f32 %v4590, %v4695
    %4697 = vmatmul.f32.gmra.mxu0 %v3920
    %v4698 = vpop.f32.mrf.mxu0
    %v4699 = vadd.f32 %v4590, %v4698
    %4700 = vmatmul.f32.gmra.mxu0 %v4019
    %v4701 = vpop.f32.mrf.mxu0
    %v4702 = vadd.f32 %v4590, %v4701
    %4703 = vmatmul.f32.gmra.mxu0 %v4118
    %v4704 = vpop.f32.mrf.mxu0
    %v4705 = vadd.f32 %v4590, %v4704
    %4706 = vmatmul.f32.gmra.mxu0 %v4217
    %v4707 = vpop.f32.mrf.mxu0
    %v4708 = vadd.f32 %v4590, %v4707
    %4709 = vmatmul.f32.gmra.mxu0 %v4316
    %v4710 = vpop.f32.mrf.mxu0
    %v4711 = vadd.f32 %v4590, %v4710
    %4712 = vmatmul.f32.gmra.mxu0 %v4415
    %v4713 = vpop.f32.mrf.mxu0
    %v4714 = vadd.f32 %v4590, %v4713
    %4715 = vmatmul.f32.gmra.mxu0 %v4514
    %v4716 = vpop.f32.mrf.mxu0
    %v4717 = vadd.f32 %v4590, %v4716
    %4718 = vdwg.mxu0
    %4719 = vmatpush.msra.mxu0 %v4584
    %4720 = vmatpush.msra.mxu0 %v4580
    %4721 = vmatpush.msra.mxu0 %v4576
    %4722 = vmatpush.msra.mxu0 %v4572
    %4723 = vmatpush.msra.mxu0 %v4568
    %4724 = vmatpush.msra.mxu0 %v4564
    %4725 = vmatpush.msra.mxu0 %v4560
    %4726 = vmatpush.msra.mxu0 %v4556
    %4727 = vmatpush.msra.mxu0 %v4552
    %4728 = vmatpush.msra.mxu0 %v4548
    %4729 = vmatpush.msra.mxu0 %v4544
    %4730 = vmatpush.msra.mxu0 %v4540
    %4731 = vmatpush.msra.mxu0 %v4536
    %4732 = vmatpush.msra.mxu0 %v4532
    %4733 = vmatpush.msra.mxu0 %v4528
    %4734 = vmatpush.msra.mxu0 %v4524
    %4735 = vmatmul.f32.gmra.mxu0 %v3821
    %v4736 = vpop.f32.mrf.mxu0
    %v4737 = vadd.f32 %v4591, %v4736
    %4738 = vmatmul.f32.gmra.mxu0 %v3920
    %v4739 = vpop.f32.mrf.mxu0
    %v4740 = vadd.f32 %v4591, %v4739
    %4741 = vmatmul.f32.gmra.mxu0 %v4019
    %v4742 = vpop.f32.mrf.mxu0
    %v4743 = vadd.f32 %v4591, %v4742
    %4744 = vmatmul.f32.gmra.mxu0 %v4118
    %v4745 = vpop.f32.mrf.mxu0
    %v4746 = vadd.f32 %v4591, %v4745
    %4747 = vmatmul.f32.gmra.mxu0 %v4217
    %v4748 = vpop.f32.mrf.mxu0
    %v4749 = vadd.f32 %v4591, %v4748
    %4750 = vmatmul.f32.gmra.mxu0 %v4316
    %v4751 = vpop.f32.mrf.mxu0
    %v4752 = vadd.f32 %v4591, %v4751
    %4753 = vmatmul.f32.gmra.mxu0 %v4415
    %v4754 = vpop.f32.mrf.mxu0
    %v4755 = vadd.f32 %v4591, %v4754
    %4756 = vmatmul.f32.gmra.mxu0 %v4514
    %v4757 = vpop.f32.mrf.mxu0
    %v4758 = vadd.f32 %v4591, %v4757
    %4759 = vdwg.mxu0
    %s4760 = sshll.u32 %s328, 4
    %4761 = dma.done %s784, %s4760
    %v4762 = vld [vmem:[%s783] sm:$0xff]
    %v4763 = vld [vmem:[%s783 + $0x8] sm:$0xff]
    %v4764 = vld [vmem:[%s783 + $0x10] sm:$0xff]
    %v4765 = vld [vmem:[%s783 + $0x18] sm:$0xff]
    %v4766 = vld [vmem:[%s783 + $0x20] sm:$0xff]
    %v4767 = vld [vmem:[%s783 + $0x28] sm:$0xff]
    %v4768 = vld [vmem:[%s783 + $0x30] sm:$0xff]
    %v4769 = vld [vmem:[%s783 + $0x38] sm:$0xff]
    %v4770 = vld [vmem:[%s783 + $0x40] sm:$0xff]
    %v4771 = vld [vmem:[%s783 + $0x48] sm:$0xff]
    %v4772 = vld [vmem:[%s783 + $0x50] sm:$0xff]
    %v4773 = vld [vmem:[%s783 + $0x58] sm:$0xff]
    %v4774 = vld [vmem:[%s783 + $0x60] sm:$0xff]
    %v4775 = vld [vmem:[%s783 + $0x68] sm:$0xff]
    %v4776 = vld [vmem:[%s783 + $0x70] sm:$0xff]
    %v4777 = vld [vmem:[%s783 + $0x78] sm:$0xff]
    %v4778 = vld [vmem:[%s783 + $0x80] sm:$0xff]
    %v4779 = vld [vmem:[%s783 + $0x88] sm:$0xff]
    %v4780 = vld [vmem:[%s783 + $0x90] sm:$0xff]
    %v4781 = vld [vmem:[%s783 + $0x98] sm:$0xff]
    %v4782 = vld [vmem:[%s783 + $0xa0] sm:$0xff]
    %v4783 = vld [vmem:[%s783 + $0xa8] sm:$0xff]
    %v4784 = vld [vmem:[%s783 + $0xb0] sm:$0xff]
    %v4785 = vld [vmem:[%s783 + $0xb8] sm:$0xff]
    %v4786 = vld [vmem:[%s783 + $0xc0] sm:$0xff]
    %v4787 = vld [vmem:[%s783 + $0xc8] sm:$0xff]
    %v4788 = vld [vmem:[%s783 + $0xd0] sm:$0xff]
    %v4789 = vld [vmem:[%s783 + $0xd8] sm:$0xff]
    %v4790 = vld [vmem:[%s783 + $0xe0] sm:$0xff]
    %v4791 = vld [vmem:[%s783 + $0xe8] sm:$0xff]
    %v4792 = vld [vmem:[%s783 + $0xf0] sm:$0xff]
    %v4793 = vld [vmem:[%s783 + $0xf8] sm:$0xff]
    %v4794 = vld [vmem:[%s783 + $0x100] sm:$0xff]
    %v4795 = vld [vmem:[%s783 + $0x108] sm:$0xff]
    %v4796 = vld [vmem:[%s783 + $0x110] sm:$0xff]
    %v4797 = vld [vmem:[%s783 + $0x118] sm:$0xff]
    %v4798 = vld [vmem:[%s783 + $0x120] sm:$0xff]
    %v4799 = vld [vmem:[%s783 + $0x128] sm:$0xff]
    %v4800 = vld [vmem:[%s783 + $0x130] sm:$0xff]
    %v4801 = vld [vmem:[%s783 + $0x138] sm:$0xff]
    %v4802 = vld [vmem:[%s783 + $0x140] sm:$0xff]
    %v4803 = vld [vmem:[%s783 + $0x148] sm:$0xff]
    %v4804 = vld [vmem:[%s783 + $0x150] sm:$0xff]
    %v4805 = vld [vmem:[%s783 + $0x158] sm:$0xff]
    %v4806 = vld [vmem:[%s783 + $0x160] sm:$0xff]
    %v4807 = vld [vmem:[%s783 + $0x168] sm:$0xff]
    %v4808 = vld [vmem:[%s783 + $0x170] sm:$0xff]
    %v4809 = vld [vmem:[%s783 + $0x178] sm:$0xff]
    %v4810 = vld [vmem:[%s783 + $0x180] sm:$0xff]
    %v4811 = vld [vmem:[%s783 + $0x188] sm:$0xff]
    %v4812 = vld [vmem:[%s783 + $0x190] sm:$0xff]
    %v4813 = vld [vmem:[%s783 + $0x198] sm:$0xff]
    %v4814 = vld [vmem:[%s783 + $0x1a0] sm:$0xff]
    %v4815 = vld [vmem:[%s783 + $0x1a8] sm:$0xff]
    %v4816 = vld [vmem:[%s783 + $0x1b0] sm:$0xff]
    %v4817 = vld [vmem:[%s783 + $0x1b8] sm:$0xff]
    %v4818 = vld [vmem:[%s783 + $0x1c0] sm:$0xff]
    %v4819 = vld [vmem:[%s783 + $0x1c8] sm:$0xff]
    %v4820 = vld [vmem:[%s783 + $0x1d0] sm:$0xff]
    %v4821 = vld [vmem:[%s783 + $0x1d8] sm:$0xff]
    %v4822 = vld [vmem:[%s783 + $0x1e0] sm:$0xff]
    %v4823 = vld [vmem:[%s783 + $0x1e8] sm:$0xff]
    %v4824 = vld [vmem:[%s783 + $0x1f0] sm:$0xff]
    %v4825 = vld [vmem:[%s783 + $0x1f8] sm:$0xff]
    %s4826 = scalar_lea.vmem %s6, 2048
    // Predicated region
    $region178: #{mv_lstm_forward.1} parent=1 // pred_check
      _
    $region179: #{mv_lstm_forward.1} parent=1 // pred_check_branch
      %4828 = sbr.rel (0) target = $region181
    $region180: #{mv_lstm_forward.1} parent=1 // pred_region
      loop: start=0, step=1, limit=1
      $region182: #{mv_lstm_forward.1} parent=180 // loop_pre_header
        _
      $region183: #{mv_lstm_forward.1} parent=180 // loop_header
        %s4830 = sphi 0, %s4834
        %p4831 = scmp.ge.s32.totalorder %s4830, 1
        %s4835 = sphi %s4826, %s4826
        %s4836 = sphi [#allocation2], [#allocation2]
      $region184: #{mv_lstm_forward.1} parent=180 // loop_header_branch
        %4833 = sbr.rel (%p4831) target = $region188
      $region185: #{mv_lstm_forward.1} parent=180 // loop_body
        %v4837 = vld [vmem:[%s4835] sm:$0xff]
        %4838 = vst [vmem:[%s4836] sm:$0xff] %v4837
        %v4839 = vld [vmem:[%s4835 + $0x8] sm:$0xff]
        %4840 = vst [vmem:[%s4836 + $0x8] sm:$0xff] %v4839
        %v4841 = vld [vmem:[%s4835 + $0x10] sm:$0xff]
        %4842 = vst [vmem:[%s4836 + $0x10] sm:$0xff] %v4841
        %v4843 = vld [vmem:[%s4835 + $0x18] sm:$0xff]
        %4844 = vst [vmem:[%s4836 + $0x18] sm:$0xff] %v4843
        %v4845 = vld [vmem:[%s4835 + $0x20] sm:$0xff]
        %4846 = vst [vmem:[%s4836 + $0x20] sm:$0xff] %v4845
        %v4847 = vld [vmem:[%s4835 + $0x28] sm:$0xff]
        %4848 = vst [vmem:[%s4836 + $0x28] sm:$0xff] %v4847
        %v4849 = vld [vmem:[%s4835 + $0x30] sm:$0xff]
        %4850 = vst [vmem:[%s4836 + $0x30] sm:$0xff] %v4849
        %v4851 = vld [vmem:[%s4835 + $0x38] sm:$0xff]
        %4852 = vst [vmem:[%s4836 + $0x38] sm:$0xff] %v4851
        %v4853 = vld [vmem:[%s4835 + $0x40] sm:$0xff]
        %4854 = vst [vmem:[%s4836 + $0x40] sm:$0xff] %v4853
        %v4855 = vld [vmem:[%s4835 + $0x48] sm:$0xff]
        %4856 = vst [vmem:[%s4836 + $0x48] sm:$0xff] %v4855
        %v4857 = vld [vmem:[%s4835 + $0x50] sm:$0xff]
        %4858 = vst [vmem:[%s4836 + $0x50] sm:$0xff] %v4857
        %v4859 = vld [vmem:[%s4835 + $0x58] sm:$0xff]
        %4860 = vst [vmem:[%s4836 + $0x58] sm:$0xff] %v4859
        %v4861 = vld [vmem:[%s4835 + $0x60] sm:$0xff]
        %4862 = vst [vmem:[%s4836 + $0x60] sm:$0xff] %v4861
        %v4863 = vld [vmem:[%s4835 + $0x68] sm:$0xff]
        %4864 = vst [vmem:[%s4836 + $0x68] sm:$0xff] %v4863
        %v4865 = vld [vmem:[%s4835 + $0x70] sm:$0xff]
        %4866 = vst [vmem:[%s4836 + $0x70] sm:$0xff] %v4865
        %v4867 = vld [vmem:[%s4835 + $0x78] sm:$0xff]
        %4868 = vst [vmem:[%s4836 + $0x78] sm:$0xff] %v4867
        %v4869 = vld [vmem:[%s4835 + $0x80] sm:$0xff]
        %4870 = vst [vmem:[%s4836 + $0x80] sm:$0xff] %v4869
        %v4871 = vld [vmem:[%s4835 + $0x88] sm:$0xff]
        %4872 = vst [vmem:[%s4836 + $0x88] sm:$0xff] %v4871
        %v4873 = vld [vmem:[%s4835 + $0x90] sm:$0xff]
        %4874 = vst [vmem:[%s4836 + $0x90] sm:$0xff] %v4873
        %v4875 = vld [vmem:[%s4835 + $0x98] sm:$0xff]
        %4876 = vst [vmem:[%s4836 + $0x98] sm:$0xff] %v4875
        %v4877 = vld [vmem:[%s4835 + $0xa0] sm:$0xff]
        %4878 = vst [vmem:[%s4836 + $0xa0] sm:$0xff] %v4877
        %v4879 = vld [vmem:[%s4835 + $0xa8] sm:$0xff]
        %4880 = vst [vmem:[%s4836 + $0xa8] sm:$0xff] %v4879
        %v4881 = vld [vmem:[%s4835 + $0xb0] sm:$0xff]
        %4882 = vst [vmem:[%s4836 + $0xb0] sm:$0xff] %v4881
        %v4883 = vld [vmem:[%s4835 + $0xb8] sm:$0xff]
        %4884 = vst [vmem:[%s4836 + $0xb8] sm:$0xff] %v4883
        %v4885 = vld [vmem:[%s4835 + $0xc0] sm:$0xff]
        %4886 = vst [vmem:[%s4836 + $0xc0] sm:$0xff] %v4885
        %v4887 = vld [vmem:[%s4835 + $0xc8] sm:$0xff]
        %4888 = vst [vmem:[%s4836 + $0xc8] sm:$0xff] %v4887
        %v4889 = vld [vmem:[%s4835 + $0xd0] sm:$0xff]
        %4890 = vst [vmem:[%s4836 + $0xd0] sm:$0xff] %v4889
        %v4891 = vld [vmem:[%s4835 + $0xd8] sm:$0xff]
        %4892 = vst [vmem:[%s4836 + $0xd8] sm:$0xff] %v4891
        %v4893 = vld [vmem:[%s4835 + $0xe0] sm:$0xff]
        %4894 = vst [vmem:[%s4836 + $0xe0] sm:$0xff] %v4893
        %v4895 = vld [vmem:[%s4835 + $0xe8] sm:$0xff]
        %4896 = vst [vmem:[%s4836 + $0xe8] sm:$0xff] %v4895
        %v4897 = vld [vmem:[%s4835 + $0xf0] sm:$0xff]
        %4898 = vst [vmem:[%s4836 + $0xf0] sm:$0xff] %v4897
        %v4899 = vld [vmem:[%s4835 + $0xf8] sm:$0xff]
        %4900 = vst [vmem:[%s4836 + $0xf8] sm:$0xff] %v4899
        %v4901 = vld [vmem:[%s4835 + $0x100] sm:$0xff]
        %4902 = vst [vmem:[%s4836 + $0x100] sm:$0xff] %v4901
        %v4903 = vld [vmem:[%s4835 + $0x108] sm:$0xff]
        %4904 = vst [vmem:[%s4836 + $0x108] sm:$0xff] %v4903
        %v4905 = vld [vmem:[%s4835 + $0x110] sm:$0xff]
        %4906 = vst [vmem:[%s4836 + $0x110] sm:$0xff] %v4905
        %v4907 = vld [vmem:[%s4835 + $0x118] sm:$0xff]
        %4908 = vst [vmem:[%s4836 + $0x118] sm:$0xff] %v4907
        %v4909 = vld [vmem:[%s4835 + $0x120] sm:$0xff]
        %4910 = vst [vmem:[%s4836 + $0x120] sm:$0xff] %v4909
        %v4911 = vld [vmem:[%s4835 + $0x128] sm:$0xff]
        %4912 = vst [vmem:[%s4836 + $0x128] sm:$0xff] %v4911
        %v4913 = vld [vmem:[%s4835 + $0x130] sm:$0xff]
        %4914 = vst [vmem:[%s4836 + $0x130] sm:$0xff] %v4913
        %v4915 = vld [vmem:[%s4835 + $0x138] sm:$0xff]
        %4916 = vst [vmem:[%s4836 + $0x138] sm:$0xff] %v4915
        %v4917 = vld [vmem:[%s4835 + $0x140] sm:$0xff]
        %4918 = vst [vmem:[%s4836 + $0x140] sm:$0xff] %v4917
        %v4919 = vld [vmem:[%s4835 + $0x148] sm:$0xff]
        %4920 = vst [vmem:[%s4836 + $0x148] sm:$0xff] %v4919
        %v4921 = vld [vmem:[%s4835 + $0x150] sm:$0xff]
        %4922 = vst [vmem:[%s4836 + $0x150] sm:$0xff] %v4921
        %v4923 = vld [vmem:[%s4835 + $0x158] sm:$0xff]
        %4924 = vst [vmem:[%s4836 + $0x158] sm:$0xff] %v4923
        %v4925 = vld [vmem:[%s4835 + $0x160] sm:$0xff]
        %4926 = vst [vmem:[%s4836 + $0x160] sm:$0xff] %v4925
        %v4927 = vld [vmem:[%s4835 + $0x168] sm:$0xff]
        %4928 = vst [vmem:[%s4836 + $0x168] sm:$0xff] %v4927
        %v4929 = vld [vmem:[%s4835 + $0x170] sm:$0xff]
        %4930 = vst [vmem:[%s4836 + $0x170] sm:$0xff] %v4929
        %v4931 = vld [vmem:[%s4835 + $0x178] sm:$0xff]
        %4932 = vst [vmem:[%s4836 + $0x178] sm:$0xff] %v4931
        %v4933 = vld [vmem:[%s4835 + $0x180] sm:$0xff]
        %4934 = vst [vmem:[%s4836 + $0x180] sm:$0xff] %v4933
        %v4935 = vld [vmem:[%s4835 + $0x188] sm:$0xff]
        %4936 = vst [vmem:[%s4836 + $0x188] sm:$0xff] %v4935
        %v4937 = vld [vmem:[%s4835 + $0x190] sm:$0xff]
        %4938 = vst [vmem:[%s4836 + $0x190] sm:$0xff] %v4937
        %v4939 = vld [vmem:[%s4835 + $0x198] sm:$0xff]
        %4940 = vst [vmem:[%s4836 + $0x198] sm:$0xff] %v4939
        %v4941 = vld [vmem:[%s4835 + $0x1a0] sm:$0xff]
        %4942 = vst [vmem:[%s4836 + $0x1a0] sm:$0xff] %v4941
        %v4943 = vld [vmem:[%s4835 + $0x1a8] sm:$0xff]
        %4944 = vst [vmem:[%s4836 + $0x1a8] sm:$0xff] %v4943
        %v4945 = vld [vmem:[%s4835 + $0x1b0] sm:$0xff]
        %4946 = vst [vmem:[%s4836 + $0x1b0] sm:$0xff] %v4945
        %v4947 = vld [vmem:[%s4835 + $0x1b8] sm:$0xff]
        %4948 = vst [vmem:[%s4836 + $0x1b8] sm:$0xff] %v4947
        %v4949 = vld [vmem:[%s4835 + $0x1c0] sm:$0xff]
        %4950 = vst [vmem:[%s4836 + $0x1c0] sm:$0xff] %v4949
        %v4951 = vld [vmem:[%s4835 + $0x1c8] sm:$0xff]
        %4952 = vst [vmem:[%s4836 + $0x1c8] sm:$0xff] %v4951
        %v4953 = vld [vmem:[%s4835 + $0x1d0] sm:$0xff]
        %4954 = vst [vmem:[%s4836 + $0x1d0] sm:$0xff] %v4953
        %v4955 = vld [vmem:[%s4835 + $0x1d8] sm:$0xff]
        %4956 = vst [vmem:[%s4836 + $0x1d8] sm:$0xff] %v4955
        %v4957 = vld [vmem:[%s4835 + $0x1e0] sm:$0xff]
        %4958 = vst [vmem:[%s4836 + $0x1e0] sm:$0xff] %v4957
        %v4959 = vld [vmem:[%s4835 + $0x1e8] sm:$0xff]
        %4960 = vst [vmem:[%s4836 + $0x1e8] sm:$0xff] %v4959
        %v4961 = vld [vmem:[%s4835 + $0x1f0] sm:$0xff]
        %4962 = vst [vmem:[%s4836 + $0x1f0] sm:$0xff] %v4961
        %v4963 = vld [vmem:[%s4835 + $0x1f8] sm:$0xff]
        %4964 = vst [vmem:[%s4836 + $0x1f8] sm:$0xff] %v4963
      $region186: #{mv_lstm_forward.1} parent=180 // loop_footer
        %s4834 = sadd.s32 1, %s4830
      $region187: #{mv_lstm_forward.1} parent=180 // loop_footer_branch
        %4829 = sbr.rel target = $region183
      $region188: #{mv_lstm_forward.1} parent=180 // loop_exit
        _
    $region181: #{mv_lstm_forward.1} parent=1 // pred_fallthru
      _
    // Predicated region
    $region189: #{mv_lstm_forward.1} parent=1 // pred_check
      _
    $region190: #{mv_lstm_forward.1} parent=1 // pred_check_branch
      %4966 = sbr.rel target = $region192
    $region191: #{mv_lstm_forward.1} parent=1 // pred_region
      _
    $region192: #{mv_lstm_forward.1} parent=1 // pred_fallthru
      _
    // Predicated region
    $region193: #{mv_lstm_forward.1} parent=1 // pred_check
      _
    $region194: #{mv_lstm_forward.1} parent=1 // pred_check_branch
      %4969 = sbr.rel (0) target = $region196
    $region195: #{mv_lstm_forward.1} parent=1 // pred_region
      %4970 = vsyncadd [#allocation4], 8192
    $region196: #{mv_lstm_forward.1} parent=1 // pred_fallthru
      _
    %s4971 = scalar_lea.vmem %s7, 2048
    // Predicated region
    $region197: #{mv_lstm_forward.1} parent=1 // pred_check
      _
    $region198: #{mv_lstm_forward.1} parent=1 // pred_check_branch
      %4973 = sbr.rel (0) target = $region200
    $region199: #{mv_lstm_forward.1} parent=1 // pred_region
      loop: start=0, step=1, limit=1
      $region201: #{mv_lstm_forward.1} parent=199 // loop_pre_header
        _
      $region202: #{mv_lstm_forward.1} parent=199 // loop_header
        %s4975 = sphi 0, %s4979
        %p4976 = scmp.ge.s32.totalorder %s4975, 1
        %s4980 = sphi %s4971, %s4971
        %s4981 = sphi [#allocation3], [#allocation3]
      $region203: #{mv_lstm_forward.1} parent=199 // loop_header_branch
        %4978 = sbr.rel (%p4976) target = $region207
      $region204: #{mv_lstm_forward.1} parent=199 // loop_body
        %v4982 = vld [vmem:[%s4980] sm:$0xff]
        %4983 = vst [vmem:[%s4981] sm:$0xff] %v4982
        %v4984 = vld [vmem:[%s4980 + $0x8] sm:$0xff]
        %4985 = vst [vmem:[%s4981 + $0x8] sm:$0xff] %v4984
        %v4986 = vld [vmem:[%s4980 + $0x10] sm:$0xff]
        %4987 = vst [vmem:[%s4981 + $0x10] sm:$0xff] %v4986
        %v4988 = vld [vmem:[%s4980 + $0x18] sm:$0xff]
        %4989 = vst [vmem:[%s4981 + $0x18] sm:$0xff] %v4988
        %v4990 = vld [vmem:[%s4980 + $0x20] sm:$0xff]
        %4991 = vst [vmem:[%s4981 + $0x20] sm:$0xff] %v4990
        %v4992 = vld [vmem:[%s4980 + $0x28] sm:$0xff]
        %4993 = vst [vmem:[%s4981 + $0x28] sm:$0xff] %v4992
        %v4994 = vld [vmem:[%s4980 + $0x30] sm:$0xff]
        %4995 = vst [vmem:[%s4981 + $0x30] sm:$0xff] %v4994
        %v4996 = vld [vmem:[%s4980 + $0x38] sm:$0xff]
        %4997 = vst [vmem:[%s4981 + $0x38] sm:$0xff] %v4996
        %v4998 = vld [vmem:[%s4980 + $0x40] sm:$0xff]
        %4999 = vst [vmem:[%s4981 + $0x40] sm:$0xff] %v4998
        %v5000 = vld [vmem:[%s4980 + $0x48] sm:$0xff]
        %5001 = vst [vmem:[%s4981 + $0x48] sm:$0xff] %v5000
        %v5002 = vld [vmem:[%s4980 + $0x50] sm:$0xff]
        %5003 = vst [vmem:[%s4981 + $0x50] sm:$0xff] %v5002
        %v5004 = vld [vmem:[%s4980 + $0x58] sm:$0xff]
        %5005 = vst [vmem:[%s4981 + $0x58] sm:$0xff] %v5004
        %v5006 = vld [vmem:[%s4980 + $0x60] sm:$0xff]
        %5007 = vst [vmem:[%s4981 + $0x60] sm:$0xff] %v5006
        %v5008 = vld [vmem:[%s4980 + $0x68] sm:$0xff]
        %5009 = vst [vmem:[%s4981 + $0x68] sm:$0xff] %v5008
        %v5010 = vld [vmem:[%s4980 + $0x70] sm:$0xff]
        %5011 = vst [vmem:[%s4981 + $0x70] sm:$0xff] %v5010
        %v5012 = vld [vmem:[%s4980 + $0x78] sm:$0xff]
        %5013 = vst [vmem:[%s4981 + $0x78] sm:$0xff] %v5012
        %v5014 = vld [vmem:[%s4980 + $0x80] sm:$0xff]
        %5015 = vst [vmem:[%s4981 + $0x80] sm:$0xff] %v5014
        %v5016 = vld [vmem:[%s4980 + $0x88] sm:$0xff]
        %5017 = vst [vmem:[%s4981 + $0x88] sm:$0xff] %v5016
        %v5018 = vld [vmem:[%s4980 + $0x90] sm:$0xff]
        %5019 = vst [vmem:[%s4981 + $0x90] sm:$0xff] %v5018
        %v5020 = vld [vmem:[%s4980 + $0x98] sm:$0xff]
        %5021 = vst [vmem:[%s4981 + $0x98] sm:$0xff] %v5020
        %v5022 = vld [vmem:[%s4980 + $0xa0] sm:$0xff]
        %5023 = vst [vmem:[%s4981 + $0xa0] sm:$0xff] %v5022
        %v5024 = vld [vmem:[%s4980 + $0xa8] sm:$0xff]
        %5025 = vst [vmem:[%s4981 + $0xa8] sm:$0xff] %v5024
        %v5026 = vld [vmem:[%s4980 + $0xb0] sm:$0xff]
        %5027 = vst [vmem:[%s4981 + $0xb0] sm:$0xff] %v5026
        %v5028 = vld [vmem:[%s4980 + $0xb8] sm:$0xff]
        %5029 = vst [vmem:[%s4981 + $0xb8] sm:$0xff] %v5028
        %v5030 = vld [vmem:[%s4980 + $0xc0] sm:$0xff]
        %5031 = vst [vmem:[%s4981 + $0xc0] sm:$0xff] %v5030
        %v5032 = vld [vmem:[%s4980 + $0xc8] sm:$0xff]
        %5033 = vst [vmem:[%s4981 + $0xc8] sm:$0xff] %v5032
        %v5034 = vld [vmem:[%s4980 + $0xd0] sm:$0xff]
        %5035 = vst [vmem:[%s4981 + $0xd0] sm:$0xff] %v5034
        %v5036 = vld [vmem:[%s4980 + $0xd8] sm:$0xff]
        %5037 = vst [vmem:[%s4981 + $0xd8] sm:$0xff] %v5036
        %v5038 = vld [vmem:[%s4980 + $0xe0] sm:$0xff]
        %5039 = vst [vmem:[%s4981 + $0xe0] sm:$0xff] %v5038
        %v5040 = vld [vmem:[%s4980 + $0xe8] sm:$0xff]
        %5041 = vst [vmem:[%s4981 + $0xe8] sm:$0xff] %v5040
        %v5042 = vld [vmem:[%s4980 + $0xf0] sm:$0xff]
        %5043 = vst [vmem:[%s4981 + $0xf0] sm:$0xff] %v5042
        %v5044 = vld [vmem:[%s4980 + $0xf8] sm:$0xff]
        %5045 = vst [vmem:[%s4981 + $0xf8] sm:$0xff] %v5044
        %v5046 = vld [vmem:[%s4980 + $0x100] sm:$0xff]
        %5047 = vst [vmem:[%s4981 + $0x100] sm:$0xff] %v5046
        %v5048 = vld [vmem:[%s4980 + $0x108] sm:$0xff]
        %5049 = vst [vmem:[%s4981 + $0x108] sm:$0xff] %v5048
        %v5050 = vld [vmem:[%s4980 + $0x110] sm:$0xff]
        %5051 = vst [vmem:[%s4981 + $0x110] sm:$0xff] %v5050
        %v5052 = vld [vmem:[%s4980 + $0x118] sm:$0xff]
        %5053 = vst [vmem:[%s4981 + $0x118] sm:$0xff] %v5052
        %v5054 = vld [vmem:[%s4980 + $0x120] sm:$0xff]
        %5055 = vst [vmem:[%s4981 + $0x120] sm:$0xff] %v5054
        %v5056 = vld [vmem:[%s4980 + $0x128] sm:$0xff]
        %5057 = vst [vmem:[%s4981 + $0x128] sm:$0xff] %v5056
        %v5058 = vld [vmem:[%s4980 + $0x130] sm:$0xff]
        %5059 = vst [vmem:[%s4981 + $0x130] sm:$0xff] %v5058
        %v5060 = vld [vmem:[%s4980 + $0x138] sm:$0xff]
        %5061 = vst [vmem:[%s4981 + $0x138] sm:$0xff] %v5060
        %v5062 = vld [vmem:[%s4980 + $0x140] sm:$0xff]
        %5063 = vst [vmem:[%s4981 + $0x140] sm:$0xff] %v5062
        %v5064 = vld [vmem:[%s4980 + $0x148] sm:$0xff]
        %5065 = vst [vmem:[%s4981 + $0x148] sm:$0xff] %v5064
        %v5066 = vld [vmem:[%s4980 + $0x150] sm:$0xff]
        %5067 = vst [vmem:[%s4981 + $0x150] sm:$0xff] %v5066
        %v5068 = vld [vmem:[%s4980 + $0x158] sm:$0xff]
        %5069 = vst [vmem:[%s4981 + $0x158] sm:$0xff] %v5068
        %v5070 = vld [vmem:[%s4980 + $0x160] sm:$0xff]
        %5071 = vst [vmem:[%s4981 + $0x160] sm:$0xff] %v5070
        %v5072 = vld [vmem:[%s4980 + $0x168] sm:$0xff]
        %5073 = vst [vmem:[%s4981 + $0x168] sm:$0xff] %v5072
        %v5074 = vld [vmem:[%s4980 + $0x170] sm:$0xff]
        %5075 = vst [vmem:[%s4981 + $0x170] sm:$0xff] %v5074
        %v5076 = vld [vmem:[%s4980 + $0x178] sm:$0xff]
        %5077 = vst [vmem:[%s4981 + $0x178] sm:$0xff] %v5076
        %v5078 = vld [vmem:[%s4980 + $0x180] sm:$0xff]
        %5079 = vst [vmem:[%s4981 + $0x180] sm:$0xff] %v5078
        %v5080 = vld [vmem:[%s4980 + $0x188] sm:$0xff]
        %5081 = vst [vmem:[%s4981 + $0x188] sm:$0xff] %v5080
        %v5082 = vld [vmem:[%s4980 + $0x190] sm:$0xff]
        %5083 = vst [vmem:[%s4981 + $0x190] sm:$0xff] %v5082
        %v5084 = vld [vmem:[%s4980 + $0x198] sm:$0xff]
        %5085 = vst [vmem:[%s4981 + $0x198] sm:$0xff] %v5084
        %v5086 = vld [vmem:[%s4980 + $0x1a0] sm:$0xff]
        %5087 = vst [vmem:[%s4981 + $0x1a0] sm:$0xff] %v5086
        %v5088 = vld [vmem:[%s4980 + $0x1a8] sm:$0xff]
        %5089 = vst [vmem:[%s4981 + $0x1a8] sm:$0xff] %v5088
        %v5090 = vld [vmem:[%s4980 + $0x1b0] sm:$0xff]
        %5091 = vst [vmem:[%s4981 + $0x1b0] sm:$0xff] %v5090
        %v5092 = vld [vmem:[%s4980 + $0x1b8] sm:$0xff]
        %5093 = vst [vmem:[%s4981 + $0x1b8] sm:$0xff] %v5092
        %v5094 = vld [vmem:[%s4980 + $0x1c0] sm:$0xff]
        %5095 = vst [vmem:[%s4981 + $0x1c0] sm:$0xff] %v5094
        %v5096 = vld [vmem:[%s4980 + $0x1c8] sm:$0xff]
        %5097 = vst [vmem:[%s4981 + $0x1c8] sm:$0xff] %v5096
        %v5098 = vld [vmem:[%s4980 + $0x1d0] sm:$0xff]
        %5099 = vst [vmem:[%s4981 + $0x1d0] sm:$0xff] %v5098
        %v5100 = vld [vmem:[%s4980 + $0x1d8] sm:$0xff]
        %5101 = vst [vmem:[%s4981 + $0x1d8] sm:$0xff] %v5100
        %v5102 = vld [vmem:[%s4980 + $0x1e0] sm:$0xff]
        %5103 = vst [vmem:[%s4981 + $0x1e0] sm:$0xff] %v5102
        %v5104 = vld [vmem:[%s4980 + $0x1e8] sm:$0xff]
        %5105 = vst [vmem:[%s4981 + $0x1e8] sm:$0xff] %v5104
        %v5106 = vld [vmem:[%s4980 + $0x1f0] sm:$0xff]
        %5107 = vst [vmem:[%s4981 + $0x1f0] sm:$0xff] %v5106
        %v5108 = vld [vmem:[%s4980 + $0x1f8] sm:$0xff]
        %5109 = vst [vmem:[%s4981 + $0x1f8] sm:$0xff] %v5108
      $region205: #{mv_lstm_forward.1} parent=199 // loop_footer
        %s4979 = sadd.s32 1, %s4975
      $region206: #{mv_lstm_forward.1} parent=199 // loop_footer_branch
        %4974 = sbr.rel target = $region202
      $region207: #{mv_lstm_forward.1} parent=199 // loop_exit
        _
    $region200: #{mv_lstm_forward.1} parent=1 // pred_fallthru
      _
    // Predicated region
    $region208: #{mv_lstm_forward.1} parent=1 // pred_check
      _
    $region209: #{mv_lstm_forward.1} parent=1 // pred_check_branch
      %5111 = sbr.rel target = $region211
    $region210: #{mv_lstm_forward.1} parent=1 // pred_region
      _
    $region211: #{mv_lstm_forward.1} parent=1 // pred_fallthru
      _
    // Predicated region
    $region212: #{mv_lstm_forward.1} parent=1 // pred_check
      _
    $region213: #{mv_lstm_forward.1} parent=1 // pred_check_branch
      %5114 = sbr.rel (0) target = $region215
    $region214: #{mv_lstm_forward.1} parent=1 // pred_region
      %5115 = vsyncadd %s174, 8192
    $region215: #{mv_lstm_forward.1} parent=1 // pred_fallthru
      _
    %s5116 = scalar_lea.vmem %s1, 24
    %v5117 = vld [vmem:[%s5116] sm:$0xff]
    %s5118 = scalar_lea.vmem %s2, 24
    %v5119 = vld [vmem:[%s5118] sm:$0xff]
    %5120 = vmatpush.msra.mxu0 %v4822
    %5121 = vmatpush.msra.mxu0 %v4818
    %5122 = vmatpush.msra.mxu0 %v4814
    %5123 = vmatpush.msra.mxu0 %v4810
    %5124 = vmatpush.msra.mxu0 %v4806
    %5125 = vmatpush.msra.mxu0 %v4802
    %5126 = vmatpush.msra.mxu0 %v4798
    %5127 = vmatpush.msra.mxu0 %v4794
    %5128 = vmatpush.msra.mxu0 %v4790
    %5129 = vmatpush.msra.mxu0 %v4786
    %5130 = vmatpush.msra.mxu0 %v4782
    %5131 = vmatpush.msra.mxu0 %v4778
    %5132 = vmatpush.msra.mxu0 %v4774
    %5133 = vmatpush.msra.mxu0 %v4770
    %5134 = vmatpush.msra.mxu0 %v4766
    %5135 = vmatpush.msra.mxu0 %v4762
    %5136 = vmatmul.f32.gmra.mxu0 %v5117
    %v5137 = vpop.f32.mrf.mxu0
    %v5138 = vadd.f32 0.0, %v5137
    %5139 = vdwg.mxu0
    %5140 = vmatpush.msra.mxu0 %v4823
    %5141 = vmatpush.msra.mxu0 %v4819
    %5142 = vmatpush.msra.mxu0 %v4815
    %5143 = vmatpush.msra.mxu0 %v4811
    %5144 = vmatpush.msra.mxu0 %v4807
    %5145 = vmatpush.msra.mxu0 %v4803
    %5146 = vmatpush.msra.mxu0 %v4799
    %5147 = vmatpush.msra.mxu0 %v4795
    %5148 = vmatpush.msra.mxu0 %v4791
    %5149 = vmatpush.msra.mxu0 %v4787
    %5150 = vmatpush.msra.mxu0 %v4783
    %5151 = vmatpush.msra.mxu0 %v4779
    %5152 = vmatpush.msra.mxu0 %v4775
    %5153 = vmatpush.msra.mxu0 %v4771
    %5154 = vmatpush.msra.mxu0 %v4767
    %5155 = vmatpush.msra.mxu0 %v4763
    %5156 = vmatmul.f32.gmra.mxu0 %v5117
    %v5157 = vpop.f32.mrf.mxu0
    %v5158 = vadd.f32 0.0, %v5157
    %5159 = vdwg.mxu0
    %5160 = vmatpush.msra.mxu0 %v4824
    %5161 = vmatpush.msra.mxu0 %v4820
    %5162 = vmatpush.msra.mxu0 %v4816
    %5163 = vmatpush.msra.mxu0 %v4812
    %5164 = vmatpush.msra.mxu0 %v4808
    %5165 = vmatpush.msra.mxu0 %v4804
    %5166 = vmatpush.msra.mxu0 %v4800
    %5167 = vmatpush.msra.mxu0 %v4796
    %5168 = vmatpush.msra.mxu0 %v4792
    %5169 = vmatpush.msra.mxu0 %v4788
    %5170 = vmatpush.msra.mxu0 %v4784
    %5171 = vmatpush.msra.mxu0 %v4780
    %5172 = vmatpush.msra.mxu0 %v4776
    %5173 = vmatpush.msra.mxu0 %v4772
    %5174 = vmatpush.msra.mxu0 %v4768
    %5175 = vmatpush.msra.mxu0 %v4764
    %5176 = vmatmul.f32.gmra.mxu0 %v5117
    %v5177 = vpop.f32.mrf.mxu0
    %v5178 = vadd.f32 0.0, %v5177
    %5179 = vdwg.mxu0
    %5180 = vmatpush.msra.mxu0 %v4825
    %5181 = vmatpush.msra.mxu0 %v4821
    %5182 = vmatpush.msra.mxu0 %v4817
    %5183 = vmatpush.msra.mxu0 %v4813
    %5184 = vmatpush.msra.mxu0 %v4809
    %5185 = vmatpush.msra.mxu0 %v4805
    %5186 = vmatpush.msra.mxu0 %v4801
    %5187 = vmatpush.msra.mxu0 %v4797
    %5188 = vmatpush.msra.mxu0 %v4793
    %5189 = vmatpush.msra.mxu0 %v4789
    %5190 = vmatpush.msra.mxu0 %v4785
    %5191 = vmatpush.msra.mxu0 %v4781
    %5192 = vmatpush.msra.mxu0 %v4777
    %5193 = vmatpush.msra.mxu0 %v4773
    %5194 = vmatpush.msra.mxu0 %v4769
    %5195 = vmatpush.msra.mxu0 %v4765
    %5196 = vmatmul.f32.gmra.mxu0 %v5117
    %v5197 = vpop.f32.mrf.mxu0
    %v5198 = vadd.f32 0.0, %v5197
    %5199 = vdwg.mxu0
    %v5200 = vadd.f32 %v4614, %v5138
    %v5201 = vadd.f32 %v4655, %v5158
    %v5202 = vadd.f32 %v4696, %v5178
    %v5203 = vadd.f32 %v4737, %v5198
    %v5204 = vtanh.pop %v5200
    %v5205 = vtanh.pop %v5201
    %v5206 = vtanh.pop %v5202
    %v5207 = vtanh.pop %v5203
    %v5208 = vmul.f32 %v5204, 0.5
    %v5209 = vadd.f32 %v5208, 0.5
    %v5210 = vmul.f32 %v5205, 0.5
    %v5211 = vadd.f32 %v5210, 0.5
    %v5212 = vmul.f32 %v5207, 0.5
    %v5213 = vadd.f32 %v5212, 0.5
    %v5214 = vmul.f32 %v5211, %v5119
    %v5215 = vmul.f32 %v5209, %v5206
    %v5216 = vadd.f32 %v5214, %v5215
    %v5217 = vtanh.pop %v5216
    %v5218 = vmul.f32 %v5213, %v5217
    %5219 = vmatpush.msra.mxu0 %v4822
    %5220 = vmatpush.msra.mxu0 %v4818
    %5221 = vmatpush.msra.mxu0 %v4814
    %5222 = vmatpush.msra.mxu0 %v4810
    %5223 = vmatpush.msra.mxu0 %v4806
    %5224 = vmatpush.msra.mxu0 %v4802
    %5225 = vmatpush.msra.mxu0 %v4798
    %5226 = vmatpush.msra.mxu0 %v4794
    %5227 = vmatpush.msra.mxu0 %v4790
    %5228 = vmatpush.msra.mxu0 %v4786
    %5229 = vmatpush.msra.mxu0 %v4782
    %5230 = vmatpush.msra.mxu0 %v4778
    %5231 = vmatpush.msra.mxu0 %v4774
    %5232 = vmatpush.msra.mxu0 %v4770
    %5233 = vmatpush.msra.mxu0 %v4766
    %5234 = vmatpush.msra.mxu0 %v4762
    %5235 = vmatmul.f32.gmra.mxu0 %v5218
    %v5236 = vpop.f32.mrf.mxu0
    %v5237 = vadd.f32 0.0, %v5236
    %5238 = vdwg.mxu0
    %5239 = vmatpush.msra.mxu0 %v4823
    %5240 = vmatpush.msra.mxu0 %v4819
    %5241 = vmatpush.msra.mxu0 %v4815
    %5242 = vmatpush.msra.mxu0 %v4811
    %5243 = vmatpush.msra.mxu0 %v4807
    %5244 = vmatpush.msra.mxu0 %v4803
    %5245 = vmatpush.msra.mxu0 %v4799
    %5246 = vmatpush.msra.mxu0 %v4795
    %5247 = vmatpush.msra.mxu0 %v4791
    %5248 = vmatpush.msra.mxu0 %v4787
    %5249 = vmatpush.msra.mxu0 %v4783
    %5250 = vmatpush.msra.mxu0 %v4779
    %5251 = vmatpush.msra.mxu0 %v4775
    %5252 = vmatpush.msra.mxu0 %v4771
    %5253 = vmatpush.msra.mxu0 %v4767
    %5254 = vmatpush.msra.mxu0 %v4763
    %5255 = vmatmul.f32.gmra.mxu0 %v5218
    %v5256 = vpop.f32.mrf.mxu0
    %v5257 = vadd.f32 0.0, %v5256
    %5258 = vdwg.mxu0
    %5259 = vmatpush.msra.mxu0 %v4824
    %5260 = vmatpush.msra.mxu0 %v4820
    %5261 = vmatpush.msra.mxu0 %v4816
    %5262 = vmatpush.msra.mxu0 %v4812
    %5263 = vmatpush.msra.mxu0 %v4808
    %5264 = vmatpush.msra.mxu0 %v4804
    %5265 = vmatpush.msra.mxu0 %v4800
    %5266 = vmatpush.msra.mxu0 %v4796
    %5267 = vmatpush.msra.mxu0 %v4792
    %5268 = vmatpush.msra.mxu0 %v4788
    %5269 = vmatpush.msra.mxu0 %v4784
    %5270 = vmatpush.msra.mxu0 %v4780
    %5271 = vmatpush.msra.mxu0 %v4776
    %5272 = vmatpush.msra.mxu0 %v4772
    %5273 = vmatpush.msra.mxu0 %v4768
    %5274 = vmatpush.msra.mxu0 %v4764
    %5275 = vmatmul.f32.gmra.mxu0 %v5218
    %v5276 = vpop.f32.mrf.mxu0
    %v5277 = vadd.f32 0.0, %v5276
    %5278 = vdwg.mxu0
    %5279 = vmatpush.msra.mxu0 %v4825
    %5280 = vmatpush.msra.mxu0 %v4821
    %5281 = vmatpush.msra.mxu0 %v4817
    %5282 = vmatpush.msra.mxu0 %v4813
    %5283 = vmatpush.msra.mxu0 %v4809
    %5284 = vmatpush.msra.mxu0 %v4805
    %5285 = vmatpush.msra.mxu0 %v4801
    %5286 = vmatpush.msra.mxu0 %v4797
    %5287 = vmatpush.msra.mxu0 %v4793
    %5288 = vmatpush.msra.mxu0 %v4789
    %5289 = vmatpush.msra.mxu0 %v4785
    %5290 = vmatpush.msra.mxu0 %v4781
    %5291 = vmatpush.msra.mxu0 %v4777
    %5292 = vmatpush.msra.mxu0 %v4773
    %5293 = vmatpush.msra.mxu0 %v4769
    %5294 = vmatpush.msra.mxu0 %v4765
    %5295 = vmatmul.f32.gmra.mxu0 %v5218
    %v5296 = vpop.f32.mrf.mxu0
    %v5297 = vadd.f32 0.0, %v5296
    %5298 = vdwg.mxu0
    %v5299 = vadd.f32 %v4617, %v5237
    %v5300 = vadd.f32 %v4658, %v5257
    %v5301 = vadd.f32 %v4699, %v5277
    %v5302 = vadd.f32 %v4740, %v5297
    %v5303 = vtanh.pop %v5299
    %v5304 = vtanh.pop %v5300
    %v5305 = vtanh.pop %v5301
    %v5306 = vtanh.pop %v5302
    %v5307 = vmul.f32 %v5303, 0.5
    %v5308 = vadd.f32 %v5307, 0.5
    %v5309 = vmul.f32 %v5304, 0.5
    %v5310 = vadd.f32 %v5309, 0.5
    %v5311 = vmul.f32 %v5306, 0.5
    %v5312 = vadd.f32 %v5311, 0.5
    %v5313 = vmul.f32 %v5310, %v5216
    %v5314 = vmul.f32 %v5308, %v5305
    %v5315 = vadd.f32 %v5313, %v5314
    %v5316 = vtanh.pop %v5315
    %v5317 = vmul.f32 %v5312, %v5316
    %5318 = vmatpush.msra.mxu0 %v4822
    %5319 = vmatpush.msra.mxu0 %v4818
    %5320 = vmatpush.msra.mxu0 %v4814
    %5321 = vmatpush.msra.mxu0 %v4810
    %5322 = vmatpush.msra.mxu0 %v4806
    %5323 = vmatpush.msra.mxu0 %v4802
    %5324 = vmatpush.msra.mxu0 %v4798
    %5325 = vmatpush.msra.mxu0 %v4794
    %5326 = vmatpush.msra.mxu0 %v4790
    %5327 = vmatpush.msra.mxu0 %v4786
    %5328 = vmatpush.msra.mxu0 %v4782
    %5329 = vmatpush.msra.mxu0 %v4778
    %5330 = vmatpush.msra.mxu0 %v4774
    %5331 = vmatpush.msra.mxu0 %v4770
    %5332 = vmatpush.msra.mxu0 %v4766
    %5333 = vmatpush.msra.mxu0 %v4762
    %5334 = vmatmul.f32.gmra.mxu0 %v5317
    %v5335 = vpop.f32.mrf.mxu0
    %v5336 = vadd.f32 0.0, %v5335
    %5337 = vdwg.mxu0
    %5338 = vmatpush.msra.mxu0 %v4823
    %5339 = vmatpush.msra.mxu0 %v4819
    %5340 = vmatpush.msra.mxu0 %v4815
    %5341 = vmatpush.msra.mxu0 %v4811
    %5342 = vmatpush.msra.mxu0 %v4807
    %5343 = vmatpush.msra.mxu0 %v4803
    %5344 = vmatpush.msra.mxu0 %v4799
    %5345 = vmatpush.msra.mxu0 %v4795
    %5346 = vmatpush.msra.mxu0 %v4791
    %5347 = vmatpush.msra.mxu0 %v4787
    %5348 = vmatpush.msra.mxu0 %v4783
    %5349 = vmatpush.msra.mxu0 %v4779
    %5350 = vmatpush.msra.mxu0 %v4775
    %5351 = vmatpush.msra.mxu0 %v4771
    %5352 = vmatpush.msra.mxu0 %v4767
    %5353 = vmatpush.msra.mxu0 %v4763
    %5354 = vmatmul.f32.gmra.mxu0 %v5317
    %v5355 = vpop.f32.mrf.mxu0
    %v5356 = vadd.f32 0.0, %v5355
    %5357 = vdwg.mxu0
    %5358 = vmatpush.msra.mxu0 %v4824
    %5359 = vmatpush.msra.mxu0 %v4820
    %5360 = vmatpush.msra.mxu0 %v4816
    %5361 = vmatpush.msra.mxu0 %v4812
    %5362 = vmatpush.msra.mxu0 %v4808
    %5363 = vmatpush.msra.mxu0 %v4804
    %5364 = vmatpush.msra.mxu0 %v4800
    %5365 = vmatpush.msra.mxu0 %v4796
    %5366 = vmatpush.msra.mxu0 %v4792
    %5367 = vmatpush.msra.mxu0 %v4788
    %5368 = vmatpush.msra.mxu0 %v4784
    %5369 = vmatpush.msra.mxu0 %v4780
    %5370 = vmatpush.msra.mxu0 %v4776
    %5371 = vmatpush.msra.mxu0 %v4772
    %5372 = vmatpush.msra.mxu0 %v4768
    %5373 = vmatpush.msra.mxu0 %v4764
    %5374 = vmatmul.f32.gmra.mxu0 %v5317
    %v5375 = vpop.f32.mrf.mxu0
    %v5376 = vadd.f32 0.0, %v5375
    %5377 = vdwg.mxu0
    %5378 = vmatpush.msra.mxu0 %v4825
    %5379 = vmatpush.msra.mxu0 %v4821
    %5380 = vmatpush.msra.mxu0 %v4817
    %5381 = vmatpush.msra.mxu0 %v4813
    %5382 = vmatpush.msra.mxu0 %v4809
    %5383 = vmatpush.msra.mxu0 %v4805
    %5384 = vmatpush.msra.mxu0 %v4801
    %5385 = vmatpush.msra.mxu0 %v4797
    %5386 = vmatpush.msra.mxu0 %v4793
    %5387 = vmatpush.msra.mxu0 %v4789
    %5388 = vmatpush.msra.mxu0 %v4785
    %5389 = vmatpush.msra.mxu0 %v4781
    %5390 = vmatpush.msra.mxu0 %v4777
    %5391 = vmatpush.msra.mxu0 %v4773
    %5392 = vmatpush.msra.mxu0 %v4769
    %5393 = vmatpush.msra.mxu0 %v4765
    %5394 = vmatmul.f32.gmra.mxu0 %v5317
    %v5395 = vpop.f32.mrf.mxu0
    %v5396 = vadd.f32 0.0, %v5395
    %5397 = vdwg.mxu0
    %v5398 = vadd.f32 %v4620, %v5336
    %v5399 = vadd.f32 %v4661, %v5356
    %v5400 = vadd.f32 %v4702, %v5376
    %v5401 = vadd.f32 %v4743, %v5396
    %v5402 = vtanh.pop %v5398
    %v5403 = vtanh.pop %v5399
    %v5404 = vtanh.pop %v5400
    %v5405 = vtanh.pop %v5401
    %v5406 = vmul.f32 %v5402, 0.5
    %v5407 = vadd.f32 %v5406, 0.5
    %v5408 = vmul.f32 %v5403, 0.5
    %v5409 = vadd.f32 %v5408, 0.5
    %v5410 = vmul.f32 %v5405, 0.5
    %v5411 = vadd.f32 %v5410, 0.5
    %v5412 = vmul.f32 %v5409, %v5315
    %v5413 = vmul.f32 %v5407, %v5404
    %v5414 = vadd.f32 %v5412, %v5413
    %v5415 = vtanh.pop %v5414
    %v5416 = vmul.f32 %v5411, %v5415
    %5417 = vmatpush.msra.mxu0 %v4822
    %5418 = vmatpush.msra.mxu0 %v4818
    %5419 = vmatpush.msra.mxu0 %v4814
    %5420 = vmatpush.msra.mxu0 %v4810
    %5421 = vmatpush.msra.mxu0 %v4806
    %5422 = vmatpush.msra.mxu0 %v4802
    %5423 = vmatpush.msra.mxu0 %v4798
    %5424 = vmatpush.msra.mxu0 %v4794
    %5425 = vmatpush.msra.mxu0 %v4790
    %5426 = vmatpush.msra.mxu0 %v4786
    %5427 = vmatpush.msra.mxu0 %v4782
    %5428 = vmatpush.msra.mxu0 %v4778
    %5429 = vmatpush.msra.mxu0 %v4774
    %5430 = vmatpush.msra.mxu0 %v4770
    %5431 = vmatpush.msra.mxu0 %v4766
    %5432 = vmatpush.msra.mxu0 %v4762
    %5433 = vmatmul.f32.gmra.mxu0 %v5416
    %v5434 = vpop.f32.mrf.mxu0
    %v5435 = vadd.f32 0.0, %v5434
    %5436 = vdwg.mxu0
    %5437 = vmatpush.msra.mxu0 %v4823
    %5438 = vmatpush.msra.mxu0 %v4819
    %5439 = vmatpush.msra.mxu0 %v4815
    %5440 = vmatpush.msra.mxu0 %v4811
    %5441 = vmatpush.msra.mxu0 %v4807
    %5442 = vmatpush.msra.mxu0 %v4803
    %5443 = vmatpush.msra.mxu0 %v4799
    %5444 = vmatpush.msra.mxu0 %v4795
    %5445 = vmatpush.msra.mxu0 %v4791
    %5446 = vmatpush.msra.mxu0 %v4787
    %5447 = vmatpush.msra.mxu0 %v4783
    %5448 = vmatpush.msra.mxu0 %v4779
    %5449 = vmatpush.msra.mxu0 %v4775
    %5450 = vmatpush.msra.mxu0 %v4771
    %5451 = vmatpush.msra.mxu0 %v4767
    %5452 = vmatpush.msra.mxu0 %v4763
    %5453 = vmatmul.f32.gmra.mxu0 %v5416
    %v5454 = vpop.f32.mrf.mxu0
    %v5455 = vadd.f32 0.0, %v5454
    %5456 = vdwg.mxu0
    %5457 = vmatpush.msra.mxu0 %v4824
    %5458 = vmatpush.msra.mxu0 %v4820
    %5459 = vmatpush.msra.mxu0 %v4816
    %5460 = vmatpush.msra.mxu0 %v4812
    %5461 = vmatpush.msra.mxu0 %v4808
    %5462 = vmatpush.msra.mxu0 %v4804
    %5463 = vmatpush.msra.mxu0 %v4800
    %5464 = vmatpush.msra.mxu0 %v4796
    %5465 = vmatpush.msra.mxu0 %v4792
    %5466 = vmatpush.msra.mxu0 %v4788
    %5467 = vmatpush.msra.mxu0 %v4784
    %5468 = vmatpush.msra.mxu0 %v4780
    %5469 = vmatpush.msra.mxu0 %v4776
    %5470 = vmatpush.msra.mxu0 %v4772
    %5471 = vmatpush.msra.mxu0 %v4768
    %5472 = vmatpush.msra.mxu0 %v4764
    %5473 = vmatmul.f32.gmra.mxu0 %v5416
    %v5474 = vpop.f32.mrf.mxu0
    %v5475 = vadd.f32 0.0, %v5474
    %5476 = vdwg.mxu0
    %5477 = vmatpush.msra.mxu0 %v4825
    %5478 = vmatpush.msra.mxu0 %v4821
    %5479 = vmatpush.msra.mxu0 %v4817
    %5480 = vmatpush.msra.mxu0 %v4813
    %5481 = vmatpush.msra.mxu0 %v4809
    %5482 = vmatpush.msra.mxu0 %v4805
    %5483 = vmatpush.msra.mxu0 %v4801
    %5484 = vmatpush.msra.mxu0 %v4797
    %5485 = vmatpush.msra.mxu0 %v4793
    %5486 = vmatpush.msra.mxu0 %v4789
    %5487 = vmatpush.msra.mxu0 %v4785
    %5488 = vmatpush.msra.mxu0 %v4781
    %5489 = vmatpush.msra.mxu0 %v4777
    %5490 = vmatpush.msra.mxu0 %v4773
    %5491 = vmatpush.msra.mxu0 %v4769
    %5492 = vmatpush.msra.mxu0 %v4765
    %5493 = vmatmul.f32.gmra.mxu0 %v5416
    %v5494 = vpop.f32.mrf.mxu0
    %v5495 = vadd.f32 0.0, %v5494
    %5496 = vdwg.mxu0
    %v5497 = vadd.f32 %v4623, %v5435
    %v5498 = vadd.f32 %v4664, %v5455
    %v5499 = vadd.f32 %v4705, %v5475
    %v5500 = vadd.f32 %v4746, %v5495
    %v5501 = vtanh.pop %v5497
    %v5502 = vtanh.pop %v5498
    %v5503 = vtanh.pop %v5499
    %v5504 = vtanh.pop %v5500
    %v5505 = vmul.f32 %v5501, 0.5
    %v5506 = vadd.f32 %v5505, 0.5
    %v5507 = vmul.f32 %v5502, 0.5
    %v5508 = vadd.f32 %v5507, 0.5
    %v5509 = vmul.f32 %v5504, 0.5
    %v5510 = vadd.f32 %v5509, 0.5
    %v5511 = vmul.f32 %v5508, %v5414
    %v5512 = vmul.f32 %v5506, %v5503
    %v5513 = vadd.f32 %v5511, %v5512
    %v5514 = vtanh.pop %v5513
    %v5515 = vmul.f32 %v5510, %v5514
    %5516 = vmatpush.msra.mxu0 %v4822
    %5517 = vmatpush.msra.mxu0 %v4818
    %5518 = vmatpush.msra.mxu0 %v4814
    %5519 = vmatpush.msra.mxu0 %v4810
    %5520 = vmatpush.msra.mxu0 %v4806
    %5521 = vmatpush.msra.mxu0 %v4802
    %5522 = vmatpush.msra.mxu0 %v4798
    %5523 = vmatpush.msra.mxu0 %v4794
    %5524 = vmatpush.msra.mxu0 %v4790
    %5525 = vmatpush.msra.mxu0 %v4786
    %5526 = vmatpush.msra.mxu0 %v4782
    %5527 = vmatpush.msra.mxu0 %v4778
    %5528 = vmatpush.msra.mxu0 %v4774
    %5529 = vmatpush.msra.mxu0 %v4770
    %5530 = vmatpush.msra.mxu0 %v4766
    %5531 = vmatpush.msra.mxu0 %v4762
    %5532 = vmatmul.f32.gmra.mxu0 %v5515
    %v5533 = vpop.f32.mrf.mxu0
    %v5534 = vadd.f32 0.0, %v5533
    %5535 = vdwg.mxu0
    %5536 = vmatpush.msra.mxu0 %v4823
    %5537 = vmatpush.msra.mxu0 %v4819
    %5538 = vmatpush.msra.mxu0 %v4815
    %5539 = vmatpush.msra.mxu0 %v4811
    %5540 = vmatpush.msra.mxu0 %v4807
    %5541 = vmatpush.msra.mxu0 %v4803
    %5542 = vmatpush.msra.mxu0 %v4799
    %5543 = vmatpush.msra.mxu0 %v4795
    %5544 = vmatpush.msra.mxu0 %v4791
    %5545 = vmatpush.msra.mxu0 %v4787
    %5546 = vmatpush.msra.mxu0 %v4783
    %5547 = vmatpush.msra.mxu0 %v4779
    %5548 = vmatpush.msra.mxu0 %v4775
    %5549 = vmatpush.msra.mxu0 %v4771
    %5550 = vmatpush.msra.mxu0 %v4767
    %5551 = vmatpush.msra.mxu0 %v4763
    %5552 = vmatmul.f32.gmra.mxu0 %v5515
    %v5553 = vpop.f32.mrf.mxu0
    %v5554 = vadd.f32 0.0, %v5553
    %5555 = vdwg.mxu0
    %5556 = vmatpush.msra.mxu0 %v4824
    %5557 = vmatpush.msra.mxu0 %v4820
    %5558 = vmatpush.msra.mxu0 %v4816
    %5559 = vmatpush.msra.mxu0 %v4812
    %5560 = vmatpush.msra.mxu0 %v4808
    %5561 = vmatpush.msra.mxu0 %v4804
    %5562 = vmatpush.msra.mxu0 %v4800
    %5563 = vmatpush.msra.mxu0 %v4796
    %5564 = vmatpush.msra.mxu0 %v4792
    %5565 = vmatpush.msra.mxu0 %v4788
    %5566 = vmatpush.msra.mxu0 %v4784
    %5567 = vmatpush.msra.mxu0 %v4780
    %5568 = vmatpush.msra.mxu0 %v4776
    %5569 = vmatpush.msra.mxu0 %v4772
    %5570 = vmatpush.msra.mxu0 %v4768
    %5571 = vmatpush.msra.mxu0 %v4764
    %5572 = vmatmul.f32.gmra.mxu0 %v5515
    %v5573 = vpop.f32.mrf.mxu0
    %v5574 = vadd.f32 0.0, %v5573
    %5575 = vdwg.mxu0
    %5576 = vmatpush.msra.mxu0 %v4825
    %5577 = vmatpush.msra.mxu0 %v4821
    %5578 = vmatpush.msra.mxu0 %v4817
    %5579 = vmatpush.msra.mxu0 %v4813
    %5580 = vmatpush.msra.mxu0 %v4809
    %5581 = vmatpush.msra.mxu0 %v4805
    %5582 = vmatpush.msra.mxu0 %v4801
    %5583 = vmatpush.msra.mxu0 %v4797
    %5584 = vmatpush.msra.mxu0 %v4793
    %5585 = vmatpush.msra.mxu0 %v4789
    %5586 = vmatpush.msra.mxu0 %v4785
    %5587 = vmatpush.msra.mxu0 %v4781
    %5588 = vmatpush.msra.mxu0 %v4777
    %5589 = vmatpush.msra.mxu0 %v4773
    %5590 = vmatpush.msra.mxu0 %v4769
    %5591 = vmatpush.msra.mxu0 %v4765
    %5592 = vmatmul.f32.gmra.mxu0 %v5515
    %v5593 = vpop.f32.mrf.mxu0
    %v5594 = vadd.f32 0.0, %v5593
    %5595 = vdwg.mxu0
    %v5596 = vadd.f32 %v4626, %v5534
    %v5597 = vadd.f32 %v4667, %v5554
    %v5598 = vadd.f32 %v4708, %v5574
    %v5599 = vadd.f32 %v4749, %v5594
    %v5600 = vtanh.pop %v5596
    %v5601 = vtanh.pop %v5597
    %v5602 = vtanh.pop %v5598
    %v5603 = vtanh.pop %v5599
    %v5604 = vmul.f32 %v5600, 0.5
    %v5605 = vadd.f32 %v5604, 0.5
    %v5606 = vmul.f32 %v5601, 0.5
    %v5607 = vadd.f32 %v5606, 0.5
    %v5608 = vmul.f32 %v5603, 0.5
    %v5609 = vadd.f32 %v5608, 0.5
    %v5610 = vmul.f32 %v5607, %v5513
    %v5611 = vmul.f32 %v5605, %v5602
    %v5612 = vadd.f32 %v5610, %v5611
    %v5613 = vtanh.pop %v5612
    %v5614 = vmul.f32 %v5609, %v5613
    %5615 = vmatpush.msra.mxu0 %v4822
    %5616 = vmatpush.msra.mxu0 %v4818
    %5617 = vmatpush.msra.mxu0 %v4814
    %5618 = vmatpush.msra.mxu0 %v4810
    %5619 = vmatpush.msra.mxu0 %v4806
    %5620 = vmatpush.msra.mxu0 %v4802
    %5621 = vmatpush.msra.mxu0 %v4798
    %5622 = vmatpush.msra.mxu0 %v4794
    %5623 = vmatpush.msra.mxu0 %v4790
    %5624 = vmatpush.msra.mxu0 %v4786
    %5625 = vmatpush.msra.mxu0 %v4782
    %5626 = vmatpush.msra.mxu0 %v4778
    %5627 = vmatpush.msra.mxu0 %v4774
    %5628 = vmatpush.msra.mxu0 %v4770
    %5629 = vmatpush.msra.mxu0 %v4766
    %5630 = vmatpush.msra.mxu0 %v4762
    %5631 = vmatmul.f32.gmra.mxu0 %v5614
    %v5632 = vpop.f32.mrf.mxu0
    %v5633 = vadd.f32 0.0, %v5632
    %5634 = vdwg.mxu0
    %5635 = vmatpush.msra.mxu0 %v4823
    %5636 = vmatpush.msra.mxu0 %v4819
    %5637 = vmatpush.msra.mxu0 %v4815
    %5638 = vmatpush.msra.mxu0 %v4811
    %5639 = vmatpush.msra.mxu0 %v4807
    %5640 = vmatpush.msra.mxu0 %v4803
    %5641 = vmatpush.msra.mxu0 %v4799
    %5642 = vmatpush.msra.mxu0 %v4795
    %5643 = vmatpush.msra.mxu0 %v4791
    %5644 = vmatpush.msra.mxu0 %v4787
    %5645 = vmatpush.msra.mxu0 %v4783
    %5646 = vmatpush.msra.mxu0 %v4779
    %5647 = vmatpush.msra.mxu0 %v4775
    %5648 = vmatpush.msra.mxu0 %v4771
    %5649 = vmatpush.msra.mxu0 %v4767
    %5650 = vmatpush.msra.mxu0 %v4763
    %5651 = vmatmul.f32.gmra.mxu0 %v5614
    %v5652 = vpop.f32.mrf.mxu0
    %v5653 = vadd.f32 0.0, %v5652
    %5654 = vdwg.mxu0
    %5655 = vmatpush.msra.mxu0 %v4824
    %5656 = vmatpush.msra.mxu0 %v4820
    %5657 = vmatpush.msra.mxu0 %v4816
    %5658 = vmatpush.msra.mxu0 %v4812
    %5659 = vmatpush.msra.mxu0 %v4808
    %5660 = vmatpush.msra.mxu0 %v4804
    %5661 = vmatpush.msra.mxu0 %v4800
    %5662 = vmatpush.msra.mxu0 %v4796
    %5663 = vmatpush.msra.mxu0 %v4792
    %5664 = vmatpush.msra.mxu0 %v4788
    %5665 = vmatpush.msra.mxu0 %v4784
    %5666 = vmatpush.msra.mxu0 %v4780
    %5667 = vmatpush.msra.mxu0 %v4776
    %5668 = vmatpush.msra.mxu0 %v4772
    %5669 = vmatpush.msra.mxu0 %v4768
    %5670 = vmatpush.msra.mxu0 %v4764
    %5671 = vmatmul.f32.gmra.mxu0 %v5614
    %v5672 = vpop.f32.mrf.mxu0
    %v5673 = vadd.f32 0.0, %v5672
    %5674 = vdwg.mxu0
    %5675 = vmatpush.msra.mxu0 %v4825
    %5676 = vmatpush.msra.mxu0 %v4821
    %5677 = vmatpush.msra.mxu0 %v4817
    %5678 = vmatpush.msra.mxu0 %v4813
    %5679 = vmatpush.msra.mxu0 %v4809
    %5680 = vmatpush.msra.mxu0 %v4805
    %5681 = vmatpush.msra.mxu0 %v4801
    %5682 = vmatpush.msra.mxu0 %v4797
    %5683 = vmatpush.msra.mxu0 %v4793
    %5684 = vmatpush.msra.mxu0 %v4789
    %5685 = vmatpush.msra.mxu0 %v4785
    %5686 = vmatpush.msra.mxu0 %v4781
    %5687 = vmatpush.msra.mxu0 %v4777
    %5688 = vmatpush.msra.mxu0 %v4773
    %5689 = vmatpush.msra.mxu0 %v4769
    %5690 = vmatpush.msra.mxu0 %v4765
    %5691 = vmatmul.f32.gmra.mxu0 %v5614
    %v5692 = vpop.f32.mrf.mxu0
    %v5693 = vadd.f32 0.0, %v5692
    %5694 = vdwg.mxu0
    %v5695 = vadd.f32 %v4629, %v5633
    %v5696 = vadd.f32 %v4670, %v5653
    %v5697 = vadd.f32 %v4711, %v5673
    %v5698 = vadd.f32 %v4752, %v5693
    %v5699 = vtanh.pop %v5695
    %v5700 = vtanh.pop %v5696
    %v5701 = vtanh.pop %v5697
    %v5702 = vtanh.pop %v5698
    %v5703 = vmul.f32 %v5699, 0.5
    %v5704 = vadd.f32 %v5703, 0.5
    %v5705 = vmul.f32 %v5700, 0.5
    %v5706 = vadd.f32 %v5705, 0.5
    %v5707 = vmul.f32 %v5702, 0.5
    %v5708 = vadd.f32 %v5707, 0.5
    %v5709 = vmul.f32 %v5706, %v5612
    %v5710 = vmul.f32 %v5704, %v5701
    %v5711 = vadd.f32 %v5709, %v5710
    %v5712 = vtanh.pop %v5711
    %v5713 = vmul.f32 %v5708, %v5712
    %5714 = vmatpush.msra.mxu0 %v4822
    %5715 = vmatpush.msra.mxu0 %v4818
    %5716 = vmatpush.msra.mxu0 %v4814
    %5717 = vmatpush.msra.mxu0 %v4810
    %5718 = vmatpush.msra.mxu0 %v4806
    %5719 = vmatpush.msra.mxu0 %v4802
    %5720 = vmatpush.msra.mxu0 %v4798
    %5721 = vmatpush.msra.mxu0 %v4794
    %5722 = vmatpush.msra.mxu0 %v4790
    %5723 = vmatpush.msra.mxu0 %v4786
    %5724 = vmatpush.msra.mxu0 %v4782
    %5725 = vmatpush.msra.mxu0 %v4778
    %5726 = vmatpush.msra.mxu0 %v4774
    %5727 = vmatpush.msra.mxu0 %v4770
    %5728 = vmatpush.msra.mxu0 %v4766
    %5729 = vmatpush.msra.mxu0 %v4762
    %5730 = vmatmul.f32.gmra.mxu0 %v5713
    %v5731 = vpop.f32.mrf.mxu0
    %v5732 = vadd.f32 0.0, %v5731
    %5733 = vdwg.mxu0
    %5734 = vmatpush.msra.mxu0 %v4823
    %5735 = vmatpush.msra.mxu0 %v4819
    %5736 = vmatpush.msra.mxu0 %v4815
    %5737 = vmatpush.msra.mxu0 %v4811
    %5738 = vmatpush.msra.mxu0 %v4807
    %5739 = vmatpush.msra.mxu0 %v4803
    %5740 = vmatpush.msra.mxu0 %v4799
    %5741 = vmatpush.msra.mxu0 %v4795
    %5742 = vmatpush.msra.mxu0 %v4791
    %5743 = vmatpush.msra.mxu0 %v4787
    %5744 = vmatpush.msra.mxu0 %v4783
    %5745 = vmatpush.msra.mxu0 %v4779
    %5746 = vmatpush.msra.mxu0 %v4775
    %5747 = vmatpush.msra.mxu0 %v4771
    %5748 = vmatpush.msra.mxu0 %v4767
    %5749 = vmatpush.msra.mxu0 %v4763
    %5750 = vmatmul.f32.gmra.mxu0 %v5713
    %v5751 = vpop.f32.mrf.mxu0
    %v5752 = vadd.f32 0.0, %v5751
    %5753 = vdwg.mxu0
    %5754 = vmatpush.msra.mxu0 %v4824
    %5755 = vmatpush.msra.mxu0 %v4820
    %5756 = vmatpush.msra.mxu0 %v4816
    %5757 = vmatpush.msra.mxu0 %v4812
    %5758 = vmatpush.msra.mxu0 %v4808
    %5759 = vmatpush.msra.mxu0 %v4804
    %5760 = vmatpush.msra.mxu0 %v4800
    %5761 = vmatpush.msra.mxu0 %v4796
    %5762 = vmatpush.msra.mxu0 %v4792
    %5763 = vmatpush.msra.mxu0 %v4788
    %5764 = vmatpush.msra.mxu0 %v4784
    %5765 = vmatpush.msra.mxu0 %v4780
    %5766 = vmatpush.msra.mxu0 %v4776
    %5767 = vmatpush.msra.mxu0 %v4772
    %5768 = vmatpush.msra.mxu0 %v4768
    %5769 = vmatpush.msra.mxu0 %v4764
    %5770 = vmatmul.f32.gmra.mxu0 %v5713
    %v5771 = vpop.f32.mrf.mxu0
    %v5772 = vadd.f32 0.0, %v5771
    %5773 = vdwg.mxu0
    %5774 = vmatpush.msra.mxu0 %v4825
    %5775 = vmatpush.msra.mxu0 %v4821
    %5776 = vmatpush.msra.mxu0 %v4817
    %5777 = vmatpush.msra.mxu0 %v4813
    %5778 = vmatpush.msra.mxu0 %v4809
    %5779 = vmatpush.msra.mxu0 %v4805
    %5780 = vmatpush.msra.mxu0 %v4801
    %5781 = vmatpush.msra.mxu0 %v4797
    %5782 = vmatpush.msra.mxu0 %v4793
    %5783 = vmatpush.msra.mxu0 %v4789
    %5784 = vmatpush.msra.mxu0 %v4785
    %5785 = vmatpush.msra.mxu0 %v4781
    %5786 = vmatpush.msra.mxu0 %v4777
    %5787 = vmatpush.msra.mxu0 %v4773
    %5788 = vmatpush.msra.mxu0 %v4769
    %5789 = vmatpush.msra.mxu0 %v4765
    %5790 = vmatmul.f32.gmra.mxu0 %v5713
    %v5791 = vpop.f32.mrf.mxu0
    %v5792 = vadd.f32 0.0, %v5791
    %5793 = vdwg.mxu0
    %v5794 = vadd.f32 %v4632, %v5732
    %v5795 = vadd.f32 %v4673, %v5752
    %v5796 = vadd.f32 %v4714, %v5772
    %v5797 = vadd.f32 %v4755, %v5792
    %v5798 = vtanh.pop %v5794
    %v5799 = vtanh.pop %v5795
    %v5800 = vtanh.pop %v5796
    %v5801 = vtanh.pop %v5797
    %v5802 = vmul.f32 %v5798, 0.5
    %v5803 = vadd.f32 %v5802, 0.5
    %v5804 = vmul.f32 %v5799, 0.5
    %v5805 = vadd.f32 %v5804, 0.5
    %v5806 = vmul.f32 %v5801, 0.5
    %v5807 = vadd.f32 %v5806, 0.5
    %v5808 = vmul.f32 %v5805, %v5711
    %v5809 = vmul.f32 %v5803, %v5800
    %v5810 = vadd.f32 %v5808, %v5809
    %v5811 = vtanh.pop %v5810
    %v5812 = vmul.f32 %v5807, %v5811
    %5813 = vmatpush.msra.mxu0 %v4822
    %5814 = vmatpush.msra.mxu0 %v4818
    %5815 = vmatpush.msra.mxu0 %v4814
    %5816 = vmatpush.msra.mxu0 %v4810
    %5817 = vmatpush.msra.mxu0 %v4806
    %5818 = vmatpush.msra.mxu0 %v4802
    %5819 = vmatpush.msra.mxu0 %v4798
    %5820 = vmatpush.msra.mxu0 %v4794
    %5821 = vmatpush.msra.mxu0 %v4790
    %5822 = vmatpush.msra.mxu0 %v4786
    %5823 = vmatpush.msra.mxu0 %v4782
    %5824 = vmatpush.msra.mxu0 %v4778
    %5825 = vmatpush.msra.mxu0 %v4774
    %5826 = vmatpush.msra.mxu0 %v4770
    %5827 = vmatpush.msra.mxu0 %v4766
    %5828 = vmatpush.msra.mxu0 %v4762
    %5829 = vmatmul.f32.gmra.mxu0 %v5812
    %v5830 = vpop.f32.mrf.mxu0
    %v5831 = vadd.f32 0.0, %v5830
    %5832 = vdwg.mxu0
    %5833 = vmatpush.msra.mxu0 %v4823
    %5834 = vmatpush.msra.mxu0 %v4819
    %5835 = vmatpush.msra.mxu0 %v4815
    %5836 = vmatpush.msra.mxu0 %v4811
    %5837 = vmatpush.msra.mxu0 %v4807
    %5838 = vmatpush.msra.mxu0 %v4803
    %5839 = vmatpush.msra.mxu0 %v4799
    %5840 = vmatpush.msra.mxu0 %v4795
    %5841 = vmatpush.msra.mxu0 %v4791
    %5842 = vmatpush.msra.mxu0 %v4787
    %5843 = vmatpush.msra.mxu0 %v4783
    %5844 = vmatpush.msra.mxu0 %v4779
    %5845 = vmatpush.msra.mxu0 %v4775
    %5846 = vmatpush.msra.mxu0 %v4771
    %5847 = vmatpush.msra.mxu0 %v4767
    %5848 = vmatpush.msra.mxu0 %v4763
    %5849 = vmatmul.f32.gmra.mxu0 %v5812
    %v5850 = vpop.f32.mrf.mxu0
    %v5851 = vadd.f32 0.0, %v5850
    %5852 = vdwg.mxu0
    %5853 = vmatpush.msra.mxu0 %v4824
    %5854 = vmatpush.msra.mxu0 %v4820
    %5855 = vmatpush.msra.mxu0 %v4816
    %5856 = vmatpush.msra.mxu0 %v4812
    %5857 = vmatpush.msra.mxu0 %v4808
    %5858 = vmatpush.msra.mxu0 %v4804
    %5859 = vmatpush.msra.mxu0 %v4800
    %5860 = vmatpush.msra.mxu0 %v4796
    %5861 = vmatpush.msra.mxu0 %v4792
    %5862 = vmatpush.msra.mxu0 %v4788
    %5863 = vmatpush.msra.mxu0 %v4784
    %5864 = vmatpush.msra.mxu0 %v4780
    %5865 = vmatpush.msra.mxu0 %v4776
    %5866 = vmatpush.msra.mxu0 %v4772
    %5867 = vmatpush.msra.mxu0 %v4768
    %5868 = vmatpush.msra.mxu0 %v4764
    %5869 = vmatmul.f32.gmra.mxu0 %v5812
    %v5870 = vpop.f32.mrf.mxu0
    %v5871 = vadd.f32 0.0, %v5870
    %5872 = vdwg.mxu0
    %5873 = vmatpush.msra.mxu0 %v4825
    %5874 = vmatpush.msra.mxu0 %v4821
    %5875 = vmatpush.msra.mxu0 %v4817
    %5876 = vmatpush.msra.mxu0 %v4813
    %5877 = vmatpush.msra.mxu0 %v4809
    %5878 = vmatpush.msra.mxu0 %v4805
    %5879 = vmatpush.msra.mxu0 %v4801
    %5880 = vmatpush.msra.mxu0 %v4797
    %5881 = vmatpush.msra.mxu0 %v4793
    %5882 = vmatpush.msra.mxu0 %v4789
    %5883 = vmatpush.msra.mxu0 %v4785
    %5884 = vmatpush.msra.mxu0 %v4781
    %5885 = vmatpush.msra.mxu0 %v4777
    %5886 = vmatpush.msra.mxu0 %v4773
    %5887 = vmatpush.msra.mxu0 %v4769
    %5888 = vmatpush.msra.mxu0 %v4765
    %5889 = vmatmul.f32.gmra.mxu0 %v5812
    %v5890 = vpop.f32.mrf.mxu0
    %v5891 = vadd.f32 0.0, %v5890
    %5892 = vdwg.mxu0
    %v5893 = vadd.f32 %v4635, %v5831
    %v5894 = vadd.f32 %v4676, %v5851
    %v5895 = vadd.f32 %v4717, %v5871
    %v5896 = vadd.f32 %v4758, %v5891
    %v5897 = vtanh.pop %v5893
    %v5898 = vtanh.pop %v5894
    %v5899 = vtanh.pop %v5895
    %v5900 = vtanh.pop %v5896
    %v5901 = vmul.f32 %v5897, 0.5
    %v5902 = vadd.f32 %v5901, 0.5
    %v5903 = vmul.f32 %v5898, 0.5
    %v5904 = vadd.f32 %v5903, 0.5
    %v5905 = vmul.f32 %v5900, 0.5
    %v5906 = vadd.f32 %v5905, 0.5
    %v5907 = vmul.f32 %v5904, %v5810
    %v5908 = vmul.f32 %v5902, %v5899
    %v5909 = vadd.f32 %v5907, %v5908
    %v5910 = vtanh.pop %v5909
    %v5911 = vmul.f32 %v5906, %v5910
    %s5912 = scalar_lea.vmem [#allocation5], 24
    %5913 = vst [vmem:[%s5912] sm:$0xff] %v5911
    %s5914 = scalar_lea.vmem [#allocation7], 24
    %5915 = vst [vmem:[%s5914] sm:$0xff] %v5909
    %s5916 = sshll.u32 %s328, 4
    %5917 = dma.done [#allocation4], %s5916
    %v5918 = vld [vmem:[#allocation2] sm:$0xff]
    %v5919 = vld [vmem:[#allocation2 + $0x8] sm:$0xff]
    %v5920 = vld [vmem:[#allocation2 + $0x10] sm:$0xff]
    %v5921 = vld [vmem:[#allocation2 + $0x18] sm:$0xff]
    %v5922 = vld [vmem:[#allocation2 + $0x20] sm:$0xff]
    %v5923 = vld [vmem:[#allocation2 + $0x28] sm:$0xff]
    %v5924 = vld [vmem:[#allocation2 + $0x30] sm:$0xff]
    %v5925 = vld [vmem:[#allocation2 + $0x38] sm:$0xff]
    %v5926 = vld [vmem:[#allocation2 + $0x40] sm:$0xff]
    %v5927 = vld [vmem:[#allocation2 + $0x48] sm:$0xff]
    %v5928 = vld [vmem:[#allocation2 + $0x50] sm:$0xff]
    %v5929 = vld [vmem:[#allocation2 + $0x58] sm:$0xff]
    %v5930 = vld [vmem:[#allocation2 + $0x60] sm:$0xff]
    %v5931 = vld [vmem:[#allocation2 + $0x68] sm:$0xff]
    %v5932 = vld [vmem:[#allocation2 + $0x70] sm:$0xff]
    %v5933 = vld [vmem:[#allocation2 + $0x78] sm:$0xff]
    %v5934 = vld [vmem:[#allocation2 + $0x80] sm:$0xff]
    %v5935 = vld [vmem:[#allocation2 + $0x88] sm:$0xff]
    %v5936 = vld [vmem:[#allocation2 + $0x90] sm:$0xff]
    %v5937 = vld [vmem:[#allocation2 + $0x98] sm:$0xff]
    %v5938 = vld [vmem:[#allocation2 + $0xa0] sm:$0xff]
    %v5939 = vld [vmem:[#allocation2 + $0xa8] sm:$0xff]
    %v5940 = vld [vmem:[#allocation2 + $0xb0] sm:$0xff]
    %v5941 = vld [vmem:[#allocation2 + $0xb8] sm:$0xff]
    %v5942 = vld [vmem:[#allocation2 + $0xc0] sm:$0xff]
    %v5943 = vld [vmem:[#allocation2 + $0xc8] sm:$0xff]
    %v5944 = vld [vmem:[#allocation2 + $0xd0] sm:$0xff]
    %v5945 = vld [vmem:[#allocation2 + $0xd8] sm:$0xff]
    %v5946 = vld [vmem:[#allocation2 + $0xe0] sm:$0xff]
    %v5947 = vld [vmem:[#allocation2 + $0xe8] sm:$0xff]
    %v5948 = vld [vmem:[#allocation2 + $0xf0] sm:$0xff]
    %v5949 = vld [vmem:[#allocation2 + $0xf8] sm:$0xff]
    %v5950 = vld [vmem:[#allocation2 + $0x100] sm:$0xff]
    %v5951 = vld [vmem:[#allocation2 + $0x108] sm:$0xff]
    %v5952 = vld [vmem:[#allocation2 + $0x110] sm:$0xff]
    %v5953 = vld [vmem:[#allocation2 + $0x118] sm:$0xff]
    %v5954 = vld [vmem:[#allocation2 + $0x120] sm:$0xff]
    %v5955 = vld [vmem:[#allocation2 + $0x128] sm:$0xff]
    %v5956 = vld [vmem:[#allocation2 + $0x130] sm:$0xff]
    %v5957 = vld [vmem:[#allocation2 + $0x138] sm:$0xff]
    %v5958 = vld [vmem:[#allocation2 + $0x140] sm:$0xff]
    %v5959 = vld [vmem:[#allocation2 + $0x148] sm:$0xff]
    %v5960 = vld [vmem:[#allocation2 + $0x150] sm:$0xff]
    %v5961 = vld [vmem:[#allocation2 + $0x158] sm:$0xff]
    %v5962 = vld [vmem:[#allocation2 + $0x160] sm:$0xff]
    %v5963 = vld [vmem:[#allocation2 + $0x168] sm:$0xff]
    %v5964 = vld [vmem:[#allocation2 + $0x170] sm:$0xff]
    %v5965 = vld [vmem:[#allocation2 + $0x178] sm:$0xff]
    %v5966 = vld [vmem:[#allocation2 + $0x180] sm:$0xff]
    %v5967 = vld [vmem:[#allocation2 + $0x188] sm:$0xff]
    %v5968 = vld [vmem:[#allocation2 + $0x190] sm:$0xff]
    %v5969 = vld [vmem:[#allocation2 + $0x198] sm:$0xff]
    %v5970 = vld [vmem:[#allocation2 + $0x1a0] sm:$0xff]
    %v5971 = vld [vmem:[#allocation2 + $0x1a8] sm:$0xff]
    %v5972 = vld [vmem:[#allocation2 + $0x1b0] sm:$0xff]
    %v5973 = vld [vmem:[#allocation2 + $0x1b8] sm:$0xff]
    %v5974 = vld [vmem:[#allocation2 + $0x1c0] sm:$0xff]
    %v5975 = vld [vmem:[#allocation2 + $0x1c8] sm:$0xff]
    %v5976 = vld [vmem:[#allocation2 + $0x1d0] sm:$0xff]
    %v5977 = vld [vmem:[#allocation2 + $0x1d8] sm:$0xff]
    %v5978 = vld [vmem:[#allocation2 + $0x1e0] sm:$0xff]
    %v5979 = vld [vmem:[#allocation2 + $0x1e8] sm:$0xff]
    %v5980 = vld [vmem:[#allocation2 + $0x1f0] sm:$0xff]
    %v5981 = vld [vmem:[#allocation2 + $0x1f8] sm:$0xff]
    %s5982 = scalar_lea.vmem %s3, 16
    %v5983 = vld [vmem:[%s5982] sm:$0xf]
    %v5985 = vperm.slane %v5983, 0
    %v5986 = vperm.slane %v5983, 1
    %v5987 = vperm.slane %v5983, 2
    %v5988 = vperm.slane %v5983, 3
    %5993 = vmatpush.msra.mxu0 %v5978
    %5994 = vmatpush.msra.mxu0 %v5974
    %5995 = vmatpush.msra.mxu0 %v5970
    %5996 = vmatpush.msra.mxu0 %v5966
    %5997 = vmatpush.msra.mxu0 %v5962
    %5998 = vmatpush.msra.mxu0 %v5958
    %5999 = vmatpush.msra.mxu0 %v5954
    %6000 = vmatpush.msra.mxu0 %v5950
    %6001 = vmatpush.msra.mxu0 %v5946
    %6002 = vmatpush.msra.mxu0 %v5942
    %6003 = vmatpush.msra.mxu0 %v5938
    %6004 = vmatpush.msra.mxu0 %v5934
    %6005 = vmatpush.msra.mxu0 %v5930
    %6006 = vmatpush.msra.mxu0 %v5926
    %6007 = vmatpush.msra.mxu0 %v5922
    %6008 = vmatpush.msra.mxu0 %v5918
    %6009 = vmatmul.f32.gmra.mxu0 %v5218
    %v6010 = vpop.f32.mrf.mxu0
    %v6011 = vadd.f32 %v5985, %v6010
    %6012 = vmatmul.f32.gmra.mxu0 %v5317
    %v6013 = vpop.f32.mrf.mxu0
    %v6014 = vadd.f32 %v5985, %v6013
    %6015 = vmatmul.f32.gmra.mxu0 %v5416
    %v6016 = vpop.f32.mrf.mxu0
    %v6017 = vadd.f32 %v5985, %v6016
    %6018 = vmatmul.f32.gmra.mxu0 %v5515
    %v6019 = vpop.f32.mrf.mxu0
    %v6020 = vadd.f32 %v5985, %v6019
    %6021 = vmatmul.f32.gmra.mxu0 %v5614
    %v6022 = vpop.f32.mrf.mxu0
    %v6023 = vadd.f32 %v5985, %v6022
    %6024 = vmatmul.f32.gmra.mxu0 %v5713
    %v6025 = vpop.f32.mrf.mxu0
    %v6026 = vadd.f32 %v5985, %v6025
    %6027 = vmatmul.f32.gmra.mxu0 %v5812
    %v6028 = vpop.f32.mrf.mxu0
    %v6029 = vadd.f32 %v5985, %v6028
    %6030 = vmatmul.f32.gmra.mxu0 %v5911
    %v6031 = vpop.f32.mrf.mxu0
    %v6032 = vadd.f32 %v5985, %v6031
    %6033 = vdwg.mxu0
    %6034 = vmatpush.msra.mxu0 %v5979
    %6035 = vmatpush.msra.mxu0 %v5975
    %6036 = vmatpush.msra.mxu0 %v5971
    %6037 = vmatpush.msra.mxu0 %v5967
    %6038 = vmatpush.msra.mxu0 %v5963
    %6039 = vmatpush.msra.mxu0 %v5959
    %6040 = vmatpush.msra.mxu0 %v5955
    %6041 = vmatpush.msra.mxu0 %v5951
    %6042 = vmatpush.msra.mxu0 %v5947
    %6043 = vmatpush.msra.mxu0 %v5943
    %6044 = vmatpush.msra.mxu0 %v5939
    %6045 = vmatpush.msra.mxu0 %v5935
    %6046 = vmatpush.msra.mxu0 %v5931
    %6047 = vmatpush.msra.mxu0 %v5927
    %6048 = vmatpush.msra.mxu0 %v5923
    %6049 = vmatpush.msra.mxu0 %v5919
    %6050 = vmatmul.f32.gmra.mxu0 %v5218
    %v6051 = vpop.f32.mrf.mxu0
    %v6052 = vadd.f32 %v5986, %v6051
    %6053 = vmatmul.f32.gmra.mxu0 %v5317
    %v6054 = vpop.f32.mrf.mxu0
    %v6055 = vadd.f32 %v5986, %v6054
    %6056 = vmatmul.f32.gmra.mxu0 %v5416
    %v6057 = vpop.f32.mrf.mxu0
    %v6058 = vadd.f32 %v5986, %v6057
    %6059 = vmatmul.f32.gmra.mxu0 %v5515
    %v6060 = vpop.f32.mrf.mxu0
    %v6061 = vadd.f32 %v5986, %v6060
    %6062 = vmatmul.f32.gmra.mxu0 %v5614
    %v6063 = vpop.f32.mrf.mxu0
    %v6064 = vadd.f32 %v5986, %v6063
    %6065 = vmatmul.f32.gmra.mxu0 %v5713
    %v6066 = vpop.f32.mrf.mxu0
    %v6067 = vadd.f32 %v5986, %v6066
    %6068 = vmatmul.f32.gmra.mxu0 %v5812
    %v6069 = vpop.f32.mrf.mxu0
    %v6070 = vadd.f32 %v5986, %v6069
    %6071 = vmatmul.f32.gmra.mxu0 %v5911
    %v6072 = vpop.f32.mrf.mxu0
    %v6073 = vadd.f32 %v5986, %v6072
    %6074 = vdwg.mxu0
    %6075 = vmatpush.msra.mxu0 %v5980
    %6076 = vmatpush.msra.mxu0 %v5976
    %6077 = vmatpush.msra.mxu0 %v5972
    %6078 = vmatpush.msra.mxu0 %v5968
    %6079 = vmatpush.msra.mxu0 %v5964
    %6080 = vmatpush.msra.mxu0 %v5960
    %6081 = vmatpush.msra.mxu0 %v5956
    %6082 = vmatpush.msra.mxu0 %v5952
    %6083 = vmatpush.msra.mxu0 %v5948
    %6084 = vmatpush.msra.mxu0 %v5944
    %6085 = vmatpush.msra.mxu0 %v5940
    %6086 = vmatpush.msra.mxu0 %v5936
    %6087 = vmatpush.msra.mxu0 %v5932
    %6088 = vmatpush.msra.mxu0 %v5928
    %6089 = vmatpush.msra.mxu0 %v5924
    %6090 = vmatpush.msra.mxu0 %v5920
    %6091 = vmatmul.f32.gmra.mxu0 %v5218
    %v6092 = vpop.f32.mrf.mxu0
    %v6093 = vadd.f32 %v5987, %v6092
    %6094 = vmatmul.f32.gmra.mxu0 %v5317
    %v6095 = vpop.f32.mrf.mxu0
    %v6096 = vadd.f32 %v5987, %v6095
    %6097 = vmatmul.f32.gmra.mxu0 %v5416
    %v6098 = vpop.f32.mrf.mxu0
    %v6099 = vadd.f32 %v5987, %v6098
    %6100 = vmatmul.f32.gmra.mxu0 %v5515
    %v6101 = vpop.f32.mrf.mxu0
    %v6102 = vadd.f32 %v5987, %v6101
    %6103 = vmatmul.f32.gmra.mxu0 %v5614
    %v6104 = vpop.f32.mrf.mxu0
    %v6105 = vadd.f32 %v5987, %v6104
    %6106 = vmatmul.f32.gmra.mxu0 %v5713
    %v6107 = vpop.f32.mrf.mxu0
    %v6108 = vadd.f32 %v5987, %v6107
    %6109 = vmatmul.f32.gmra.mxu0 %v5812
    %v6110 = vpop.f32.mrf.mxu0
    %v6111 = vadd.f32 %v5987, %v6110
    %6112 = vmatmul.f32.gmra.mxu0 %v5911
    %v6113 = vpop.f32.mrf.mxu0
    %v6114 = vadd.f32 %v5987, %v6113
    %6115 = vdwg.mxu0
    %6116 = vmatpush.msra.mxu0 %v5981
    %6117 = vmatpush.msra.mxu0 %v5977
    %6118 = vmatpush.msra.mxu0 %v5973
    %6119 = vmatpush.msra.mxu0 %v5969
    %6120 = vmatpush.msra.mxu0 %v5965
    %6121 = vmatpush.msra.mxu0 %v5961
    %6122 = vmatpush.msra.mxu0 %v5957
    %6123 = vmatpush.msra.mxu0 %v5953
    %6124 = vmatpush.msra.mxu0 %v5949
    %6125 = vmatpush.msra.mxu0 %v5945
    %6126 = vmatpush.msra.mxu0 %v5941
    %6127 = vmatpush.msra.mxu0 %v5937
    %6128 = vmatpush.msra.mxu0 %v5933
    %6129 = vmatpush.msra.mxu0 %v5929
    %6130 = vmatpush.msra.mxu0 %v5925
    %6131 = vmatpush.msra.mxu0 %v5921
    %6132 = vmatmul.f32.gmra.mxu0 %v5218
    %v6133 = vpop.f32.mrf.mxu0
    %v6134 = vadd.f32 %v5988, %v6133
    %6135 = vmatmul.f32.gmra.mxu0 %v5317
    %v6136 = vpop.f32.mrf.mxu0
    %v6137 = vadd.f32 %v5988, %v6136
    %6138 = vmatmul.f32.gmra.mxu0 %v5416
    %v6139 = vpop.f32.mrf.mxu0
    %v6140 = vadd.f32 %v5988, %v6139
    %6141 = vmatmul.f32.gmra.mxu0 %v5515
    %v6142 = vpop.f32.mrf.mxu0
    %v6143 = vadd.f32 %v5988, %v6142
    %6144 = vmatmul.f32.gmra.mxu0 %v5614
    %v6145 = vpop.f32.mrf.mxu0
    %v6146 = vadd.f32 %v5988, %v6145
    %6147 = vmatmul.f32.gmra.mxu0 %v5713
    %v6148 = vpop.f32.mrf.mxu0
    %v6149 = vadd.f32 %v5988, %v6148
    %6150 = vmatmul.f32.gmra.mxu0 %v5812
    %v6151 = vpop.f32.mrf.mxu0
    %v6152 = vadd.f32 %v5988, %v6151
    %6153 = vmatmul.f32.gmra.mxu0 %v5911
    %v6154 = vpop.f32.mrf.mxu0
    %v6155 = vadd.f32 %v5988, %v6154
    %6156 = vdwg.mxu0
    %s6157 = sshll.u32 %s328, 4
    %6158 = dma.done %s174, %s6157
    %v6159 = vld [vmem:[#allocation3] sm:$0xff]
    %v6160 = vld [vmem:[#allocation3 + $0x8] sm:$0xff]
    %v6161 = vld [vmem:[#allocation3 + $0x10] sm:$0xff]
    %v6162 = vld [vmem:[#allocation3 + $0x18] sm:$0xff]
    %v6163 = vld [vmem:[#allocation3 + $0x20] sm:$0xff]
    %v6164 = vld [vmem:[#allocation3 + $0x28] sm:$0xff]
    %v6165 = vld [vmem:[#allocation3 + $0x30] sm:$0xff]
    %v6166 = vld [vmem:[#allocation3 + $0x38] sm:$0xff]
    %v6167 = vld [vmem:[#allocation3 + $0x40] sm:$0xff]
    %v6168 = vld [vmem:[#allocation3 + $0x48] sm:$0xff]
    %v6169 = vld [vmem:[#allocation3 + $0x50] sm:$0xff]
    %v6170 = vld [vmem:[#allocation3 + $0x58] sm:$0xff]
    %v6171 = vld [vmem:[#allocation3 + $0x60] sm:$0xff]
    %v6172 = vld [vmem:[#allocation3 + $0x68] sm:$0xff]
    %v6173 = vld [vmem:[#allocation3 + $0x70] sm:$0xff]
    %v6174 = vld [vmem:[#allocation3 + $0x78] sm:$0xff]
    %v6175 = vld [vmem:[#allocation3 + $0x80] sm:$0xff]
    %v6176 = vld [vmem:[#allocation3 + $0x88] sm:$0xff]
    %v6177 = vld [vmem:[#allocation3 + $0x90] sm:$0xff]
    %v6178 = vld [vmem:[#allocation3 + $0x98] sm:$0xff]
    %v6179 = vld [vmem:[#allocation3 + $0xa0] sm:$0xff]
    %v6180 = vld [vmem:[#allocation3 + $0xa8] sm:$0xff]
    %v6181 = vld [vmem:[#allocation3 + $0xb0] sm:$0xff]
    %v6182 = vld [vmem:[#allocation3 + $0xb8] sm:$0xff]
    %v6183 = vld [vmem:[#allocation3 + $0xc0] sm:$0xff]
    %v6184 = vld [vmem:[#allocation3 + $0xc8] sm:$0xff]
    %v6185 = vld [vmem:[#allocation3 + $0xd0] sm:$0xff]
    %v6186 = vld [vmem:[#allocation3 + $0xd8] sm:$0xff]
    %v6187 = vld [vmem:[#allocation3 + $0xe0] sm:$0xff]
    %v6188 = vld [vmem:[#allocation3 + $0xe8] sm:$0xff]
    %v6189 = vld [vmem:[#allocation3 + $0xf0] sm:$0xff]
    %v6190 = vld [vmem:[#allocation3 + $0xf8] sm:$0xff]
    %v6191 = vld [vmem:[#allocation3 + $0x100] sm:$0xff]
    %v6192 = vld [vmem:[#allocation3 + $0x108] sm:$0xff]
    %v6193 = vld [vmem:[#allocation3 + $0x110] sm:$0xff]
    %v6194 = vld [vmem:[#allocation3 + $0x118] sm:$0xff]
    %v6195 = vld [vmem:[#allocation3 + $0x120] sm:$0xff]
    %v6196 = vld [vmem:[#allocation3 + $0x128] sm:$0xff]
    %v6197 = vld [vmem:[#allocation3 + $0x130] sm:$0xff]
    %v6198 = vld [vmem:[#allocation3 + $0x138] sm:$0xff]
    %v6199 = vld [vmem:[#allocation3 + $0x140] sm:$0xff]
    %v6200 = vld [vmem:[#allocation3 + $0x148] sm:$0xff]
    %v6201 = vld [vmem:[#allocation3 + $0x150] sm:$0xff]
    %v6202 = vld [vmem:[#allocation3 + $0x158] sm:$0xff]
    %v6203 = vld [vmem:[#allocation3 + $0x160] sm:$0xff]
    %v6204 = vld [vmem:[#allocation3 + $0x168] sm:$0xff]
    %v6205 = vld [vmem:[#allocation3 + $0x170] sm:$0xff]
    %v6206 = vld [vmem:[#allocation3 + $0x178] sm:$0xff]
    %v6207 = vld [vmem:[#allocation3 + $0x180] sm:$0xff]
    %v6208 = vld [vmem:[#allocation3 + $0x188] sm:$0xff]
    %v6209 = vld [vmem:[#allocation3 + $0x190] sm:$0xff]
    %v6210 = vld [vmem:[#allocation3 + $0x198] sm:$0xff]
    %v6211 = vld [vmem:[#allocation3 + $0x1a0] sm:$0xff]
    %v6212 = vld [vmem:[#allocation3 + $0x1a8] sm:$0xff]
    %v6213 = vld [vmem:[#allocation3 + $0x1b0] sm:$0xff]
    %v6214 = vld [vmem:[#allocation3 + $0x1b8] sm:$0xff]
    %v6215 = vld [vmem:[#allocation3 + $0x1c0] sm:$0xff]
    %v6216 = vld [vmem:[#allocation3 + $0x1c8] sm:$0xff]
    %v6217 = vld [vmem:[#allocation3 + $0x1d0] sm:$0xff]
    %v6218 = vld [vmem:[#allocation3 + $0x1d8] sm:$0xff]
    %v6219 = vld [vmem:[#allocation3 + $0x1e0] sm:$0xff]
    %v6220 = vld [vmem:[#allocation3 + $0x1e8] sm:$0xff]
    %v6221 = vld [vmem:[#allocation3 + $0x1f0] sm:$0xff]
    %v6222 = vld [vmem:[#allocation3 + $0x1f8] sm:$0xff]
    %s6223 = scalar_lea.vmem %s1, 32
    %v6224 = vld [vmem:[%s6223] sm:$0xff]
    %s6225 = scalar_lea.vmem %s2, 32
    %v6226 = vld [vmem:[%s6225] sm:$0xff]
    %6227 = vmatpush.msra.mxu0 %v6219
    %6228 = vmatpush.msra.mxu0 %v6215
    %6229 = vmatpush.msra.mxu0 %v6211
    %6230 = vmatpush.msra.mxu0 %v6207
    %6231 = vmatpush.msra.mxu0 %v6203
    %6232 = vmatpush.msra.mxu0 %v6199
    %6233 = vmatpush.msra.mxu0 %v6195
    %6234 = vmatpush.msra.mxu0 %v6191
    %6235 = vmatpush.msra.mxu0 %v6187
    %6236 = vmatpush.msra.mxu0 %v6183
    %6237 = vmatpush.msra.mxu0 %v6179
    %6238 = vmatpush.msra.mxu0 %v6175
    %6239 = vmatpush.msra.mxu0 %v6171
    %6240 = vmatpush.msra.mxu0 %v6167
    %6241 = vmatpush.msra.mxu0 %v6163
    %6242 = vmatpush.msra.mxu0 %v6159
    %6243 = vmatmul.f32.gmra.mxu0 %v6224
    %v6244 = vpop.f32.mrf.mxu0
    %v6245 = vadd.f32 0.0, %v6244
    %6246 = vdwg.mxu0
    %6247 = vmatpush.msra.mxu0 %v6220
    %6248 = vmatpush.msra.mxu0 %v6216
    %6249 = vmatpush.msra.mxu0 %v6212
    %6250 = vmatpush.msra.mxu0 %v6208
    %6251 = vmatpush.msra.mxu0 %v6204
    %6252 = vmatpush.msra.mxu0 %v6200
    %6253 = vmatpush.msra.mxu0 %v6196
    %6254 = vmatpush.msra.mxu0 %v6192
    %6255 = vmatpush.msra.mxu0 %v6188
    %6256 = vmatpush.msra.mxu0 %v6184
    %6257 = vmatpush.msra.mxu0 %v6180
    %6258 = vmatpush.msra.mxu0 %v6176
    %6259 = vmatpush.msra.mxu0 %v6172
    %6260 = vmatpush.msra.mxu0 %v6168
    %6261 = vmatpush.msra.mxu0 %v6164
    %6262 = vmatpush.msra.mxu0 %v6160
    %6263 = vmatmul.f32.gmra.mxu0 %v6224
    %v6264 = vpop.f32.mrf.mxu0
    %v6265 = vadd.f32 0.0, %v6264
    %6266 = vdwg.mxu0
    %6267 = vmatpush.msra.mxu0 %v6221
    %6268 = vmatpush.msra.mxu0 %v6217
    %6269 = vmatpush.msra.mxu0 %v6213
    %6270 = vmatpush.msra.mxu0 %v6209
    %6271 = vmatpush.msra.mxu0 %v6205
    %6272 = vmatpush.msra.mxu0 %v6201
    %6273 = vmatpush.msra.mxu0 %v6197
    %6274 = vmatpush.msra.mxu0 %v6193
    %6275 = vmatpush.msra.mxu0 %v6189
    %6276 = vmatpush.msra.mxu0 %v6185
    %6277 = vmatpush.msra.mxu0 %v6181
    %6278 = vmatpush.msra.mxu0 %v6177
    %6279 = vmatpush.msra.mxu0 %v6173
    %6280 = vmatpush.msra.mxu0 %v6169
    %6281 = vmatpush.msra.mxu0 %v6165
    %6282 = vmatpush.msra.mxu0 %v6161
    %6283 = vmatmul.f32.gmra.mxu0 %v6224
    %v6284 = vpop.f32.mrf.mxu0
    %v6285 = vadd.f32 0.0, %v6284
    %6286 = vdwg.mxu0
    %6287 = vmatpush.msra.mxu0 %v6222
    %6288 = vmatpush.msra.mxu0 %v6218
    %6289 = vmatpush.msra.mxu0 %v6214
    %6290 = vmatpush.msra.mxu0 %v6210
    %6291 = vmatpush.msra.mxu0 %v6206
    %6292 = vmatpush.msra.mxu0 %v6202
    %6293 = vmatpush.msra.mxu0 %v6198
    %6294 = vmatpush.msra.mxu0 %v6194
    %6295 = vmatpush.msra.mxu0 %v6190
    %6296 = vmatpush.msra.mxu0 %v6186
    %6297 = vmatpush.msra.mxu0 %v6182
    %6298 = vmatpush.msra.mxu0 %v6178
    %6299 = vmatpush.msra.mxu0 %v6174
    %6300 = vmatpush.msra.mxu0 %v6170
    %6301 = vmatpush.msra.mxu0 %v6166
    %6302 = vmatpush.msra.mxu0 %v6162
    %6303 = vmatmul.f32.gmra.mxu0 %v6224
    %v6304 = vpop.f32.mrf.mxu0
    %v6305 = vadd.f32 0.0, %v6304
    %6306 = vdwg.mxu0
    %v6307 = vadd.f32 %v6011, %v6245
    %v6308 = vadd.f32 %v6052, %v6265
    %v6309 = vadd.f32 %v6093, %v6285
    %v6310 = vadd.f32 %v6134, %v6305
    %v6311 = vtanh.pop %v6307
    %v6312 = vtanh.pop %v6308
    %v6313 = vtanh.pop %v6309
    %v6314 = vtanh.pop %v6310
    %v6315 = vmul.f32 %v6311, 0.5
    %v6316 = vadd.f32 %v6315, 0.5
    %v6317 = vmul.f32 %v6312, 0.5
    %v6318 = vadd.f32 %v6317, 0.5
    %v6319 = vmul.f32 %v6314, 0.5
    %v6320 = vadd.f32 %v6319, 0.5
    %v6321 = vmul.f32 %v6318, %v6226
    %v6322 = vmul.f32 %v6316, %v6313
    %v6323 = vadd.f32 %v6321, %v6322
    %v6324 = vtanh.pop %v6323
    %v6325 = vmul.f32 %v6320, %v6324
    %6326 = vmatpush.msra.mxu0 %v6219
    %6327 = vmatpush.msra.mxu0 %v6215
    %6328 = vmatpush.msra.mxu0 %v6211
    %6329 = vmatpush.msra.mxu0 %v6207
    %6330 = vmatpush.msra.mxu0 %v6203
    %6331 = vmatpush.msra.mxu0 %v6199
    %6332 = vmatpush.msra.mxu0 %v6195
    %6333 = vmatpush.msra.mxu0 %v6191
    %6334 = vmatpush.msra.mxu0 %v6187
    %6335 = vmatpush.msra.mxu0 %v6183
    %6336 = vmatpush.msra.mxu0 %v6179
    %6337 = vmatpush.msra.mxu0 %v6175
    %6338 = vmatpush.msra.mxu0 %v6171
    %6339 = vmatpush.msra.mxu0 %v6167
    %6340 = vmatpush.msra.mxu0 %v6163
    %6341 = vmatpush.msra.mxu0 %v6159
    %6342 = vmatmul.f32.gmra.mxu0 %v6325
    %v6343 = vpop.f32.mrf.mxu0
    %v6344 = vadd.f32 0.0, %v6343
    %6345 = vdwg.mxu0
    %6346 = vmatpush.msra.mxu0 %v6220
    %6347 = vmatpush.msra.mxu0 %v6216
    %6348 = vmatpush.msra.mxu0 %v6212
    %6349 = vmatpush.msra.mxu0 %v6208
    %6350 = vmatpush.msra.mxu0 %v6204
    %6351 = vmatpush.msra.mxu0 %v6200
    %6352 = vmatpush.msra.mxu0 %v6196
    %6353 = vmatpush.msra.mxu0 %v6192
    %6354 = vmatpush.msra.mxu0 %v6188
    %6355 = vmatpush.msra.mxu0 %v6184
    %6356 = vmatpush.msra.mxu0 %v6180
    %6357 = vmatpush.msra.mxu0 %v6176
    %6358 = vmatpush.msra.mxu0 %v6172
    %6359 = vmatpush.msra.mxu0 %v6168
    %6360 = vmatpush.msra.mxu0 %v6164
    %6361 = vmatpush.msra.mxu0 %v6160
    %6362 = vmatmul.f32.gmra.mxu0 %v6325
    %v6363 = vpop.f32.mrf.mxu0
    %v6364 = vadd.f32 0.0, %v6363
    %6365 = vdwg.mxu0
    %6366 = vmatpush.msra.mxu0 %v6221
    %6367 = vmatpush.msra.mxu0 %v6217
    %6368 = vmatpush.msra.mxu0 %v6213
    %6369 = vmatpush.msra.mxu0 %v6209
    %6370 = vmatpush.msra.mxu0 %v6205
    %6371 = vmatpush.msra.mxu0 %v6201
    %6372 = vmatpush.msra.mxu0 %v6197
    %6373 = vmatpush.msra.mxu0 %v6193
    %6374 = vmatpush.msra.mxu0 %v6189
    %6375 = vmatpush.msra.mxu0 %v6185
    %6376 = vmatpush.msra.mxu0 %v6181
    %6377 = vmatpush.msra.mxu0 %v6177
    %6378 = vmatpush.msra.mxu0 %v6173
    %6379 = vmatpush.msra.mxu0 %v6169
    %6380 = vmatpush.msra.mxu0 %v6165
    %6381 = vmatpush.msra.mxu0 %v6161
    %6382 = vmatmul.f32.gmra.mxu0 %v6325
    %v6383 = vpop.f32.mrf.mxu0
    %v6384 = vadd.f32 0.0, %v6383
    %6385 = vdwg.mxu0
    %6386 = vmatpush.msra.mxu0 %v6222
    %6387 = vmatpush.msra.mxu0 %v6218
    %6388 = vmatpush.msra.mxu0 %v6214
    %6389 = vmatpush.msra.mxu0 %v6210
    %6390 = vmatpush.msra.mxu0 %v6206
    %6391 = vmatpush.msra.mxu0 %v6202
    %6392 = vmatpush.msra.mxu0 %v6198
    %6393 = vmatpush.msra.mxu0 %v6194
    %6394 = vmatpush.msra.mxu0 %v6190
    %6395 = vmatpush.msra.mxu0 %v6186
    %6396 = vmatpush.msra.mxu0 %v6182
    %6397 = vmatpush.msra.mxu0 %v6178
    %6398 = vmatpush.msra.mxu0 %v6174
    %6399 = vmatpush.msra.mxu0 %v6170
    %6400 = vmatpush.msra.mxu0 %v6166
    %6401 = vmatpush.msra.mxu0 %v6162
    %6402 = vmatmul.f32.gmra.mxu0 %v6325
    %v6403 = vpop.f32.mrf.mxu0
    %v6404 = vadd.f32 0.0, %v6403
    %6405 = vdwg.mxu0
    %v6406 = vadd.f32 %v6014, %v6344
    %v6407 = vadd.f32 %v6055, %v6364
    %v6408 = vadd.f32 %v6096, %v6384
    %v6409 = vadd.f32 %v6137, %v6404
    %v6410 = vtanh.pop %v6406
    %v6411 = vtanh.pop %v6407
    %v6412 = vtanh.pop %v6408
    %v6413 = vtanh.pop %v6409
    %v6414 = vmul.f32 %v6410, 0.5
    %v6415 = vadd.f32 %v6414, 0.5
    %v6416 = vmul.f32 %v6411, 0.5
    %v6417 = vadd.f32 %v6416, 0.5
    %v6418 = vmul.f32 %v6413, 0.5
    %v6419 = vadd.f32 %v6418, 0.5
    %v6420 = vmul.f32 %v6417, %v6323
    %v6421 = vmul.f32 %v6415, %v6412
    %v6422 = vadd.f32 %v6420, %v6421
    %v6423 = vtanh.pop %v6422
    %v6424 = vmul.f32 %v6419, %v6423
    %6425 = vmatpush.msra.mxu0 %v6219
    %6426 = vmatpush.msra.mxu0 %v6215
    %6427 = vmatpush.msra.mxu0 %v6211
    %6428 = vmatpush.msra.mxu0 %v6207
    %6429 = vmatpush.msra.mxu0 %v6203
    %6430 = vmatpush.msra.mxu0 %v6199
    %6431 = vmatpush.msra.mxu0 %v6195
    %6432 = vmatpush.msra.mxu0 %v6191
    %6433 = vmatpush.msra.mxu0 %v6187
    %6434 = vmatpush.msra.mxu0 %v6183
    %6435 = vmatpush.msra.mxu0 %v6179
    %6436 = vmatpush.msra.mxu0 %v6175
    %6437 = vmatpush.msra.mxu0 %v6171
    %6438 = vmatpush.msra.mxu0 %v6167
    %6439 = vmatpush.msra.mxu0 %v6163
    %6440 = vmatpush.msra.mxu0 %v6159
    %6441 = vmatmul.f32.gmra.mxu0 %v6424
    %v6442 = vpop.f32.mrf.mxu0
    %v6443 = vadd.f32 0.0, %v6442
    %6444 = vdwg.mxu0
    %6445 = vmatpush.msra.mxu0 %v6220
    %6446 = vmatpush.msra.mxu0 %v6216
    %6447 = vmatpush.msra.mxu0 %v6212
    %6448 = vmatpush.msra.mxu0 %v6208
    %6449 = vmatpush.msra.mxu0 %v6204
    %6450 = vmatpush.msra.mxu0 %v6200
    %6451 = vmatpush.msra.mxu0 %v6196
    %6452 = vmatpush.msra.mxu0 %v6192
    %6453 = vmatpush.msra.mxu0 %v6188
    %6454 = vmatpush.msra.mxu0 %v6184
    %6455 = vmatpush.msra.mxu0 %v6180
    %6456 = vmatpush.msra.mxu0 %v6176
    %6457 = vmatpush.msra.mxu0 %v6172
    %6458 = vmatpush.msra.mxu0 %v6168
    %6459 = vmatpush.msra.mxu0 %v6164
    %6460 = vmatpush.msra.mxu0 %v6160
    %6461 = vmatmul.f32.gmra.mxu0 %v6424
    %v6462 = vpop.f32.mrf.mxu0
    %v6463 = vadd.f32 0.0, %v6462
    %6464 = vdwg.mxu0
    %6465 = vmatpush.msra.mxu0 %v6221
    %6466 = vmatpush.msra.mxu0 %v6217
    %6467 = vmatpush.msra.mxu0 %v6213
    %6468 = vmatpush.msra.mxu0 %v6209
    %6469 = vmatpush.msra.mxu0 %v6205
    %6470 = vmatpush.msra.mxu0 %v6201
    %6471 = vmatpush.msra.mxu0 %v6197
    %6472 = vmatpush.msra.mxu0 %v6193
    %6473 = vmatpush.msra.mxu0 %v6189
    %6474 = vmatpush.msra.mxu0 %v6185
    %6475 = vmatpush.msra.mxu0 %v6181
    %6476 = vmatpush.msra.mxu0 %v6177
    %6477 = vmatpush.msra.mxu0 %v6173
    %6478 = vmatpush.msra.mxu0 %v6169
    %6479 = vmatpush.msra.mxu0 %v6165
    %6480 = vmatpush.msra.mxu0 %v6161
    %6481 = vmatmul.f32.gmra.mxu0 %v6424
    %v6482 = vpop.f32.mrf.mxu0
    %v6483 = vadd.f32 0.0, %v6482
    %6484 = vdwg.mxu0
    %6485 = vmatpush.msra.mxu0 %v6222
    %6486 = vmatpush.msra.mxu0 %v6218
    %6487 = vmatpush.msra.mxu0 %v6214
    %6488 = vmatpush.msra.mxu0 %v6210
    %6489 = vmatpush.msra.mxu0 %v6206
    %6490 = vmatpush.msra.mxu0 %v6202
    %6491 = vmatpush.msra.mxu0 %v6198
    %6492 = vmatpush.msra.mxu0 %v6194
    %6493 = vmatpush.msra.mxu0 %v6190
    %6494 = vmatpush.msra.mxu0 %v6186
    %6495 = vmatpush.msra.mxu0 %v6182
    %6496 = vmatpush.msra.mxu0 %v6178
    %6497 = vmatpush.msra.mxu0 %v6174
    %6498 = vmatpush.msra.mxu0 %v6170
    %6499 = vmatpush.msra.mxu0 %v6166
    %6500 = vmatpush.msra.mxu0 %v6162
    %6501 = vmatmul.f32.gmra.mxu0 %v6424
    %v6502 = vpop.f32.mrf.mxu0
    %v6503 = vadd.f32 0.0, %v6502
    %6504 = vdwg.mxu0
    %v6505 = vadd.f32 %v6017, %v6443
    %v6506 = vadd.f32 %v6058, %v6463
    %v6507 = vadd.f32 %v6099, %v6483
    %v6508 = vadd.f32 %v6140, %v6503
    %v6509 = vtanh.pop %v6505
    %v6510 = vtanh.pop %v6506
    %v6511 = vtanh.pop %v6507
    %v6512 = vtanh.pop %v6508
    %v6513 = vmul.f32 %v6509, 0.5
    %v6514 = vadd.f32 %v6513, 0.5
    %v6515 = vmul.f32 %v6510, 0.5
    %v6516 = vadd.f32 %v6515, 0.5
    %v6517 = vmul.f32 %v6512, 0.5
    %v6518 = vadd.f32 %v6517, 0.5
    %v6519 = vmul.f32 %v6516, %v6422
    %v6520 = vmul.f32 %v6514, %v6511
    %v6521 = vadd.f32 %v6519, %v6520
    %v6522 = vtanh.pop %v6521
    %v6523 = vmul.f32 %v6518, %v6522
    %6524 = vmatpush.msra.mxu0 %v6219
    %6525 = vmatpush.msra.mxu0 %v6215
    %6526 = vmatpush.msra.mxu0 %v6211
    %6527 = vmatpush.msra.mxu0 %v6207
    %6528 = vmatpush.msra.mxu0 %v6203
    %6529 = vmatpush.msra.mxu0 %v6199
    %6530 = vmatpush.msra.mxu0 %v6195
    %6531 = vmatpush.msra.mxu0 %v6191
    %6532 = vmatpush.msra.mxu0 %v6187
    %6533 = vmatpush.msra.mxu0 %v6183
    %6534 = vmatpush.msra.mxu0 %v6179
    %6535 = vmatpush.msra.mxu0 %v6175
    %6536 = vmatpush.msra.mxu0 %v6171
    %6537 = vmatpush.msra.mxu0 %v6167
    %6538 = vmatpush.msra.mxu0 %v6163
    %6539 = vmatpush.msra.mxu0 %v6159
    %6540 = vmatmul.f32.gmra.mxu0 %v6523
    %v6541 = vpop.f32.mrf.mxu0
    %v6542 = vadd.f32 0.0, %v6541
    %6543 = vdwg.mxu0
    %6544 = vmatpush.msra.mxu0 %v6220
    %6545 = vmatpush.msra.mxu0 %v6216
    %6546 = vmatpush.msra.mxu0 %v6212
    %6547 = vmatpush.msra.mxu0 %v6208
    %6548 = vmatpush.msra.mxu0 %v6204
    %6549 = vmatpush.msra.mxu0 %v6200
    %6550 = vmatpush.msra.mxu0 %v6196
    %6551 = vmatpush.msra.mxu0 %v6192
    %6552 = vmatpush.msra.mxu0 %v6188
    %6553 = vmatpush.msra.mxu0 %v6184
    %6554 = vmatpush.msra.mxu0 %v6180
    %6555 = vmatpush.msra.mxu0 %v6176
    %6556 = vmatpush.msra.mxu0 %v6172
    %6557 = vmatpush.msra.mxu0 %v6168
    %6558 = vmatpush.msra.mxu0 %v6164
    %6559 = vmatpush.msra.mxu0 %v6160
    %6560 = vmatmul.f32.gmra.mxu0 %v6523
    %v6561 = vpop.f32.mrf.mxu0
    %v6562 = vadd.f32 0.0, %v6561
    %6563 = vdwg.mxu0
    %6564 = vmatpush.msra.mxu0 %v6221
    %6565 = vmatpush.msra.mxu0 %v6217
    %6566 = vmatpush.msra.mxu0 %v6213
    %6567 = vmatpush.msra.mxu0 %v6209
    %6568 = vmatpush.msra.mxu0 %v6205
    %6569 = vmatpush.msra.mxu0 %v6201
    %6570 = vmatpush.msra.mxu0 %v6197
    %6571 = vmatpush.msra.mxu0 %v6193
    %6572 = vmatpush.msra.mxu0 %v6189
    %6573 = vmatpush.msra.mxu0 %v6185
    %6574 = vmatpush.msra.mxu0 %v6181
    %6575 = vmatpush.msra.mxu0 %v6177
    %6576 = vmatpush.msra.mxu0 %v6173
    %6577 = vmatpush.msra.mxu0 %v6169
    %6578 = vmatpush.msra.mxu0 %v6165
    %6579 = vmatpush.msra.mxu0 %v6161
    %6580 = vmatmul.f32.gmra.mxu0 %v6523
    %v6581 = vpop.f32.mrf.mxu0
    %v6582 = vadd.f32 0.0, %v6581
    %6583 = vdwg.mxu0
    %6584 = vmatpush.msra.mxu0 %v6222
    %6585 = vmatpush.msra.mxu0 %v6218
    %6586 = vmatpush.msra.mxu0 %v6214
    %6587 = vmatpush.msra.mxu0 %v6210
    %6588 = vmatpush.msra.mxu0 %v6206
    %6589 = vmatpush.msra.mxu0 %v6202
    %6590 = vmatpush.msra.mxu0 %v6198
    %6591 = vmatpush.msra.mxu0 %v6194
    %6592 = vmatpush.msra.mxu0 %v6190
    %6593 = vmatpush.msra.mxu0 %v6186
    %6594 = vmatpush.msra.mxu0 %v6182
    %6595 = vmatpush.msra.mxu0 %v6178
    %6596 = vmatpush.msra.mxu0 %v6174
    %6597 = vmatpush.msra.mxu0 %v6170
    %6598 = vmatpush.msra.mxu0 %v6166
    %6599 = vmatpush.msra.mxu0 %v6162
    %6600 = vmatmul.f32.gmra.mxu0 %v6523
    %v6601 = vpop.f32.mrf.mxu0
    %v6602 = vadd.f32 0.0, %v6601
    %6603 = vdwg.mxu0
    %v6604 = vadd.f32 %v6020, %v6542
    %v6605 = vadd.f32 %v6061, %v6562
    %v6606 = vadd.f32 %v6102, %v6582
    %v6607 = vadd.f32 %v6143, %v6602
    %v6608 = vtanh.pop %v6604
    %v6609 = vtanh.pop %v6605
    %v6610 = vtanh.pop %v6606
    %v6611 = vtanh.pop %v6607
    %v6612 = vmul.f32 %v6608, 0.5
    %v6613 = vadd.f32 %v6612, 0.5
    %v6614 = vmul.f32 %v6609, 0.5
    %v6615 = vadd.f32 %v6614, 0.5
    %v6616 = vmul.f32 %v6611, 0.5
    %v6617 = vadd.f32 %v6616, 0.5
    %v6618 = vmul.f32 %v6615, %v6521
    %v6619 = vmul.f32 %v6613, %v6610
    %v6620 = vadd.f32 %v6618, %v6619
    %v6621 = vtanh.pop %v6620
    %v6622 = vmul.f32 %v6617, %v6621
    %6623 = vmatpush.msra.mxu0 %v6219
    %6624 = vmatpush.msra.mxu0 %v6215
    %6625 = vmatpush.msra.mxu0 %v6211
    %6626 = vmatpush.msra.mxu0 %v6207
    %6627 = vmatpush.msra.mxu0 %v6203
    %6628 = vmatpush.msra.mxu0 %v6199
    %6629 = vmatpush.msra.mxu0 %v6195
    %6630 = vmatpush.msra.mxu0 %v6191
    %6631 = vmatpush.msra.mxu0 %v6187
    %6632 = vmatpush.msra.mxu0 %v6183
    %6633 = vmatpush.msra.mxu0 %v6179
    %6634 = vmatpush.msra.mxu0 %v6175
    %6635 = vmatpush.msra.mxu0 %v6171
    %6636 = vmatpush.msra.mxu0 %v6167
    %6637 = vmatpush.msra.mxu0 %v6163
    %6638 = vmatpush.msra.mxu0 %v6159
    %6639 = vmatmul.f32.gmra.mxu0 %v6622
    %v6640 = vpop.f32.mrf.mxu0
    %v6641 = vadd.f32 0.0, %v6640
    %6642 = vdwg.mxu0
    %6643 = vmatpush.msra.mxu0 %v6220
    %6644 = vmatpush.msra.mxu0 %v6216
    %6645 = vmatpush.msra.mxu0 %v6212
    %6646 = vmatpush.msra.mxu0 %v6208
    %6647 = vmatpush.msra.mxu0 %v6204
    %6648 = vmatpush.msra.mxu0 %v6200
    %6649 = vmatpush.msra.mxu0 %v6196
    %6650 = vmatpush.msra.mxu0 %v6192
    %6651 = vmatpush.msra.mxu0 %v6188
    %6652 = vmatpush.msra.mxu0 %v6184
    %6653 = vmatpush.msra.mxu0 %v6180
    %6654 = vmatpush.msra.mxu0 %v6176
    %6655 = vmatpush.msra.mxu0 %v6172
    %6656 = vmatpush.msra.mxu0 %v6168
    %6657 = vmatpush.msra.mxu0 %v6164
    %6658 = vmatpush.msra.mxu0 %v6160
    %6659 = vmatmul.f32.gmra.mxu0 %v6622
    %v6660 = vpop.f32.mrf.mxu0
    %v6661 = vadd.f32 0.0, %v6660
    %6662 = vdwg.mxu0
    %6663 = vmatpush.msra.mxu0 %v6221
    %6664 = vmatpush.msra.mxu0 %v6217
    %6665 = vmatpush.msra.mxu0 %v6213
    %6666 = vmatpush.msra.mxu0 %v6209
    %6667 = vmatpush.msra.mxu0 %v6205
    %6668 = vmatpush.msra.mxu0 %v6201
    %6669 = vmatpush.msra.mxu0 %v6197
    %6670 = vmatpush.msra.mxu0 %v6193
    %6671 = vmatpush.msra.mxu0 %v6189
    %6672 = vmatpush.msra.mxu0 %v6185
    %6673 = vmatpush.msra.mxu0 %v6181
    %6674 = vmatpush.msra.mxu0 %v6177
    %6675 = vmatpush.msra.mxu0 %v6173
    %6676 = vmatpush.msra.mxu0 %v6169
    %6677 = vmatpush.msra.mxu0 %v6165
    %6678 = vmatpush.msra.mxu0 %v6161
    %6679 = vmatmul.f32.gmra.mxu0 %v6622
    %v6680 = vpop.f32.mrf.mxu0
    %v6681 = vadd.f32 0.0, %v6680
    %6682 = vdwg.mxu0
    %6683 = vmatpush.msra.mxu0 %v6222
    %6684 = vmatpush.msra.mxu0 %v6218
    %6685 = vmatpush.msra.mxu0 %v6214
    %6686 = vmatpush.msra.mxu0 %v6210
    %6687 = vmatpush.msra.mxu0 %v6206
    %6688 = vmatpush.msra.mxu0 %v6202
    %6689 = vmatpush.msra.mxu0 %v6198
    %6690 = vmatpush.msra.mxu0 %v6194
    %6691 = vmatpush.msra.mxu0 %v6190
    %6692 = vmatpush.msra.mxu0 %v6186
    %6693 = vmatpush.msra.mxu0 %v6182
    %6694 = vmatpush.msra.mxu0 %v6178
    %6695 = vmatpush.msra.mxu0 %v6174
    %6696 = vmatpush.msra.mxu0 %v6170
    %6697 = vmatpush.msra.mxu0 %v6166
    %6698 = vmatpush.msra.mxu0 %v6162
    %6699 = vmatmul.f32.gmra.mxu0 %v6622
    %v6700 = vpop.f32.mrf.mxu0
    %v6701 = vadd.f32 0.0, %v6700
    %6702 = vdwg.mxu0
    %v6703 = vadd.f32 %v6023, %v6641
    %v6704 = vadd.f32 %v6064, %v6661
    %v6705 = vadd.f32 %v6105, %v6681
    %v6706 = vadd.f32 %v6146, %v6701
    %v6707 = vtanh.pop %v6703
    %v6708 = vtanh.pop %v6704
    %v6709 = vtanh.pop %v6705
    %v6710 = vtanh.pop %v6706
    %v6711 = vmul.f32 %v6707, 0.5
    %v6712 = vadd.f32 %v6711, 0.5
    %v6713 = vmul.f32 %v6708, 0.5
    %v6714 = vadd.f32 %v6713, 0.5
    %v6715 = vmul.f32 %v6710, 0.5
    %v6716 = vadd.f32 %v6715, 0.5
    %v6717 = vmul.f32 %v6714, %v6620
    %v6718 = vmul.f32 %v6712, %v6709
    %v6719 = vadd.f32 %v6717, %v6718
    %v6720 = vtanh.pop %v6719
    %v6721 = vmul.f32 %v6716, %v6720
    %6722 = vmatpush.msra.mxu0 %v6219
    %6723 = vmatpush.msra.mxu0 %v6215
    %6724 = vmatpush.msra.mxu0 %v6211
    %6725 = vmatpush.msra.mxu0 %v6207
    %6726 = vmatpush.msra.mxu0 %v6203
    %6727 = vmatpush.msra.mxu0 %v6199
    %6728 = vmatpush.msra.mxu0 %v6195
    %6729 = vmatpush.msra.mxu0 %v6191
    %6730 = vmatpush.msra.mxu0 %v6187
    %6731 = vmatpush.msra.mxu0 %v6183
    %6732 = vmatpush.msra.mxu0 %v6179
    %6733 = vmatpush.msra.mxu0 %v6175
    %6734 = vmatpush.msra.mxu0 %v6171
    %6735 = vmatpush.msra.mxu0 %v6167
    %6736 = vmatpush.msra.mxu0 %v6163
    %6737 = vmatpush.msra.mxu0 %v6159
    %6738 = vmatmul.f32.gmra.mxu0 %v6721
    %v6739 = vpop.f32.mrf.mxu0
    %v6740 = vadd.f32 0.0, %v6739
    %6741 = vdwg.mxu0
    %6742 = vmatpush.msra.mxu0 %v6220
    %6743 = vmatpush.msra.mxu0 %v6216
    %6744 = vmatpush.msra.mxu0 %v6212
    %6745 = vmatpush.msra.mxu0 %v6208
    %6746 = vmatpush.msra.mxu0 %v6204
    %6747 = vmatpush.msra.mxu0 %v6200
    %6748 = vmatpush.msra.mxu0 %v6196
    %6749 = vmatpush.msra.mxu0 %v6192
    %6750 = vmatpush.msra.mxu0 %v6188
    %6751 = vmatpush.msra.mxu0 %v6184
    %6752 = vmatpush.msra.mxu0 %v6180
    %6753 = vmatpush.msra.mxu0 %v6176
    %6754 = vmatpush.msra.mxu0 %v6172
    %6755 = vmatpush.msra.mxu0 %v6168
    %6756 = vmatpush.msra.mxu0 %v6164
    %6757 = vmatpush.msra.mxu0 %v6160
    %6758 = vmatmul.f32.gmra.mxu0 %v6721
    %v6759 = vpop.f32.mrf.mxu0
    %v6760 = vadd.f32 0.0, %v6759
    %6761 = vdwg.mxu0
    %6762 = vmatpush.msra.mxu0 %v6221
    %6763 = vmatpush.msra.mxu0 %v6217
    %6764 = vmatpush.msra.mxu0 %v6213
    %6765 = vmatpush.msra.mxu0 %v6209
    %6766 = vmatpush.msra.mxu0 %v6205
    %6767 = vmatpush.msra.mxu0 %v6201
    %6768 = vmatpush.msra.mxu0 %v6197
    %6769 = vmatpush.msra.mxu0 %v6193
    %6770 = vmatpush.msra.mxu0 %v6189
    %6771 = vmatpush.msra.mxu0 %v6185
    %6772 = vmatpush.msra.mxu0 %v6181
    %6773 = vmatpush.msra.mxu0 %v6177
    %6774 = vmatpush.msra.mxu0 %v6173
    %6775 = vmatpush.msra.mxu0 %v6169
    %6776 = vmatpush.msra.mxu0 %v6165
    %6777 = vmatpush.msra.mxu0 %v6161
    %6778 = vmatmul.f32.gmra.mxu0 %v6721
    %v6779 = vpop.f32.mrf.mxu0
    %v6780 = vadd.f32 0.0, %v6779
    %6781 = vdwg.mxu0
    %6782 = vmatpush.msra.mxu0 %v6222
    %6783 = vmatpush.msra.mxu0 %v6218
    %6784 = vmatpush.msra.mxu0 %v6214
    %6785 = vmatpush.msra.mxu0 %v6210
    %6786 = vmatpush.msra.mxu0 %v6206
    %6787 = vmatpush.msra.mxu0 %v6202
    %6788 = vmatpush.msra.mxu0 %v6198
    %6789 = vmatpush.msra.mxu0 %v6194
    %6790 = vmatpush.msra.mxu0 %v6190
    %6791 = vmatpush.msra.mxu0 %v6186
    %6792 = vmatpush.msra.mxu0 %v6182
    %6793 = vmatpush.msra.mxu0 %v6178
    %6794 = vmatpush.msra.mxu0 %v6174
    %6795 = vmatpush.msra.mxu0 %v6170
    %6796 = vmatpush.msra.mxu0 %v6166
    %6797 = vmatpush.msra.mxu0 %v6162
    %6798 = vmatmul.f32.gmra.mxu0 %v6721
    %v6799 = vpop.f32.mrf.mxu0
    %v6800 = vadd.f32 0.0, %v6799
    %6801 = vdwg.mxu0
    %v6802 = vadd.f32 %v6026, %v6740
    %v6803 = vadd.f32 %v6067, %v6760
    %v6804 = vadd.f32 %v6108, %v6780
    %v6805 = vadd.f32 %v6149, %v6800
    %v6806 = vtanh.pop %v6802
    %v6807 = vtanh.pop %v6803
    %v6808 = vtanh.pop %v6804
    %v6809 = vtanh.pop %v6805
    %v6810 = vmul.f32 %v6806, 0.5
    %v6811 = vadd.f32 %v6810, 0.5
    %v6812 = vmul.f32 %v6807, 0.5
    %v6813 = vadd.f32 %v6812, 0.5
    %v6814 = vmul.f32 %v6809, 0.5
    %v6815 = vadd.f32 %v6814, 0.5
    %v6816 = vmul.f32 %v6813, %v6719
    %v6817 = vmul.f32 %v6811, %v6808
    %v6818 = vadd.f32 %v6816, %v6817
    %v6819 = vtanh.pop %v6818
    %v6820 = vmul.f32 %v6815, %v6819
    %6821 = vmatpush.msra.mxu0 %v6219
    %6822 = vmatpush.msra.mxu0 %v6215
    %6823 = vmatpush.msra.mxu0 %v6211
    %6824 = vmatpush.msra.mxu0 %v6207
    %6825 = vmatpush.msra.mxu0 %v6203
    %6826 = vmatpush.msra.mxu0 %v6199
    %6827 = vmatpush.msra.mxu0 %v6195
    %6828 = vmatpush.msra.mxu0 %v6191
    %6829 = vmatpush.msra.mxu0 %v6187
    %6830 = vmatpush.msra.mxu0 %v6183
    %6831 = vmatpush.msra.mxu0 %v6179
    %6832 = vmatpush.msra.mxu0 %v6175
    %6833 = vmatpush.msra.mxu0 %v6171
    %6834 = vmatpush.msra.mxu0 %v6167
    %6835 = vmatpush.msra.mxu0 %v6163
    %6836 = vmatpush.msra.mxu0 %v6159
    %6837 = vmatmul.f32.gmra.mxu0 %v6820
    %v6838 = vpop.f32.mrf.mxu0
    %v6839 = vadd.f32 0.0, %v6838
    %6840 = vdwg.mxu0
    %6841 = vmatpush.msra.mxu0 %v6220
    %6842 = vmatpush.msra.mxu0 %v6216
    %6843 = vmatpush.msra.mxu0 %v6212
    %6844 = vmatpush.msra.mxu0 %v6208
    %6845 = vmatpush.msra.mxu0 %v6204
    %6846 = vmatpush.msra.mxu0 %v6200
    %6847 = vmatpush.msra.mxu0 %v6196
    %6848 = vmatpush.msra.mxu0 %v6192
    %6849 = vmatpush.msra.mxu0 %v6188
    %6850 = vmatpush.msra.mxu0 %v6184
    %6851 = vmatpush.msra.mxu0 %v6180
    %6852 = vmatpush.msra.mxu0 %v6176
    %6853 = vmatpush.msra.mxu0 %v6172
    %6854 = vmatpush.msra.mxu0 %v6168
    %6855 = vmatpush.msra.mxu0 %v6164
    %6856 = vmatpush.msra.mxu0 %v6160
    %6857 = vmatmul.f32.gmra.mxu0 %v6820
    %v6858 = vpop.f32.mrf.mxu0
    %v6859 = vadd.f32 0.0, %v6858
    %6860 = vdwg.mxu0
    %6861 = vmatpush.msra.mxu0 %v6221
    %6862 = vmatpush.msra.mxu0 %v6217
    %6863 = vmatpush.msra.mxu0 %v6213
    %6864 = vmatpush.msra.mxu0 %v6209
    %6865 = vmatpush.msra.mxu0 %v6205
    %6866 = vmatpush.msra.mxu0 %v6201
    %6867 = vmatpush.msra.mxu0 %v6197
    %6868 = vmatpush.msra.mxu0 %v6193
    %6869 = vmatpush.msra.mxu0 %v6189
    %6870 = vmatpush.msra.mxu0 %v6185
    %6871 = vmatpush.msra.mxu0 %v6181
    %6872 = vmatpush.msra.mxu0 %v6177
    %6873 = vmatpush.msra.mxu0 %v6173
    %6874 = vmatpush.msra.mxu0 %v6169
    %6875 = vmatpush.msra.mxu0 %v6165
    %6876 = vmatpush.msra.mxu0 %v6161
    %6877 = vmatmul.f32.gmra.mxu0 %v6820
    %v6878 = vpop.f32.mrf.mxu0
    %v6879 = vadd.f32 0.0, %v6878
    %6880 = vdwg.mxu0
    %6881 = vmatpush.msra.mxu0 %v6222
    %6882 = vmatpush.msra.mxu0 %v6218
    %6883 = vmatpush.msra.mxu0 %v6214
    %6884 = vmatpush.msra.mxu0 %v6210
    %6885 = vmatpush.msra.mxu0 %v6206
    %6886 = vmatpush.msra.mxu0 %v6202
    %6887 = vmatpush.msra.mxu0 %v6198
    %6888 = vmatpush.msra.mxu0 %v6194
    %6889 = vmatpush.msra.mxu0 %v6190
    %6890 = vmatpush.msra.mxu0 %v6186
    %6891 = vmatpush.msra.mxu0 %v6182
    %6892 = vmatpush.msra.mxu0 %v6178
    %6893 = vmatpush.msra.mxu0 %v6174
    %6894 = vmatpush.msra.mxu0 %v6170
    %6895 = vmatpush.msra.mxu0 %v6166
    %6896 = vmatpush.msra.mxu0 %v6162
    %6897 = vmatmul.f32.gmra.mxu0 %v6820
    %v6898 = vpop.f32.mrf.mxu0
    %v6899 = vadd.f32 0.0, %v6898
    %6900 = vdwg.mxu0
    %v6901 = vadd.f32 %v6029, %v6839
    %v6902 = vadd.f32 %v6070, %v6859
    %v6903 = vadd.f32 %v6111, %v6879
    %v6904 = vadd.f32 %v6152, %v6899
    %v6905 = vtanh.pop %v6901
    %v6906 = vtanh.pop %v6902
    %v6907 = vtanh.pop %v6903
    %v6908 = vtanh.pop %v6904
    %v6909 = vmul.f32 %v6905, 0.5
    %v6910 = vadd.f32 %v6909, 0.5
    %v6911 = vmul.f32 %v6906, 0.5
    %v6912 = vadd.f32 %v6911, 0.5
    %v6913 = vmul.f32 %v6908, 0.5
    %v6914 = vadd.f32 %v6913, 0.5
    %v6915 = vmul.f32 %v6912, %v6818
    %v6916 = vmul.f32 %v6910, %v6907
    %v6917 = vadd.f32 %v6915, %v6916
    %v6918 = vtanh.pop %v6917
    %v6919 = vmul.f32 %v6914, %v6918
    %6920 = vmatpush.msra.mxu0 %v6219
    %6921 = vmatpush.msra.mxu0 %v6215
    %6922 = vmatpush.msra.mxu0 %v6211
    %6923 = vmatpush.msra.mxu0 %v6207
    %6924 = vmatpush.msra.mxu0 %v6203
    %6925 = vmatpush.msra.mxu0 %v6199
    %6926 = vmatpush.msra.mxu0 %v6195
    %6927 = vmatpush.msra.mxu0 %v6191
    %6928 = vmatpush.msra.mxu0 %v6187
    %6929 = vmatpush.msra.mxu0 %v6183
    %6930 = vmatpush.msra.mxu0 %v6179
    %6931 = vmatpush.msra.mxu0 %v6175
    %6932 = vmatpush.msra.mxu0 %v6171
    %6933 = vmatpush.msra.mxu0 %v6167
    %6934 = vmatpush.msra.mxu0 %v6163
    %6935 = vmatpush.msra.mxu0 %v6159
    %6936 = vmatmul.f32.gmra.mxu0 %v6919
    %v6937 = vpop.f32.mrf.mxu0
    %v6938 = vadd.f32 0.0, %v6937
    %6939 = vdwg.mxu0
    %6940 = vmatpush.msra.mxu0 %v6220
    %6941 = vmatpush.msra.mxu0 %v6216
    %6942 = vmatpush.msra.mxu0 %v6212
    %6943 = vmatpush.msra.mxu0 %v6208
    %6944 = vmatpush.msra.mxu0 %v6204
    %6945 = vmatpush.msra.mxu0 %v6200
    %6946 = vmatpush.msra.mxu0 %v6196
    %6947 = vmatpush.msra.mxu0 %v6192
    %6948 = vmatpush.msra.mxu0 %v6188
    %6949 = vmatpush.msra.mxu0 %v6184
    %6950 = vmatpush.msra.mxu0 %v6180
    %6951 = vmatpush.msra.mxu0 %v6176
    %6952 = vmatpush.msra.mxu0 %v6172
    %6953 = vmatpush.msra.mxu0 %v6168
    %6954 = vmatpush.msra.mxu0 %v6164
    %6955 = vmatpush.msra.mxu0 %v6160
    %6956 = vmatmul.f32.gmra.mxu0 %v6919
    %v6957 = vpop.f32.mrf.mxu0
    %v6958 = vadd.f32 0.0, %v6957
    %6959 = vdwg.mxu0
    %6960 = vmatpush.msra.mxu0 %v6221
    %6961 = vmatpush.msra.mxu0 %v6217
    %6962 = vmatpush.msra.mxu0 %v6213
    %6963 = vmatpush.msra.mxu0 %v6209
    %6964 = vmatpush.msra.mxu0 %v6205
    %6965 = vmatpush.msra.mxu0 %v6201
    %6966 = vmatpush.msra.mxu0 %v6197
    %6967 = vmatpush.msra.mxu0 %v6193
    %6968 = vmatpush.msra.mxu0 %v6189
    %6969 = vmatpush.msra.mxu0 %v6185
    %6970 = vmatpush.msra.mxu0 %v6181
    %6971 = vmatpush.msra.mxu0 %v6177
    %6972 = vmatpush.msra.mxu0 %v6173
    %6973 = vmatpush.msra.mxu0 %v6169
    %6974 = vmatpush.msra.mxu0 %v6165
    %6975 = vmatpush.msra.mxu0 %v6161
    %6976 = vmatmul.f32.gmra.mxu0 %v6919
    %v6977 = vpop.f32.mrf.mxu0
    %v6978 = vadd.f32 0.0, %v6977
    %6979 = vdwg.mxu0
    %6980 = vmatpush.msra.mxu0 %v6222
    %6981 = vmatpush.msra.mxu0 %v6218
    %6982 = vmatpush.msra.mxu0 %v6214
    %6983 = vmatpush.msra.mxu0 %v6210
    %6984 = vmatpush.msra.mxu0 %v6206
    %6985 = vmatpush.msra.mxu0 %v6202
    %6986 = vmatpush.msra.mxu0 %v6198
    %6987 = vmatpush.msra.mxu0 %v6194
    %6988 = vmatpush.msra.mxu0 %v6190
    %6989 = vmatpush.msra.mxu0 %v6186
    %6990 = vmatpush.msra.mxu0 %v6182
    %6991 = vmatpush.msra.mxu0 %v6178
    %6992 = vmatpush.msra.mxu0 %v6174
    %6993 = vmatpush.msra.mxu0 %v6170
    %6994 = vmatpush.msra.mxu0 %v6166
    %6995 = vmatpush.msra.mxu0 %v6162
    %6996 = vmatmul.f32.gmra.mxu0 %v6919
    %v6997 = vpop.f32.mrf.mxu0
    %v6998 = vadd.f32 0.0, %v6997
    %6999 = vdwg.mxu0
    %v7000 = vadd.f32 %v6032, %v6938
    %v7001 = vadd.f32 %v6073, %v6958
    %v7002 = vadd.f32 %v6114, %v6978
    %v7003 = vadd.f32 %v6155, %v6998
    %v7004 = vtanh.pop %v7000
    %v7005 = vtanh.pop %v7001
    %v7006 = vtanh.pop %v7002
    %v7007 = vtanh.pop %v7003
    %v7008 = vmul.f32 %v7004, 0.5
    %v7009 = vadd.f32 %v7008, 0.5
    %v7010 = vmul.f32 %v7005, 0.5
    %v7011 = vadd.f32 %v7010, 0.5
    %v7012 = vmul.f32 %v7007, 0.5
    %v7013 = vadd.f32 %v7012, 0.5
    %v7014 = vmul.f32 %v7011, %v6917
    %v7015 = vmul.f32 %v7009, %v7006
    %v7016 = vadd.f32 %v7014, %v7015
    %v7017 = vtanh.pop %v7016
    %v7018 = vmul.f32 %v7013, %v7017
    %s7019 = scalar_lea.vmem [#allocation5], 32
    %7020 = vst [vmem:[%s7019] sm:$0xff] %v7018
    %s7021 = scalar_lea.vmem [#allocation7], 32
    %7022 = vst [vmem:[%s7021] sm:$0xff] %v7016
    %v7023 = vld [vmem:[%s4] sm:$0xff]
    %v7024 = vld [vmem:[%s4 + $0x8] sm:$0xff]
    %v7025 = vld [vmem:[%s4 + $0x10] sm:$0xff]
    %v7026 = vld [vmem:[%s4 + $0x18] sm:$0xff]
    %v7027 = vld [vmem:[%s4 + $0x20] sm:$0xff]
    %v7028 = vld [vmem:[%s4 + $0x28] sm:$0xff]
    %v7029 = vld [vmem:[%s4 + $0x30] sm:$0xff]
    %v7030 = vld [vmem:[%s4 + $0x38] sm:$0xff]
    %v7031 = vld [vmem:[%s4 + $0x40] sm:$0xff]
    %v7032 = vld [vmem:[%s4 + $0x48] sm:$0xff]
    %v7033 = vld [vmem:[%s4 + $0x50] sm:$0xff]
    %v7034 = vld [vmem:[%s4 + $0x58] sm:$0xff]
    %v7035 = vld [vmem:[%s4 + $0x60] sm:$0xff]
    %v7036 = vld [vmem:[%s4 + $0x68] sm:$0xff]
    %v7037 = vld [vmem:[%s4 + $0x70] sm:$0xff]
    %v7038 = vld [vmem:[%s4 + $0x78] sm:$0xff]
    %v7039 = vld [vmem:[%s5] sm:$0x1]
    %v7041 = vperm.slane %v7039, 0
    %7043 = vmatpush.msra.mxu0 %v7038
    %7044 = vmatpush.msra.mxu0 %v7037
    %7045 = vmatpush.msra.mxu0 %v7036
    %7046 = vmatpush.msra.mxu0 %v7035
    %7047 = vmatpush.msra.mxu0 %v7034
    %7048 = vmatpush.msra.mxu0 %v7033
    %7049 = vmatpush.msra.mxu0 %v7032
    %7050 = vmatpush.msra.mxu0 %v7031
    %7051 = vmatpush.msra.mxu0 %v7030
    %7052 = vmatpush.msra.mxu0 %v7029
    %7053 = vmatpush.msra.mxu0 %v7028
    %7054 = vmatpush.msra.mxu0 %v7027
    %7055 = vmatpush.msra.mxu0 %v7026
    %7056 = vmatpush.msra.mxu0 %v7025
    %7057 = vmatpush.msra.mxu0 %v7024
    %7058 = vmatpush.msra.mxu0 %v7023
    %7059 = vmatmul.f32.gmra.mxu0 %v7018
    %v7060 = vpop.f32.mrf.mxu0
    %v7061 = vadd.f32 %v7041, %v7060
    %7062 = vdwg.mxu0
    %7063 = vst [vmem:[%s8] sm:$0xff] %v7061
    // Predicated region
    $region216: #{mv_lstm_forward.1} parent=1 // pred_check
      _
    $region217: #{mv_lstm_forward.1} parent=1 // pred_check_branch
      %7065 = sbr.rel (0) target = $region219
    $region218: #{mv_lstm_forward.1} parent=1 // pred_region
      _
    $region219: #{mv_lstm_forward.1} parent=1 // pred_fallthru
      _
    // Predicated region
    $region220: #{mv_lstm_forward.1} parent=1 // pred_check
      _
    $region221: #{mv_lstm_forward.1} parent=1 // pred_check_branch
      %7067 = sbr.rel (0) target = $region223
    $region222: #{mv_lstm_forward.1} parent=1 // pred_region
      %7069 = vsyncadd [#allocation6], 0
      %s7070 = sshll.u32 [#allocation5], 4
      %s7071 = int_to_ptr.vmem [resolvable:$true] %s7070
      %s7072 = sshll.u32 %s9, 4
      %s7073 = int_to_ptr.hbm [resolvable:$true] %s7072
      %7078 = dma.vmem_to_hbm [thread:$0]  %s7071, 640, %s7073, [#allocation6], 128, 128, 8
    $region223: #{mv_lstm_forward.1} parent=1 // pred_fallthru
      _
    // Predicated region
    $region224: #{mv_lstm_forward.1} parent=1 // pred_check
      _
    $region225: #{mv_lstm_forward.1} parent=1 // pred_check_branch
      %7080 = sbr.rel (0) target = $region227
    $region226: #{mv_lstm_forward.1} parent=1 // pred_region
      %7082 = vsyncadd [#allocation8], 0
      %s7083 = sshll.u32 [#allocation7], 4
      %s7084 = int_to_ptr.vmem [resolvable:$true] %s7083
      %s7085 = sshll.u32 %s10, 4
      %s7086 = int_to_ptr.hbm [resolvable:$true] %s7085
      %7091 = dma.vmem_to_hbm [thread:$0]  %s7084, 640, %s7086, [#allocation8], 128, 128, 8
    $region227: #{mv_lstm_forward.1} parent=1 // pred_fallthru
      _
    // Predicated region
    $region228: #{mv_lstm_forward.1} parent=1 // pred_check
      _
    $region229: #{mv_lstm_forward.1} parent=1 // pred_check_branch
      %7093 = sbr.rel (0) target = $region231
    $region230: #{mv_lstm_forward.1} parent=1 // pred_region
      _
    $region231: #{mv_lstm_forward.1} parent=1 // pred_fallthru
      _
    // Predicated region
    $region232: #{mv_lstm_forward.1} parent=1 // pred_check
      _
    $region233: #{mv_lstm_forward.1} parent=1 // pred_check_branch
      %7095 = sbr.rel (0) target = $region235
    $region234: #{mv_lstm_forward.1} parent=1 // pred_region
      %7097 = dma.done [#allocation6], 640
    $region235: #{mv_lstm_forward.1} parent=1 // pred_fallthru
      _
    // Predicated region
    $region236: #{mv_lstm_forward.1} parent=1 // pred_check
      _
    $region237: #{mv_lstm_forward.1} parent=1 // pred_check_branch
      %7099 = sbr.rel (0) target = $region239
    $region238: #{mv_lstm_forward.1} parent=1 // pred_region
      %7101 = dma.done [#allocation8], 640
    $region239: #{mv_lstm_forward.1} parent=1 // pred_fallthru
      _
    %7102 = vsyncpa [#allocation6], 1
    %7103 = vsyncpa [#allocation8], 1
  %7104 = vsyncmov [#allocation4]
  %s7105 = vpop.sfrf %7104
  %p7106 = scmp.eq.s32.totalorder %s7105, 0
  %p7107 = pneg %p7106
  %7109 = shalt.err (%p7107)
  %s7110 = scalar_lea.sflag [#allocation4], 1
  %7111 = vsyncmov %s7110
  %s7112 = vpop.sfrf %7111
  %p7113 = scmp.eq.s32.totalorder %s7112, 0
  %p7114 = pneg %p7113
  %7116 = shalt.err (%p7114)
  %s7117 = scalar_lea.sflag [#allocation4], 2
  %7118 = vsyncmov %s7117
  %s7119 = vpop.sfrf %7118
  %p7120 = scmp.eq.s32.totalorder %s7119, 0
  %p7121 = pneg %p7120
  %7123 = shalt.err (%p7121)
  %s7124 = scalar_lea.sflag [#allocation4], 3
  %7125 = vsyncmov %s7124
  %s7126 = vpop.sfrf %7125
  %p7127 = scmp.eq.s32.totalorder %s7126, 0
  %p7128 = pneg %p7127
  %7130 = shalt.err (%p7128)

</llo_original>
